<compile_context>
chip_gen: v7x
topology: tpu7x:2x2x1
jax: 0.10.0
libtpu: 0.0.40
codegen_flags: <defaults>
</compile_context>

<pallas_src>
import functools

import numpy as np
import jax
import jax.numpy as jnp
from jax.experimental import pallas as pl
from jax.experimental.pallas import tpu as pltpu

# ----------------- configuration (small shapes consistent with the ctor) -----------------
DIM = 32                      # dim
RES = (8, 8)                  # input_resolution (H, W)
DEPTH = 2                     # depth  (block 0: shift=0, block 1: shift=window//2)
NUM_HEADS = 4
WINDOW = 4                    # window_size
MLP_RATIO = 4.0
BATCH = 2

H, W = RES
L = H * W
N = WINDOW * WINDOW           # tokens per window
HEAD_DIM = DIM // NUM_HEADS
SCALE = HEAD_DIM ** -0.5      # qk_scale=None -> head_dim ** -0.5
HIDDEN = int(DIM * MLP_RATIO)
EPS = 1e-5
NEG = -1e9                    # "-inf" for cross-window / cross-batch pairs
PARAMS_PER_BLOCK = 13         # bias + 12 weight/bias/LN tensors


# --------------------------- static window geometry / bias pieces -------------------------
def _relative_position_index():
    coords = np.stack(np.meshgrid(np.arange(WINDOW), np.arange(WINDOW), indexing="ij"))
    cf = coords.reshape(2, -1)
    rel = (cf[:, :, None] - cf[:, None, :]).transpose(1, 2, 0).astype(np.int64)
    rel[:, :, 0] += WINDOW - 1
    rel[:, :, 1] += WINDOW - 1
    rel[:, :, 0] *= 2 * WINDOW - 1
    return rel.sum(-1)                                    # (N, N)


REL_INDEX = _relative_position_index()


def _token_geometry(shift):
    """Per original token: shifted-window id, in-window position, shift-mask region."""
    t = np.arange(L)
    h, w = t // W, t % W
    hs, ws = (h - shift) % H, (w - shift) % W             # position after roll(-shift)
    wid = (hs // WINDOW) * (W // WINDOW) + (ws // WINDOW)
    pos = (hs % WINDOW) * WINDOW + (ws % WINDOW)
    if shift > 0:
        img = np.zeros((H, W), np.float32)                # classic Swin img_mask regions
        cnt = 0
        for sh in (slice(0, -WINDOW), slice(-WINDOW, -shift), slice(-shift, None)):
            for sw in (slice(0, -WINDOW), slice(-WINDOW, -shift), slice(-shift, None)):
                img[sh, sw] = cnt
                cnt += 1
        reg = img[hs, ws]
    else:
        reg = np.zeros(L, np.float32)
    return wid, pos, reg


@functools.lru_cache(maxsize=None)
def _static_bias_pieces(shift):
    """(L,L) rel-pos-index map and (L,L) additive mask (0 / -100 / NEG) for one block."""
    wid, pos, reg = _token_geometry(shift)
    rel_idx = REL_INDEX[pos[:, None], pos[None, :]].astype(np.int32)
    same_win = wid[:, None] == wid[None, :]
    add = np.where(same_win, 0.0, NEG).astype(np.float32)
    if shift > 0:
        add = add + np.where(same_win & (reg[:, None] != reg[None, :]),
                             -100.0, 0.0).astype(np.float32)
    return rel_idx, add


def _block_attn_bias(rpb_table, shift, batch):
    """(NUM_HEADS, B*L, B*L) additive bias = rel-pos bias + shift mask + window/batch mask."""
    rel_idx, add = _static_bias_pieces(shift)
    rb = rpb_table[rel_idx.reshape(-1)].reshape(L, L, NUM_HEADS)
    rb = jnp.transpose(rb, (2, 0, 1)) + jnp.asarray(add)[None]         # (nh, L, L)
    bl = batch * L
    full = jnp.full((NUM_HEADS, bl, bl), NEG, jnp.float32)
    for b in range(batch):                                             # batch block-diagonal
        full = full.at[:, b * L:(b + 1) * L, b * L:(b + 1) * L].set(rb)
    return full


# ------------------------------------ in-kernel math --------------------------------------
def _layernorm(x, gamma, beta):
    mu = jnp.mean(x, axis=-1, keepdims=True)
    var = jnp.mean((x - mu) ** 2, axis=-1, keepdims=True)
    return (x - mu) * jax.lax.rsqrt(var + EPS) * gamma + beta


def _erf(x):
    # Abramowitz & Stegun 7.1.26 (|err| < 1.5e-7); only exp/mul/div (EUP/VPU safe).
    a1, a2, a3, a4, a5 = 0.254829592, -0.284496736, 1.421413741, -1.453152027, 1.061405429
    p = 0.3275911
    s = jnp.where(x >= 0.0, 1.0, -1.0)
    ax = jnp.abs(x)
    t = 1.0 / (1.0 + p * ax)
    y = 1.0 - ((((a5 * t + a4) * t + a3) * t + a2) * t + a1) * t * jnp.exp(-ax * ax)
    return s * y


def _gelu(x):
    # exact (erf-based) GELU to match torch.nn.GELU default
    return 0.5 * x * (1.0 + _erf(x * 0.7071067811865476))


def basic_layer_kernel(*refs):
    """Fully fused BasicLayer forward over (B*L, C) tokens, one grid step.

    refs = [x, (bias, ln1_g, ln1_b, w_qkv, b_qkv, w_proj, b_proj,
                ln2_g, ln2_b, w_fc1, b_fc1, w_fc2, b_fc2) * DEPTH, out]
    """
    x_ref, o_ref = refs[0], refs[-1]
    block_refs = refs[1:-1]
    n_blocks = len(block_refs) // PARAMS_PER_BLOCK

    x = x_ref[...].astype(jnp.float32)                    # (BL, C) resident for whole layer
    bl = x.shape[0]

    for blk in range(n_blocks):
        (bias_ref, g1, b1, wqkv, bqkv, wproj, bproj,
         g2, b2, w1, bb1, w2, bb2) = block_refs[blk * PARAMS_PER_BLOCK:
                                                (blk + 1) * PARAMS_PER_BLOCK]

        # ------------------ windowed multi-head attention (masked full attention) ---------
        xn = _layernorm(x, g1[...], b1[...])
        qkv = jnp.dot(xn, wqkv[...], preferred_element_type=jnp.float32) + bqkv[...]
        wp = wproj[...]                                                 # (C, C)
        attn = jnp.zeros((bl, DIM), jnp.float32)
        for h in range(NUM_HEADS):
            q = qkv[:, h * HEAD_DIM:(h + 1) * HEAD_DIM] * SCALE
            k = qkv[:, DIM + h * HEAD_DIM:DIM + (h + 1) * HEAD_DIM]
            v = qkv[:, 2 * DIM + h * HEAD_DIM:2 * DIM + (h + 1) * HEAD_DIM]
            # full (BL, BL) scores; bias carries rel-pos + shift mask + locality mask
            s = jax.lax.dot_general(q, k, (((1,), (1,)), ((), ())),
                                    preferred_element_type=jnp.float32)
            s = s + bias_ref[h]
            s = s - jnp.max(s, axis=-1, keepdims=True)
            p = jnp.exp(s)
            p = p * pl.reciprocal(jnp.sum(p, axis=-1, keepdims=True), approx=False)
            oh = jnp.dot(p, v, preferred_element_type=jnp.float32)      # (BL, head_dim)
            # accumulate through this head's rows of W_proj (no lane concat)
            attn = attn + jnp.dot(oh, wp[h * HEAD_DIM:(h + 1) * HEAD_DIM, :],
                                  preferred_element_type=jnp.float32)
        x = x + attn + bproj[...]                                       # residual #1

        # --------------------------------------- MLP --------------------------------------
        xn2 = _layernorm(x, g2[...], b2[...])
        hdn = jnp.dot(xn2, w1[...], preferred_element_type=jnp.float32) + bb1[...]
        hdn = _gelu(hdn)
        x = x + jnp.dot(hdn, w2[...], preferred_element_type=jnp.float32) + bb2[...]  # res #2

    o_ref[...] = x.astype(o_ref.dtype)


# ------------------------------------ pallas_call wrapper ---------------------------------
def _full_block_spec(shape):
    nd = len(shape)
    return pl.BlockSpec(shape, lambda i, _nd=nd: (0,) * _nd)


def basic_layer_forward(x, act_scaling_factor, params_list):
    """x: (B, H*W, C).  upsample=None -> passthrough; scaling factor threaded unchanged."""
    batch = x.shape[0]
    bl = batch * L
    xf = x.reshape(bl, DIM)

    inputs = [xf]
    for i, p in enumerate(params_list):
        shift = 0 if i % 2 == 0 else WINDOW // 2
        bias = _block_attn_bias(p["rpb_table"], shift, batch)
        inputs += [bias, p["ln1_g"], p["ln1_b"], p["w_qkv"], p["b_qkv"],
                   p["w_proj"], p["b_proj"], p["ln2_g"], p["ln2_b"],
                   p["w_fc1"], p["b_fc1"], p["w_fc2"], p["b_fc2"]]

    out = pl.pallas_call(
        basic_layer_kernel,
        out_shape=jax.ShapeDtypeStruct((bl, DIM), jnp.float32),
        grid=(1,),
        in_specs=[_full_block_spec(a.shape) for a in inputs],
        out_specs=_full_block_spec((bl, DIM)),
        compiler_params=pltpu.CompilerParams(dimension_semantics=("arbitrary",)),
    )(*inputs)

    return out.reshape(batch, L, DIM), act_scaling_factor


# ------------------------- pure-JAX reference (classic windowed path) ---------------------
def reference_forward(x, params_list):
    batch = x.shape[0]

    def win_part(xi):
        xi = xi.reshape(batch, H // WINDOW, WINDOW, W // WINDOW, WINDOW, DIM)
        return jnp.transpose(xi, (0, 1, 3, 2, 4, 5)).reshape(-1, N, DIM)

    def win_rev(wins):
        xi = wins.reshape(batch, H // WINDOW, W // WINDOW, WINDOW, WINDOW, DIM)
        return jnp.transpose(xi, (0, 1, 3, 2, 4, 5)).reshape(batch, H, W, DIM)

    def ln(v, g, b):
        mu = jnp.mean(v, -1, keepdims=True)
        var = jnp.mean((v - mu) ** 2, -1, keepdims=True)
        return (v - mu) * jax.lax.rsqrt(var + EPS) * g + b

    for i, p in enumerate(params_list):
        shift = 0 if i % 2 == 0 else WINDOW // 2
        shortcut = x
        xn = ln(x, p["ln1_g"], p["ln1_b"]).reshape(batch, H, W, DIM)
        if shift > 0:
            xn = jnp.roll(xn, (-shift, -shift), axis=(1, 2))
        xw = win_part(xn)                                               # (B*nW, N, C)
        qkv = (xw @ p["w_qkv"] + p["b_qkv"]).reshape(-1, N, 3, NUM_HEADS, HEAD_DIM)
        qkv = qkv.transpose(2, 0, 3, 1, 4)                              # (3, B*nW, nh, N, hd)
        q, k, v = qkv[0] * SCALE, qkv[1], qkv[2]
        att = jnp.einsum("whnd,whmd->whnm", q, k)
        rpb = p["rpb_table"][REL_INDEX.reshape(-1)].reshape(N, N, NUM_HEADS).transpose(2, 0, 1)
        att = att + rpb[None]
        if shift > 0:
            img = np.zeros((H, W), np.float32)
            cnt = 0
            for sh in (slice(0, -WINDOW), slice(-WINDOW, -shift), slice(-shift, None)):
                for sw in (slice(0, -WINDOW), slice(-WINDOW, -shift), slice(-shift, None)):
                    img[sh, sw] = cnt
                    cnt += 1
            mw = img.reshape(H // WINDOW, WINDOW, W // WINDOW, WINDOW)
            mw = mw.transpose(0, 2, 1, 3).reshape(-1, N)
            am = np.where((mw[:, None, :] - mw[:, :, None]) != 0, -100.0, 0.0).astype(np.float32)
            n_w = am.shape[0]
            att = att.reshape(batch, n_w, NUM_HEADS, N, N) + jnp.asarray(am)[None, :, None]
            att = att.reshape(-1, NUM_HEADS, N, N)
        att = jax.nn.softmax(att, axis=-1)
        out = jnp.einsum("whnm,whmd->whnd", att, v).transpose(0, 2, 1, 3).reshape(-1, N, DIM)
        out = out @ p["w_proj"] + p["b_proj"]
        xr = win_rev(out)
        if shift > 0:
            xr = jnp.roll(xr, (shift, shift), axis=(1, 2))
        x = shortcut + xr.reshape(batch, L, DIM)
        xn2 = ln(x, p["ln2_g"], p["ln2_b"])
        hdn = xn2 @ p["w_fc1"] + p["b_fc1"]
        hdn = 0.5 * hdn * (1.0 + jax.scipy.special.erf(hdn * 0.7071067811865476))
        x = x + hdn @ p["w_fc2"] + p["b_fc2"]
    return x


# ----------------------------------- parameter init ---------------------------------------
def init_block_params(key):
    ks = jax.random.split(key, 7)
    std = 0.1
    return dict(
        ln1_g=jnp.ones((1, DIM), jnp.float32),
        ln1_b=jnp.zeros((1, DIM), jnp.float32),
        w_qkv=jax.random.normal(ks[0], (DIM, 3 * DIM), jnp.float32) * std,
        b_qkv=jax.random.normal(ks[1], (1, 3 * DIM), jnp.float32) * std,
        w_proj=jax.random.normal(ks[2], (DIM, DIM), jnp.float32) * std,
        b_proj=jax.random.normal(ks[3], (1, DIM), jnp.float32) * std,
        rpb_table=jax.random.normal(ks[4], ((2 * WINDOW - 1) ** 2, NUM_HEADS), jnp.float32) * std,
        ln2_g=jnp.ones((1, DIM), jnp.float32),
        ln2_b=jnp.zeros((1, DIM), jnp.float32),
        w_fc1=jax.random.normal(ks[5], (DIM, HIDDEN), jnp.float32) * std,
        b_fc1=jnp.zeros((1, HIDDEN), jnp.float32),
        w_fc2=jax.random.normal(ks[6], (HIDDEN, DIM), jnp.float32) * std,
        b_fc2=jnp.zeros((1, DIM), jnp.float32),
    )


# ------------------------------------------ main -------------------------------------------
if __name__ == "__main__":
    root = jax.random.PRNGKey(0)
    k_x, *k_blocks = jax.random.split(root, 1 + DEPTH)
    params_list = [init_block_params(k) for k in k_blocks]

    x = jax.random.normal(k_x, (BATCH, L, DIM), jnp.float32)        # (B, H*W, C)
    act_scaling_factor = jnp.float32(1.0)

    fwd = jax.jit(basic_layer_forward)
    out, out_scale = fwd(x, act_scaling_factor, params_list)
    jax.block_until_ready(out)
    jax.block_until_ready(out_scale)

    assert out.shape == (BATCH, L, DIM) and out.dtype == jnp.float32

    # numerical sanity check against the classic (roll / window-partition) formulation
    ref = jax.jit(reference_forward)(x, params_list)
    jax.block_until_ready(ref)
    assert jnp.allclose(out, ref, atol=2e-2, rtol=2e-2), \
        float(jnp.max(jnp.abs(out - ref)))

    print("KERNEL_OK")
</pallas_src>

<mosaic_0001>
module attributes {stable_mosaic.version = 11 : i64} {
  func.func @basic_layer_kernel(%arg0: i32, %arg1: memref<128x32xf32, #tpu.memory_space<vmem>>, %arg2: memref<4x128x128xf32, #tpu.memory_space<vmem>>, %arg3: memref<1x32xf32, #tpu.memory_space<vmem>>, %arg4: memref<1x32xf32, #tpu.memory_space<vmem>>, %arg5: memref<32x96xf32, #tpu.memory_space<vmem>>, %arg6: memref<1x96xf32, #tpu.memory_space<vmem>>, %arg7: memref<32x32xf32, #tpu.memory_space<vmem>>, %arg8: memref<1x32xf32, #tpu.memory_space<vmem>>, %arg9: memref<1x32xf32, #tpu.memory_space<vmem>>, %arg10: memref<1x32xf32, #tpu.memory_space<vmem>>, %arg11: memref<32x128xf32, #tpu.memory_space<vmem>>, %arg12: memref<1x128xf32, #tpu.memory_space<vmem>>, %arg13: memref<128x32xf32, #tpu.memory_space<vmem>>, %arg14: memref<1x32xf32, #tpu.memory_space<vmem>>, %arg15: memref<4x128x128xf32, #tpu.memory_space<vmem>>, %arg16: memref<1x32xf32, #tpu.memory_space<vmem>>, %arg17: memref<1x32xf32, #tpu.memory_space<vmem>>, %arg18: memref<32x96xf32, #tpu.memory_space<vmem>>, %arg19: memref<1x96xf32, #tpu.memory_space<vmem>>, %arg20: memref<32x32xf32, #tpu.memory_space<vmem>>, %arg21: memref<1x32xf32, #tpu.memory_space<vmem>>, %arg22: memref<1x32xf32, #tpu.memory_space<vmem>>, %arg23: memref<1x32xf32, #tpu.memory_space<vmem>>, %arg24: memref<32x128xf32, #tpu.memory_space<vmem>>, %arg25: memref<1x128xf32, #tpu.memory_space<vmem>>, %arg26: memref<128x32xf32, #tpu.memory_space<vmem>>, %arg27: memref<1x32xf32, #tpu.memory_space<vmem>>, %arg28: memref<128x32xf32, #tpu.memory_space<vmem>>) attributes {dimension_semantics = [#tpu.dimension_semantics<arbitrary>], iteration_bounds = array<i64: 1>, scalar_prefetch = 0 : i64, scratch_operands = 0 : i64, tpu.core_type = #tpu.core_type<tc>, window_params = [{pipeline_mode = #tpu.pipeline_mode<synchronous>, transform_indices = @transform_0, window_bounds = array<i64: 128, 32>}, {pipeline_mode = #tpu.pipeline_mode<synchronous>, transform_indices = @transform_1, window_bounds = array<i64: 4, 128, 128>}, {pipeline_mode = #tpu.pipeline_mode<synchronous>, transform_indices = @transform_2, window_bounds = array<i64: 1, 32>}, {pipeline_mode = #tpu.pipeline_mode<synchronous>, transform_indices = @transform_3, window_bounds = array<i64: 1, 32>}, {pipeline_mode = #tpu.pipeline_mode<synchronous>, transform_indices = @transform_4, window_bounds = array<i64: 32, 96>}, {pipeline_mode = #tpu.pipeline_mode<synchronous>, transform_indices = @transform_5, window_bounds = array<i64: 1, 96>}, {pipeline_mode = #tpu.pipeline_mode<synchronous>, transform_indices = @transform_6, window_bounds = array<i64: 32, 32>}, {pipeline_mode = #tpu.pipeline_mode<synchronous>, transform_indices = @transform_7, window_bounds = array<i64: 1, 32>}, {pipeline_mode = #tpu.pipeline_mode<synchronous>, transform_indices = @transform_8, window_bounds = array<i64: 1, 32>}, {pipeline_mode = #tpu.pipeline_mode<synchronous>, transform_indices = @transform_9, window_bounds = array<i64: 1, 32>}, {pipeline_mode = #tpu.pipeline_mode<synchronous>, transform_indices = @transform_10, window_bounds = array<i64: 32, 128>}, {pipeline_mode = #tpu.pipeline_mode<synchronous>, transform_indices = @transform_11, window_bounds = array<i64: 1, 128>}, {pipeline_mode = #tpu.pipeline_mode<synchronous>, transform_indices = @transform_12, window_bounds = array<i64: 128, 32>}, {pipeline_mode = #tpu.pipeline_mode<synchronous>, transform_indices = @transform_13, window_bounds = array<i64: 1, 32>}, {pipeline_mode = #tpu.pipeline_mode<synchronous>, transform_indices = @transform_14, window_bounds = array<i64: 4, 128, 128>}, {pipeline_mode = #tpu.pipeline_mode<synchronous>, transform_indices = @transform_15, window_bounds = array<i64: 1, 32>}, {pipeline_mode = #tpu.pipeline_mode<synchronous>, transform_indices = @transform_16, window_bounds = array<i64: 1, 32>}, {pipeline_mode = #tpu.pipeline_mode<synchronous>, transform_indices = @transform_17, window_bounds = array<i64: 32, 96>}, {pipeline_mode = #tpu.pipeline_mode<synchronous>, transform_indices = @transform_18, window_bounds = array<i64: 1, 96>}, {pipeline_mode = #tpu.pipeline_mode<synchronous>, transform_indices = @transform_19, window_bounds = array<i64: 32, 32>}, {pipeline_mode = #tpu.pipeline_mode<synchronous>, transform_indices = @transform_20, window_bounds = array<i64: 1, 32>}, {pipeline_mode = #tpu.pipeline_mode<synchronous>, transform_indices = @transform_21, window_bounds = array<i64: 1, 32>}, {pipeline_mode = #tpu.pipeline_mode<synchronous>, transform_indices = @transform_22, window_bounds = array<i64: 1, 32>}, {pipeline_mode = #tpu.pipeline_mode<synchronous>, transform_indices = @transform_23, window_bounds = array<i64: 32, 128>}, {pipeline_mode = #tpu.pipeline_mode<synchronous>, transform_indices = @transform_24, window_bounds = array<i64: 1, 128>}, {pipeline_mode = #tpu.pipeline_mode<synchronous>, transform_indices = @transform_25, window_bounds = array<i64: 128, 32>}, {pipeline_mode = #tpu.pipeline_mode<synchronous>, transform_indices = @transform_26, window_bounds = array<i64: 1, 32>}, {pipeline_mode = #tpu.pipeline_mode<synchronous>, transform_indices = @transform_27, window_bounds = array<i64: 128, 32>}]} {
    %c0 = arith.constant 0 : index
    %c0_0 = arith.constant 0 : index
    %0 = vector.load %arg1[%c0, %c0_0] : memref<128x32xf32, #tpu.memory_space<vmem>>, vector<128x32xf32>
    %c0_1 = arith.constant 0 : index
    %c0_2 = arith.constant 0 : index
    %1 = vector.load %arg3[%c0_1, %c0_2] : memref<1x32xf32, #tpu.memory_space<vmem>>, vector<1x32xf32>
    %c0_3 = arith.constant 0 : index
    %c0_4 = arith.constant 0 : index
    %2 = vector.load %arg4[%c0_3, %c0_4] : memref<1x32xf32, #tpu.memory_space<vmem>>, vector<1x32xf32>
    %cst = arith.constant dense<0.000000e+00> : vector<128xf32>
    %3 = vector.multi_reduction <add>, %0, %cst [1] : vector<128x32xf32> to vector<128xf32>
    %4 = vector.shape_cast %3 : vector<128xf32> to vector<128x1xf32>
    %cst_5 = arith.constant 3.200000e+01 : f32
    %5 = vector.broadcast %cst_5 : f32 to vector<128x1xf32>
    %6 = arith.divf %4, %5 : vector<128x1xf32>
    %7 = vector.broadcast %6 : vector<128x1xf32> to vector<128x32xf32>
    %8 = arith.subf %0, %7 : vector<128x32xf32>
    %9 = arith.mulf %8, %8 : vector<128x32xf32>
    %cst_6 = arith.constant dense<0.000000e+00> : vector<128xf32>
    %10 = vector.multi_reduction <add>, %9, %cst_6 [1] : vector<128x32xf32> to vector<128xf32>
    %11 = vector.shape_cast %10 : vector<128xf32> to vector<128x1xf32>
    %cst_7 = arith.constant 3.200000e+01 : f32
    %12 = vector.broadcast %cst_7 : f32 to vector<128x1xf32>
    %13 = arith.divf %11, %12 : vector<128x1xf32>
    %14 = vector.broadcast %6 : vector<128x1xf32> to vector<128x32xf32>
    %15 = arith.subf %0, %14 : vector<128x32xf32>
    %cst_8 = arith.constant 9.99999974E-6 : f32
    %16 = vector.broadcast %cst_8 : f32 to vector<128x1xf32>
    %17 = arith.addf %13, %16 : vector<128x1xf32>
    %18 = math.rsqrt %17 : vector<128x1xf32>
    %19 = vector.broadcast %18 : vector<128x1xf32> to vector<128x32xf32>
    %20 = arith.mulf %15, %19 : vector<128x32xf32>
    %21 = vector.broadcast %1 : vector<1x32xf32> to vector<128x32xf32>
    %22 = arith.mulf %20, %21 : vector<128x32xf32>
    %23 = vector.broadcast %2 : vector<1x32xf32> to vector<128x32xf32>
    %24 = arith.addf %22, %23 : vector<128x32xf32>
    %c0_9 = arith.constant 0 : index
    %c0_10 = arith.constant 0 : index
    %25 = vector.load %arg5[%c0_9, %c0_10] : memref<32x96xf32, #tpu.memory_space<vmem>>, vector<32x96xf32>
    %cst_11 = arith.constant dense<0.000000e+00> : vector<128x96xf32>
    %26 = tpu.matmul %24, %25, %cst_11 {dimension_numbers = #tpu.dot_dimension_numbers<[1], [0], [0], [1], [0, 0, 1, 1], [], []>} : vector<128x32xf32>, vector<32x96xf32>, vector<128x96xf32> -> vector<128x96xf32>
    %c0_12 = arith.constant 0 : index
    %c0_13 = arith.constant 0 : index
    %27 = vector.load %arg6[%c0_12, %c0_13] : memref<1x96xf32, #tpu.memory_space<vmem>>, vector<1x96xf32>
    %28 = vector.broadcast %27 : vector<1x96xf32> to vector<128x96xf32>
    %29 = arith.addf %26, %28 : vector<128x96xf32>
    %c0_14 = arith.constant 0 : index
    %c0_15 = arith.constant 0 : index
    %30 = vector.load %arg7[%c0_14, %c0_15] : memref<32x32xf32, #tpu.memory_space<vmem>>, vector<32x32xf32>
    %cst_16 = arith.constant 0.000000e+00 : f32
    %31 = vector.broadcast %cst_16 : f32 to vector<128x32xf32>
    %32 = vector.extract_strided_slice %29 {offsets = [0, 0], sizes = [128, 8], strides = [1, 1]} : vector<128x96xf32> to vector<128x8xf32>
    %cst_17 = arith.constant 0.353553385 : f32
    %33 = vector.broadcast %cst_17 : f32 to vector<128x8xf32>
    %34 = arith.mulf %32, %33 : vector<128x8xf32>
    %35 = vector.extract_strided_slice %29 {offsets = [0, 32], sizes = [128, 8], strides = [1, 1]} : vector<128x96xf32> to vector<128x8xf32>
    %36 = vector.extract_strided_slice %29 {offsets = [0, 64], sizes = [128, 8], strides = [1, 1]} : vector<128x96xf32> to vector<128x8xf32>
    %cst_18 = arith.constant dense<0.000000e+00> : vector<128x128xf32>
    %37 = tpu.matmul %34, %35, %cst_18 {dimension_numbers = #tpu.dot_dimension_numbers<[1], [1], [0], [0], [0, 0, 1, 0], [], []>} : vector<128x8xf32>, vector<128x8xf32>, vector<128x128xf32> -> vector<128x128xf32>
    %c0_19 = arith.constant 0 : index
    %c0_20 = arith.constant 0 : index
    %c0_21 = arith.constant 0 : index
    %38 = vector.load %arg2[%c0_19, %c0_20, %c0_21] : memref<4x128x128xf32, #tpu.memory_space<vmem>>, vector<1x128x128xf32>
    %39 = vector.shape_cast %38 : vector<1x128x128xf32> to vector<128x128xf32>
    %40 = arith.addf %37, %39 : vector<128x128xf32>
    %cst_22 = arith.constant dense<0xFF800000> : vector<128xf32>
    %41 = vector.multi_reduction <maximumf>, %40, %cst_22 [1] : vector<128x128xf32> to vector<128xf32>
    %42 = vector.shape_cast %41 : vector<128xf32> to vector<128x1xf32>
    %43 = vector.broadcast %42 : vector<128x1xf32> to vector<128x128xf32>
    %44 = arith.subf %40, %43 : vector<128x128xf32>
    %45 = math.exp %44 : vector<128x128xf32>
    %cst_23 = arith.constant dense<0.000000e+00> : vector<128xf32>
    %46 = vector.multi_reduction <add>, %45, %cst_23 [1] : vector<128x128xf32> to vector<128xf32>
    %47 = vector.shape_cast %46 : vector<128xf32> to vector<128x1xf32>
    %48 = tpu.reciprocal %47 : vector<128x1xf32> -> vector<128x1xf32>
    %49 = vector.broadcast %48 : vector<128x1xf32> to vector<128x128xf32>
    %50 = arith.mulf %45, %49 : vector<128x128xf32>
    %cst_24 = arith.constant dense<0.000000e+00> : vector<128x8xf32>
    %51 = tpu.matmul %50, %36, %cst_24 {dimension_numbers = #tpu.dot_dimension_numbers<[1], [0], [0], [1], [0, 0, 1, 1], [], []>} : vector<128x128xf32>, vector<128x8xf32>, vector<128x8xf32> -> vector<128x8xf32>
    %52 = vector.extract_strided_slice %30 {offsets = [0, 0], sizes = [8, 32], strides = [1, 1]} : vector<32x32xf32> to vector<8x32xf32>
    %cst_25 = arith.constant dense<0.000000e+00> : vector<128x32xf32>
    %53 = tpu.matmul %51, %52, %cst_25 {dimension_numbers = #tpu.dot_dimension_numbers<[1], [0], [0], [1], [0, 0, 1, 1], [], []>} : vector<128x8xf32>, vector<8x32xf32>, vector<128x32xf32> -> vector<128x32xf32>
    %54 = arith.addf %31, %53 : vector<128x32xf32>
    %55 = vector.extract_strided_slice %29 {offsets = [0, 8], sizes = [128, 8], strides = [1, 1]} : vector<128x96xf32> to vector<128x8xf32>
    %cst_26 = arith.constant 0.353553385 : f32
    %56 = vector.broadcast %cst_26 : f32 to vector<128x8xf32>
    %57 = arith.mulf %55, %56 : vector<128x8xf32>
    %58 = vector.extract_strided_slice %29 {offsets = [0, 40], sizes = [128, 8], strides = [1, 1]} : vector<128x96xf32> to vector<128x8xf32>
    %59 = vector.extract_strided_slice %29 {offsets = [0, 72], sizes = [128, 8], strides = [1, 1]} : vector<128x96xf32> to vector<128x8xf32>
    %cst_27 = arith.constant dense<0.000000e+00> : vector<128x128xf32>
    %60 = tpu.matmul %57, %58, %cst_27 {dimension_numbers = #tpu.dot_dimension_numbers<[1], [1], [0], [0], [0, 0, 1, 0], [], []>} : vector<128x8xf32>, vector<128x8xf32>, vector<128x128xf32> -> vector<128x128xf32>
    %c1 = arith.constant 1 : index
    %c0_28 = arith.constant 0 : index
    %c0_29 = arith.constant 0 : index
    %61 = vector.load %arg2[%c1, %c0_28, %c0_29] : memref<4x128x128xf32, #tpu.memory_space<vmem>>, vector<1x128x128xf32>
    %62 = vector.shape_cast %61 : vector<1x128x128xf32> to vector<128x128xf32>
    %63 = arith.addf %60, %62 : vector<128x128xf32>
    %cst_30 = arith.constant dense<0xFF800000> : vector<128xf32>
    %64 = vector.multi_reduction <maximumf>, %63, %cst_30 [1] : vector<128x128xf32> to vector<128xf32>
    %65 = vector.shape_cast %64 : vector<128xf32> to vector<128x1xf32>
    %66 = vector.broadcast %65 : vector<128x1xf32> to vector<128x128xf32>
    %67 = arith.subf %63, %66 : vector<128x128xf32>
    %68 = math.exp %67 : vector<128x128xf32>
    %cst_31 = arith.constant dense<0.000000e+00> : vector<128xf32>
    %69 = vector.multi_reduction <add>, %68, %cst_31 [1] : vector<128x128xf32> to vector<128xf32>
    %70 = vector.shape_cast %69 : vector<128xf32> to vector<128x1xf32>
    %71 = tpu.reciprocal %70 : vector<128x1xf32> -> vector<128x1xf32>
    %72 = vector.broadcast %71 : vector<128x1xf32> to vector<128x128xf32>
    %73 = arith.mulf %68, %72 : vector<128x128xf32>
    %cst_32 = arith.constant dense<0.000000e+00> : vector<128x8xf32>
    %74 = tpu.matmul %73, %59, %cst_32 {dimension_numbers = #tpu.dot_dimension_numbers<[1], [0], [0], [1], [0, 0, 1, 1], [], []>} : vector<128x128xf32>, vector<128x8xf32>, vector<128x8xf32> -> vector<128x8xf32>
    %75 = vector.extract_strided_slice %30 {offsets = [8, 0], sizes = [8, 32], strides = [1, 1]} : vector<32x32xf32> to vector<8x32xf32>
    %cst_33 = arith.constant dense<0.000000e+00> : vector<128x32xf32>
    %76 = tpu.matmul %74, %75, %cst_33 {dimension_numbers = #tpu.dot_dimension_numbers<[1], [0], [0], [1], [0, 0, 1, 1], [], []>} : vector<128x8xf32>, vector<8x32xf32>, vector<128x32xf32> -> vector<128x32xf32>
    %77 = arith.addf %54, %76 : vector<128x32xf32>
    %78 = vector.extract_strided_slice %29 {offsets = [0, 16], sizes = [128, 8], strides = [1, 1]} : vector<128x96xf32> to vector<128x8xf32>
    %cst_34 = arith.constant 0.353553385 : f32
    %79 = vector.broadcast %cst_34 : f32 to vector<128x8xf32>
    %80 = arith.mulf %78, %79 : vector<128x8xf32>
    %81 = vector.extract_strided_slice %29 {offsets = [0, 48], sizes = [128, 8], strides = [1, 1]} : vector<128x96xf32> to vector<128x8xf32>
    %82 = vector.extract_strided_slice %29 {offsets = [0, 80], sizes = [128, 8], strides = [1, 1]} : vector<128x96xf32> to vector<128x8xf32>
    %cst_35 = arith.constant dense<0.000000e+00> : vector<128x128xf32>
    %83 = tpu.matmul %80, %81, %cst_35 {dimension_numbers = #tpu.dot_dimension_numbers<[1], [1], [0], [0], [0, 0, 1, 0], [], []>} : vector<128x8xf32>, vector<128x8xf32>, vector<128x128xf32> -> vector<128x128xf32>
    %c2 = arith.constant 2 : index
    %c0_36 = arith.constant 0 : index
    %c0_37 = arith.constant 0 : index
    %84 = vector.load %arg2[%c2, %c0_36, %c0_37] : memref<4x128x128xf32, #tpu.memory_space<vmem>>, vector<1x128x128xf32>
    %85 = vector.shape_cast %84 : vector<1x128x128xf32> to vector<128x128xf32>
    %86 = arith.addf %83, %85 : vector<128x128xf32>
    %cst_38 = arith.constant dense<0xFF800000> : vector<128xf32>
    %87 = vector.multi_reduction <maximumf>, %86, %cst_38 [1] : vector<128x128xf32> to vector<128xf32>
    %88 = vector.shape_cast %87 : vector<128xf32> to vector<128x1xf32>
    %89 = vector.broadcast %88 : vector<128x1xf32> to vector<128x128xf32>
    %90 = arith.subf %86, %89 : vector<128x128xf32>
    %91 = math.exp %90 : vector<128x128xf32>
    %cst_39 = arith.constant dense<0.000000e+00> : vector<128xf32>
    %92 = vector.multi_reduction <add>, %91, %cst_39 [1] : vector<128x128xf32> to vector<128xf32>
    %93 = vector.shape_cast %92 : vector<128xf32> to vector<128x1xf32>
    %94 = tpu.reciprocal %93 : vector<128x1xf32> -> vector<128x1xf32>
    %95 = vector.broadcast %94 : vector<128x1xf32> to vector<128x128xf32>
    %96 = arith.mulf %91, %95 : vector<128x128xf32>
    %cst_40 = arith.constant dense<0.000000e+00> : vector<128x8xf32>
    %97 = tpu.matmul %96, %82, %cst_40 {dimension_numbers = #tpu.dot_dimension_numbers<[1], [0], [0], [1], [0, 0, 1, 1], [], []>} : vector<128x128xf32>, vector<128x8xf32>, vector<128x8xf32> -> vector<128x8xf32>
    %98 = vector.extract_strided_slice %30 {offsets = [16, 0], sizes = [8, 32], strides = [1, 1]} : vector<32x32xf32> to vector<8x32xf32>
    %cst_41 = arith.constant dense<0.000000e+00> : vector<128x32xf32>
    %99 = tpu.matmul %97, %98, %cst_41 {dimension_numbers = #tpu.dot_dimension_numbers<[1], [0], [0], [1], [0, 0, 1, 1], [], []>} : vector<128x8xf32>, vector<8x32xf32>, vector<128x32xf32> -> vector<128x32xf32>
    %100 = arith.addf %77, %99 : vector<128x32xf32>
    %101 = vector.extract_strided_slice %29 {offsets = [0, 24], sizes = [128, 8], strides = [1, 1]} : vector<128x96xf32> to vector<128x8xf32>
    %cst_42 = arith.constant 0.353553385 : f32
    %102 = vector.broadcast %cst_42 : f32 to vector<128x8xf32>
    %103 = arith.mulf %101, %102 : vector<128x8xf32>
    %104 = vector.extract_strided_slice %29 {offsets = [0, 56], sizes = [128, 8], strides = [1, 1]} : vector<128x96xf32> to vector<128x8xf32>
    %105 = vector.extract_strided_slice %29 {offsets = [0, 88], sizes = [128, 8], strides = [1, 1]} : vector<128x96xf32> to vector<128x8xf32>
    %cst_43 = arith.constant dense<0.000000e+00> : vector<128x128xf32>
    %106 = tpu.matmul %103, %104, %cst_43 {dimension_numbers = #tpu.dot_dimension_numbers<[1], [1], [0], [0], [0, 0, 1, 0], [], []>} : vector<128x8xf32>, vector<128x8xf32>, vector<128x128xf32> -> vector<128x128xf32>
    %c3 = arith.constant 3 : index
    %c0_44 = arith.constant 0 : index
    %c0_45 = arith.constant 0 : index
    %107 = vector.load %arg2[%c3, %c0_44, %c0_45] : memref<4x128x128xf32, #tpu.memory_space<vmem>>, vector<1x128x128xf32>
    %108 = vector.shape_cast %107 : vector<1x128x128xf32> to vector<128x128xf32>
    %109 = arith.addf %106, %108 : vector<128x128xf32>
    %cst_46 = arith.constant dense<0xFF800000> : vector<128xf32>
    %110 = vector.multi_reduction <maximumf>, %109, %cst_46 [1] : vector<128x128xf32> to vector<128xf32>
    %111 = vector.shape_cast %110 : vector<128xf32> to vector<128x1xf32>
    %112 = vector.broadcast %111 : vector<128x1xf32> to vector<128x128xf32>
    %113 = arith.subf %109, %112 : vector<128x128xf32>
    %114 = math.exp %113 : vector<128x128xf32>
    %cst_47 = arith.constant dense<0.000000e+00> : vector<128xf32>
    %115 = vector.multi_reduction <add>, %114, %cst_47 [1] : vector<128x128xf32> to vector<128xf32>
    %116 = vector.shape_cast %115 : vector<128xf32> to vector<128x1xf32>
    %117 = tpu.reciprocal %116 : vector<128x1xf32> -> vector<128x1xf32>
    %118 = vector.broadcast %117 : vector<128x1xf32> to vector<128x128xf32>
    %119 = arith.mulf %114, %118 : vector<128x128xf32>
    %cst_48 = arith.constant dense<0.000000e+00> : vector<128x8xf32>
    %120 = tpu.matmul %119, %105, %cst_48 {dimension_numbers = #tpu.dot_dimension_numbers<[1], [0], [0], [1], [0, 0, 1, 1], [], []>} : vector<128x128xf32>, vector<128x8xf32>, vector<128x8xf32> -> vector<128x8xf32>
    %121 = vector.extract_strided_slice %30 {offsets = [24, 0], sizes = [8, 32], strides = [1, 1]} : vector<32x32xf32> to vector<8x32xf32>
    %cst_49 = arith.constant dense<0.000000e+00> : vector<128x32xf32>
    %122 = tpu.matmul %120, %121, %cst_49 {dimension_numbers = #tpu.dot_dimension_numbers<[1], [0], [0], [1], [0, 0, 1, 1], [], []>} : vector<128x8xf32>, vector<8x32xf32>, vector<128x32xf32> -> vector<128x32xf32>
    %123 = arith.addf %100, %122 : vector<128x32xf32>
    %124 = arith.addf %0, %123 : vector<128x32xf32>
    %c0_50 = arith.constant 0 : index
    %c0_51 = arith.constant 0 : index
    %125 = vector.load %arg8[%c0_50, %c0_51] : memref<1x32xf32, #tpu.memory_space<vmem>>, vector<1x32xf32>
    %126 = vector.broadcast %125 : vector<1x32xf32> to vector<128x32xf32>
    %127 = arith.addf %124, %126 : vector<128x32xf32>
    %c0_52 = arith.constant 0 : index
    %c0_53 = arith.constant 0 : index
    %128 = vector.load %arg9[%c0_52, %c0_53] : memref<1x32xf32, #tpu.memory_space<vmem>>, vector<1x32xf32>
    %c0_54 = arith.constant 0 : index
    %c0_55 = arith.constant 0 : index
    %129 = vector.load %arg10[%c0_54, %c0_55] : memref<1x32xf32, #tpu.memory_space<vmem>>, vector<1x32xf32>
    %cst_56 = arith.constant dense<0.000000e+00> : vector<128xf32>
    %130 = vector.multi_reduction <add>, %127, %cst_56 [1] : vector<128x32xf32> to vector<128xf32>
    %131 = vector.shape_cast %130 : vector<128xf32> to vector<128x1xf32>
    %cst_57 = arith.constant 3.200000e+01 : f32
    %132 = vector.broadcast %cst_57 : f32 to vector<128x1xf32>
    %133 = arith.divf %131, %132 : vector<128x1xf32>
    %134 = vector.broadcast %133 : vector<128x1xf32> to vector<128x32xf32>
    %135 = arith.subf %127, %134 : vector<128x32xf32>
    %136 = arith.mulf %135, %135 : vector<128x32xf32>
    %cst_58 = arith.constant dense<0.000000e+00> : vector<128xf32>
    %137 = vector.multi_reduction <add>, %136, %cst_58 [1] : vector<128x32xf32> to vector<128xf32>
    %138 = vector.shape_cast %137 : vector<128xf32> to vector<128x1xf32>
    %cst_59 = arith.constant 3.200000e+01 : f32
    %139 = vector.broadcast %cst_59 : f32 to vector<128x1xf32>
    %140 = arith.divf %138, %139 : vector<128x1xf32>
    %141 = vector.broadcast %133 : vector<128x1xf32> to vector<128x32xf32>
    %142 = arith.subf %127, %141 : vector<128x32xf32>
    %cst_60 = arith.constant 9.99999974E-6 : f32
    %143 = vector.broadcast %cst_60 : f32 to vector<128x1xf32>
    %144 = arith.addf %140, %143 : vector<128x1xf32>
    %145 = math.rsqrt %144 : vector<128x1xf32>
    %146 = vector.broadcast %145 : vector<128x1xf32> to vector<128x32xf32>
    %147 = arith.mulf %142, %146 : vector<128x32xf32>
    %148 = vector.broadcast %128 : vector<1x32xf32> to vector<128x32xf32>
    %149 = arith.mulf %147, %148 : vector<128x32xf32>
    %150 = vector.broadcast %129 : vector<1x32xf32> to vector<128x32xf32>
    %151 = arith.addf %149, %150 : vector<128x32xf32>
    %c0_61 = arith.constant 0 : index
    %c0_62 = arith.constant 0 : index
    %152 = vector.load %arg11[%c0_61, %c0_62] : memref<32x128xf32, #tpu.memory_space<vmem>>, vector<32x128xf32>
    %cst_63 = arith.constant dense<0.000000e+00> : vector<128x128xf32>
    %153 = tpu.matmul %151, %152, %cst_63 {dimension_numbers = #tpu.dot_dimension_numbers<[1], [0], [0], [1], [0, 0, 1, 1], [], []>} : vector<128x32xf32>, vector<32x128xf32>, vector<128x128xf32> -> vector<128x128xf32>
    %c0_64 = arith.constant 0 : index
    %c0_65 = arith.constant 0 : index
    %154 = vector.load %arg12[%c0_64, %c0_65] : memref<1x128xf32, #tpu.memory_space<vmem>>, vector<1x128xf32>
    %155 = vector.broadcast %154 : vector<1x128xf32> to vector<128x128xf32>
    %156 = arith.addf %153, %155 : vector<128x128xf32>
    %cst_66 = arith.constant 5.000000e-01 : f32
    %157 = vector.broadcast %cst_66 : f32 to vector<128x128xf32>
    %158 = arith.mulf %157, %156 : vector<128x128xf32>
    %cst_67 = arith.constant 0.707106769 : f32
    %159 = vector.broadcast %cst_67 : f32 to vector<128x128xf32>
    %160 = arith.mulf %156, %159 : vector<128x128xf32>
    %cst_68 = arith.constant 0.000000e+00 : f32
    %161 = vector.broadcast %cst_68 : f32 to vector<128x128xf32>
    %162 = arith.cmpf oge, %160, %161 : vector<128x128xf32>
    %cst_69 = arith.constant 1.000000e+00 : f32
    %cst_70 = arith.constant -1.000000e+00 : f32
    %163 = vector.broadcast %cst_69 : f32 to vector<128x128xf32>
    %164 = vector.broadcast %cst_70 : f32 to vector<128x128xf32>
    %165 = arith.select %162, %163, %164 : vector<128x128xi1>, vector<128x128xf32>
    %166 = math.absf %160 : vector<128x128xf32>
    %cst_71 = arith.constant 0.327591091 : f32
    %167 = vector.broadcast %cst_71 : f32 to vector<128x128xf32>
    %168 = arith.mulf %167, %166 : vector<128x128xf32>
    %cst_72 = arith.constant 1.000000e+00 : f32
    %169 = vector.broadcast %cst_72 : f32 to vector<128x128xf32>
    %170 = arith.addf %169, %168 : vector<128x128xf32>
    %cst_73 = arith.constant 1.000000e+00 : f32
    %171 = vector.broadcast %cst_73 : f32 to vector<128x128xf32>
    %172 = arith.divf %171, %170 : vector<128x128xf32>
    %cst_74 = arith.constant 1.06140542 : f32
    %173 = vector.broadcast %cst_74 : f32 to vector<128x128xf32>
    %174 = arith.mulf %173, %172 : vector<128x128xf32>
    %cst_75 = arith.constant -1.45315206 : f32
    %175 = vector.broadcast %cst_75 : f32 to vector<128x128xf32>
    %176 = arith.addf %174, %175 : vector<128x128xf32>
    %177 = arith.mulf %176, %172 : vector<128x128xf32>
    %cst_76 = arith.constant 1.42141378 : f32
    %178 = vector.broadcast %cst_76 : f32 to vector<128x128xf32>
    %179 = arith.addf %177, %178 : vector<128x128xf32>
    %180 = arith.mulf %179, %172 : vector<128x128xf32>
    %cst_77 = arith.constant -0.284496725 : f32
    %181 = vector.broadcast %cst_77 : f32 to vector<128x128xf32>
    %182 = arith.addf %180, %181 : vector<128x128xf32>
    %183 = arith.mulf %182, %172 : vector<128x128xf32>
    %cst_78 = arith.constant 0.254829586 : f32
    %184 = vector.broadcast %cst_78 : f32 to vector<128x128xf32>
    %185 = arith.addf %183, %184 : vector<128x128xf32>
    %186 = arith.mulf %185, %172 : vector<128x128xf32>
    %cst_79 = arith.constant 0.000000e+00 : f32
    %187 = vector.broadcast %cst_79 : f32 to vector<128x128xf32>
    %188 = arith.subf %187, %166 : vector<128x128xf32>
    %189 = arith.mulf %188, %166 : vector<128x128xf32>
    %190 = math.exp %189 : vector<128x128xf32>
    %191 = arith.mulf %186, %190 : vector<128x128xf32>
    %cst_80 = arith.constant 1.000000e+00 : f32
    %192 = vector.broadcast %cst_80 : f32 to vector<128x128xf32>
    %193 = arith.subf %192, %191 : vector<128x128xf32>
    %194 = arith.mulf %165, %193 : vector<128x128xf32>
    %cst_81 = arith.constant 1.000000e+00 : f32
    %195 = vector.broadcast %cst_81 : f32 to vector<128x128xf32>
    %196 = arith.addf %195, %194 : vector<128x128xf32>
    %197 = arith.mulf %158, %196 : vector<128x128xf32>
    %c0_82 = arith.constant 0 : index
    %c0_83 = arith.constant 0 : index
    %198 = vector.load %arg13[%c0_82, %c0_83] : memref<128x32xf32, #tpu.memory_space<vmem>>, vector<128x32xf32>
    %cst_84 = arith.constant dense<0.000000e+00> : vector<128x32xf32>
    %199 = tpu.matmul %197, %198, %cst_84 {dimension_numbers = #tpu.dot_dimension_numbers<[1], [0], [0], [1], [0, 0, 1, 1], [], []>} : vector<128x128xf32>, vector<128x32xf32>, vector<128x32xf32> -> vector<128x32xf32>
    %200 = arith.addf %127, %199 : vector<128x32xf32>
    %c0_85 = arith.constant 0 : index
    %c0_86 = arith.constant 0 : index
    %201 = vector.load %arg14[%c0_85, %c0_86] : memref<1x32xf32, #tpu.memory_space<vmem>>, vector<1x32xf32>
    %202 = vector.broadcast %201 : vector<1x32xf32> to vector<128x32xf32>
    %203 = arith.addf %200, %202 : vector<128x32xf32>
    %c0_87 = arith.constant 0 : index
    %c0_88 = arith.constant 0 : index
    %204 = vector.load %arg16[%c0_87, %c0_88] : memref<1x32xf32, #tpu.memory_space<vmem>>, vector<1x32xf32>
    %c0_89 = arith.constant 0 : index
    %c0_90 = arith.constant 0 : index
    %205 = vector.load %arg17[%c0_89, %c0_90] : memref<1x32xf32, #tpu.memory_space<vmem>>, vector<1x32xf32>
    %cst_91 = arith.constant dense<0.000000e+00> : vector<128xf32>
    %206 = vector.multi_reduction <add>, %203, %cst_91 [1] : vector<128x32xf32> to vector<128xf32>
    %207 = vector.shape_cast %206 : vector<128xf32> to vector<128x1xf32>
    %cst_92 = arith.constant 3.200000e+01 : f32
    %208 = vector.broadcast %cst_92 : f32 to vector<128x1xf32>
    %209 = arith.divf %207, %208 : vector<128x1xf32>
    %210 = vector.broadcast %209 : vector<128x1xf32> to vector<128x32xf32>
    %211 = arith.subf %203, %210 : vector<128x32xf32>
    %212 = arith.mulf %211, %211 : vector<128x32xf32>
    %cst_93 = arith.constant dense<0.000000e+00> : vector<128xf32>
    %213 = vector.multi_reduction <add>, %212, %cst_93 [1] : vector<128x32xf32> to vector<128xf32>
    %214 = vector.shape_cast %213 : vector<128xf32> to vector<128x1xf32>
    %cst_94 = arith.constant 3.200000e+01 : f32
    %215 = vector.broadcast %cst_94 : f32 to vector<128x1xf32>
    %216 = arith.divf %214, %215 : vector<128x1xf32>
    %217 = vector.broadcast %209 : vector<128x1xf32> to vector<128x32xf32>
    %218 = arith.subf %203, %217 : vector<128x32xf32>
    %cst_95 = arith.constant 9.99999974E-6 : f32
    %219 = vector.broadcast %cst_95 : f32 to vector<128x1xf32>
    %220 = arith.addf %216, %219 : vector<128x1xf32>
    %221 = math.rsqrt %220 : vector<128x1xf32>
    %222 = vector.broadcast %221 : vector<128x1xf32> to vector<128x32xf32>
    %223 = arith.mulf %218, %222 : vector<128x32xf32>
    %224 = vector.broadcast %204 : vector<1x32xf32> to vector<128x32xf32>
    %225 = arith.mulf %223, %224 : vector<128x32xf32>
    %226 = vector.broadcast %205 : vector<1x32xf32> to vector<128x32xf32>
    %227 = arith.addf %225, %226 : vector<128x32xf32>
    %c0_96 = arith.constant 0 : index
    %c0_97 = arith.constant 0 : index
    %228 = vector.load %arg18[%c0_96, %c0_97] : memref<32x96xf32, #tpu.memory_space<vmem>>, vector<32x96xf32>
    %cst_98 = arith.constant dense<0.000000e+00> : vector<128x96xf32>
    %229 = tpu.matmul %227, %228, %cst_98 {dimension_numbers = #tpu.dot_dimension_numbers<[1], [0], [0], [1], [0, 0, 1, 1], [], []>} : vector<128x32xf32>, vector<32x96xf32>, vector<128x96xf32> -> vector<128x96xf32>
    %c0_99 = arith.constant 0 : index
    %c0_100 = arith.constant 0 : index
    %230 = vector.load %arg19[%c0_99, %c0_100] : memref<1x96xf32, #tpu.memory_space<vmem>>, vector<1x96xf32>
    %231 = vector.broadcast %230 : vector<1x96xf32> to vector<128x96xf32>
    %232 = arith.addf %229, %231 : vector<128x96xf32>
    %c0_101 = arith.constant 0 : index
    %c0_102 = arith.constant 0 : index
    %233 = vector.load %arg20[%c0_101, %c0_102] : memref<32x32xf32, #tpu.memory_space<vmem>>, vector<32x32xf32>
    %cst_103 = arith.constant 0.000000e+00 : f32
    %234 = vector.broadcast %cst_103 : f32 to vector<128x32xf32>
    %235 = vector.extract_strided_slice %232 {offsets = [0, 0], sizes = [128, 8], strides = [1, 1]} : vector<128x96xf32> to vector<128x8xf32>
    %cst_104 = arith.constant 0.353553385 : f32
    %236 = vector.broadcast %cst_104 : f32 to vector<128x8xf32>
    %237 = arith.mulf %235, %236 : vector<128x8xf32>
    %238 = vector.extract_strided_slice %232 {offsets = [0, 32], sizes = [128, 8], strides = [1, 1]} : vector<128x96xf32> to vector<128x8xf32>
    %239 = vector.extract_strided_slice %232 {offsets = [0, 64], sizes = [128, 8], strides = [1, 1]} : vector<128x96xf32> to vector<128x8xf32>
    %cst_105 = arith.constant dense<0.000000e+00> : vector<128x128xf32>
    %240 = tpu.matmul %237, %238, %cst_105 {dimension_numbers = #tpu.dot_dimension_numbers<[1], [1], [0], [0], [0, 0, 1, 0], [], []>} : vector<128x8xf32>, vector<128x8xf32>, vector<128x128xf32> -> vector<128x128xf32>
    %c0_106 = arith.constant 0 : index
    %c0_107 = arith.constant 0 : index
    %c0_108 = arith.constant 0 : index
    %241 = vector.load %arg15[%c0_106, %c0_107, %c0_108] : memref<4x128x128xf32, #tpu.memory_space<vmem>>, vector<1x128x128xf32>
    %242 = vector.shape_cast %241 : vector<1x128x128xf32> to vector<128x128xf32>
    %243 = arith.addf %240, %242 : vector<128x128xf32>
    %cst_109 = arith.constant dense<0xFF800000> : vector<128xf32>
    %244 = vector.multi_reduction <maximumf>, %243, %cst_109 [1] : vector<128x128xf32> to vector<128xf32>
    %245 = vector.shape_cast %244 : vector<128xf32> to vector<128x1xf32>
    %246 = vector.broadcast %245 : vector<128x1xf32> to vector<128x128xf32>
    %247 = arith.subf %243, %246 : vector<128x128xf32>
    %248 = math.exp %247 : vector<128x128xf32>
    %cst_110 = arith.constant dense<0.000000e+00> : vector<128xf32>
    %249 = vector.multi_reduction <add>, %248, %cst_110 [1] : vector<128x128xf32> to vector<128xf32>
    %250 = vector.shape_cast %249 : vector<128xf32> to vector<128x1xf32>
    %251 = tpu.reciprocal %250 : vector<128x1xf32> -> vector<128x1xf32>
    %252 = vector.broadcast %251 : vector<128x1xf32> to vector<128x128xf32>
    %253 = arith.mulf %248, %252 : vector<128x128xf32>
    %cst_111 = arith.constant dense<0.000000e+00> : vector<128x8xf32>
    %254 = tpu.matmul %253, %239, %cst_111 {dimension_numbers = #tpu.dot_dimension_numbers<[1], [0], [0], [1], [0, 0, 1, 1], [], []>} : vector<128x128xf32>, vector<128x8xf32>, vector<128x8xf32> -> vector<128x8xf32>
    %255 = vector.extract_strided_slice %233 {offsets = [0, 0], sizes = [8, 32], strides = [1, 1]} : vector<32x32xf32> to vector<8x32xf32>
    %cst_112 = arith.constant dense<0.000000e+00> : vector<128x32xf32>
    %256 = tpu.matmul %254, %255, %cst_112 {dimension_numbers = #tpu.dot_dimension_numbers<[1], [0], [0], [1], [0, 0, 1, 1], [], []>} : vector<128x8xf32>, vector<8x32xf32>, vector<128x32xf32> -> vector<128x32xf32>
    %257 = arith.addf %234, %256 : vector<128x32xf32>
    %258 = vector.extract_strided_slice %232 {offsets = [0, 8], sizes = [128, 8], strides = [1, 1]} : vector<128x96xf32> to vector<128x8xf32>
    %cst_113 = arith.constant 0.353553385 : f32
    %259 = vector.broadcast %cst_113 : f32 to vector<128x8xf32>
    %260 = arith.mulf %258, %259 : vector<128x8xf32>
    %261 = vector.extract_strided_slice %232 {offsets = [0, 40], sizes = [128, 8], strides = [1, 1]} : vector<128x96xf32> to vector<128x8xf32>
    %262 = vector.extract_strided_slice %232 {offsets = [0, 72], sizes = [128, 8], strides = [1, 1]} : vector<128x96xf32> to vector<128x8xf32>
    %cst_114 = arith.constant dense<0.000000e+00> : vector<128x128xf32>
    %263 = tpu.matmul %260, %261, %cst_114 {dimension_numbers = #tpu.dot_dimension_numbers<[1], [1], [0], [0], [0, 0, 1, 0], [], []>} : vector<128x8xf32>, vector<128x8xf32>, vector<128x128xf32> -> vector<128x128xf32>
    %c1_115 = arith.constant 1 : index
    %c0_116 = arith.constant 0 : index
    %c0_117 = arith.constant 0 : index
    %264 = vector.load %arg15[%c1_115, %c0_116, %c0_117] : memref<4x128x128xf32, #tpu.memory_space<vmem>>, vector<1x128x128xf32>
    %265 = vector.shape_cast %264 : vector<1x128x128xf32> to vector<128x128xf32>
    %266 = arith.addf %263, %265 : vector<128x128xf32>
    %cst_118 = arith.constant dense<0xFF800000> : vector<128xf32>
    %267 = vector.multi_reduction <maximumf>, %266, %cst_118 [1] : vector<128x128xf32> to vector<128xf32>
    %268 = vector.shape_cast %267 : vector<128xf32> to vector<128x1xf32>
    %269 = vector.broadcast %268 : vector<128x1xf32> to vector<128x128xf32>
    %270 = arith.subf %266, %269 : vector<128x128xf32>
    %271 = math.exp %270 : vector<128x128xf32>
    %cst_119 = arith.constant dense<0.000000e+00> : vector<128xf32>
    %272 = vector.multi_reduction <add>, %271, %cst_119 [1] : vector<128x128xf32> to vector<128xf32>
    %273 = vector.shape_cast %272 : vector<128xf32> to vector<128x1xf32>
    %274 = tpu.reciprocal %273 : vector<128x1xf32> -> vector<128x1xf32>
    %275 = vector.broadcast %274 : vector<128x1xf32> to vector<128x128xf32>
    %276 = arith.mulf %271, %275 : vector<128x128xf32>
    %cst_120 = arith.constant dense<0.000000e+00> : vector<128x8xf32>
    %277 = tpu.matmul %276, %262, %cst_120 {dimension_numbers = #tpu.dot_dimension_numbers<[1], [0], [0], [1], [0, 0, 1, 1], [], []>} : vector<128x128xf32>, vector<128x8xf32>, vector<128x8xf32> -> vector<128x8xf32>
    %278 = vector.extract_strided_slice %233 {offsets = [8, 0], sizes = [8, 32], strides = [1, 1]} : vector<32x32xf32> to vector<8x32xf32>
    %cst_121 = arith.constant dense<0.000000e+00> : vector<128x32xf32>
    %279 = tpu.matmul %277, %278, %cst_121 {dimension_numbers = #tpu.dot_dimension_numbers<[1], [0], [0], [1], [0, 0, 1, 1], [], []>} : vector<128x8xf32>, vector<8x32xf32>, vector<128x32xf32> -> vector<128x32xf32>
    %280 = arith.addf %257, %279 : vector<128x32xf32>
    %281 = vector.extract_strided_slice %232 {offsets = [0, 16], sizes = [128, 8], strides = [1, 1]} : vector<128x96xf32> to vector<128x8xf32>
    %cst_122 = arith.constant 0.353553385 : f32
    %282 = vector.broadcast %cst_122 : f32 to vector<128x8xf32>
    %283 = arith.mulf %281, %282 : vector<128x8xf32>
    %284 = vector.extract_strided_slice %232 {offsets = [0, 48], sizes = [128, 8], strides = [1, 1]} : vector<128x96xf32> to vector<128x8xf32>
    %285 = vector.extract_strided_slice %232 {offsets = [0, 80], sizes = [128, 8], strides = [1, 1]} : vector<128x96xf32> to vector<128x8xf32>
    %cst_123 = arith.constant dense<0.000000e+00> : vector<128x128xf32>
    %286 = tpu.matmul %283, %284, %cst_123 {dimension_numbers = #tpu.dot_dimension_numbers<[1], [1], [0], [0], [0, 0, 1, 0], [], []>} : vector<128x8xf32>, vector<128x8xf32>, vector<128x128xf32> -> vector<128x128xf32>
    %c2_124 = arith.constant 2 : index
    %c0_125 = arith.constant 0 : index
    %c0_126 = arith.constant 0 : index
    %287 = vector.load %arg15[%c2_124, %c0_125, %c0_126] : memref<4x128x128xf32, #tpu.memory_space<vmem>>, vector<1x128x128xf32>
    %288 = vector.shape_cast %287 : vector<1x128x128xf32> to vector<128x128xf32>
    %289 = arith.addf %286, %288 : vector<128x128xf32>
    %cst_127 = arith.constant dense<0xFF800000> : vector<128xf32>
    %290 = vector.multi_reduction <maximumf>, %289, %cst_127 [1] : vector<128x128xf32> to vector<128xf32>
    %291 = vector.shape_cast %290 : vector<128xf32> to vector<128x1xf32>
    %292 = vector.broadcast %291 : vector<128x1xf32> to vector<128x128xf32>
    %293 = arith.subf %289, %292 : vector<128x128xf32>
    %294 = math.exp %293 : vector<128x128xf32>
    %cst_128 = arith.constant dense<0.000000e+00> : vector<128xf32>
    %295 = vector.multi_reduction <add>, %294, %cst_128 [1] : vector<128x128xf32> to vector<128xf32>
    %296 = vector.shape_cast %295 : vector<128xf32> to vector<128x1xf32>
    %297 = tpu.reciprocal %296 : vector<128x1xf32> -> vector<128x1xf32>
    %298 = vector.broadcast %297 : vector<128x1xf32> to vector<128x128xf32>
    %299 = arith.mulf %294, %298 : vector<128x128xf32>
    %cst_129 = arith.constant dense<0.000000e+00> : vector<128x8xf32>
    %300 = tpu.matmul %299, %285, %cst_129 {dimension_numbers = #tpu.dot_dimension_numbers<[1], [0], [0], [1], [0, 0, 1, 1], [], []>} : vector<128x128xf32>, vector<128x8xf32>, vector<128x8xf32> -> vector<128x8xf32>
    %301 = vector.extract_strided_slice %233 {offsets = [16, 0], sizes = [8, 32], strides = [1, 1]} : vector<32x32xf32> to vector<8x32xf32>
    %cst_130 = arith.constant dense<0.000000e+00> : vector<128x32xf32>
    %302 = tpu.matmul %300, %301, %cst_130 {dimension_numbers = #tpu.dot_dimension_numbers<[1], [0], [0], [1], [0, 0, 1, 1], [], []>} : vector<128x8xf32>, vector<8x32xf32>, vector<128x32xf32> -> vector<128x32xf32>
    %303 = arith.addf %280, %302 : vector<128x32xf32>
    %304 = vector.extract_strided_slice %232 {offsets = [0, 24], sizes = [128, 8], strides = [1, 1]} : vector<128x96xf32> to vector<128x8xf32>
    %cst_131 = arith.constant 0.353553385 : f32
    %305 = vector.broadcast %cst_131 : f32 to vector<128x8xf32>
    %306 = arith.mulf %304, %305 : vector<128x8xf32>
    %307 = vector.extract_strided_slice %232 {offsets = [0, 56], sizes = [128, 8], strides = [1, 1]} : vector<128x96xf32> to vector<128x8xf32>
    %308 = vector.extract_strided_slice %232 {offsets = [0, 88], sizes = [128, 8], strides = [1, 1]} : vector<128x96xf32> to vector<128x8xf32>
    %cst_132 = arith.constant dense<0.000000e+00> : vector<128x128xf32>
    %309 = tpu.matmul %306, %307, %cst_132 {dimension_numbers = #tpu.dot_dimension_numbers<[1], [1], [0], [0], [0, 0, 1, 0], [], []>} : vector<128x8xf32>, vector<128x8xf32>, vector<128x128xf32> -> vector<128x128xf32>
    %c3_133 = arith.constant 3 : index
    %c0_134 = arith.constant 0 : index
    %c0_135 = arith.constant 0 : index
    %310 = vector.load %arg15[%c3_133, %c0_134, %c0_135] : memref<4x128x128xf32, #tpu.memory_space<vmem>>, vector<1x128x128xf32>
    %311 = vector.shape_cast %310 : vector<1x128x128xf32> to vector<128x128xf32>
    %312 = arith.addf %309, %311 : vector<128x128xf32>
    %cst_136 = arith.constant dense<0xFF800000> : vector<128xf32>
    %313 = vector.multi_reduction <maximumf>, %312, %cst_136 [1] : vector<128x128xf32> to vector<128xf32>
    %314 = vector.shape_cast %313 : vector<128xf32> to vector<128x1xf32>
    %315 = vector.broadcast %314 : vector<128x1xf32> to vector<128x128xf32>
    %316 = arith.subf %312, %315 : vector<128x128xf32>
    %317 = math.exp %316 : vector<128x128xf32>
    %cst_137 = arith.constant dense<0.000000e+00> : vector<128xf32>
    %318 = vector.multi_reduction <add>, %317, %cst_137 [1] : vector<128x128xf32> to vector<128xf32>
    %319 = vector.shape_cast %318 : vector<128xf32> to vector<128x1xf32>
    %320 = tpu.reciprocal %319 : vector<128x1xf32> -> vector<128x1xf32>
    %321 = vector.broadcast %320 : vector<128x1xf32> to vector<128x128xf32>
    %322 = arith.mulf %317, %321 : vector<128x128xf32>
    %cst_138 = arith.constant dense<0.000000e+00> : vector<128x8xf32>
    %323 = tpu.matmul %322, %308, %cst_138 {dimension_numbers = #tpu.dot_dimension_numbers<[1], [0], [0], [1], [0, 0, 1, 1], [], []>} : vector<128x128xf32>, vector<128x8xf32>, vector<128x8xf32> -> vector<128x8xf32>
    %324 = vector.extract_strided_slice %233 {offsets = [24, 0], sizes = [8, 32], strides = [1, 1]} : vector<32x32xf32> to vector<8x32xf32>
    %cst_139 = arith.constant dense<0.000000e+00> : vector<128x32xf32>
    %325 = tpu.matmul %323, %324, %cst_139 {dimension_numbers = #tpu.dot_dimension_numbers<[1], [0], [0], [1], [0, 0, 1, 1], [], []>} : vector<128x8xf32>, vector<8x32xf32>, vector<128x32xf32> -> vector<128x32xf32>
    %326 = arith.addf %303, %325 : vector<128x32xf32>
    %327 = arith.addf %203, %326 : vector<128x32xf32>
    %c0_140 = arith.constant 0 : index
    %c0_141 = arith.constant 0 : index
    %328 = vector.load %arg21[%c0_140, %c0_141] : memref<1x32xf32, #tpu.memory_space<vmem>>, vector<1x32xf32>
    %329 = vector.broadcast %328 : vector<1x32xf32> to vector<128x32xf32>
    %330 = arith.addf %327, %329 : vector<128x32xf32>
    %c0_142 = arith.constant 0 : index
    %c0_143 = arith.constant 0 : index
    %331 = vector.load %arg22[%c0_142, %c0_143] : memref<1x32xf32, #tpu.memory_space<vmem>>, vector<1x32xf32>
    %c0_144 = arith.constant 0 : index
    %c0_145 = arith.constant 0 : index
    %332 = vector.load %arg23[%c0_144, %c0_145] : memref<1x32xf32, #tpu.memory_space<vmem>>, vector<1x32xf32>
    %cst_146 = arith.constant dense<0.000000e+00> : vector<128xf32>
    %333 = vector.multi_reduction <add>, %330, %cst_146 [1] : vector<128x32xf32> to vector<128xf32>
    %334 = vector.shape_cast %333 : vector<128xf32> to vector<128x1xf32>
    %cst_147 = arith.constant 3.200000e+01 : f32
    %335 = vector.broadcast %cst_147 : f32 to vector<128x1xf32>
    %336 = arith.divf %334, %335 : vector<128x1xf32>
    %337 = vector.broadcast %336 : vector<128x1xf32> to vector<128x32xf32>
    %338 = arith.subf %330, %337 : vector<128x32xf32>
    %339 = arith.mulf %338, %338 : vector<128x32xf32>
    %cst_148 = arith.constant dense<0.000000e+00> : vector<128xf32>
    %340 = vector.multi_reduction <add>, %339, %cst_148 [1] : vector<128x32xf32> to vector<128xf32>
    %341 = vector.shape_cast %340 : vector<128xf32> to vector<128x1xf32>
    %cst_149 = arith.constant 3.200000e+01 : f32
    %342 = vector.broadcast %cst_149 : f32 to vector<128x1xf32>
    %343 = arith.divf %341, %342 : vector<128x1xf32>
    %344 = vector.broadcast %336 : vector<128x1xf32> to vector<128x32xf32>
    %345 = arith.subf %330, %344 : vector<128x32xf32>
    %cst_150 = arith.constant 9.99999974E-6 : f32
    %346 = vector.broadcast %cst_150 : f32 to vector<128x1xf32>
    %347 = arith.addf %343, %346 : vector<128x1xf32>
    %348 = math.rsqrt %347 : vector<128x1xf32>
    %349 = vector.broadcast %348 : vector<128x1xf32> to vector<128x32xf32>
    %350 = arith.mulf %345, %349 : vector<128x32xf32>
    %351 = vector.broadcast %331 : vector<1x32xf32> to vector<128x32xf32>
    %352 = arith.mulf %350, %351 : vector<128x32xf32>
    %353 = vector.broadcast %332 : vector<1x32xf32> to vector<128x32xf32>
    %354 = arith.addf %352, %353 : vector<128x32xf32>
    %c0_151 = arith.constant 0 : index
    %c0_152 = arith.constant 0 : index
    %355 = vector.load %arg24[%c0_151, %c0_152] : memref<32x128xf32, #tpu.memory_space<vmem>>, vector<32x128xf32>
    %cst_153 = arith.constant dense<0.000000e+00> : vector<128x128xf32>
    %356 = tpu.matmul %354, %355, %cst_153 {dimension_numbers = #tpu.dot_dimension_numbers<[1], [0], [0], [1], [0, 0, 1, 1], [], []>} : vector<128x32xf32>, vector<32x128xf32>, vector<128x128xf32> -> vector<128x128xf32>
    %c0_154 = arith.constant 0 : index
    %c0_155 = arith.constant 0 : index
    %357 = vector.load %arg25[%c0_154, %c0_155] : memref<1x128xf32, #tpu.memory_space<vmem>>, vector<1x128xf32>
    %358 = vector.broadcast %357 : vector<1x128xf32> to vector<128x128xf32>
    %359 = arith.addf %356, %358 : vector<128x128xf32>
    %cst_156 = arith.constant 5.000000e-01 : f32
    %360 = vector.broadcast %cst_156 : f32 to vector<128x128xf32>
    %361 = arith.mulf %360, %359 : vector<128x128xf32>
    %cst_157 = arith.constant 0.707106769 : f32
    %362 = vector.broadcast %cst_157 : f32 to vector<128x128xf32>
    %363 = arith.mulf %359, %362 : vector<128x128xf32>
    %cst_158 = arith.constant 0.000000e+00 : f32
    %364 = vector.broadcast %cst_158 : f32 to vector<128x128xf32>
    %365 = arith.cmpf oge, %363, %364 : vector<128x128xf32>
    %cst_159 = arith.constant 1.000000e+00 : f32
    %cst_160 = arith.constant -1.000000e+00 : f32
    %366 = vector.broadcast %cst_159 : f32 to vector<128x128xf32>
    %367 = vector.broadcast %cst_160 : f32 to vector<128x128xf32>
    %368 = arith.select %365, %366, %367 : vector<128x128xi1>, vector<128x128xf32>
    %369 = math.absf %363 : vector<128x128xf32>
    %cst_161 = arith.constant 0.327591091 : f32
    %370 = vector.broadcast %cst_161 : f32 to vector<128x128xf32>
    %371 = arith.mulf %370, %369 : vector<128x128xf32>
    %cst_162 = arith.constant 1.000000e+00 : f32
    %372 = vector.broadcast %cst_162 : f32 to vector<128x128xf32>
    %373 = arith.addf %372, %371 : vector<128x128xf32>
    %cst_163 = arith.constant 1.000000e+00 : f32
    %374 = vector.broadcast %cst_163 : f32 to vector<128x128xf32>
    %375 = arith.divf %374, %373 : vector<128x128xf32>
    %cst_164 = arith.constant 1.06140542 : f32
    %376 = vector.broadcast %cst_164 : f32 to vector<128x128xf32>
    %377 = arith.mulf %376, %375 : vector<128x128xf32>
    %cst_165 = arith.constant -1.45315206 : f32
    %378 = vector.broadcast %cst_165 : f32 to vector<128x128xf32>
    %379 = arith.addf %377, %378 : vector<128x128xf32>
    %380 = arith.mulf %379, %375 : vector<128x128xf32>
    %cst_166 = arith.constant 1.42141378 : f32
    %381 = vector.broadcast %cst_166 : f32 to vector<128x128xf32>
    %382 = arith.addf %380, %381 : vector<128x128xf32>
    %383 = arith.mulf %382, %375 : vector<128x128xf32>
    %cst_167 = arith.constant -0.284496725 : f32
    %384 = vector.broadcast %cst_167 : f32 to vector<128x128xf32>
    %385 = arith.addf %383, %384 : vector<128x128xf32>
    %386 = arith.mulf %385, %375 : vector<128x128xf32>
    %cst_168 = arith.constant 0.254829586 : f32
    %387 = vector.broadcast %cst_168 : f32 to vector<128x128xf32>
    %388 = arith.addf %386, %387 : vector<128x128xf32>
    %389 = arith.mulf %388, %375 : vector<128x128xf32>
    %cst_169 = arith.constant 0.000000e+00 : f32
    %390 = vector.broadcast %cst_169 : f32 to vector<128x128xf32>
    %391 = arith.subf %390, %369 : vector<128x128xf32>
    %392 = arith.mulf %391, %369 : vector<128x128xf32>
    %393 = math.exp %392 : vector<128x128xf32>
    %394 = arith.mulf %389, %393 : vector<128x128xf32>
    %cst_170 = arith.constant 1.000000e+00 : f32
    %395 = vector.broadcast %cst_170 : f32 to vector<128x128xf32>
    %396 = arith.subf %395, %394 : vector<128x128xf32>
    %397 = arith.mulf %368, %396 : vector<128x128xf32>
    %cst_171 = arith.constant 1.000000e+00 : f32
    %398 = vector.broadcast %cst_171 : f32 to vector<128x128xf32>
    %399 = arith.addf %398, %397 : vector<128x128xf32>
    %400 = arith.mulf %361, %399 : vector<128x128xf32>
    %c0_172 = arith.constant 0 : index
    %c0_173 = arith.constant 0 : index
    %401 = vector.load %arg26[%c0_172, %c0_173] : memref<128x32xf32, #tpu.memory_space<vmem>>, vector<128x32xf32>
    %cst_174 = arith.constant dense<0.000000e+00> : vector<128x32xf32>
    %402 = tpu.matmul %400, %401, %cst_174 {dimension_numbers = #tpu.dot_dimension_numbers<[1], [0], [0], [1], [0, 0, 1, 1], [], []>} : vector<128x128xf32>, vector<128x32xf32>, vector<128x32xf32> -> vector<128x32xf32>
    %403 = arith.addf %330, %402 : vector<128x32xf32>
    %c0_175 = arith.constant 0 : index
    %c0_176 = arith.constant 0 : index
    %404 = vector.load %arg27[%c0_175, %c0_176] : memref<1x32xf32, #tpu.memory_space<vmem>>, vector<1x32xf32>
    %405 = vector.broadcast %404 : vector<1x32xf32> to vector<128x32xf32>
    %406 = arith.addf %403, %405 : vector<128x32xf32>
    %c0_177 = arith.constant 0 : index
    %c0_178 = arith.constant 0 : index
    %407 = vector.load %arg28[%c0_177, %c0_178] : memref<128x32xf32, #tpu.memory_space<vmem>>, vector<128x32xf32>
    tpu.vector_store %arg28[%c0_177, %c0_178], %406 {strides = array<i32>} : memref<128x32xf32, #tpu.memory_space<vmem>>, vector<128x32xf32>,
    return
  }
  func.func @transform_0(%arg0: i32) -> (i32, i32) {
    %c0_i32 = arith.constant 0 : i32
    %c0_i32_0 = arith.constant 0 : i32
    %c0_i32_1 = arith.constant 0 : i32
    return %c0_i32, %c0_i32_0 : i32, i32
  }
  func.func @transform_1(%arg0: i32) -> (i32, i32, i32) {
    %c0_i32 = arith.constant 0 : i32
    %c0_i32_0 = arith.constant 0 : i32
    %c0_i32_1 = arith.constant 0 : i32
    %c0_i32_2 = arith.constant 0 : i32
    return %c0_i32, %c0_i32_0, %c0_i32_1 : i32, i32, i32
  }
  func.func @transform_2(%arg0: i32) -> (i32, i32) {
    %c0_i32 = arith.constant 0 : i32
    %c0_i32_0 = arith.constant 0 : i32
    %c0_i32_1 = arith.constant 0 : i32
    return %c0_i32, %c0_i32_0 : i32, i32
  }
  func.func @transform_3(%arg0: i32) -> (i32, i32) {
    %c0_i32 = arith.constant 0 : i32
    %c0_i32_0 = arith.constant 0 : i32
    %c0_i32_1 = arith.constant 0 : i32
    return %c0_i32, %c0_i32_0 : i32, i32
  }
  func.func @transform_4(%arg0: i32) -> (i32, i32) {
    %c0_i32 = arith.constant 0 : i32
    %c0_i32_0 = arith.constant 0 : i32
    %c0_i32_1 = arith.constant 0 : i32
    return %c0_i32, %c0_i32_0 : i32, i32
  }
  func.func @transform_5(%arg0: i32) -> (i32, i32) {
    %c0_i32 = arith.constant 0 : i32
    %c0_i32_0 = arith.constant 0 : i32
    %c0_i32_1 = arith.constant 0 : i32
    return %c0_i32, %c0_i32_0 : i32, i32
  }
  func.func @transform_6(%arg0: i32) -> (i32, i32) {
    %c0_i32 = arith.constant 0 : i32
    %c0_i32_0 = arith.constant 0 : i32
    %c0_i32_1 = arith.constant 0 : i32
    return %c0_i32, %c0_i32_0 : i32, i32
  }
  func.func @transform_7(%arg0: i32) -> (i32, i32) {
    %c0_i32 = arith.constant 0 : i32
    %c0_i32_0 = arith.constant 0 : i32
    %c0_i32_1 = arith.constant 0 : i32
    return %c0_i32, %c0_i32_0 : i32, i32
  }
  func.func @transform_8(%arg0: i32) -> (i32, i32) {
    %c0_i32 = arith.constant 0 : i32
    %c0_i32_0 = arith.constant 0 : i32
    %c0_i32_1 = arith.constant 0 : i32
    return %c0_i32, %c0_i32_0 : i32, i32
  }
  func.func @transform_9(%arg0: i32) -> (i32, i32) {
    %c0_i32 = arith.constant 0 : i32
    %c0_i32_0 = arith.constant 0 : i32
    %c0_i32_1 = arith.constant 0 : i32
    return %c0_i32, %c0_i32_0 : i32, i32
  }
  func.func @transform_10(%arg0: i32) -> (i32, i32) {
    %c0_i32 = arith.constant 0 : i32
    %c0_i32_0 = arith.constant 0 : i32
    %c0_i32_1 = arith.constant 0 : i32
    return %c0_i32, %c0_i32_0 : i32, i32
  }
  func.func @transform_11(%arg0: i32) -> (i32, i32) {
    %c0_i32 = arith.constant 0 : i32
    %c0_i32_0 = arith.constant 0 : i32
    %c0_i32_1 = arith.constant 0 : i32
    return %c0_i32, %c0_i32_0 : i32, i32
  }
  func.func @transform_12(%arg0: i32) -> (i32, i32) {
    %c0_i32 = arith.constant 0 : i32
    %c0_i32_0 = arith.constant 0 : i32
    %c0_i32_1 = arith.constant 0 : i32
    return %c0_i32, %c0_i32_0 : i32, i32
  }
  func.func @transform_13(%arg0: i32) -> (i32, i32) {
    %c0_i32 = arith.constant 0 : i32
    %c0_i32_0 = arith.constant 0 : i32
    %c0_i32_1 = arith.constant 0 : i32
    return %c0_i32, %c0_i32_0 : i32, i32
  }
  func.func @transform_14(%arg0: i32) -> (i32, i32, i32) {
    %c0_i32 = arith.constant 0 : i32
    %c0_i32_0 = arith.constant 0 : i32
    %c0_i32_1 = arith.constant 0 : i32
    %c0_i32_2 = arith.constant 0 : i32
    return %c0_i32, %c0_i32_0, %c0_i32_1 : i32, i32, i32
  }
  func.func @transform_15(%arg0: i32) -> (i32, i32) {
    %c0_i32 = arith.constant 0 : i32
    %c0_i32_0 = arith.constant 0 : i32
    %c0_i32_1 = arith.constant 0 : i32
    return %c0_i32, %c0_i32_0 : i32, i32
  }
  func.func @transform_16(%arg0: i32) -> (i32, i32) {
    %c0_i32 = arith.constant 0 : i32
    %c0_i32_0 = arith.constant 0 : i32
    %c0_i32_1 = arith.constant 0 : i32
    return %c0_i32, %c0_i32_0 : i32, i32
  }
  func.func @transform_17(%arg0: i32) -> (i32, i32) {
    %c0_i32 = arith.constant 0 : i32
    %c0_i32_0 = arith.constant 0 : i32
    %c0_i32_1 = arith.constant 0 : i32
    return %c0_i32, %c0_i32_0 : i32, i32
  }
  func.func @transform_18(%arg0: i32) -> (i32, i32) {
    %c0_i32 = arith.constant 0 : i32
    %c0_i32_0 = arith.constant 0 : i32
    %c0_i32_1 = arith.constant 0 : i32
    return %c0_i32, %c0_i32_0 : i32, i32
  }
  func.func @transform_19(%arg0: i32) -> (i32, i32) {
    %c0_i32 = arith.constant 0 : i32
    %c0_i32_0 = arith.constant 0 : i32
    %c0_i32_1 = arith.constant 0 : i32
    return %c0_i32, %c0_i32_0 : i32, i32
  }
  func.func @transform_20(%arg0: i32) -> (i32, i32) {
    %c0_i32 = arith.constant 0 : i32
    %c0_i32_0 = arith.constant 0 : i32
    %c0_i32_1 = arith.constant 0 : i32
    return %c0_i32, %c0_i32_0 : i32, i32
  }
  func.func @transform_21(%arg0: i32) -> (i32, i32) {
    %c0_i32 = arith.constant 0 : i32
    %c0_i32_0 = arith.constant 0 : i32
    %c0_i32_1 = arith.constant 0 : i32
    return %c0_i32, %c0_i32_0 : i32, i32
  }
  func.func @transform_22(%arg0: i32) -> (i32, i32) {
    %c0_i32 = arith.constant 0 : i32
    %c0_i32_0 = arith.constant 0 : i32
    %c0_i32_1 = arith.constant 0 : i32
    return %c0_i32, %c0_i32_0 : i32, i32
  }
  func.func @transform_23(%arg0: i32) -> (i32, i32) {
    %c0_i32 = arith.constant 0 : i32
    %c0_i32_0 = arith.constant 0 : i32
    %c0_i32_1 = arith.constant 0 : i32
    return %c0_i32, %c0_i32_0 : i32, i32
  }
  func.func @transform_24(%arg0: i32) -> (i32, i32) {
    %c0_i32 = arith.constant 0 : i32
    %c0_i32_0 = arith.constant 0 : i32
    %c0_i32_1 = arith.constant 0 : i32
    return %c0_i32, %c0_i32_0 : i32, i32
  }
  func.func @transform_25(%arg0: i32) -> (i32, i32) {
    %c0_i32 = arith.constant 0 : i32
    %c0_i32_0 = arith.constant 0 : i32
    %c0_i32_1 = arith.constant 0 : i32
    return %c0_i32, %c0_i32_0 : i32, i32
  }
  func.func @transform_26(%arg0: i32) -> (i32, i32) {
    %c0_i32 = arith.constant 0 : i32
    %c0_i32_0 = arith.constant 0 : i32
    %c0_i32_1 = arith.constant 0 : i32
    return %c0_i32, %c0_i32_0 : i32, i32
  }
  func.func @transform_27(%arg0: i32) -> (i32, i32) {
    %c0_i32 = arith.constant 0 : i32
    %c0_i32_0 = arith.constant 0 : i32
    %c0_i32_1 = arith.constant 0 : i32
    return %c0_i32, %c0_i32_0 : i32, i32
  }
}

</mosaic_0001>

<llo_original>
// kernel: basic_layer_forward.1
$region0: #{basic_layer_forward.1}
  #allocation0 [shape = 'u32[]', space=smem, size = 0x4, offset = 0x4, fixed_abs, tag = 'smem constant byte address 0x4 - core index']
  #allocation1 [shape = 'u32[144,128]{1,0:T(1,128)}', space=vmem, size = 0x12000, scoped, tag = 'internal scratch']
  %s0 = inlined_call_operand.vmem [shape: f32[128,32], index: 0, kind: input, shape index: {}]
  %s1 = inlined_call_operand.vmem [shape: f32[4,128,128], index: 1, kind: input, shape index: {}]
  %s2 = inlined_call_operand.vmem [shape: f32[1,32], index: 2, kind: input, shape index: {}]
  %s3 = inlined_call_operand.vmem [shape: f32[1,32], index: 3, kind: input, shape index: {}]
  %s4 = inlined_call_operand.vmem [shape: f32[32,96], index: 4, kind: input, shape index: {}]
  %s5 = inlined_call_operand.vmem [shape: f32[1,96], index: 5, kind: input, shape index: {}]
  %s6 = inlined_call_operand.vmem [shape: f32[32,32], index: 6, kind: input, shape index: {}]
  %s7 = inlined_call_operand.vmem [shape: f32[1,32], index: 7, kind: input, shape index: {}]
  %s8 = inlined_call_operand.vmem [shape: f32[1,32], index: 8, kind: input, shape index: {}]
  %s9 = inlined_call_operand.vmem [shape: f32[1,32], index: 9, kind: input, shape index: {}]
  %s10 = inlined_call_operand.vmem [shape: f32[32,128], index: 10, kind: input, shape index: {}]
  %s11 = inlined_call_operand.vmem [shape: f32[1,128], index: 11, kind: input, shape index: {}]
  %s12 = inlined_call_operand.vmem [shape: f32[128,32], index: 12, kind: input, shape index: {}]
  %s13 = inlined_call_operand.vmem [shape: f32[1,32], index: 13, kind: input, shape index: {}]
  %s14 = inlined_call_operand.vmem [shape: f32[4,128,128], index: 14, kind: input, shape index: {}]
  %s15 = inlined_call_operand.vmem [shape: f32[1,32], index: 15, kind: input, shape index: {}]
  %s16 = inlined_call_operand.vmem [shape: f32[1,32], index: 16, kind: input, shape index: {}]
  %s17 = inlined_call_operand.vmem [shape: f32[32,96], index: 17, kind: input, shape index: {}]
  %s18 = inlined_call_operand.vmem [shape: f32[1,96], index: 18, kind: input, shape index: {}]
  %s19 = inlined_call_operand.vmem [shape: f32[32,32], index: 19, kind: input, shape index: {}]
  %s20 = inlined_call_operand.vmem [shape: f32[1,32], index: 20, kind: input, shape index: {}]
  %s21 = inlined_call_operand.vmem [shape: f32[1,32], index: 21, kind: input, shape index: {}]
  %s22 = inlined_call_operand.vmem [shape: f32[1,32], index: 22, kind: input, shape index: {}]
  %s23 = inlined_call_operand.vmem [shape: f32[32,128], index: 23, kind: input, shape index: {}]
  %s24 = inlined_call_operand.vmem [shape: f32[1,128], index: 24, kind: input, shape index: {}]
  %s25 = inlined_call_operand.vmem [shape: f32[128,32], index: 25, kind: input, shape index: {}]
  %s26 = inlined_call_operand.vmem [shape: f32[1,32], index: 26, kind: input, shape index: {}]
  %s27 = inlined_call_operand.vmem [shape: f32[128,32], index: 27, kind: output, shape index: {}]
  %s28 = sld [smem:[#allocation0]]
  $region118: #{basic_layer_forward.1} parent=0
    _
  %s30 = ssub.s32 1, %s28
  %s31 = scalar_select 0, %s30, %s28
  // Predicated region
  $region2: #{basic_layer_forward.1} parent=0 // pred_check
    _
  $region3: #{basic_layer_forward.1} parent=0 // pred_check_branch
    %33 = sbr.rel (0) target = $region5
  $region4: #{basic_layer_forward.1} parent=0 // pred_region
    _
  $region5: #{basic_layer_forward.1} parent=0 // pred_fallthru
    _
  // Predicated region
  $region6: #{basic_layer_forward.1} parent=0 // pred_check
    _
  $region7: #{basic_layer_forward.1} parent=0 // pred_check_branch
    %35 = sbr.rel (0) target = $region9
  $region8: #{basic_layer_forward.1} parent=0 // pred_region
    _
  $region9: #{basic_layer_forward.1} parent=0 // pred_fallthru
    _
  // Predicated region
  $region10: #{basic_layer_forward.1} parent=0 // pred_check
    _
  $region11: #{basic_layer_forward.1} parent=0 // pred_check_branch
    %37 = sbr.rel (0) target = $region13
  $region12: #{basic_layer_forward.1} parent=0 // pred_region
    _
  $region13: #{basic_layer_forward.1} parent=0 // pred_fallthru
    _
  // Predicated region
  $region14: #{basic_layer_forward.1} parent=0 // pred_check
    _
  $region15: #{basic_layer_forward.1} parent=0 // pred_check_branch
    %39 = sbr.rel (0) target = $region17
  $region16: #{basic_layer_forward.1} parent=0 // pred_region
    _
  $region17: #{basic_layer_forward.1} parent=0 // pred_fallthru
    _
  // Predicated region
  $region18: #{basic_layer_forward.1} parent=0 // pred_check
    _
  $region19: #{basic_layer_forward.1} parent=0 // pred_check_branch
    %41 = sbr.rel (0) target = $region21
  $region20: #{basic_layer_forward.1} parent=0 // pred_region
    _
  $region21: #{basic_layer_forward.1} parent=0 // pred_fallthru
    _
  // Predicated region
  $region22: #{basic_layer_forward.1} parent=0 // pred_check
    _
  $region23: #{basic_layer_forward.1} parent=0 // pred_check_branch
    %43 = sbr.rel (0) target = $region25
  $region24: #{basic_layer_forward.1} parent=0 // pred_region
    _
  $region25: #{basic_layer_forward.1} parent=0 // pred_fallthru
    _
  // Predicated region
  $region26: #{basic_layer_forward.1} parent=0 // pred_check
    _
  $region27: #{basic_layer_forward.1} parent=0 // pred_check_branch
    %45 = sbr.rel (0) target = $region29
  $region28: #{basic_layer_forward.1} parent=0 // pred_region
    _
  $region29: #{basic_layer_forward.1} parent=0 // pred_fallthru
    _
  // Predicated region
  $region30: #{basic_layer_forward.1} parent=0 // pred_check
    _
  $region31: #{basic_layer_forward.1} parent=0 // pred_check_branch
    %47 = sbr.rel (0) target = $region33
  $region32: #{basic_layer_forward.1} parent=0 // pred_region
    _
  $region33: #{basic_layer_forward.1} parent=0 // pred_fallthru
    _
  // Predicated region
  $region34: #{basic_layer_forward.1} parent=0 // pred_check
    _
  $region35: #{basic_layer_forward.1} parent=0 // pred_check_branch
    %49 = sbr.rel (0) target = $region37
  $region36: #{basic_layer_forward.1} parent=0 // pred_region
    _
  $region37: #{basic_layer_forward.1} parent=0 // pred_fallthru
    _
  // Predicated region
  $region38: #{basic_layer_forward.1} parent=0 // pred_check
    _
  $region39: #{basic_layer_forward.1} parent=0 // pred_check_branch
    %51 = sbr.rel (0) target = $region41
  $region40: #{basic_layer_forward.1} parent=0 // pred_region
    _
  $region41: #{basic_layer_forward.1} parent=0 // pred_fallthru
    _
  // Predicated region
  $region42: #{basic_layer_forward.1} parent=0 // pred_check
    _
  $region43: #{basic_layer_forward.1} parent=0 // pred_check_branch
    %53 = sbr.rel (0) target = $region45
  $region44: #{basic_layer_forward.1} parent=0 // pred_region
    _
  $region45: #{basic_layer_forward.1} parent=0 // pred_fallthru
    _
  // Predicated region
  $region46: #{basic_layer_forward.1} parent=0 // pred_check
    _
  $region47: #{basic_layer_forward.1} parent=0 // pred_check_branch
    %55 = sbr.rel (0) target = $region49
  $region48: #{basic_layer_forward.1} parent=0 // pred_region
    _
  $region49: #{basic_layer_forward.1} parent=0 // pred_fallthru
    _
  // Predicated region
  $region50: #{basic_layer_forward.1} parent=0 // pred_check
    _
  $region51: #{basic_layer_forward.1} parent=0 // pred_check_branch
    %57 = sbr.rel (0) target = $region53
  $region52: #{basic_layer_forward.1} parent=0 // pred_region
    _
  $region53: #{basic_layer_forward.1} parent=0 // pred_fallthru
    _
  // Predicated region
  $region54: #{basic_layer_forward.1} parent=0 // pred_check
    _
  $region55: #{basic_layer_forward.1} parent=0 // pred_check_branch
    %59 = sbr.rel (0) target = $region57
  $region56: #{basic_layer_forward.1} parent=0 // pred_region
    _
  $region57: #{basic_layer_forward.1} parent=0 // pred_fallthru
    _
  // Predicated region
  $region58: #{basic_layer_forward.1} parent=0 // pred_check
    _
  $region59: #{basic_layer_forward.1} parent=0 // pred_check_branch
    %61 = sbr.rel (0) target = $region61
  $region60: #{basic_layer_forward.1} parent=0 // pred_region
    _
  $region61: #{basic_layer_forward.1} parent=0 // pred_fallthru
    _
  // Predicated region
  $region62: #{basic_layer_forward.1} parent=0 // pred_check
    _
  $region63: #{basic_layer_forward.1} parent=0 // pred_check_branch
    %63 = sbr.rel (0) target = $region65
  $region64: #{basic_layer_forward.1} parent=0 // pred_region
    _
  $region65: #{basic_layer_forward.1} parent=0 // pred_fallthru
    _
  // Predicated region
  $region66: #{basic_layer_forward.1} parent=0 // pred_check
    _
  $region67: #{basic_layer_forward.1} parent=0 // pred_check_branch
    %65 = sbr.rel (0) target = $region69
  $region68: #{basic_layer_forward.1} parent=0 // pred_region
    _
  $region69: #{basic_layer_forward.1} parent=0 // pred_fallthru
    _
  // Predicated region
  $region70: #{basic_layer_forward.1} parent=0 // pred_check
    _
  $region71: #{basic_layer_forward.1} parent=0 // pred_check_branch
    %67 = sbr.rel (0) target = $region73
  $region72: #{basic_layer_forward.1} parent=0 // pred_region
    _
  $region73: #{basic_layer_forward.1} parent=0 // pred_fallthru
    _
  // Predicated region
  $region74: #{basic_layer_forward.1} parent=0 // pred_check
    _
  $region75: #{basic_layer_forward.1} parent=0 // pred_check_branch
    %69 = sbr.rel (0) target = $region77
  $region76: #{basic_layer_forward.1} parent=0 // pred_region
    _
  $region77: #{basic_layer_forward.1} parent=0 // pred_fallthru
    _
  // Predicated region
  $region78: #{basic_layer_forward.1} parent=0 // pred_check
    _
  $region79: #{basic_layer_forward.1} parent=0 // pred_check_branch
    %71 = sbr.rel (0) target = $region81
  $region80: #{basic_layer_forward.1} parent=0 // pred_region
    _
  $region81: #{basic_layer_forward.1} parent=0 // pred_fallthru
    _
  // Predicated region
  $region82: #{basic_layer_forward.1} parent=0 // pred_check
    _
  $region83: #{basic_layer_forward.1} parent=0 // pred_check_branch
    %73 = sbr.rel (0) target = $region85
  $region84: #{basic_layer_forward.1} parent=0 // pred_region
    _
  $region85: #{basic_layer_forward.1} parent=0 // pred_fallthru
    _
  // Predicated region
  $region86: #{basic_layer_forward.1} parent=0 // pred_check
    _
  $region87: #{basic_layer_forward.1} parent=0 // pred_check_branch
    %75 = sbr.rel (0) target = $region89
  $region88: #{basic_layer_forward.1} parent=0 // pred_region
    _
  $region89: #{basic_layer_forward.1} parent=0 // pred_fallthru
    _
  // Predicated region
  $region90: #{basic_layer_forward.1} parent=0 // pred_check
    _
  $region91: #{basic_layer_forward.1} parent=0 // pred_check_branch
    %77 = sbr.rel (0) target = $region93
  $region92: #{basic_layer_forward.1} parent=0 // pred_region
    _
  $region93: #{basic_layer_forward.1} parent=0 // pred_fallthru
    _
  // Predicated region
  $region94: #{basic_layer_forward.1} parent=0 // pred_check
    _
  $region95: #{basic_layer_forward.1} parent=0 // pred_check_branch
    %79 = sbr.rel (0) target = $region97
  $region96: #{basic_layer_forward.1} parent=0 // pred_region
    _
  $region97: #{basic_layer_forward.1} parent=0 // pred_fallthru
    _
  // Predicated region
  $region98: #{basic_layer_forward.1} parent=0 // pred_check
    _
  $region99: #{basic_layer_forward.1} parent=0 // pred_check_branch
    %81 = sbr.rel (0) target = $region101
  $region100: #{basic_layer_forward.1} parent=0 // pred_region
    _
  $region101: #{basic_layer_forward.1} parent=0 // pred_fallthru
    _
  // Predicated region
  $region102: #{basic_layer_forward.1} parent=0 // pred_check
    _
  $region103: #{basic_layer_forward.1} parent=0 // pred_check_branch
    %83 = sbr.rel (0) target = $region105
  $region104: #{basic_layer_forward.1} parent=0 // pred_region
    _
  $region105: #{basic_layer_forward.1} parent=0 // pred_fallthru
    _
  // Predicated region
  $region106: #{basic_layer_forward.1} parent=0 // pred_check
    _
  $region107: #{basic_layer_forward.1} parent=0 // pred_check_branch
    %85 = sbr.rel (0) target = $region109
  $region108: #{basic_layer_forward.1} parent=0 // pred_region
    _
  $region109: #{basic_layer_forward.1} parent=0 // pred_fallthru
    _
  %v86 = vld [vmem:[%s0] sm:$0xff]
  %v87 = vld [vmem:[%s0 + $0x8] sm:$0xff]
  %v88 = vld [vmem:[%s0 + $0x10] sm:$0xff]
  %v89 = vld [vmem:[%s0 + $0x18] sm:$0xff]
  %v90 = vld [vmem:[%s0 + $0x20] sm:$0xff]
  %v91 = vld [vmem:[%s0 + $0x28] sm:$0xff]
  %v92 = vld [vmem:[%s0 + $0x30] sm:$0xff]
  %v93 = vld [vmem:[%s0 + $0x38] sm:$0xff]
  %v94 = vld [vmem:[%s0 + $0x40] sm:$0xff]
  %v95 = vld [vmem:[%s0 + $0x48] sm:$0xff]
  %v96 = vld [vmem:[%s0 + $0x50] sm:$0xff]
  %v97 = vld [vmem:[%s0 + $0x58] sm:$0xff]
  %v98 = vld [vmem:[%s0 + $0x60] sm:$0xff]
  %v99 = vld [vmem:[%s0 + $0x68] sm:$0xff]
  %v100 = vld [vmem:[%s0 + $0x70] sm:$0xff]
  %v101 = vld [vmem:[%s0 + $0x78] sm:$0xff]
  %v102 = vld [vmem:[%s2] sm:$0x1]
  %v103 = vld [vmem:[%s3] sm:$0x1]
  %vm104 = vcmask 261120
  %v105 = vsel %vm104, %v86, 0.0
  %106 = vadd.xlane.f32.xlu0 %v105
  %v107 = vpop.xlane.xlu0 %106
  %v108 = vsel %vm104, %v87, 0.0
  %109 = vadd.xlane.f32.xlu0 %v108
  %v110 = vpop.xlane.xlu0 %109
  %v111 = vsel %vm104, %v88, 0.0
  %112 = vadd.xlane.f32.xlu0 %v111
  %v113 = vpop.xlane.xlu0 %112
  %v114 = vsel %vm104, %v89, 0.0
  %115 = vadd.xlane.f32.xlu0 %v114
  %v116 = vpop.xlane.xlu0 %115
  %v117 = vsel %vm104, %v90, 0.0
  %118 = vadd.xlane.f32.xlu0 %v117
  %v119 = vpop.xlane.xlu0 %118
  %v120 = vsel %vm104, %v91, 0.0
  %121 = vadd.xlane.f32.xlu0 %v120
  %v122 = vpop.xlane.xlu0 %121
  %v123 = vsel %vm104, %v92, 0.0
  %124 = vadd.xlane.f32.xlu0 %v123
  %v125 = vpop.xlane.xlu0 %124
  %v126 = vsel %vm104, %v93, 0.0
  %127 = vadd.xlane.f32.xlu0 %v126
  %v128 = vpop.xlane.xlu0 %127
  %v129 = vsel %vm104, %v94, 0.0
  %130 = vadd.xlane.f32.xlu0 %v129
  %v131 = vpop.xlane.xlu0 %130
  %v132 = vsel %vm104, %v95, 0.0
  %133 = vadd.xlane.f32.xlu0 %v132
  %v134 = vpop.xlane.xlu0 %133
  %v135 = vsel %vm104, %v96, 0.0
  %136 = vadd.xlane.f32.xlu0 %v135
  %v137 = vpop.xlane.xlu0 %136
  %v138 = vsel %vm104, %v97, 0.0
  %139 = vadd.xlane.f32.xlu0 %v138
  %v140 = vpop.xlane.xlu0 %139
  %v141 = vsel %vm104, %v98, 0.0
  %142 = vadd.xlane.f32.xlu0 %v141
  %v143 = vpop.xlane.xlu0 %142
  %v144 = vsel %vm104, %v99, 0.0
  %145 = vadd.xlane.f32.xlu0 %v144
  %v146 = vpop.xlane.xlu0 %145
  %v147 = vsel %vm104, %v100, 0.0
  %148 = vadd.xlane.f32.xlu0 %v147
  %v149 = vpop.xlane.xlu0 %148
  %v150 = vsel %vm104, %v101, 0.0
  %151 = vadd.xlane.f32.xlu0 %v150
  %v152 = vpop.xlane.xlu0 %151
  %v153 = vrcp.pop 32.0
  %v154 = vmul.f32 %v107, %v153
  %v155 = vmul.f32 %v110, %v153
  %v156 = vmul.f32 %v113, %v153
  %v157 = vmul.f32 %v116, %v153
  %v158 = vmul.f32 %v119, %v153
  %v159 = vmul.f32 %v122, %v153
  %v160 = vmul.f32 %v125, %v153
  %v161 = vmul.f32 %v128, %v153
  %v162 = vmul.f32 %v131, %v153
  %v163 = vmul.f32 %v134, %v153
  %v164 = vmul.f32 %v137, %v153
  %v165 = vmul.f32 %v140, %v153
  %v166 = vmul.f32 %v143, %v153
  %v167 = vmul.f32 %v146, %v153
  %v168 = vmul.f32 %v149, %v153
  %v169 = vmul.f32 %v152, %v153
  %v170 = vsub.f32 %v86, %v154
  %v171 = vsub.f32 %v87, %v155
  %v172 = vsub.f32 %v88, %v156
  %v173 = vsub.f32 %v89, %v157
  %v174 = vsub.f32 %v90, %v158
  %v175 = vsub.f32 %v91, %v159
  %v176 = vsub.f32 %v92, %v160
  %v177 = vsub.f32 %v93, %v161
  %v178 = vsub.f32 %v94, %v162
  %v179 = vsub.f32 %v95, %v163
  %v180 = vsub.f32 %v96, %v164
  %v181 = vsub.f32 %v97, %v165
  %v182 = vsub.f32 %v98, %v166
  %v183 = vsub.f32 %v99, %v167
  %v184 = vsub.f32 %v100, %v168
  %v185 = vsub.f32 %v101, %v169
  %v186 = vmul.f32 %v170, %v170
  %v187 = vmul.f32 %v171, %v171
  %v188 = vmul.f32 %v172, %v172
  %v189 = vmul.f32 %v173, %v173
  %v190 = vmul.f32 %v174, %v174
  %v191 = vmul.f32 %v175, %v175
  %v192 = vmul.f32 %v176, %v176
  %v193 = vmul.f32 %v177, %v177
  %v194 = vmul.f32 %v178, %v178
  %v195 = vmul.f32 %v179, %v179
  %v196 = vmul.f32 %v180, %v180
  %v197 = vmul.f32 %v181, %v181
  %v198 = vmul.f32 %v182, %v182
  %v199 = vmul.f32 %v183, %v183
  %v200 = vmul.f32 %v184, %v184
  %v201 = vmul.f32 %v185, %v185
  %v202 = vsel %vm104, %v186, 0.0
  %203 = vadd.xlane.f32.xlu0 %v202
  %v204 = vpop.xlane.xlu0 %203
  %v205 = vsel %vm104, %v187, 0.0
  %206 = vadd.xlane.f32.xlu0 %v205
  %v207 = vpop.xlane.xlu0 %206
  %v208 = vsel %vm104, %v188, 0.0
  %209 = vadd.xlane.f32.xlu0 %v208
  %v210 = vpop.xlane.xlu0 %209
  %v211 = vsel %vm104, %v189, 0.0
  %212 = vadd.xlane.f32.xlu0 %v211
  %v213 = vpop.xlane.xlu0 %212
  %v214 = vsel %vm104, %v190, 0.0
  %215 = vadd.xlane.f32.xlu0 %v214
  %v216 = vpop.xlane.xlu0 %215
  %v217 = vsel %vm104, %v191, 0.0
  %218 = vadd.xlane.f32.xlu0 %v217
  %v219 = vpop.xlane.xlu0 %218
  %v220 = vsel %vm104, %v192, 0.0
  %221 = vadd.xlane.f32.xlu0 %v220
  %v222 = vpop.xlane.xlu0 %221
  %v223 = vsel %vm104, %v193, 0.0
  %224 = vadd.xlane.f32.xlu0 %v223
  %v225 = vpop.xlane.xlu0 %224
  %v226 = vsel %vm104, %v194, 0.0
  %227 = vadd.xlane.f32.xlu0 %v226
  %v228 = vpop.xlane.xlu0 %227
  %v229 = vsel %vm104, %v195, 0.0
  %230 = vadd.xlane.f32.xlu0 %v229
  %v231 = vpop.xlane.xlu0 %230
  %v232 = vsel %vm104, %v196, 0.0
  %233 = vadd.xlane.f32.xlu0 %v232
  %v234 = vpop.xlane.xlu0 %233
  %v235 = vsel %vm104, %v197, 0.0
  %236 = vadd.xlane.f32.xlu0 %v235
  %v237 = vpop.xlane.xlu0 %236
  %v238 = vsel %vm104, %v198, 0.0
  %239 = vadd.xlane.f32.xlu0 %v238
  %v240 = vpop.xlane.xlu0 %239
  %v241 = vsel %vm104, %v199, 0.0
  %242 = vadd.xlane.f32.xlu0 %v241
  %v243 = vpop.xlane.xlu0 %242
  %v244 = vsel %vm104, %v200, 0.0
  %245 = vadd.xlane.f32.xlu0 %v244
  %v246 = vpop.xlane.xlu0 %245
  %v247 = vsel %vm104, %v201, 0.0
  %248 = vadd.xlane.f32.xlu0 %v247
  %v249 = vpop.xlane.xlu0 %248
  %v250 = vmul.f32 %v204, %v153
  %v251 = vmul.f32 %v207, %v153
  %v252 = vmul.f32 %v210, %v153
  %v253 = vmul.f32 %v213, %v153
  %v254 = vmul.f32 %v216, %v153
  %v255 = vmul.f32 %v219, %v153
  %v256 = vmul.f32 %v222, %v153
  %v257 = vmul.f32 %v225, %v153
  %v258 = vmul.f32 %v228, %v153
  %v259 = vmul.f32 %v231, %v153
  %v260 = vmul.f32 %v234, %v153
  %v261 = vmul.f32 %v237, %v153
  %v262 = vmul.f32 %v240, %v153
  %v263 = vmul.f32 %v243, %v153
  %v264 = vmul.f32 %v246, %v153
  %v265 = vmul.f32 %v249, %v153
  %v266 = vadd.f32 %v250, 1e-05
  %v267 = vadd.f32 %v251, 1e-05
  %v268 = vadd.f32 %v252, 1e-05
  %v269 = vadd.f32 %v253, 1e-05
  %v270 = vadd.f32 %v254, 1e-05
  %v271 = vadd.f32 %v255, 1e-05
  %v272 = vadd.f32 %v256, 1e-05
  %v273 = vadd.f32 %v257, 1e-05
  %v274 = vadd.f32 %v258, 1e-05
  %v275 = vadd.f32 %v259, 1e-05
  %v276 = vadd.f32 %v260, 1e-05
  %v277 = vadd.f32 %v261, 1e-05
  %v278 = vadd.f32 %v262, 1e-05
  %v279 = vadd.f32 %v263, 1e-05
  %v280 = vadd.f32 %v264, 1e-05
  %v281 = vadd.f32 %v265, 1e-05
  %v282 = vrsqrt.pop %v266
  %v283 = vrsqrt.pop %v267
  %v284 = vrsqrt.pop %v268
  %v285 = vrsqrt.pop %v269
  %v286 = vrsqrt.pop %v270
  %v287 = vrsqrt.pop %v271
  %v288 = vrsqrt.pop %v272
  %v289 = vrsqrt.pop %v273
  %v290 = vrsqrt.pop %v274
  %v291 = vrsqrt.pop %v275
  %v292 = vrsqrt.pop %v276
  %v293 = vrsqrt.pop %v277
  %v294 = vrsqrt.pop %v278
  %v295 = vrsqrt.pop %v279
  %v296 = vrsqrt.pop %v280
  %v297 = vrsqrt.pop %v281
  %v298 = vmul.f32 %v170, %v282
  %v299 = vmul.f32 %v171, %v283
  %v300 = vmul.f32 %v172, %v284
  %v301 = vmul.f32 %v173, %v285
  %v302 = vmul.f32 %v174, %v286
  %v303 = vmul.f32 %v175, %v287
  %v304 = vmul.f32 %v176, %v288
  %v305 = vmul.f32 %v177, %v289
  %v306 = vmul.f32 %v178, %v290
  %v307 = vmul.f32 %v179, %v291
  %v308 = vmul.f32 %v180, %v292
  %v309 = vmul.f32 %v181, %v293
  %v310 = vmul.f32 %v182, %v294
  %v311 = vmul.f32 %v183, %v295
  %v312 = vmul.f32 %v184, %v296
  %v313 = vmul.f32 %v185, %v297
  %v315 = vlaneseq
  %v316 = vshrl.u32 %v315, 7
  %v317 = vsub.s32 0, %v316
  %v318 = vrot.slane %v102, %v317
  %v320 = vmul.f32 %v298, %v318
  %v321 = vmul.f32 %v299, %v318
  %v322 = vmul.f32 %v300, %v318
  %v323 = vmul.f32 %v301, %v318
  %v324 = vmul.f32 %v302, %v318
  %v325 = vmul.f32 %v303, %v318
  %v326 = vmul.f32 %v304, %v318
  %v327 = vmul.f32 %v305, %v318
  %v328 = vmul.f32 %v306, %v318
  %v329 = vmul.f32 %v307, %v318
  %v330 = vmul.f32 %v308, %v318
  %v331 = vmul.f32 %v309, %v318
  %v332 = vmul.f32 %v310, %v318
  %v333 = vmul.f32 %v311, %v318
  %v334 = vmul.f32 %v312, %v318
  %v335 = vmul.f32 %v313, %v318
  %v337 = vlaneseq
  %v338 = vshrl.u32 %v337, 7
  %v339 = vsub.s32 0, %v338
  %v340 = vrot.slane %v103, %v339
  %v342 = vadd.f32 %v320, %v340
  %v343 = vadd.f32 %v321, %v340
  %v344 = vadd.f32 %v322, %v340
  %v345 = vadd.f32 %v323, %v340
  %v346 = vadd.f32 %v324, %v340
  %v347 = vadd.f32 %v325, %v340
  %v348 = vadd.f32 %v326, %v340
  %v349 = vadd.f32 %v327, %v340
  %v350 = vadd.f32 %v328, %v340
  %v351 = vadd.f32 %v329, %v340
  %v352 = vadd.f32 %v330, %v340
  %v353 = vadd.f32 %v331, %v340
  %v354 = vadd.f32 %v332, %v340
  %v355 = vadd.f32 %v333, %v340
  %v356 = vadd.f32 %v334, %v340
  %v357 = vadd.f32 %v335, %v340
  %v358 = vld [vmem:[%s4] sm:$0xff]
  %v359 = vld [vmem:[%s4 + $0x8] sm:$0xff]
  %v360 = vld [vmem:[%s4 + $0x10] sm:$0xff]
  %v361 = vld [vmem:[%s4 + $0x18] sm:$0xff]
  %v362 = vld [vmem:[%s5] sm:$0x1]
  %v364 = vlaneseq
  %v365 = vshrl.u32 %v364, 7
  %v366 = vsub.s32 0, %v365
  %v367 = vrot.slane %v362, %v366
  %v370 = vsel %vm104, %v342, 0
  %v373 = vsel %vm104, %v343, 0
  %v376 = vsel %vm104, %v344, 0
  %v379 = vsel %vm104, %v345, 0
  %v382 = vsel %vm104, %v346, 0
  %v385 = vsel %vm104, %v347, 0
  %v388 = vsel %vm104, %v348, 0
  %v391 = vsel %vm104, %v349, 0
  %v394 = vsel %vm104, %v350, 0
  %v397 = vsel %vm104, %v351, 0
  %v400 = vsel %vm104, %v352, 0
  %v403 = vsel %vm104, %v353, 0
  %v406 = vsel %vm104, %v354, 0
  %v409 = vsel %vm104, %v355, 0
  %v412 = vsel %vm104, %v356, 0
  %v415 = vsel %vm104, %v357, 0
  %417 = vmatprep.subr.mxu0 0.0
  %418 = vmatpush1.msra.mxu0 %v358
  %419 = vmatprep.subr.mxu0 0.0
  %420 = vmatpush1.msra.mxu0 %v359
  %421 = vmatprep.subr.mxu0 0.0
  %422 = vmatpush1.msra.mxu0 %v360
  %423 = vmatprep.subr.mxu0 0.0
  %424 = vmatpush1.msra.mxu0 %v361
  %425 = vmatprep.subr.mxu0 0.0
  %426 = vmatpush1.msra.mxu0 0.0
  %427 = vmatprep.subr.mxu0 0.0
  %428 = vmatpush1.msra.mxu0 0.0
  %429 = vmatprep.subr.mxu0 0.0
  %430 = vmatpush1.msra.mxu0 0.0
  %431 = vmatprep.subr.mxu0 0.0
  %432 = vmatpush1.msra.mxu0 0.0
  %433 = vmatprep.subr.mxu0 0.0
  %434 = vmatpush1.msra.mxu0 0.0
  %435 = vmatprep.subr.mxu0 0.0
  %436 = vmatpush1.msra.mxu0 0.0
  %437 = vmatprep.subr.mxu0 0.0
  %438 = vmatpush1.msra.mxu0 0.0
  %439 = vmatprep.subr.mxu0 0.0
  %440 = vmatpush1.msra.mxu0 0.0
  %441 = vmatprep.subr.mxu0 0.0
  %442 = vmatpush1.msra.mxu0 0.0
  %443 = vmatprep.subr.mxu0 0.0
  %444 = vmatpush1.msra.mxu0 0.0
  %445 = vmatprep.subr.mxu0 0.0
  %446 = vmatpush1.msra.mxu0 0.0
  %447 = vmatprep.subr.mxu0 0.0
  %448 = vmatpush1.msra.mxu0 0.0
  %449 = vmatprep.subr.mxu0 0.0
  %450 = vmatpush1.msra.mxu0 0.0
  %451 = vmatprep.subr.mxu0 0.0
  %452 = vmatpush1.msra.mxu0 0.0
  %453 = vmatprep.subr.mxu0 0.0
  %454 = vmatpush1.msra.mxu0 0.0
  %455 = vmatprep.subr.mxu0 0.0
  %456 = vmatpush1.msra.mxu0 0.0
  %457 = vmatprep.subr.mxu0 0.0
  %458 = vmatpush1.msra.mxu0 0.0
  %459 = vmatprep.subr.mxu0 0.0
  %460 = vmatpush1.msra.mxu0 0.0
  %461 = vmatprep.subr.mxu0 0.0
  %462 = vmatpush1.msra.mxu0 0.0
  %463 = vmatprep.subr.mxu0 0.0
  %464 = vmatpush1.msra.mxu0 0.0
  %465 = vmatprep.subr.mxu0 0.0
  %466 = vmatpush1.msra.mxu0 0.0
  %467 = vmatprep.subr.mxu0 0.0
  %468 = vmatpush1.msra.mxu0 0.0
  %469 = vmatprep.subr.mxu0 0.0
  %470 = vmatpush1.msra.mxu0 0.0
  %471 = vmatprep.subr.mxu0 0.0
  %472 = vmatpush1.msra.mxu0 0.0
  %473 = vmatprep.subr.mxu0 0.0
  %474 = vmatpush1.msra.mxu0 0.0
  %475 = vmatprep.subr.mxu0 0.0
  %476 = vmatpush1.msra.mxu0 0.0
  %477 = vmatprep.subr.mxu0 0.0
  %478 = vmatpush1.msra.mxu0 0.0
  %479 = vmatprep.subr.mxu0 0.0
  %480 = vmatpush1.msra.mxu0 0.0
  %481 = vmatprep.mubr.f32.mxu0 0.0
  %482 = vmatmul.mubr.f32.gmra.mrb[0].mxu0 %v370
  %v483 = vpop.f32.mrb[0].mxu0
  %v484 = vadd.f32 %v367, %v483
  %v485 = vpop.f32.mrb[0].mxu0
  %486 = vmatprep.mubr.f32.mxu0 0.0
  %487 = vmatmul.mubr.f32.gmra.mrb[0].mxu0 %v373
  %v488 = vpop.f32.mrb[0].mxu0
  %v489 = vadd.f32 %v367, %v488
  %v490 = vpop.f32.mrb[0].mxu0
  %491 = vmatprep.mubr.f32.mxu0 0.0
  %492 = vmatmul.mubr.f32.gmra.mrb[0].mxu0 %v376
  %v493 = vpop.f32.mrb[0].mxu0
  %v494 = vadd.f32 %v367, %v493
  %v495 = vpop.f32.mrb[0].mxu0
  %496 = vmatprep.mubr.f32.mxu0 0.0
  %497 = vmatmul.mubr.f32.gmra.mrb[0].mxu0 %v379
  %v498 = vpop.f32.mrb[0].mxu0
  %v499 = vadd.f32 %v367, %v498
  %v500 = vpop.f32.mrb[0].mxu0
  %501 = vmatprep.mubr.f32.mxu0 0.0
  %502 = vmatmul.mubr.f32.gmra.mrb[0].mxu0 %v382
  %v503 = vpop.f32.mrb[0].mxu0
  %v504 = vadd.f32 %v367, %v503
  %v505 = vpop.f32.mrb[0].mxu0
  %506 = vmatprep.mubr.f32.mxu0 0.0
  %507 = vmatmul.mubr.f32.gmra.mrb[0].mxu0 %v385
  %v508 = vpop.f32.mrb[0].mxu0
  %v509 = vadd.f32 %v367, %v508
  %v510 = vpop.f32.mrb[0].mxu0
  %511 = vmatprep.mubr.f32.mxu0 0.0
  %512 = vmatmul.mubr.f32.gmra.mrb[0].mxu0 %v388
  %v513 = vpop.f32.mrb[0].mxu0
  %v514 = vadd.f32 %v367, %v513
  %v515 = vpop.f32.mrb[0].mxu0
  %516 = vmatprep.mubr.f32.mxu0 0.0
  %517 = vmatmul.mubr.f32.gmra.mrb[0].mxu0 %v391
  %v518 = vpop.f32.mrb[0].mxu0
  %v519 = vadd.f32 %v367, %v518
  %v520 = vpop.f32.mrb[0].mxu0
  %521 = vmatprep.mubr.f32.mxu0 0.0
  %522 = vmatmul.mubr.f32.gmra.mrb[0].mxu0 %v394
  %v523 = vpop.f32.mrb[0].mxu0
  %v524 = vadd.f32 %v367, %v523
  %v525 = vpop.f32.mrb[0].mxu0
  %526 = vmatprep.mubr.f32.mxu0 0.0
  %527 = vmatmul.mubr.f32.gmra.mrb[0].mxu0 %v397
  %v528 = vpop.f32.mrb[0].mxu0
  %v529 = vadd.f32 %v367, %v528
  %v530 = vpop.f32.mrb[0].mxu0
  %531 = vmatprep.mubr.f32.mxu0 0.0
  %532 = vmatmul.mubr.f32.gmra.mrb[0].mxu0 %v400
  %v533 = vpop.f32.mrb[0].mxu0
  %v534 = vadd.f32 %v367, %v533
  %v535 = vpop.f32.mrb[0].mxu0
  %536 = vmatprep.mubr.f32.mxu0 0.0
  %537 = vmatmul.mubr.f32.gmra.mrb[0].mxu0 %v403
  %v538 = vpop.f32.mrb[0].mxu0
  %v539 = vadd.f32 %v367, %v538
  %v540 = vpop.f32.mrb[0].mxu0
  %541 = vmatprep.mubr.f32.mxu0 0.0
  %542 = vmatmul.mubr.f32.gmra.mrb[0].mxu0 %v406
  %v543 = vpop.f32.mrb[0].mxu0
  %v544 = vadd.f32 %v367, %v543
  %v545 = vpop.f32.mrb[0].mxu0
  %546 = vmatprep.mubr.f32.mxu0 0.0
  %547 = vmatmul.mubr.f32.gmra.mrb[0].mxu0 %v409
  %v548 = vpop.f32.mrb[0].mxu0
  %v549 = vadd.f32 %v367, %v548
  %v550 = vpop.f32.mrb[0].mxu0
  %551 = vmatprep.mubr.f32.mxu0 0.0
  %552 = vmatmul.mubr.f32.gmra.mrb[0].mxu0 %v412
  %v553 = vpop.f32.mrb[0].mxu0
  %v554 = vadd.f32 %v367, %v553
  %v555 = vpop.f32.mrb[0].mxu0
  %556 = vmatprep.mubr.f32.mxu0 0.0
  %557 = vmatmul.mubr.f32.gmra.mrb[0].mxu0 %v415
  %v558 = vpop.f32.mrb[0].mxu0
  %v559 = vadd.f32 %v367, %v558
  %v560 = vpop.f32.mrb[0].mxu0
  %561 = vdwg.mxu0
  %v562 = vld [vmem:[%s6] sm:$0xff]
  %v563 = vld [vmem:[%s6 + $0x8] sm:$0xff]
  %v564 = vld [vmem:[%s6 + $0x10] sm:$0xff]
  %v565 = vld [vmem:[%s6 + $0x18] sm:$0xff]
  %v566 = vmul.f32 %v484, 0.35355338
  %v567 = vmul.f32 %v489, 0.35355338
  %v568 = vmul.f32 %v494, 0.35355338
  %v569 = vmul.f32 %v499, 0.35355338
  %v570 = vmul.f32 %v504, 0.35355338
  %v571 = vmul.f32 %v509, 0.35355338
  %v572 = vmul.f32 %v514, 0.35355338
  %v573 = vmul.f32 %v519, 0.35355338
  %v574 = vmul.f32 %v524, 0.35355338
  %v575 = vmul.f32 %v529, 0.35355338
  %v576 = vmul.f32 %v534, 0.35355338
  %v577 = vmul.f32 %v539, 0.35355338
  %v578 = vmul.f32 %v544, 0.35355338
  %v579 = vmul.f32 %v549, 0.35355338
  %v580 = vmul.f32 %v554, 0.35355338
  %v581 = vmul.f32 %v559, 0.35355338
  %v582 = vld [vmem:[%s1] sm:$0xff]
  %v583 = vld [vmem:[%s1 + $0x8] sm:$0xff]
  %v584 = vld [vmem:[%s1 + $0x10] sm:$0xff]
  %v585 = vld [vmem:[%s1 + $0x18] sm:$0xff]
  %v586 = vld [vmem:[%s1 + $0x20] sm:$0xff]
  %v587 = vld [vmem:[%s1 + $0x28] sm:$0xff]
  %v588 = vld [vmem:[%s1 + $0x30] sm:$0xff]
  %v589 = vld [vmem:[%s1 + $0x38] sm:$0xff]
  %v590 = vld [vmem:[%s1 + $0x40] sm:$0xff]
  %v591 = vld [vmem:[%s1 + $0x48] sm:$0xff]
  %v592 = vld [vmem:[%s1 + $0x50] sm:$0xff]
  %v593 = vld [vmem:[%s1 + $0x58] sm:$0xff]
  %v594 = vld [vmem:[%s1 + $0x60] sm:$0xff]
  %v595 = vld [vmem:[%s1 + $0x68] sm:$0xff]
  %v596 = vld [vmem:[%s1 + $0x70] sm:$0xff]
  %v597 = vld [vmem:[%s1 + $0x78] sm:$0xff]
  %614 = vrot.lane.b32.xlu0 %v484, 96
  %v615 = vpop.permute.xlu0 %614
  %616 = vrot.lane.b32.xlu0 %v489, 96
  %v617 = vpop.permute.xlu0 %616
  %618 = vrot.lane.b32.xlu0 %v494, 96
  %v619 = vpop.permute.xlu0 %618
  %620 = vrot.lane.b32.xlu0 %v499, 96
  %v621 = vpop.permute.xlu0 %620
  %622 = vrot.lane.b32.xlu0 %v504, 96
  %v623 = vpop.permute.xlu0 %622
  %624 = vrot.lane.b32.xlu0 %v509, 96
  %v625 = vpop.permute.xlu0 %624
  %626 = vrot.lane.b32.xlu0 %v514, 96
  %v627 = vpop.permute.xlu0 %626
  %628 = vrot.lane.b32.xlu0 %v519, 96
  %v629 = vpop.permute.xlu0 %628
  %630 = vrot.lane.b32.xlu0 %v524, 96
  %v631 = vpop.permute.xlu0 %630
  %632 = vrot.lane.b32.xlu0 %v529, 96
  %v633 = vpop.permute.xlu0 %632
  %634 = vrot.lane.b32.xlu0 %v534, 96
  %v635 = vpop.permute.xlu0 %634
  %636 = vrot.lane.b32.xlu0 %v539, 96
  %v637 = vpop.permute.xlu0 %636
  %638 = vrot.lane.b32.xlu0 %v544, 96
  %v639 = vpop.permute.xlu0 %638
  %640 = vrot.lane.b32.xlu0 %v549, 96
  %v641 = vpop.permute.xlu0 %640
  %642 = vrot.lane.b32.xlu0 %v554, 96
  %v643 = vpop.permute.xlu0 %642
  %644 = vrot.lane.b32.xlu0 %v559, 96
  %v645 = vpop.permute.xlu0 %644
  %vm646 = vcmask 64512
  %v648 = vsel %vm646, %v566, 0
  %v651 = vsel %vm646, %v567, 0
  %v654 = vsel %vm646, %v568, 0
  %v657 = vsel %vm646, %v569, 0
  %v660 = vsel %vm646, %v570, 0
  %v663 = vsel %vm646, %v571, 0
  %v666 = vsel %vm646, %v572, 0
  %v669 = vsel %vm646, %v573, 0
  %v672 = vsel %vm646, %v574, 0
  %v675 = vsel %vm646, %v575, 0
  %v678 = vsel %vm646, %v576, 0
  %v681 = vsel %vm646, %v577, 0
  %v684 = vsel %vm646, %v578, 0
  %v687 = vsel %vm646, %v579, 0
  %v690 = vsel %vm646, %v580, 0
  %v693 = vsel %vm646, %v581, 0
  %v695 = vsel %vm646, %v615, 0
  %v697 = vsel %vm646, %v617, 0
  %v699 = vsel %vm646, %v619, 0
  %v701 = vsel %vm646, %v621, 0
  %v703 = vsel %vm646, %v623, 0
  %v705 = vsel %vm646, %v625, 0
  %v707 = vsel %vm646, %v627, 0
  %v709 = vsel %vm646, %v629, 0
  %v711 = vsel %vm646, %v631, 0
  %v713 = vsel %vm646, %v633, 0
  %v715 = vsel %vm646, %v635, 0
  %v717 = vsel %vm646, %v637, 0
  %v719 = vsel %vm646, %v639, 0
  %v721 = vsel %vm646, %v641, 0
  %v723 = vsel %vm646, %v643, 0
  %v725 = vsel %vm646, %v645, 0
  %727 = vmatprep.subr.mxu0 0.0
  %728 = vmatpush1.xpose.msra.mxu0 %v695
  %729 = vmatprep.subr.mxu0 0.0
  %730 = vmatpush1.xpose.msra.mxu0 %v697
  %731 = vmatprep.subr.mxu0 0.0
  %732 = vmatpush1.xpose.msra.mxu0 %v699
  %733 = vmatprep.subr.mxu0 0.0
  %734 = vmatpush1.xpose.msra.mxu0 %v701
  %735 = vmatprep.subr.mxu0 0.0
  %736 = vmatpush1.xpose.msra.mxu0 %v703
  %737 = vmatprep.subr.mxu0 0.0
  %738 = vmatpush1.xpose.msra.mxu0 %v705
  %739 = vmatprep.subr.mxu0 0.0
  %740 = vmatpush1.xpose.msra.mxu0 %v707
  %741 = vmatprep.subr.mxu0 0.0
  %742 = vmatpush1.xpose.msra.mxu0 %v709
  %743 = vmatprep.subr.mxu0 0.0
  %744 = vmatpush1.xpose.msra.mxu0 %v711
  %745 = vmatprep.subr.mxu0 0.0
  %746 = vmatpush1.xpose.msra.mxu0 %v713
  %747 = vmatprep.subr.mxu0 0.0
  %748 = vmatpush1.xpose.msra.mxu0 %v715
  %749 = vmatprep.subr.mxu0 0.0
  %750 = vmatpush1.xpose.msra.mxu0 %v717
  %751 = vmatprep.subr.mxu0 0.0
  %752 = vmatpush1.xpose.msra.mxu0 %v719
  %753 = vmatprep.subr.mxu0 0.0
  %754 = vmatpush1.xpose.msra.mxu0 %v721
  %755 = vmatprep.subr.mxu0 0.0
  %756 = vmatpush1.xpose.msra.mxu0 %v723
  %757 = vmatprep.subr.mxu0 0.0
  %758 = vmatpush1.xpose.msra.mxu0 %v725
  %759 = vmatprep.subr.mxu0 0.0
  %760 = vmatpush1.xpose.msra.mxu0 0.0
  %761 = vmatprep.subr.mxu0 0.0
  %762 = vmatpush1.xpose.msra.mxu0 0.0
  %763 = vmatprep.subr.mxu0 0.0
  %764 = vmatpush1.xpose.msra.mxu0 0.0
  %765 = vmatprep.subr.mxu0 0.0
  %766 = vmatpush1.xpose.msra.mxu0 0.0
  %767 = vmatprep.subr.mxu0 0.0
  %768 = vmatpush1.xpose.msra.mxu0 0.0
  %769 = vmatprep.subr.mxu0 0.0
  %770 = vmatpush1.xpose.msra.mxu0 0.0
  %771 = vmatprep.subr.mxu0 0.0
  %772 = vmatpush1.xpose.msra.mxu0 0.0
  %773 = vmatprep.subr.mxu0 0.0
  %774 = vmatpush1.xpose.msra.mxu0 0.0
  %775 = vmatprep.subr.mxu0 0.0
  %776 = vmatpush1.xpose.msra.mxu0 0.0
  %777 = vmatprep.subr.mxu0 0.0
  %778 = vmatpush1.xpose.msra.mxu0 0.0
  %779 = vmatprep.subr.mxu0 0.0
  %780 = vmatpush1.xpose.msra.mxu0 0.0
  %781 = vmatprep.subr.mxu0 0.0
  %782 = vmatpush1.xpose.msra.mxu0 0.0
  %783 = vmatprep.subr.mxu0 0.0
  %784 = vmatpush1.xpose.msra.mxu0 0.0
  %785 = vmatprep.subr.mxu0 0.0
  %786 = vmatpush1.xpose.msra.mxu0 0.0
  %787 = vmatprep.subr.mxu0 0.0
  %788 = vmatpush1.xpose.msra.mxu0 0.0
  %789 = vmatprep.subr.mxu0 0.0
  %790 = vmatpush1.xpose.msra.mxu0 0.0
  %791 = vmatprep.mubr.f32.mxu0 0.0
  %792 = vmatmul.mubr.f32.gmra.mrb[0].mxu0 %v648
  %v793 = vpop.f32.mrb[0].mxu0
  %v794 = vadd.f32 %v582, %v793
  %v795 = vpop.f32.mrb[0].mxu0
  %796 = vmatprep.mubr.f32.mxu0 0.0
  %797 = vmatmul.mubr.f32.gmra.mrb[0].mxu0 %v651
  %v798 = vpop.f32.mrb[0].mxu0
  %v799 = vadd.f32 %v583, %v798
  %v800 = vpop.f32.mrb[0].mxu0
  %801 = vmatprep.mubr.f32.mxu0 0.0
  %802 = vmatmul.mubr.f32.gmra.mrb[0].mxu0 %v654
  %v803 = vpop.f32.mrb[0].mxu0
  %v804 = vadd.f32 %v584, %v803
  %v805 = vpop.f32.mrb[0].mxu0
  %806 = vmatprep.mubr.f32.mxu0 0.0
  %807 = vmatmul.mubr.f32.gmra.mrb[0].mxu0 %v657
  %v808 = vpop.f32.mrb[0].mxu0
  %v809 = vadd.f32 %v585, %v808
  %v810 = vpop.f32.mrb[0].mxu0
  %811 = vmatprep.mubr.f32.mxu0 0.0
  %812 = vmatmul.mubr.f32.gmra.mrb[0].mxu0 %v660
  %v813 = vpop.f32.mrb[0].mxu0
  %v814 = vadd.f32 %v586, %v813
  %v815 = vpop.f32.mrb[0].mxu0
  %816 = vmatprep.mubr.f32.mxu0 0.0
  %817 = vmatmul.mubr.f32.gmra.mrb[0].mxu0 %v663
  %v818 = vpop.f32.mrb[0].mxu0
  %v819 = vadd.f32 %v587, %v818
  %v820 = vpop.f32.mrb[0].mxu0
  %821 = vmatprep.mubr.f32.mxu0 0.0
  %822 = vmatmul.mubr.f32.gmra.mrb[0].mxu0 %v666
  %v823 = vpop.f32.mrb[0].mxu0
  %v824 = vadd.f32 %v588, %v823
  %v825 = vpop.f32.mrb[0].mxu0
  %826 = vmatprep.mubr.f32.mxu0 0.0
  %827 = vmatmul.mubr.f32.gmra.mrb[0].mxu0 %v669
  %v828 = vpop.f32.mrb[0].mxu0
  %v829 = vadd.f32 %v589, %v828
  %v830 = vpop.f32.mrb[0].mxu0
  %831 = vmatprep.mubr.f32.mxu0 0.0
  %832 = vmatmul.mubr.f32.gmra.mrb[0].mxu0 %v672
  %v833 = vpop.f32.mrb[0].mxu0
  %v834 = vadd.f32 %v590, %v833
  %v835 = vpop.f32.mrb[0].mxu0
  %836 = vmatprep.mubr.f32.mxu0 0.0
  %837 = vmatmul.mubr.f32.gmra.mrb[0].mxu0 %v675
  %v838 = vpop.f32.mrb[0].mxu0
  %v839 = vadd.f32 %v591, %v838
  %v840 = vpop.f32.mrb[0].mxu0
  %841 = vmatprep.mubr.f32.mxu0 0.0
  %842 = vmatmul.mubr.f32.gmra.mrb[0].mxu0 %v678
  %v843 = vpop.f32.mrb[0].mxu0
  %v844 = vadd.f32 %v592, %v843
  %v845 = vpop.f32.mrb[0].mxu0
  %846 = vmatprep.mubr.f32.mxu0 0.0
  %847 = vmatmul.mubr.f32.gmra.mrb[0].mxu0 %v681
  %v848 = vpop.f32.mrb[0].mxu0
  %v849 = vadd.f32 %v593, %v848
  %v850 = vpop.f32.mrb[0].mxu0
  %851 = vmatprep.mubr.f32.mxu0 0.0
  %852 = vmatmul.mubr.f32.gmra.mrb[0].mxu0 %v684
  %v853 = vpop.f32.mrb[0].mxu0
  %v854 = vadd.f32 %v594, %v853
  %v855 = vpop.f32.mrb[0].mxu0
  %856 = vmatprep.mubr.f32.mxu0 0.0
  %857 = vmatmul.mubr.f32.gmra.mrb[0].mxu0 %v687
  %v858 = vpop.f32.mrb[0].mxu0
  %v859 = vadd.f32 %v595, %v858
  %v860 = vpop.f32.mrb[0].mxu0
  %861 = vmatprep.mubr.f32.mxu0 0.0
  %862 = vmatmul.mubr.f32.gmra.mrb[0].mxu0 %v690
  %v863 = vpop.f32.mrb[0].mxu0
  %v864 = vadd.f32 %v596, %v863
  %v865 = vpop.f32.mrb[0].mxu0
  %866 = vmatprep.mubr.f32.mxu0 0.0
  %867 = vmatmul.mubr.f32.gmra.mrb[0].mxu0 %v693
  %v868 = vpop.f32.mrb[0].mxu0
  %v869 = vadd.f32 %v597, %v868
  %v870 = vpop.f32.mrb[0].mxu0
  %871 = vdwg.mxu0
  %872 = vmax.xlane.f32.xlu0 %v794
  %v873 = vpop.xlane.xlu0 %872
  %874 = vmax.xlane.f32.xlu0 %v799
  %v875 = vpop.xlane.xlu0 %874
  %876 = vmax.xlane.f32.xlu0 %v804
  %v877 = vpop.xlane.xlu0 %876
  %878 = vmax.xlane.f32.xlu0 %v809
  %v879 = vpop.xlane.xlu0 %878
  %880 = vmax.xlane.f32.xlu0 %v814
  %v881 = vpop.xlane.xlu0 %880
  %882 = vmax.xlane.f32.xlu0 %v819
  %v883 = vpop.xlane.xlu0 %882
  %884 = vmax.xlane.f32.xlu0 %v824
  %v885 = vpop.xlane.xlu0 %884
  %886 = vmax.xlane.f32.xlu0 %v829
  %v887 = vpop.xlane.xlu0 %886
  %888 = vmax.xlane.f32.xlu0 %v834
  %v889 = vpop.xlane.xlu0 %888
  %890 = vmax.xlane.f32.xlu0 %v839
  %v891 = vpop.xlane.xlu0 %890
  %892 = vmax.xlane.f32.xlu0 %v844
  %v893 = vpop.xlane.xlu0 %892
  %894 = vmax.xlane.f32.xlu0 %v849
  %v895 = vpop.xlane.xlu0 %894
  %896 = vmax.xlane.f32.xlu0 %v854
  %v897 = vpop.xlane.xlu0 %896
  %898 = vmax.xlane.f32.xlu0 %v859
  %v899 = vpop.xlane.xlu0 %898
  %900 = vmax.xlane.f32.xlu0 %v864
  %v901 = vpop.xlane.xlu0 %900
  %902 = vmax.xlane.f32.xlu0 %v869
  %v903 = vpop.xlane.xlu0 %902
  %v904 = vsub.f32 %v794, %v873
  %v905 = vsub.f32 %v799, %v875
  %v906 = vsub.f32 %v804, %v877
  %v907 = vsub.f32 %v809, %v879
  %v908 = vsub.f32 %v814, %v881
  %v909 = vsub.f32 %v819, %v883
  %v910 = vsub.f32 %v824, %v885
  %v911 = vsub.f32 %v829, %v887
  %v912 = vsub.f32 %v834, %v889
  %v913 = vsub.f32 %v839, %v891
  %v914 = vsub.f32 %v844, %v893
  %v915 = vsub.f32 %v849, %v895
  %v916 = vsub.f32 %v854, %v897
  %v917 = vsub.f32 %v859, %v899
  %v918 = vsub.f32 %v864, %v901
  %v919 = vsub.f32 %v869, %v903
  %v920 = vmul.f32 %v904, 1.442695
  %v921 = vpow.pop %v920
  %v922 = vmul.f32 %v905, 1.442695
  %v923 = vpow.pop %v922
  %v924 = vmul.f32 %v906, 1.442695
  %v925 = vpow.pop %v924
  %v926 = vmul.f32 %v907, 1.442695
  %v927 = vpow.pop %v926
  %v928 = vmul.f32 %v908, 1.442695
  %v929 = vpow.pop %v928
  %v930 = vmul.f32 %v909, 1.442695
  %v931 = vpow.pop %v930
  %v932 = vmul.f32 %v910, 1.442695
  %v933 = vpow.pop %v932
  %v934 = vmul.f32 %v911, 1.442695
  %v935 = vpow.pop %v934
  %v936 = vmul.f32 %v912, 1.442695
  %v937 = vpow.pop %v936
  %v938 = vmul.f32 %v913, 1.442695
  %v939 = vpow.pop %v938
  %v940 = vmul.f32 %v914, 1.442695
  %v941 = vpow.pop %v940
  %v942 = vmul.f32 %v915, 1.442695
  %v943 = vpow.pop %v942
  %v944 = vmul.f32 %v916, 1.442695
  %v945 = vpow.pop %v944
  %v946 = vmul.f32 %v917, 1.442695
  %v947 = vpow.pop %v946
  %v948 = vmul.f32 %v918, 1.442695
  %v949 = vpow.pop %v948
  %v950 = vmul.f32 %v919, 1.442695
  %v951 = vpow.pop %v950
  %952 = vadd.xlane.f32.xlu0 %v921
  %v953 = vpop.xlane.xlu0 %952
  %954 = vadd.xlane.f32.xlu0 %v923
  %v955 = vpop.xlane.xlu0 %954
  %956 = vadd.xlane.f32.xlu0 %v925
  %v957 = vpop.xlane.xlu0 %956
  %958 = vadd.xlane.f32.xlu0 %v927
  %v959 = vpop.xlane.xlu0 %958
  %960 = vadd.xlane.f32.xlu0 %v929
  %v961 = vpop.xlane.xlu0 %960
  %962 = vadd.xlane.f32.xlu0 %v931
  %v963 = vpop.xlane.xlu0 %962
  %964 = vadd.xlane.f32.xlu0 %v933
  %v965 = vpop.xlane.xlu0 %964
  %966 = vadd.xlane.f32.xlu0 %v935
  %v967 = vpop.xlane.xlu0 %966
  %968 = vadd.xlane.f32.xlu0 %v937
  %v969 = vpop.xlane.xlu0 %968
  %970 = vadd.xlane.f32.xlu0 %v939
  %v971 = vpop.xlane.xlu0 %970
  %972 = vadd.xlane.f32.xlu0 %v941
  %v973 = vpop.xlane.xlu0 %972
  %974 = vadd.xlane.f32.xlu0 %v943
  %v975 = vpop.xlane.xlu0 %974
  %976 = vadd.xlane.f32.xlu0 %v945
  %v977 = vpop.xlane.xlu0 %976
  %978 = vadd.xlane.f32.xlu0 %v947
  %v979 = vpop.xlane.xlu0 %978
  %980 = vadd.xlane.f32.xlu0 %v949
  %v981 = vpop.xlane.xlu0 %980
  %982 = vadd.xlane.f32.xlu0 %v951
  %v983 = vpop.xlane.xlu0 %982
  %v984 = vrcp.pop %v953
  %v985 = vrcp.pop %v955
  %v986 = vrcp.pop %v957
  %v987 = vrcp.pop %v959
  %v988 = vrcp.pop %v961
  %v989 = vrcp.pop %v963
  %v990 = vrcp.pop %v965
  %v991 = vrcp.pop %v967
  %v992 = vrcp.pop %v969
  %v993 = vrcp.pop %v971
  %v994 = vrcp.pop %v973
  %v995 = vrcp.pop %v975
  %v996 = vrcp.pop %v977
  %v997 = vrcp.pop %v979
  %v998 = vrcp.pop %v981
  %v999 = vrcp.pop %v983
  %v1000 = vmul.f32 %v921, %v984
  %v1001 = vmul.f32 %v923, %v985
  %v1002 = vmul.f32 %v925, %v986
  %v1003 = vmul.f32 %v927, %v987
  %v1004 = vmul.f32 %v929, %v988
  %v1005 = vmul.f32 %v931, %v989
  %v1006 = vmul.f32 %v933, %v990
  %v1007 = vmul.f32 %v935, %v991
  %v1008 = vmul.f32 %v937, %v992
  %v1009 = vmul.f32 %v939, %v993
  %v1010 = vmul.f32 %v941, %v994
  %v1011 = vmul.f32 %v943, %v995
  %v1012 = vmul.f32 %v945, %v996
  %v1013 = vmul.f32 %v947, %v997
  %v1014 = vmul.f32 %v949, %v998
  %v1015 = vmul.f32 %v951, %v999
  %1016 = vrot.lane.b32.xlu0 %v484, 64
  %v1017 = vpop.permute.xlu0 %1016
  %1018 = vrot.lane.b32.xlu0 %v489, 64
  %v1019 = vpop.permute.xlu0 %1018
  %1020 = vrot.lane.b32.xlu0 %v494, 64
  %v1021 = vpop.permute.xlu0 %1020
  %1022 = vrot.lane.b32.xlu0 %v499, 64
  %v1023 = vpop.permute.xlu0 %1022
  %1024 = vrot.lane.b32.xlu0 %v504, 64
  %v1025 = vpop.permute.xlu0 %1024
  %1026 = vrot.lane.b32.xlu0 %v509, 64
  %v1027 = vpop.permute.xlu0 %1026
  %1028 = vrot.lane.b32.xlu0 %v514, 64
  %v1029 = vpop.permute.xlu0 %1028
  %1030 = vrot.lane.b32.xlu0 %v519, 64
  %v1031 = vpop.permute.xlu0 %1030
  %1032 = vrot.lane.b32.xlu0 %v524, 64
  %v1033 = vpop.permute.xlu0 %1032
  %1034 = vrot.lane.b32.xlu0 %v529, 64
  %v1035 = vpop.permute.xlu0 %1034
  %1036 = vrot.lane.b32.xlu0 %v534, 64
  %v1037 = vpop.permute.xlu0 %1036
  %1038 = vrot.lane.b32.xlu0 %v539, 64
  %v1039 = vpop.permute.xlu0 %1038
  %1040 = vrot.lane.b32.xlu0 %v544, 64
  %v1041 = vpop.permute.xlu0 %1040
  %1042 = vrot.lane.b32.xlu0 %v549, 64
  %v1043 = vpop.permute.xlu0 %1042
  %1044 = vrot.lane.b32.xlu0 %v554, 64
  %v1045 = vpop.permute.xlu0 %1044
  %1046 = vrot.lane.b32.xlu0 %v559, 64
  %v1047 = vpop.permute.xlu0 %1046
  %1064 = vmatprep.subr.mxu0 0.0
  %1065 = vmatpush1.msra.mxu0 %v1017
  %1066 = vmatprep.subr.mxu0 0.0
  %1067 = vmatpush1.msra.mxu0 %v1019
  %1068 = vmatprep.subr.mxu0 0.0
  %1069 = vmatpush1.msra.mxu0 %v1021
  %1070 = vmatprep.subr.mxu0 0.0
  %1071 = vmatpush1.msra.mxu0 %v1023
  %1072 = vmatprep.subr.mxu0 0.0
  %1073 = vmatpush1.msra.mxu0 %v1025
  %1074 = vmatprep.subr.mxu0 0.0
  %1075 = vmatpush1.msra.mxu0 %v1027
  %1076 = vmatprep.subr.mxu0 0.0
  %1077 = vmatpush1.msra.mxu0 %v1029
  %1078 = vmatprep.subr.mxu0 0.0
  %1079 = vmatpush1.msra.mxu0 %v1031
  %1080 = vmatprep.subr.mxu0 0.0
  %1081 = vmatpush1.msra.mxu0 %v1033
  %1082 = vmatprep.subr.mxu0 0.0
  %1083 = vmatpush1.msra.mxu0 %v1035
  %1084 = vmatprep.subr.mxu0 0.0
  %1085 = vmatpush1.msra.mxu0 %v1037
  %1086 = vmatprep.subr.mxu0 0.0
  %1087 = vmatpush1.msra.mxu0 %v1039
  %1088 = vmatprep.subr.mxu0 0.0
  %1089 = vmatpush1.msra.mxu0 %v1041
  %1090 = vmatprep.subr.mxu0 0.0
  %1091 = vmatpush1.msra.mxu0 %v1043
  %1092 = vmatprep.subr.mxu0 0.0
  %1093 = vmatpush1.msra.mxu0 %v1045
  %1094 = vmatprep.subr.mxu0 0.0
  %1095 = vmatpush1.msra.mxu0 %v1047
  %1096 = vmatprep.subr.mxu0 0.0
  %1097 = vmatpush1.msra.mxu0 0.0
  %1098 = vmatprep.subr.mxu0 0.0
  %1099 = vmatpush1.msra.mxu0 0.0
  %1100 = vmatprep.subr.mxu0 0.0
  %1101 = vmatpush1.msra.mxu0 0.0
  %1102 = vmatprep.subr.mxu0 0.0
  %1103 = vmatpush1.msra.mxu0 0.0
  %1104 = vmatprep.subr.mxu0 0.0
  %1105 = vmatpush1.msra.mxu0 0.0
  %1106 = vmatprep.subr.mxu0 0.0
  %1107 = vmatpush1.msra.mxu0 0.0
  %1108 = vmatprep.subr.mxu0 0.0
  %1109 = vmatpush1.msra.mxu0 0.0
  %1110 = vmatprep.subr.mxu0 0.0
  %1111 = vmatpush1.msra.mxu0 0.0
  %1112 = vmatprep.subr.mxu0 0.0
  %1113 = vmatpush1.msra.mxu0 0.0
  %1114 = vmatprep.subr.mxu0 0.0
  %1115 = vmatpush1.msra.mxu0 0.0
  %1116 = vmatprep.subr.mxu0 0.0
  %1117 = vmatpush1.msra.mxu0 0.0
  %1118 = vmatprep.subr.mxu0 0.0
  %1119 = vmatpush1.msra.mxu0 0.0
  %1120 = vmatprep.subr.mxu0 0.0
  %1121 = vmatpush1.msra.mxu0 0.0
  %1122 = vmatprep.subr.mxu0 0.0
  %1123 = vmatpush1.msra.mxu0 0.0
  %1124 = vmatprep.subr.mxu0 0.0
  %1125 = vmatpush1.msra.mxu0 0.0
  %1126 = vmatprep.subr.mxu0 0.0
  %1127 = vmatpush1.msra.mxu0 0.0
  %1128 = vmatprep.mubr.f32.mxu0 0.0
  %1129 = vmatmul.mubr.f32.gmra.mrb[0].mxu0 %v1000
  %v1130 = vpop.f32.mrb[0].mxu0
  %v1131 = vadd.f32 0.0, %v1130
  %v1132 = vpop.f32.mrb[0].mxu0
  %1133 = vmatprep.mubr.f32.mxu0 0.0
  %1134 = vmatmul.mubr.f32.gmra.mrb[0].mxu0 %v1001
  %v1135 = vpop.f32.mrb[0].mxu0
  %v1136 = vadd.f32 0.0, %v1135
  %v1137 = vpop.f32.mrb[0].mxu0
  %1138 = vmatprep.mubr.f32.mxu0 0.0
  %1139 = vmatmul.mubr.f32.gmra.mrb[0].mxu0 %v1002
  %v1140 = vpop.f32.mrb[0].mxu0
  %v1141 = vadd.f32 0.0, %v1140
  %v1142 = vpop.f32.mrb[0].mxu0
  %1143 = vmatprep.mubr.f32.mxu0 0.0
  %1144 = vmatmul.mubr.f32.gmra.mrb[0].mxu0 %v1003
  %v1145 = vpop.f32.mrb[0].mxu0
  %v1146 = vadd.f32 0.0, %v1145
  %v1147 = vpop.f32.mrb[0].mxu0
  %1148 = vmatprep.mubr.f32.mxu0 0.0
  %1149 = vmatmul.mubr.f32.gmra.mrb[0].mxu0 %v1004
  %v1150 = vpop.f32.mrb[0].mxu0
  %v1151 = vadd.f32 0.0, %v1150
  %v1152 = vpop.f32.mrb[0].mxu0
  %1153 = vmatprep.mubr.f32.mxu0 0.0
  %1154 = vmatmul.mubr.f32.gmra.mrb[0].mxu0 %v1005
  %v1155 = vpop.f32.mrb[0].mxu0
  %v1156 = vadd.f32 0.0, %v1155
  %v1157 = vpop.f32.mrb[0].mxu0
  %1158 = vmatprep.mubr.f32.mxu0 0.0
  %1159 = vmatmul.mubr.f32.gmra.mrb[0].mxu0 %v1006
  %v1160 = vpop.f32.mrb[0].mxu0
  %v1161 = vadd.f32 0.0, %v1160
  %v1162 = vpop.f32.mrb[0].mxu0
  %1163 = vmatprep.mubr.f32.mxu0 0.0
  %1164 = vmatmul.mubr.f32.gmra.mrb[0].mxu0 %v1007
  %v1165 = vpop.f32.mrb[0].mxu0
  %v1166 = vadd.f32 0.0, %v1165
  %v1167 = vpop.f32.mrb[0].mxu0
  %1168 = vmatprep.mubr.f32.mxu0 0.0
  %1169 = vmatmul.mubr.f32.gmra.mrb[0].mxu0 %v1008
  %v1170 = vpop.f32.mrb[0].mxu0
  %v1171 = vadd.f32 0.0, %v1170
  %v1172 = vpop.f32.mrb[0].mxu0
  %1173 = vmatprep.mubr.f32.mxu0 0.0
  %1174 = vmatmul.mubr.f32.gmra.mrb[0].mxu0 %v1009
  %v1175 = vpop.f32.mrb[0].mxu0
  %v1176 = vadd.f32 0.0, %v1175
  %v1177 = vpop.f32.mrb[0].mxu0
  %1178 = vmatprep.mubr.f32.mxu0 0.0
  %1179 = vmatmul.mubr.f32.gmra.mrb[0].mxu0 %v1010
  %v1180 = vpop.f32.mrb[0].mxu0
  %v1181 = vadd.f32 0.0, %v1180
  %v1182 = vpop.f32.mrb[0].mxu0
  %1183 = vmatprep.mubr.f32.mxu0 0.0
  %1184 = vmatmul.mubr.f32.gmra.mrb[0].mxu0 %v1011
  %v1185 = vpop.f32.mrb[0].mxu0
  %v1186 = vadd.f32 0.0, %v1185
  %v1187 = vpop.f32.mrb[0].mxu0
  %1188 = vmatprep.mubr.f32.mxu0 0.0
  %1189 = vmatmul.mubr.f32.gmra.mrb[0].mxu0 %v1012
  %v1190 = vpop.f32.mrb[0].mxu0
  %v1191 = vadd.f32 0.0, %v1190
  %v1192 = vpop.f32.mrb[0].mxu0
  %1193 = vmatprep.mubr.f32.mxu0 0.0
  %1194 = vmatmul.mubr.f32.gmra.mrb[0].mxu0 %v1013
  %v1195 = vpop.f32.mrb[0].mxu0
  %v1196 = vadd.f32 0.0, %v1195
  %v1197 = vpop.f32.mrb[0].mxu0
  %1198 = vmatprep.mubr.f32.mxu0 0.0
  %1199 = vmatmul.mubr.f32.gmra.mrb[0].mxu0 %v1014
  %v1200 = vpop.f32.mrb[0].mxu0
  %v1201 = vadd.f32 0.0, %v1200
  %v1202 = vpop.f32.mrb[0].mxu0
  %1203 = vmatprep.mubr.f32.mxu0 0.0
  %1204 = vmatmul.mubr.f32.gmra.mrb[0].mxu0 %v1015
  %v1205 = vpop.f32.mrb[0].mxu0
  %v1206 = vadd.f32 0.0, %v1205
  %v1207 = vpop.f32.mrb[0].mxu0
  %1208 = vdwg.mxu0
  %s1209 = scalar_lea.vmem %s1, 128
  %v1210 = vld [vmem:[%s1209] sm:$0xff]
  %v1211 = vld [vmem:[%s1209 + $0x8] sm:$0xff]
  %v1212 = vld [vmem:[%s1209 + $0x10] sm:$0xff]
  %v1213 = vld [vmem:[%s1209 + $0x18] sm:$0xff]
  %v1214 = vld [vmem:[%s1209 + $0x20] sm:$0xff]
  %v1215 = vld [vmem:[%s1209 + $0x28] sm:$0xff]
  %v1216 = vld [vmem:[%s1209 + $0x30] sm:$0xff]
  %v1217 = vld [vmem:[%s1209 + $0x38] sm:$0xff]
  %v1218 = vld [vmem:[%s1209 + $0x40] sm:$0xff]
  %v1219 = vld [vmem:[%s1209 + $0x48] sm:$0xff]
  %v1220 = vld [vmem:[%s1209 + $0x50] sm:$0xff]
  %v1221 = vld [vmem:[%s1209 + $0x58] sm:$0xff]
  %v1222 = vld [vmem:[%s1209 + $0x60] sm:$0xff]
  %v1223 = vld [vmem:[%s1209 + $0x68] sm:$0xff]
  %v1224 = vld [vmem:[%s1209 + $0x70] sm:$0xff]
  %v1225 = vld [vmem:[%s1209 + $0x78] sm:$0xff]
  %1226 = vrot.lane.b32.xlu0 %v566, 120
  %v1227 = vpop.permute.xlu0 %1226
  %1228 = vrot.lane.b32.xlu0 %v567, 120
  %v1229 = vpop.permute.xlu0 %1228
  %1230 = vrot.lane.b32.xlu0 %v568, 120
  %v1231 = vpop.permute.xlu0 %1230
  %1232 = vrot.lane.b32.xlu0 %v569, 120
  %v1233 = vpop.permute.xlu0 %1232
  %1234 = vrot.lane.b32.xlu0 %v570, 120
  %v1235 = vpop.permute.xlu0 %1234
  %1236 = vrot.lane.b32.xlu0 %v571, 120
  %v1237 = vpop.permute.xlu0 %1236
  %1238 = vrot.lane.b32.xlu0 %v572, 120
  %v1239 = vpop.permute.xlu0 %1238
  %1240 = vrot.lane.b32.xlu0 %v573, 120
  %v1241 = vpop.permute.xlu0 %1240
  %1242 = vrot.lane.b32.xlu0 %v574, 120
  %v1243 = vpop.permute.xlu0 %1242
  %1244 = vrot.lane.b32.xlu0 %v575, 120
  %v1245 = vpop.permute.xlu0 %1244
  %1246 = vrot.lane.b32.xlu0 %v576, 120
  %v1247 = vpop.permute.xlu0 %1246
  %1248 = vrot.lane.b32.xlu0 %v577, 120
  %v1249 = vpop.permute.xlu0 %1248
  %1250 = vrot.lane.b32.xlu0 %v578, 120
  %v1251 = vpop.permute.xlu0 %1250
  %1252 = vrot.lane.b32.xlu0 %v579, 120
  %v1253 = vpop.permute.xlu0 %1252
  %1254 = vrot.lane.b32.xlu0 %v580, 120
  %v1255 = vpop.permute.xlu0 %1254
  %1256 = vrot.lane.b32.xlu0 %v581, 120
  %v1257 = vpop.permute.xlu0 %1256
  %1258 = vrot.lane.b32.xlu0 %v484, 88
  %v1259 = vpop.permute.xlu0 %1258
  %1260 = vrot.lane.b32.xlu0 %v489, 88
  %v1261 = vpop.permute.xlu0 %1260
  %1262 = vrot.lane.b32.xlu0 %v494, 88
  %v1263 = vpop.permute.xlu0 %1262
  %1264 = vrot.lane.b32.xlu0 %v499, 88
  %v1265 = vpop.permute.xlu0 %1264
  %1266 = vrot.lane.b32.xlu0 %v504, 88
  %v1267 = vpop.permute.xlu0 %1266
  %1268 = vrot.lane.b32.xlu0 %v509, 88
  %v1269 = vpop.permute.xlu0 %1268
  %1270 = vrot.lane.b32.xlu0 %v514, 88
  %v1271 = vpop.permute.xlu0 %1270
  %1272 = vrot.lane.b32.xlu0 %v519, 88
  %v1273 = vpop.permute.xlu0 %1272
  %1274 = vrot.lane.b32.xlu0 %v524, 88
  %v1275 = vpop.permute.xlu0 %1274
  %1276 = vrot.lane.b32.xlu0 %v529, 88
  %v1277 = vpop.permute.xlu0 %1276
  %1278 = vrot.lane.b32.xlu0 %v534, 88
  %v1279 = vpop.permute.xlu0 %1278
  %1280 = vrot.lane.b32.xlu0 %v539, 88
  %v1281 = vpop.permute.xlu0 %1280
  %1282 = vrot.lane.b32.xlu0 %v544, 88
  %v1283 = vpop.permute.xlu0 %1282
  %1284 = vrot.lane.b32.xlu0 %v549, 88
  %v1285 = vpop.permute.xlu0 %1284
  %1286 = vrot.lane.b32.xlu0 %v554, 88
  %v1287 = vpop.permute.xlu0 %1286
  %1288 = vrot.lane.b32.xlu0 %v559, 88
  %v1289 = vpop.permute.xlu0 %1288
  %v1290 = vsel %vm646, %v1227, 0
  %v1292 = vsel %vm646, %v1229, 0
  %v1294 = vsel %vm646, %v1231, 0
  %v1296 = vsel %vm646, %v1233, 0
  %v1298 = vsel %vm646, %v1235, 0
  %v1300 = vsel %vm646, %v1237, 0
  %v1302 = vsel %vm646, %v1239, 0
  %v1304 = vsel %vm646, %v1241, 0
  %v1306 = vsel %vm646, %v1243, 0
  %v1308 = vsel %vm646, %v1245, 0
  %v1310 = vsel %vm646, %v1247, 0
  %v1312 = vsel %vm646, %v1249, 0
  %v1314 = vsel %vm646, %v1251, 0
  %v1316 = vsel %vm646, %v1253, 0
  %v1318 = vsel %vm646, %v1255, 0
  %v1320 = vsel %vm646, %v1257, 0
  %v1322 = vsel %vm646, %v1259, 0
  %v1324 = vsel %vm646, %v1261, 0
  %v1326 = vsel %vm646, %v1263, 0
  %v1328 = vsel %vm646, %v1265, 0
  %v1330 = vsel %vm646, %v1267, 0
  %v1332 = vsel %vm646, %v1269, 0
  %v1334 = vsel %vm646, %v1271, 0
  %v1336 = vsel %vm646, %v1273, 0
  %v1338 = vsel %vm646, %v1275, 0
  %v1340 = vsel %vm646, %v1277, 0
  %v1342 = vsel %vm646, %v1279, 0
  %v1344 = vsel %vm646, %v1281, 0
  %v1346 = vsel %vm646, %v1283, 0
  %v1348 = vsel %vm646, %v1285, 0
  %v1350 = vsel %vm646, %v1287, 0
  %v1352 = vsel %vm646, %v1289, 0
  %1354 = vmatprep.subr.mxu0 0.0
  %1355 = vmatpush1.xpose.msra.mxu0 %v1322
  %1356 = vmatprep.subr.mxu0 0.0
  %1357 = vmatpush1.xpose.msra.mxu0 %v1324
  %1358 = vmatprep.subr.mxu0 0.0
  %1359 = vmatpush1.xpose.msra.mxu0 %v1326
  %1360 = vmatprep.subr.mxu0 0.0
  %1361 = vmatpush1.xpose.msra.mxu0 %v1328
  %1362 = vmatprep.subr.mxu0 0.0
  %1363 = vmatpush1.xpose.msra.mxu0 %v1330
  %1364 = vmatprep.subr.mxu0 0.0
  %1365 = vmatpush1.xpose.msra.mxu0 %v1332
  %1366 = vmatprep.subr.mxu0 0.0
  %1367 = vmatpush1.xpose.msra.mxu0 %v1334
  %1368 = vmatprep.subr.mxu0 0.0
  %1369 = vmatpush1.xpose.msra.mxu0 %v1336
  %1370 = vmatprep.subr.mxu0 0.0
  %1371 = vmatpush1.xpose.msra.mxu0 %v1338
  %1372 = vmatprep.subr.mxu0 0.0
  %1373 = vmatpush1.xpose.msra.mxu0 %v1340
  %1374 = vmatprep.subr.mxu0 0.0
  %1375 = vmatpush1.xpose.msra.mxu0 %v1342
  %1376 = vmatprep.subr.mxu0 0.0
  %1377 = vmatpush1.xpose.msra.mxu0 %v1344
  %1378 = vmatprep.subr.mxu0 0.0
  %1379 = vmatpush1.xpose.msra.mxu0 %v1346
  %1380 = vmatprep.subr.mxu0 0.0
  %1381 = vmatpush1.xpose.msra.mxu0 %v1348
  %1382 = vmatprep.subr.mxu0 0.0
  %1383 = vmatpush1.xpose.msra.mxu0 %v1350
  %1384 = vmatprep.subr.mxu0 0.0
  %1385 = vmatpush1.xpose.msra.mxu0 %v1352
  %1386 = vmatprep.subr.mxu0 0.0
  %1387 = vmatpush1.xpose.msra.mxu0 0.0
  %1388 = vmatprep.subr.mxu0 0.0
  %1389 = vmatpush1.xpose.msra.mxu0 0.0
  %1390 = vmatprep.subr.mxu0 0.0
  %1391 = vmatpush1.xpose.msra.mxu0 0.0
  %1392 = vmatprep.subr.mxu0 0.0
  %1393 = vmatpush1.xpose.msra.mxu0 0.0
  %1394 = vmatprep.subr.mxu0 0.0
  %1395 = vmatpush1.xpose.msra.mxu0 0.0
  %1396 = vmatprep.subr.mxu0 0.0
  %1397 = vmatpush1.xpose.msra.mxu0 0.0
  %1398 = vmatprep.subr.mxu0 0.0
  %1399 = vmatpush1.xpose.msra.mxu0 0.0
  %1400 = vmatprep.subr.mxu0 0.0
  %1401 = vmatpush1.xpose.msra.mxu0 0.0
  %1402 = vmatprep.subr.mxu0 0.0
  %1403 = vmatpush1.xpose.msra.mxu0 0.0
  %1404 = vmatprep.subr.mxu0 0.0
  %1405 = vmatpush1.xpose.msra.mxu0 0.0
  %1406 = vmatprep.subr.mxu0 0.0
  %1407 = vmatpush1.xpose.msra.mxu0 0.0
  %1408 = vmatprep.subr.mxu0 0.0
  %1409 = vmatpush1.xpose.msra.mxu0 0.0
  %1410 = vmatprep.subr.mxu0 0.0
  %1411 = vmatpush1.xpose.msra.mxu0 0.0
  %1412 = vmatprep.subr.mxu0 0.0
  %1413 = vmatpush1.xpose.msra.mxu0 0.0
  %1414 = vmatprep.subr.mxu0 0.0
  %1415 = vmatpush1.xpose.msra.mxu0 0.0
  %1416 = vmatprep.subr.mxu0 0.0
  %1417 = vmatpush1.xpose.msra.mxu0 0.0
  %1418 = vmatprep.mubr.f32.mxu0 0.0
  %1419 = vmatmul.mubr.f32.gmra.mrb[0].mxu0 %v1290
  %v1420 = vpop.f32.mrb[0].mxu0
  %v1421 = vadd.f32 %v1210, %v1420
  %v1422 = vpop.f32.mrb[0].mxu0
  %1423 = vmatprep.mubr.f32.mxu0 0.0
  %1424 = vmatmul.mubr.f32.gmra.mrb[0].mxu0 %v1292
  %v1425 = vpop.f32.mrb[0].mxu0
  %v1426 = vadd.f32 %v1211, %v1425
  %v1427 = vpop.f32.mrb[0].mxu0
  %1428 = vmatprep.mubr.f32.mxu0 0.0
  %1429 = vmatmul.mubr.f32.gmra.mrb[0].mxu0 %v1294
  %v1430 = vpop.f32.mrb[0].mxu0
  %v1431 = vadd.f32 %v1212, %v1430
  %v1432 = vpop.f32.mrb[0].mxu0
  %1433 = vmatprep.mubr.f32.mxu0 0.0
  %1434 = vmatmul.mubr.f32.gmra.mrb[0].mxu0 %v1296
  %v1435 = vpop.f32.mrb[0].mxu0
  %v1436 = vadd.f32 %v1213, %v1435
  %v1437 = vpop.f32.mrb[0].mxu0
  %1438 = vmatprep.mubr.f32.mxu0 0.0
  %1439 = vmatmul.mubr.f32.gmra.mrb[0].mxu0 %v1298
  %v1440 = vpop.f32.mrb[0].mxu0
  %v1441 = vadd.f32 %v1214, %v1440
  %v1442 = vpop.f32.mrb[0].mxu0
  %1443 = vmatprep.mubr.f32.mxu0 0.0
  %1444 = vmatmul.mubr.f32.gmra.mrb[0].mxu0 %v1300
  %v1445 = vpop.f32.mrb[0].mxu0
  %v1446 = vadd.f32 %v1215, %v1445
  %v1447 = vpop.f32.mrb[0].mxu0
  %1448 = vmatprep.mubr.f32.mxu0 0.0
  %1449 = vmatmul.mubr.f32.gmra.mrb[0].mxu0 %v1302
  %v1450 = vpop.f32.mrb[0].mxu0
  %v1451 = vadd.f32 %v1216, %v1450
  %v1452 = vpop.f32.mrb[0].mxu0
  %1453 = vmatprep.mubr.f32.mxu0 0.0
  %1454 = vmatmul.mubr.f32.gmra.mrb[0].mxu0 %v1304
  %v1455 = vpop.f32.mrb[0].mxu0
  %v1456 = vadd.f32 %v1217, %v1455
  %v1457 = vpop.f32.mrb[0].mxu0
  %1458 = vmatprep.mubr.f32.mxu0 0.0
  %1459 = vmatmul.mubr.f32.gmra.mrb[0].mxu0 %v1306
  %v1460 = vpop.f32.mrb[0].mxu0
  %v1461 = vadd.f32 %v1218, %v1460
  %v1462 = vpop.f32.mrb[0].mxu0
  %1463 = vmatprep.mubr.f32.mxu0 0.0
  %1464 = vmatmul.mubr.f32.gmra.mrb[0].mxu0 %v1308
  %v1465 = vpop.f32.mrb[0].mxu0
  %v1466 = vadd.f32 %v1219, %v1465
  %v1467 = vpop.f32.mrb[0].mxu0
  %1468 = vmatprep.mubr.f32.mxu0 0.0
  %1469 = vmatmul.mubr.f32.gmra.mrb[0].mxu0 %v1310
  %v1470 = vpop.f32.mrb[0].mxu0
  %v1471 = vadd.f32 %v1220, %v1470
  %v1472 = vpop.f32.mrb[0].mxu0
  %1473 = vmatprep.mubr.f32.mxu0 0.0
  %1474 = vmatmul.mubr.f32.gmra.mrb[0].mxu0 %v1312
  %v1475 = vpop.f32.mrb[0].mxu0
  %v1476 = vadd.f32 %v1221, %v1475
  %v1477 = vpop.f32.mrb[0].mxu0
  %1478 = vmatprep.mubr.f32.mxu0 0.0
  %1479 = vmatmul.mubr.f32.gmra.mrb[0].mxu0 %v1314
  %v1480 = vpop.f32.mrb[0].mxu0
  %v1481 = vadd.f32 %v1222, %v1480
  %v1482 = vpop.f32.mrb[0].mxu0
  %1483 = vmatprep.mubr.f32.mxu0 0.0
  %1484 = vmatmul.mubr.f32.gmra.mrb[0].mxu0 %v1316
  %v1485 = vpop.f32.mrb[0].mxu0
  %v1486 = vadd.f32 %v1223, %v1485
  %v1487 = vpop.f32.mrb[0].mxu0
  %1488 = vmatprep.mubr.f32.mxu0 0.0
  %1489 = vmatmul.mubr.f32.gmra.mrb[0].mxu0 %v1318
  %v1490 = vpop.f32.mrb[0].mxu0
  %v1491 = vadd.f32 %v1224, %v1490
  %v1492 = vpop.f32.mrb[0].mxu0
  %1493 = vmatprep.mubr.f32.mxu0 0.0
  %1494 = vmatmul.mubr.f32.gmra.mrb[0].mxu0 %v1320
  %v1495 = vpop.f32.mrb[0].mxu0
  %v1496 = vadd.f32 %v1225, %v1495
  %v1497 = vpop.f32.mrb[0].mxu0
  %1498 = vdwg.mxu0
  %1499 = vmax.xlane.f32.xlu0 %v1421
  %v1500 = vpop.xlane.xlu0 %1499
  %1501 = vmax.xlane.f32.xlu0 %v1426
  %v1502 = vpop.xlane.xlu0 %1501
  %1503 = vmax.xlane.f32.xlu0 %v1431
  %v1504 = vpop.xlane.xlu0 %1503
  %1505 = vmax.xlane.f32.xlu0 %v1436
  %v1506 = vpop.xlane.xlu0 %1505
  %1507 = vmax.xlane.f32.xlu0 %v1441
  %v1508 = vpop.xlane.xlu0 %1507
  %1509 = vmax.xlane.f32.xlu0 %v1446
  %v1510 = vpop.xlane.xlu0 %1509
  %1511 = vmax.xlane.f32.xlu0 %v1451
  %v1512 = vpop.xlane.xlu0 %1511
  %1513 = vmax.xlane.f32.xlu0 %v1456
  %v1514 = vpop.xlane.xlu0 %1513
  %1515 = vmax.xlane.f32.xlu0 %v1461
  %v1516 = vpop.xlane.xlu0 %1515
  %1517 = vmax.xlane.f32.xlu0 %v1466
  %v1518 = vpop.xlane.xlu0 %1517
  %1519 = vmax.xlane.f32.xlu0 %v1471
  %v1520 = vpop.xlane.xlu0 %1519
  %1521 = vmax.xlane.f32.xlu0 %v1476
  %v1522 = vpop.xlane.xlu0 %1521
  %1523 = vmax.xlane.f32.xlu0 %v1481
  %v1524 = vpop.xlane.xlu0 %1523
  %1525 = vmax.xlane.f32.xlu0 %v1486
  %v1526 = vpop.xlane.xlu0 %1525
  %1527 = vmax.xlane.f32.xlu0 %v1491
  %v1528 = vpop.xlane.xlu0 %1527
  %1529 = vmax.xlane.f32.xlu0 %v1496
  %v1530 = vpop.xlane.xlu0 %1529
  %v1531 = vsub.f32 %v1421, %v1500
  %v1532 = vsub.f32 %v1426, %v1502
  %v1533 = vsub.f32 %v1431, %v1504
  %v1534 = vsub.f32 %v1436, %v1506
  %v1535 = vsub.f32 %v1441, %v1508
  %v1536 = vsub.f32 %v1446, %v1510
  %v1537 = vsub.f32 %v1451, %v1512
  %v1538 = vsub.f32 %v1456, %v1514
  %v1539 = vsub.f32 %v1461, %v1516
  %v1540 = vsub.f32 %v1466, %v1518
  %v1541 = vsub.f32 %v1471, %v1520
  %v1542 = vsub.f32 %v1476, %v1522
  %v1543 = vsub.f32 %v1481, %v1524
  %v1544 = vsub.f32 %v1486, %v1526
  %v1545 = vsub.f32 %v1491, %v1528
  %v1546 = vsub.f32 %v1496, %v1530
  %v1547 = vmul.f32 %v1531, 1.442695
  %v1548 = vpow.pop %v1547
  %v1549 = vmul.f32 %v1532, 1.442695
  %v1550 = vpow.pop %v1549
  %v1551 = vmul.f32 %v1533, 1.442695
  %v1552 = vpow.pop %v1551
  %v1553 = vmul.f32 %v1534, 1.442695
  %v1554 = vpow.pop %v1553
  %v1555 = vmul.f32 %v1535, 1.442695
  %v1556 = vpow.pop %v1555
  %v1557 = vmul.f32 %v1536, 1.442695
  %v1558 = vpow.pop %v1557
  %v1559 = vmul.f32 %v1537, 1.442695
  %v1560 = vpow.pop %v1559
  %v1561 = vmul.f32 %v1538, 1.442695
  %v1562 = vpow.pop %v1561
  %v1563 = vmul.f32 %v1539, 1.442695
  %v1564 = vpow.pop %v1563
  %v1565 = vmul.f32 %v1540, 1.442695
  %v1566 = vpow.pop %v1565
  %v1567 = vmul.f32 %v1541, 1.442695
  %v1568 = vpow.pop %v1567
  %v1569 = vmul.f32 %v1542, 1.442695
  %v1570 = vpow.pop %v1569
  %v1571 = vmul.f32 %v1543, 1.442695
  %v1572 = vpow.pop %v1571
  %v1573 = vmul.f32 %v1544, 1.442695
  %v1574 = vpow.pop %v1573
  %v1575 = vmul.f32 %v1545, 1.442695
  %v1576 = vpow.pop %v1575
  %v1577 = vmul.f32 %v1546, 1.442695
  %v1578 = vpow.pop %v1577
  %1579 = vadd.xlane.f32.xlu0 %v1548
  %v1580 = vpop.xlane.xlu0 %1579
  %1581 = vadd.xlane.f32.xlu0 %v1550
  %v1582 = vpop.xlane.xlu0 %1581
  %1583 = vadd.xlane.f32.xlu0 %v1552
  %v1584 = vpop.xlane.xlu0 %1583
  %1585 = vadd.xlane.f32.xlu0 %v1554
  %v1586 = vpop.xlane.xlu0 %1585
  %1587 = vadd.xlane.f32.xlu0 %v1556
  %v1588 = vpop.xlane.xlu0 %1587
  %1589 = vadd.xlane.f32.xlu0 %v1558
  %v1590 = vpop.xlane.xlu0 %1589
  %1591 = vadd.xlane.f32.xlu0 %v1560
  %v1592 = vpop.xlane.xlu0 %1591
  %1593 = vadd.xlane.f32.xlu0 %v1562
  %v1594 = vpop.xlane.xlu0 %1593
  %1595 = vadd.xlane.f32.xlu0 %v1564
  %v1596 = vpop.xlane.xlu0 %1595
  %1597 = vadd.xlane.f32.xlu0 %v1566
  %v1598 = vpop.xlane.xlu0 %1597
  %1599 = vadd.xlane.f32.xlu0 %v1568
  %v1600 = vpop.xlane.xlu0 %1599
  %1601 = vadd.xlane.f32.xlu0 %v1570
  %v1602 = vpop.xlane.xlu0 %1601
  %1603 = vadd.xlane.f32.xlu0 %v1572
  %v1604 = vpop.xlane.xlu0 %1603
  %1605 = vadd.xlane.f32.xlu0 %v1574
  %v1606 = vpop.xlane.xlu0 %1605
  %1607 = vadd.xlane.f32.xlu0 %v1576
  %v1608 = vpop.xlane.xlu0 %1607
  %1609 = vadd.xlane.f32.xlu0 %v1578
  %v1610 = vpop.xlane.xlu0 %1609
  %v1611 = vrcp.pop %v1580
  %v1612 = vrcp.pop %v1582
  %v1613 = vrcp.pop %v1584
  %v1614 = vrcp.pop %v1586
  %v1615 = vrcp.pop %v1588
  %v1616 = vrcp.pop %v1590
  %v1617 = vrcp.pop %v1592
  %v1618 = vrcp.pop %v1594
  %v1619 = vrcp.pop %v1596
  %v1620 = vrcp.pop %v1598
  %v1621 = vrcp.pop %v1600
  %v1622 = vrcp.pop %v1602
  %v1623 = vrcp.pop %v1604
  %v1624 = vrcp.pop %v1606
  %v1625 = vrcp.pop %v1608
  %v1626 = vrcp.pop %v1610
  %v1627 = vmul.f32 %v1548, %v1611
  %v1628 = vmul.f32 %v1550, %v1612
  %v1629 = vmul.f32 %v1552, %v1613
  %v1630 = vmul.f32 %v1554, %v1614
  %v1631 = vmul.f32 %v1556, %v1615
  %v1632 = vmul.f32 %v1558, %v1616
  %v1633 = vmul.f32 %v1560, %v1617
  %v1634 = vmul.f32 %v1562, %v1618
  %v1635 = vmul.f32 %v1564, %v1619
  %v1636 = vmul.f32 %v1566, %v1620
  %v1637 = vmul.f32 %v1568, %v1621
  %v1638 = vmul.f32 %v1570, %v1622
  %v1639 = vmul.f32 %v1572, %v1623
  %v1640 = vmul.f32 %v1574, %v1624
  %v1641 = vmul.f32 %v1576, %v1625
  %v1642 = vmul.f32 %v1578, %v1626
  %1643 = vrot.lane.b32.xlu0 %v484, 56
  %v1644 = vpop.permute.xlu0 %1643
  %1645 = vrot.lane.b32.xlu0 %v489, 56
  %v1646 = vpop.permute.xlu0 %1645
  %1647 = vrot.lane.b32.xlu0 %v494, 56
  %v1648 = vpop.permute.xlu0 %1647
  %1649 = vrot.lane.b32.xlu0 %v499, 56
  %v1650 = vpop.permute.xlu0 %1649
  %1651 = vrot.lane.b32.xlu0 %v504, 56
  %v1652 = vpop.permute.xlu0 %1651
  %1653 = vrot.lane.b32.xlu0 %v509, 56
  %v1654 = vpop.permute.xlu0 %1653
  %1655 = vrot.lane.b32.xlu0 %v514, 56
  %v1656 = vpop.permute.xlu0 %1655
  %1657 = vrot.lane.b32.xlu0 %v519, 56
  %v1658 = vpop.permute.xlu0 %1657
  %1659 = vrot.lane.b32.xlu0 %v524, 56
  %v1660 = vpop.permute.xlu0 %1659
  %1661 = vrot.lane.b32.xlu0 %v529, 56
  %v1662 = vpop.permute.xlu0 %1661
  %1663 = vrot.lane.b32.xlu0 %v534, 56
  %v1664 = vpop.permute.xlu0 %1663
  %1665 = vrot.lane.b32.xlu0 %v539, 56
  %v1666 = vpop.permute.xlu0 %1665
  %1667 = vrot.lane.b32.xlu0 %v544, 56
  %v1668 = vpop.permute.xlu0 %1667
  %1669 = vrot.lane.b32.xlu0 %v549, 56
  %v1670 = vpop.permute.xlu0 %1669
  %1671 = vrot.lane.b32.xlu0 %v554, 56
  %v1672 = vpop.permute.xlu0 %1671
  %1673 = vrot.lane.b32.xlu0 %v559, 56
  %v1674 = vpop.permute.xlu0 %1673
  %1691 = vmatprep.subr.mxu0 0.0
  %1692 = vmatpush1.msra.mxu0 %v1644
  %1693 = vmatprep.subr.mxu0 0.0
  %1694 = vmatpush1.msra.mxu0 %v1646
  %1695 = vmatprep.subr.mxu0 0.0
  %1696 = vmatpush1.msra.mxu0 %v1648
  %1697 = vmatprep.subr.mxu0 0.0
  %1698 = vmatpush1.msra.mxu0 %v1650
  %1699 = vmatprep.subr.mxu0 0.0
  %1700 = vmatpush1.msra.mxu0 %v1652
  %1701 = vmatprep.subr.mxu0 0.0
  %1702 = vmatpush1.msra.mxu0 %v1654
  %1703 = vmatprep.subr.mxu0 0.0
  %1704 = vmatpush1.msra.mxu0 %v1656
  %1705 = vmatprep.subr.mxu0 0.0
  %1706 = vmatpush1.msra.mxu0 %v1658
  %1707 = vmatprep.subr.mxu0 0.0
  %1708 = vmatpush1.msra.mxu0 %v1660
  %1709 = vmatprep.subr.mxu0 0.0
  %1710 = vmatpush1.msra.mxu0 %v1662
  %1711 = vmatprep.subr.mxu0 0.0
  %1712 = vmatpush1.msra.mxu0 %v1664
  %1713 = vmatprep.subr.mxu0 0.0
  %1714 = vmatpush1.msra.mxu0 %v1666
  %1715 = vmatprep.subr.mxu0 0.0
  %1716 = vmatpush1.msra.mxu0 %v1668
  %1717 = vmatprep.subr.mxu0 0.0
  %1718 = vmatpush1.msra.mxu0 %v1670
  %1719 = vmatprep.subr.mxu0 0.0
  %1720 = vmatpush1.msra.mxu0 %v1672
  %1721 = vmatprep.subr.mxu0 0.0
  %1722 = vmatpush1.msra.mxu0 %v1674
  %1723 = vmatprep.subr.mxu0 0.0
  %1724 = vmatpush1.msra.mxu0 0.0
  %1725 = vmatprep.subr.mxu0 0.0
  %1726 = vmatpush1.msra.mxu0 0.0
  %1727 = vmatprep.subr.mxu0 0.0
  %1728 = vmatpush1.msra.mxu0 0.0
  %1729 = vmatprep.subr.mxu0 0.0
  %1730 = vmatpush1.msra.mxu0 0.0
  %1731 = vmatprep.subr.mxu0 0.0
  %1732 = vmatpush1.msra.mxu0 0.0
  %1733 = vmatprep.subr.mxu0 0.0
  %1734 = vmatpush1.msra.mxu0 0.0
  %1735 = vmatprep.subr.mxu0 0.0
  %1736 = vmatpush1.msra.mxu0 0.0
  %1737 = vmatprep.subr.mxu0 0.0
  %1738 = vmatpush1.msra.mxu0 0.0
  %1739 = vmatprep.subr.mxu0 0.0
  %1740 = vmatpush1.msra.mxu0 0.0
  %1741 = vmatprep.subr.mxu0 0.0
  %1742 = vmatpush1.msra.mxu0 0.0
  %1743 = vmatprep.subr.mxu0 0.0
  %1744 = vmatpush1.msra.mxu0 0.0
  %1745 = vmatprep.subr.mxu0 0.0
  %1746 = vmatpush1.msra.mxu0 0.0
  %1747 = vmatprep.subr.mxu0 0.0
  %1748 = vmatpush1.msra.mxu0 0.0
  %1749 = vmatprep.subr.mxu0 0.0
  %1750 = vmatpush1.msra.mxu0 0.0
  %1751 = vmatprep.subr.mxu0 0.0
  %1752 = vmatpush1.msra.mxu0 0.0
  %1753 = vmatprep.subr.mxu0 0.0
  %1754 = vmatpush1.msra.mxu0 0.0
  %1755 = vmatprep.mubr.f32.mxu0 0.0
  %1756 = vmatmul.mubr.f32.gmra.mrb[0].mxu0 %v1627
  %v1757 = vpop.f32.mrb[0].mxu0
  %v1758 = vadd.f32 0.0, %v1757
  %v1759 = vpop.f32.mrb[0].mxu0
  %1760 = vmatprep.mubr.f32.mxu0 0.0
  %1761 = vmatmul.mubr.f32.gmra.mrb[0].mxu0 %v1628
  %v1762 = vpop.f32.mrb[0].mxu0
  %v1763 = vadd.f32 0.0, %v1762
  %v1764 = vpop.f32.mrb[0].mxu0
  %1765 = vmatprep.mubr.f32.mxu0 0.0
  %1766 = vmatmul.mubr.f32.gmra.mrb[0].mxu0 %v1629
  %v1767 = vpop.f32.mrb[0].mxu0
  %v1768 = vadd.f32 0.0, %v1767
  %v1769 = vpop.f32.mrb[0].mxu0
  %1770 = vmatprep.mubr.f32.mxu0 0.0
  %1771 = vmatmul.mubr.f32.gmra.mrb[0].mxu0 %v1630
  %v1772 = vpop.f32.mrb[0].mxu0
  %v1773 = vadd.f32 0.0, %v1772
  %v1774 = vpop.f32.mrb[0].mxu0
  %1775 = vmatprep.mubr.f32.mxu0 0.0
  %1776 = vmatmul.mubr.f32.gmra.mrb[0].mxu0 %v1631
  %v1777 = vpop.f32.mrb[0].mxu0
  %v1778 = vadd.f32 0.0, %v1777
  %v1779 = vpop.f32.mrb[0].mxu0
  %1780 = vmatprep.mubr.f32.mxu0 0.0
  %1781 = vmatmul.mubr.f32.gmra.mrb[0].mxu0 %v1632
  %v1782 = vpop.f32.mrb[0].mxu0
  %v1783 = vadd.f32 0.0, %v1782
  %v1784 = vpop.f32.mrb[0].mxu0
  %1785 = vmatprep.mubr.f32.mxu0 0.0
  %1786 = vmatmul.mubr.f32.gmra.mrb[0].mxu0 %v1633
  %v1787 = vpop.f32.mrb[0].mxu0
  %v1788 = vadd.f32 0.0, %v1787
  %v1789 = vpop.f32.mrb[0].mxu0
  %1790 = vmatprep.mubr.f32.mxu0 0.0
  %1791 = vmatmul.mubr.f32.gmra.mrb[0].mxu0 %v1634
  %v1792 = vpop.f32.mrb[0].mxu0
  %v1793 = vadd.f32 0.0, %v1792
  %v1794 = vpop.f32.mrb[0].mxu0
  %1795 = vmatprep.mubr.f32.mxu0 0.0
  %1796 = vmatmul.mubr.f32.gmra.mrb[0].mxu0 %v1635
  %v1797 = vpop.f32.mrb[0].mxu0
  %v1798 = vadd.f32 0.0, %v1797
  %v1799 = vpop.f32.mrb[0].mxu0
  %1800 = vmatprep.mubr.f32.mxu0 0.0
  %1801 = vmatmul.mubr.f32.gmra.mrb[0].mxu0 %v1636
  %v1802 = vpop.f32.mrb[0].mxu0
  %v1803 = vadd.f32 0.0, %v1802
  %v1804 = vpop.f32.mrb[0].mxu0
  %1805 = vmatprep.mubr.f32.mxu0 0.0
  %1806 = vmatmul.mubr.f32.gmra.mrb[0].mxu0 %v1637
  %v1807 = vpop.f32.mrb[0].mxu0
  %v1808 = vadd.f32 0.0, %v1807
  %v1809 = vpop.f32.mrb[0].mxu0
  %1810 = vmatprep.mubr.f32.mxu0 0.0
  %1811 = vmatmul.mubr.f32.gmra.mrb[0].mxu0 %v1638
  %v1812 = vpop.f32.mrb[0].mxu0
  %v1813 = vadd.f32 0.0, %v1812
  %v1814 = vpop.f32.mrb[0].mxu0
  %1815 = vmatprep.mubr.f32.mxu0 0.0
  %1816 = vmatmul.mubr.f32.gmra.mrb[0].mxu0 %v1639
  %v1817 = vpop.f32.mrb[0].mxu0
  %v1818 = vadd.f32 0.0, %v1817
  %v1819 = vpop.f32.mrb[0].mxu0
  %1820 = vmatprep.mubr.f32.mxu0 0.0
  %1821 = vmatmul.mubr.f32.gmra.mrb[0].mxu0 %v1640
  %v1822 = vpop.f32.mrb[0].mxu0
  %v1823 = vadd.f32 0.0, %v1822
  %v1824 = vpop.f32.mrb[0].mxu0
  %1825 = vmatprep.mubr.f32.mxu0 0.0
  %1826 = vmatmul.mubr.f32.gmra.mrb[0].mxu0 %v1641
  %v1827 = vpop.f32.mrb[0].mxu0
  %v1828 = vadd.f32 0.0, %v1827
  %v1829 = vpop.f32.mrb[0].mxu0
  %1830 = vmatprep.mubr.f32.mxu0 0.0
  %1831 = vmatmul.mubr.f32.gmra.mrb[0].mxu0 %v1642
  %v1832 = vpop.f32.mrb[0].mxu0
  %v1833 = vadd.f32 0.0, %v1832
  %v1834 = vpop.f32.mrb[0].mxu0
  %1835 = vdwg.mxu0
  %v1837 = vsel %vm646, %v1758, 0
  %v1840 = vsel %vm646, %v1763, 0
  %v1843 = vsel %vm646, %v1768, 0
  %v1846 = vsel %vm646, %v1773, 0
  %v1849 = vsel %vm646, %v1778, 0
  %v1852 = vsel %vm646, %v1783, 0
  %v1855 = vsel %vm646, %v1788, 0
  %v1858 = vsel %vm646, %v1793, 0
  %v1861 = vsel %vm646, %v1798, 0
  %v1864 = vsel %vm646, %v1803, 0
  %v1867 = vsel %vm646, %v1808, 0
  %v1870 = vsel %vm646, %v1813, 0
  %v1873 = vsel %vm646, %v1818, 0
  %v1876 = vsel %vm646, %v1823, 0
  %v1879 = vsel %vm646, %v1828, 0
  %v1882 = vsel %vm646, %v1833, 0
  %1884 = vmatprep.subr.mxu0 0.0
  %1885 = vmatpush1.msra.mxu0 %v563
  %1886 = vmatprep.subr.mxu0 0.0
  %1887 = vmatpush1.msra.mxu0 0.0
  %1888 = vmatprep.subr.mxu0 0.0
  %1889 = vmatpush1.msra.mxu0 0.0
  %1890 = vmatprep.subr.mxu0 0.0
  %1891 = vmatpush1.msra.mxu0 0.0
  %1892 = vmatprep.subr.mxu0 0.0
  %1893 = vmatpush1.msra.mxu0 0.0
  %1894 = vmatprep.subr.mxu0 0.0
  %1895 = vmatpush1.msra.mxu0 0.0
  %1896 = vmatprep.subr.mxu0 0.0
  %1897 = vmatpush1.msra.mxu0 0.0
  %1898 = vmatprep.subr.mxu0 0.0
  %1899 = vmatpush1.msra.mxu0 0.0
  %1900 = vmatprep.subr.mxu0 0.0
  %1901 = vmatpush1.msra.mxu0 0.0
  %1902 = vmatprep.subr.mxu0 0.0
  %1903 = vmatpush1.msra.mxu0 0.0
  %1904 = vmatprep.subr.mxu0 0.0
  %1905 = vmatpush1.msra.mxu0 0.0
  %1906 = vmatprep.subr.mxu0 0.0
  %1907 = vmatpush1.msra.mxu0 0.0
  %1908 = vmatprep.subr.mxu0 0.0
  %1909 = vmatpush1.msra.mxu0 0.0
  %1910 = vmatprep.subr.mxu0 0.0
  %1911 = vmatpush1.msra.mxu0 0.0
  %1912 = vmatprep.subr.mxu0 0.0
  %1913 = vmatpush1.msra.mxu0 0.0
  %1914 = vmatprep.subr.mxu0 0.0
  %1915 = vmatpush1.msra.mxu0 0.0
  %1916 = vmatprep.subr.mxu0 0.0
  %1917 = vmatpush1.msra.mxu0 0.0
  %1918 = vmatprep.subr.mxu0 0.0
  %1919 = vmatpush1.msra.mxu0 0.0
  %1920 = vmatprep.subr.mxu0 0.0
  %1921 = vmatpush1.msra.mxu0 0.0
  %1922 = vmatprep.subr.mxu0 0.0
  %1923 = vmatpush1.msra.mxu0 0.0
  %1924 = vmatprep.subr.mxu0 0.0
  %1925 = vmatpush1.msra.mxu0 0.0
  %1926 = vmatprep.subr.mxu0 0.0
  %1927 = vmatpush1.msra.mxu0 0.0
  %1928 = vmatprep.subr.mxu0 0.0
  %1929 = vmatpush1.msra.mxu0 0.0
  %1930 = vmatprep.subr.mxu0 0.0
  %1931 = vmatpush1.msra.mxu0 0.0
  %1932 = vmatprep.subr.mxu0 0.0
  %1933 = vmatpush1.msra.mxu0 0.0
  %1934 = vmatprep.subr.mxu0 0.0
  %1935 = vmatpush1.msra.mxu0 0.0
  %1936 = vmatprep.subr.mxu0 0.0
  %1937 = vmatpush1.msra.mxu0 0.0
  %1938 = vmatprep.subr.mxu0 0.0
  %1939 = vmatpush1.msra.mxu0 0.0
  %1940 = vmatprep.subr.mxu0 0.0
  %1941 = vmatpush1.msra.mxu0 0.0
  %1942 = vmatprep.subr.mxu0 0.0
  %1943 = vmatpush1.msra.mxu0 0.0
  %1944 = vmatprep.subr.mxu0 0.0
  %1945 = vmatpush1.msra.mxu0 0.0
  %1946 = vmatprep.subr.mxu0 0.0
  %1947 = vmatpush1.msra.mxu0 0.0
  %1948 = vmatprep.mubr.f32.mxu0 0.0
  %1949 = vmatmul.mubr.f32.gmra.mrb[0].mxu0 %v1837
  %v1950 = vpop.f32.mrb[0].mxu0
  %v1951 = vadd.f32 0.0, %v1950
  %v1952 = vpop.f32.mrb[0].mxu0
  %1953 = vmatprep.mubr.f32.mxu0 0.0
  %1954 = vmatmul.mubr.f32.gmra.mrb[0].mxu0 %v1840
  %v1955 = vpop.f32.mrb[0].mxu0
  %v1956 = vadd.f32 0.0, %v1955
  %v1957 = vpop.f32.mrb[0].mxu0
  %1958 = vmatprep.mubr.f32.mxu0 0.0
  %1959 = vmatmul.mubr.f32.gmra.mrb[0].mxu0 %v1843
  %v1960 = vpop.f32.mrb[0].mxu0
  %v1961 = vadd.f32 0.0, %v1960
  %v1962 = vpop.f32.mrb[0].mxu0
  %1963 = vmatprep.mubr.f32.mxu0 0.0
  %1964 = vmatmul.mubr.f32.gmra.mrb[0].mxu0 %v1846
  %v1965 = vpop.f32.mrb[0].mxu0
  %v1966 = vadd.f32 0.0, %v1965
  %v1967 = vpop.f32.mrb[0].mxu0
  %1968 = vmatprep.mubr.f32.mxu0 0.0
  %1969 = vmatmul.mubr.f32.gmra.mrb[0].mxu0 %v1849
  %v1970 = vpop.f32.mrb[0].mxu0
  %v1971 = vadd.f32 0.0, %v1970
  %v1972 = vpop.f32.mrb[0].mxu0
  %1973 = vmatprep.mubr.f32.mxu0 0.0
  %1974 = vmatmul.mubr.f32.gmra.mrb[0].mxu0 %v1852
  %v1975 = vpop.f32.mrb[0].mxu0
  %v1976 = vadd.f32 0.0, %v1975
  %v1977 = vpop.f32.mrb[0].mxu0
  %1978 = vmatprep.mubr.f32.mxu0 0.0
  %1979 = vmatmul.mubr.f32.gmra.mrb[0].mxu0 %v1855
  %v1980 = vpop.f32.mrb[0].mxu0
  %v1981 = vadd.f32 0.0, %v1980
  %v1982 = vpop.f32.mrb[0].mxu0
  %1983 = vmatprep.mubr.f32.mxu0 0.0
  %1984 = vmatmul.mubr.f32.gmra.mrb[0].mxu0 %v1858
  %v1985 = vpop.f32.mrb[0].mxu0
  %v1986 = vadd.f32 0.0, %v1985
  %v1987 = vpop.f32.mrb[0].mxu0
  %1988 = vmatprep.mubr.f32.mxu0 0.0
  %1989 = vmatmul.mubr.f32.gmra.mrb[0].mxu0 %v1861
  %v1990 = vpop.f32.mrb[0].mxu0
  %v1991 = vadd.f32 0.0, %v1990
  %v1992 = vpop.f32.mrb[0].mxu0
  %1993 = vmatprep.mubr.f32.mxu0 0.0
  %1994 = vmatmul.mubr.f32.gmra.mrb[0].mxu0 %v1864
  %v1995 = vpop.f32.mrb[0].mxu0
  %v1996 = vadd.f32 0.0, %v1995
  %v1997 = vpop.f32.mrb[0].mxu0
  %1998 = vmatprep.mubr.f32.mxu0 0.0
  %1999 = vmatmul.mubr.f32.gmra.mrb[0].mxu0 %v1867
  %v2000 = vpop.f32.mrb[0].mxu0
  %v2001 = vadd.f32 0.0, %v2000
  %v2002 = vpop.f32.mrb[0].mxu0
  %2003 = vmatprep.mubr.f32.mxu0 0.0
  %2004 = vmatmul.mubr.f32.gmra.mrb[0].mxu0 %v1870
  %v2005 = vpop.f32.mrb[0].mxu0
  %v2006 = vadd.f32 0.0, %v2005
  %v2007 = vpop.f32.mrb[0].mxu0
  %2008 = vmatprep.mubr.f32.mxu0 0.0
  %2009 = vmatmul.mubr.f32.gmra.mrb[0].mxu0 %v1873
  %v2010 = vpop.f32.mrb[0].mxu0
  %v2011 = vadd.f32 0.0, %v2010
  %v2012 = vpop.f32.mrb[0].mxu0
  %2013 = vmatprep.mubr.f32.mxu0 0.0
  %2014 = vmatmul.mubr.f32.gmra.mrb[0].mxu0 %v1876
  %v2015 = vpop.f32.mrb[0].mxu0
  %v2016 = vadd.f32 0.0, %v2015
  %v2017 = vpop.f32.mrb[0].mxu0
  %2018 = vmatprep.mubr.f32.mxu0 0.0
  %2019 = vmatmul.mubr.f32.gmra.mrb[0].mxu0 %v1879
  %v2020 = vpop.f32.mrb[0].mxu0
  %v2021 = vadd.f32 0.0, %v2020
  %v2022 = vpop.f32.mrb[0].mxu0
  %2023 = vmatprep.mubr.f32.mxu0 0.0
  %2024 = vmatmul.mubr.f32.gmra.mrb[0].mxu0 %v1882
  %v2025 = vpop.f32.mrb[0].mxu0
  %v2026 = vadd.f32 0.0, %v2025
  %v2027 = vpop.f32.mrb[0].mxu0
  %2028 = vdwg.mxu0
  %v2030 = vsel %vm646, %v1131, 0
  %v2033 = vsel %vm646, %v1136, 0
  %v2036 = vsel %vm646, %v1141, 0
  %v2039 = vsel %vm646, %v1146, 0
  %v2042 = vsel %vm646, %v1151, 0
  %v2045 = vsel %vm646, %v1156, 0
  %v2048 = vsel %vm646, %v1161, 0
  %v2051 = vsel %vm646, %v1166, 0
  %v2054 = vsel %vm646, %v1171, 0
  %v2057 = vsel %vm646, %v1176, 0
  %v2060 = vsel %vm646, %v1181, 0
  %v2063 = vsel %vm646, %v1186, 0
  %v2066 = vsel %vm646, %v1191, 0
  %v2069 = vsel %vm646, %v1196, 0
  %v2072 = vsel %vm646, %v1201, 0
  %v2075 = vsel %vm646, %v1206, 0
  %2077 = vmatprep.subr.mxu0 0.0
  %2078 = vmatpush1.msra.mxu0 %v562
  %2079 = vmatprep.subr.mxu0 0.0
  %2080 = vmatpush1.msra.mxu0 0.0
  %2081 = vmatprep.subr.mxu0 0.0
  %2082 = vmatpush1.msra.mxu0 0.0
  %2083 = vmatprep.subr.mxu0 0.0
  %2084 = vmatpush1.msra.mxu0 0.0
  %2085 = vmatprep.subr.mxu0 0.0
  %2086 = vmatpush1.msra.mxu0 0.0
  %2087 = vmatprep.subr.mxu0 0.0
  %2088 = vmatpush1.msra.mxu0 0.0
  %2089 = vmatprep.subr.mxu0 0.0
  %2090 = vmatpush1.msra.mxu0 0.0
  %2091 = vmatprep.subr.mxu0 0.0
  %2092 = vmatpush1.msra.mxu0 0.0
  %2093 = vmatprep.subr.mxu0 0.0
  %2094 = vmatpush1.msra.mxu0 0.0
  %2095 = vmatprep.subr.mxu0 0.0
  %2096 = vmatpush1.msra.mxu0 0.0
  %2097 = vmatprep.subr.mxu0 0.0
  %2098 = vmatpush1.msra.mxu0 0.0
  %2099 = vmatprep.subr.mxu0 0.0
  %2100 = vmatpush1.msra.mxu0 0.0
  %2101 = vmatprep.subr.mxu0 0.0
  %2102 = vmatpush1.msra.mxu0 0.0
  %2103 = vmatprep.subr.mxu0 0.0
  %2104 = vmatpush1.msra.mxu0 0.0
  %2105 = vmatprep.subr.mxu0 0.0
  %2106 = vmatpush1.msra.mxu0 0.0
  %2107 = vmatprep.subr.mxu0 0.0
  %2108 = vmatpush1.msra.mxu0 0.0
  %2109 = vmatprep.subr.mxu0 0.0
  %2110 = vmatpush1.msra.mxu0 0.0
  %2111 = vmatprep.subr.mxu0 0.0
  %2112 = vmatpush1.msra.mxu0 0.0
  %2113 = vmatprep.subr.mxu0 0.0
  %2114 = vmatpush1.msra.mxu0 0.0
  %2115 = vmatprep.subr.mxu0 0.0
  %2116 = vmatpush1.msra.mxu0 0.0
  %2117 = vmatprep.subr.mxu0 0.0
  %2118 = vmatpush1.msra.mxu0 0.0
  %2119 = vmatprep.subr.mxu0 0.0
  %2120 = vmatpush1.msra.mxu0 0.0
  %2121 = vmatprep.subr.mxu0 0.0
  %2122 = vmatpush1.msra.mxu0 0.0
  %2123 = vmatprep.subr.mxu0 0.0
  %2124 = vmatpush1.msra.mxu0 0.0
  %2125 = vmatprep.subr.mxu0 0.0
  %2126 = vmatpush1.msra.mxu0 0.0
  %2127 = vmatprep.subr.mxu0 0.0
  %2128 = vmatpush1.msra.mxu0 0.0
  %2129 = vmatprep.subr.mxu0 0.0
  %2130 = vmatpush1.msra.mxu0 0.0
  %2131 = vmatprep.subr.mxu0 0.0
  %2132 = vmatpush1.msra.mxu0 0.0
  %2133 = vmatprep.subr.mxu0 0.0
  %2134 = vmatpush1.msra.mxu0 0.0
  %2135 = vmatprep.subr.mxu0 0.0
  %2136 = vmatpush1.msra.mxu0 0.0
  %2137 = vmatprep.subr.mxu0 0.0
  %2138 = vmatpush1.msra.mxu0 0.0
  %2139 = vmatprep.subr.mxu0 0.0
  %2140 = vmatpush1.msra.mxu0 0.0
  %2141 = vmatprep.mubr.f32.mxu0 0.0
  %2142 = vmatmul.mubr.f32.gmra.mrb[0].mxu0 %v2030
  %v2143 = vpop.f32.mrb[0].mxu0
  %v2144 = vadd.f32 %v1951, %v2143
  %v2145 = vpop.f32.mrb[0].mxu0
  %2146 = vmatprep.mubr.f32.mxu0 0.0
  %2147 = vmatmul.mubr.f32.gmra.mrb[0].mxu0 %v2033
  %v2148 = vpop.f32.mrb[0].mxu0
  %v2149 = vadd.f32 %v1956, %v2148
  %v2150 = vpop.f32.mrb[0].mxu0
  %2151 = vmatprep.mubr.f32.mxu0 0.0
  %2152 = vmatmul.mubr.f32.gmra.mrb[0].mxu0 %v2036
  %v2153 = vpop.f32.mrb[0].mxu0
  %v2154 = vadd.f32 %v1961, %v2153
  %v2155 = vpop.f32.mrb[0].mxu0
  %2156 = vmatprep.mubr.f32.mxu0 0.0
  %2157 = vmatmul.mubr.f32.gmra.mrb[0].mxu0 %v2039
  %v2158 = vpop.f32.mrb[0].mxu0
  %v2159 = vadd.f32 %v1966, %v2158
  %v2160 = vpop.f32.mrb[0].mxu0
  %2161 = vmatprep.mubr.f32.mxu0 0.0
  %2162 = vmatmul.mubr.f32.gmra.mrb[0].mxu0 %v2042
  %v2163 = vpop.f32.mrb[0].mxu0
  %v2164 = vadd.f32 %v1971, %v2163
  %v2165 = vpop.f32.mrb[0].mxu0
  %2166 = vmatprep.mubr.f32.mxu0 0.0
  %2167 = vmatmul.mubr.f32.gmra.mrb[0].mxu0 %v2045
  %v2168 = vpop.f32.mrb[0].mxu0
  %v2169 = vadd.f32 %v1976, %v2168
  %v2170 = vpop.f32.mrb[0].mxu0
  %2171 = vmatprep.mubr.f32.mxu0 0.0
  %2172 = vmatmul.mubr.f32.gmra.mrb[0].mxu0 %v2048
  %v2173 = vpop.f32.mrb[0].mxu0
  %v2174 = vadd.f32 %v1981, %v2173
  %v2175 = vpop.f32.mrb[0].mxu0
  %2176 = vmatprep.mubr.f32.mxu0 0.0
  %2177 = vmatmul.mubr.f32.gmra.mrb[0].mxu0 %v2051
  %v2178 = vpop.f32.mrb[0].mxu0
  %v2179 = vadd.f32 %v1986, %v2178
  %v2180 = vpop.f32.mrb[0].mxu0
  %2181 = vmatprep.mubr.f32.mxu0 0.0
  %2182 = vmatmul.mubr.f32.gmra.mrb[0].mxu0 %v2054
  %v2183 = vpop.f32.mrb[0].mxu0
  %v2184 = vadd.f32 %v1991, %v2183
  %v2185 = vpop.f32.mrb[0].mxu0
  %2186 = vmatprep.mubr.f32.mxu0 0.0
  %2187 = vmatmul.mubr.f32.gmra.mrb[0].mxu0 %v2057
  %v2188 = vpop.f32.mrb[0].mxu0
  %v2189 = vadd.f32 %v1996, %v2188
  %v2190 = vpop.f32.mrb[0].mxu0
  %2191 = vmatprep.mubr.f32.mxu0 0.0
  %2192 = vmatmul.mubr.f32.gmra.mrb[0].mxu0 %v2060
  %v2193 = vpop.f32.mrb[0].mxu0
  %v2194 = vadd.f32 %v2001, %v2193
  %v2195 = vpop.f32.mrb[0].mxu0
  %2196 = vmatprep.mubr.f32.mxu0 0.0
  %2197 = vmatmul.mubr.f32.gmra.mrb[0].mxu0 %v2063
  %v2198 = vpop.f32.mrb[0].mxu0
  %v2199 = vadd.f32 %v2006, %v2198
  %v2200 = vpop.f32.mrb[0].mxu0
  %2201 = vmatprep.mubr.f32.mxu0 0.0
  %2202 = vmatmul.mubr.f32.gmra.mrb[0].mxu0 %v2066
  %v2203 = vpop.f32.mrb[0].mxu0
  %v2204 = vadd.f32 %v2011, %v2203
  %v2205 = vpop.f32.mrb[0].mxu0
  %2206 = vmatprep.mubr.f32.mxu0 0.0
  %2207 = vmatmul.mubr.f32.gmra.mrb[0].mxu0 %v2069
  %v2208 = vpop.f32.mrb[0].mxu0
  %v2209 = vadd.f32 %v2016, %v2208
  %v2210 = vpop.f32.mrb[0].mxu0
  %2211 = vmatprep.mubr.f32.mxu0 0.0
  %2212 = vmatmul.mubr.f32.gmra.mrb[0].mxu0 %v2072
  %v2213 = vpop.f32.mrb[0].mxu0
  %v2214 = vadd.f32 %v2021, %v2213
  %v2215 = vpop.f32.mrb[0].mxu0
  %2216 = vmatprep.mubr.f32.mxu0 0.0
  %2217 = vmatmul.mubr.f32.gmra.mrb[0].mxu0 %v2075
  %v2218 = vpop.f32.mrb[0].mxu0
  %v2219 = vadd.f32 %v2026, %v2218
  %v2220 = vpop.f32.mrb[0].mxu0
  %2221 = vdwg.mxu0
  %s2222 = scalar_lea.vmem %s1, 256
  %v2223 = vld [vmem:[%s2222] sm:$0xff]
  %v2224 = vld [vmem:[%s2222 + $0x8] sm:$0xff]
  %v2225 = vld [vmem:[%s2222 + $0x10] sm:$0xff]
  %v2226 = vld [vmem:[%s2222 + $0x18] sm:$0xff]
  %v2227 = vld [vmem:[%s2222 + $0x20] sm:$0xff]
  %v2228 = vld [vmem:[%s2222 + $0x28] sm:$0xff]
  %v2229 = vld [vmem:[%s2222 + $0x30] sm:$0xff]
  %v2230 = vld [vmem:[%s2222 + $0x38] sm:$0xff]
  %v2231 = vld [vmem:[%s2222 + $0x40] sm:$0xff]
  %v2232 = vld [vmem:[%s2222 + $0x48] sm:$0xff]
  %v2233 = vld [vmem:[%s2222 + $0x50] sm:$0xff]
  %v2234 = vld [vmem:[%s2222 + $0x58] sm:$0xff]
  %v2235 = vld [vmem:[%s2222 + $0x60] sm:$0xff]
  %v2236 = vld [vmem:[%s2222 + $0x68] sm:$0xff]
  %v2237 = vld [vmem:[%s2222 + $0x70] sm:$0xff]
  %v2238 = vld [vmem:[%s2222 + $0x78] sm:$0xff]
  %2239 = vrot.lane.b32.xlu0 %v566, 112
  %v2240 = vpop.permute.xlu0 %2239
  %2241 = vrot.lane.b32.xlu0 %v567, 112
  %v2242 = vpop.permute.xlu0 %2241
  %2243 = vrot.lane.b32.xlu0 %v568, 112
  %v2244 = vpop.permute.xlu0 %2243
  %2245 = vrot.lane.b32.xlu0 %v569, 112
  %v2246 = vpop.permute.xlu0 %2245
  %2247 = vrot.lane.b32.xlu0 %v570, 112
  %v2248 = vpop.permute.xlu0 %2247
  %2249 = vrot.lane.b32.xlu0 %v571, 112
  %v2250 = vpop.permute.xlu0 %2249
  %2251 = vrot.lane.b32.xlu0 %v572, 112
  %v2252 = vpop.permute.xlu0 %2251
  %2253 = vrot.lane.b32.xlu0 %v573, 112
  %v2254 = vpop.permute.xlu0 %2253
  %2255 = vrot.lane.b32.xlu0 %v574, 112
  %v2256 = vpop.permute.xlu0 %2255
  %2257 = vrot.lane.b32.xlu0 %v575, 112
  %v2258 = vpop.permute.xlu0 %2257
  %2259 = vrot.lane.b32.xlu0 %v576, 112
  %v2260 = vpop.permute.xlu0 %2259
  %2261 = vrot.lane.b32.xlu0 %v577, 112
  %v2262 = vpop.permute.xlu0 %2261
  %2263 = vrot.lane.b32.xlu0 %v578, 112
  %v2264 = vpop.permute.xlu0 %2263
  %2265 = vrot.lane.b32.xlu0 %v579, 112
  %v2266 = vpop.permute.xlu0 %2265
  %2267 = vrot.lane.b32.xlu0 %v580, 112
  %v2268 = vpop.permute.xlu0 %2267
  %2269 = vrot.lane.b32.xlu0 %v581, 112
  %v2270 = vpop.permute.xlu0 %2269
  %2271 = vrot.lane.b32.xlu0 %v484, 80
  %v2272 = vpop.permute.xlu0 %2271
  %2273 = vrot.lane.b32.xlu0 %v489, 80
  %v2274 = vpop.permute.xlu0 %2273
  %2275 = vrot.lane.b32.xlu0 %v494, 80
  %v2276 = vpop.permute.xlu0 %2275
  %2277 = vrot.lane.b32.xlu0 %v499, 80
  %v2278 = vpop.permute.xlu0 %2277
  %2279 = vrot.lane.b32.xlu0 %v504, 80
  %v2280 = vpop.permute.xlu0 %2279
  %2281 = vrot.lane.b32.xlu0 %v509, 80
  %v2282 = vpop.permute.xlu0 %2281
  %2283 = vrot.lane.b32.xlu0 %v514, 80
  %v2284 = vpop.permute.xlu0 %2283
  %2285 = vrot.lane.b32.xlu0 %v519, 80
  %v2286 = vpop.permute.xlu0 %2285
  %2287 = vrot.lane.b32.xlu0 %v524, 80
  %v2288 = vpop.permute.xlu0 %2287
  %2289 = vrot.lane.b32.xlu0 %v529, 80
  %v2290 = vpop.permute.xlu0 %2289
  %2291 = vrot.lane.b32.xlu0 %v534, 80
  %v2292 = vpop.permute.xlu0 %2291
  %2293 = vrot.lane.b32.xlu0 %v539, 80
  %v2294 = vpop.permute.xlu0 %2293
  %2295 = vrot.lane.b32.xlu0 %v544, 80
  %v2296 = vpop.permute.xlu0 %2295
  %2297 = vrot.lane.b32.xlu0 %v549, 80
  %v2298 = vpop.permute.xlu0 %2297
  %2299 = vrot.lane.b32.xlu0 %v554, 80
  %v2300 = vpop.permute.xlu0 %2299
  %2301 = vrot.lane.b32.xlu0 %v559, 80
  %v2302 = vpop.permute.xlu0 %2301
  %v2303 = vsel %vm646, %v2240, 0
  %v2305 = vsel %vm646, %v2242, 0
  %v2307 = vsel %vm646, %v2244, 0
  %v2309 = vsel %vm646, %v2246, 0
  %v2311 = vsel %vm646, %v2248, 0
  %v2313 = vsel %vm646, %v2250, 0
  %v2315 = vsel %vm646, %v2252, 0
  %v2317 = vsel %vm646, %v2254, 0
  %v2319 = vsel %vm646, %v2256, 0
  %v2321 = vsel %vm646, %v2258, 0
  %v2323 = vsel %vm646, %v2260, 0
  %v2325 = vsel %vm646, %v2262, 0
  %v2327 = vsel %vm646, %v2264, 0
  %v2329 = vsel %vm646, %v2266, 0
  %v2331 = vsel %vm646, %v2268, 0
  %v2333 = vsel %vm646, %v2270, 0
  %v2335 = vsel %vm646, %v2272, 0
  %v2337 = vsel %vm646, %v2274, 0
  %v2339 = vsel %vm646, %v2276, 0
  %v2341 = vsel %vm646, %v2278, 0
  %v2343 = vsel %vm646, %v2280, 0
  %v2345 = vsel %vm646, %v2282, 0
  %v2347 = vsel %vm646, %v2284, 0
  %v2349 = vsel %vm646, %v2286, 0
  %v2351 = vsel %vm646, %v2288, 0
  %v2353 = vsel %vm646, %v2290, 0
  %v2355 = vsel %vm646, %v2292, 0
  %v2357 = vsel %vm646, %v2294, 0
  %v2359 = vsel %vm646, %v2296, 0
  %v2361 = vsel %vm646, %v2298, 0
  %v2363 = vsel %vm646, %v2300, 0
  %v2365 = vsel %vm646, %v2302, 0
  %2367 = vmatprep.subr.mxu0 0.0
  %2368 = vmatpush1.xpose.msra.mxu0 %v2335
  %2369 = vmatprep.subr.mxu0 0.0
  %2370 = vmatpush1.xpose.msra.mxu0 %v2337
  %2371 = vmatprep.subr.mxu0 0.0
  %2372 = vmatpush1.xpose.msra.mxu0 %v2339
  %2373 = vmatprep.subr.mxu0 0.0
  %2374 = vmatpush1.xpose.msra.mxu0 %v2341
  %2375 = vmatprep.subr.mxu0 0.0
  %2376 = vmatpush1.xpose.msra.mxu0 %v2343
  %2377 = vmatprep.subr.mxu0 0.0
  %2378 = vmatpush1.xpose.msra.mxu0 %v2345
  %2379 = vmatprep.subr.mxu0 0.0
  %2380 = vmatpush1.xpose.msra.mxu0 %v2347
  %2381 = vmatprep.subr.mxu0 0.0
  %2382 = vmatpush1.xpose.msra.mxu0 %v2349
  %2383 = vmatprep.subr.mxu0 0.0
  %2384 = vmatpush1.xpose.msra.mxu0 %v2351
  %2385 = vmatprep.subr.mxu0 0.0
  %2386 = vmatpush1.xpose.msra.mxu0 %v2353
  %2387 = vmatprep.subr.mxu0 0.0
  %2388 = vmatpush1.xpose.msra.mxu0 %v2355
  %2389 = vmatprep.subr.mxu0 0.0
  %2390 = vmatpush1.xpose.msra.mxu0 %v2357
  %2391 = vmatprep.subr.mxu0 0.0
  %2392 = vmatpush1.xpose.msra.mxu0 %v2359
  %2393 = vmatprep.subr.mxu0 0.0
  %2394 = vmatpush1.xpose.msra.mxu0 %v2361
  %2395 = vmatprep.subr.mxu0 0.0
  %2396 = vmatpush1.xpose.msra.mxu0 %v2363
  %2397 = vmatprep.subr.mxu0 0.0
  %2398 = vmatpush1.xpose.msra.mxu0 %v2365
  %2399 = vmatprep.subr.mxu0 0.0
  %2400 = vmatpush1.xpose.msra.mxu0 0.0
  %2401 = vmatprep.subr.mxu0 0.0
  %2402 = vmatpush1.xpose.msra.mxu0 0.0
  %2403 = vmatprep.subr.mxu0 0.0
  %2404 = vmatpush1.xpose.msra.mxu0 0.0
  %2405 = vmatprep.subr.mxu0 0.0
  %2406 = vmatpush1.xpose.msra.mxu0 0.0
  %2407 = vmatprep.subr.mxu0 0.0
  %2408 = vmatpush1.xpose.msra.mxu0 0.0
  %2409 = vmatprep.subr.mxu0 0.0
  %2410 = vmatpush1.xpose.msra.mxu0 0.0
  %2411 = vmatprep.subr.mxu0 0.0
  %2412 = vmatpush1.xpose.msra.mxu0 0.0
  %2413 = vmatprep.subr.mxu0 0.0
  %2414 = vmatpush1.xpose.msra.mxu0 0.0
  %2415 = vmatprep.subr.mxu0 0.0
  %2416 = vmatpush1.xpose.msra.mxu0 0.0
  %2417 = vmatprep.subr.mxu0 0.0
  %2418 = vmatpush1.xpose.msra.mxu0 0.0
  %2419 = vmatprep.subr.mxu0 0.0
  %2420 = vmatpush1.xpose.msra.mxu0 0.0
  %2421 = vmatprep.subr.mxu0 0.0
  %2422 = vmatpush1.xpose.msra.mxu0 0.0
  %2423 = vmatprep.subr.mxu0 0.0
  %2424 = vmatpush1.xpose.msra.mxu0 0.0
  %2425 = vmatprep.subr.mxu0 0.0
  %2426 = vmatpush1.xpose.msra.mxu0 0.0
  %2427 = vmatprep.subr.mxu0 0.0
  %2428 = vmatpush1.xpose.msra.mxu0 0.0
  %2429 = vmatprep.subr.mxu0 0.0
  %2430 = vmatpush1.xpose.msra.mxu0 0.0
  %2431 = vmatprep.mubr.f32.mxu0 0.0
  %2432 = vmatmul.mubr.f32.gmra.mrb[0].mxu0 %v2303
  %v2433 = vpop.f32.mrb[0].mxu0
  %v2434 = vadd.f32 %v2223, %v2433
  %v2435 = vpop.f32.mrb[0].mxu0
  %2436 = vmatprep.mubr.f32.mxu0 0.0
  %2437 = vmatmul.mubr.f32.gmra.mrb[0].mxu0 %v2305
  %v2438 = vpop.f32.mrb[0].mxu0
  %v2439 = vadd.f32 %v2224, %v2438
  %v2440 = vpop.f32.mrb[0].mxu0
  %2441 = vmatprep.mubr.f32.mxu0 0.0
  %2442 = vmatmul.mubr.f32.gmra.mrb[0].mxu0 %v2307
  %v2443 = vpop.f32.mrb[0].mxu0
  %v2444 = vadd.f32 %v2225, %v2443
  %v2445 = vpop.f32.mrb[0].mxu0
  %2446 = vmatprep.mubr.f32.mxu0 0.0
  %2447 = vmatmul.mubr.f32.gmra.mrb[0].mxu0 %v2309
  %v2448 = vpop.f32.mrb[0].mxu0
  %v2449 = vadd.f32 %v2226, %v2448
  %v2450 = vpop.f32.mrb[0].mxu0
  %2451 = vmatprep.mubr.f32.mxu0 0.0
  %2452 = vmatmul.mubr.f32.gmra.mrb[0].mxu0 %v2311
  %v2453 = vpop.f32.mrb[0].mxu0
  %v2454 = vadd.f32 %v2227, %v2453
  %v2455 = vpop.f32.mrb[0].mxu0
  %2456 = vmatprep.mubr.f32.mxu0 0.0
  %2457 = vmatmul.mubr.f32.gmra.mrb[0].mxu0 %v2313
  %v2458 = vpop.f32.mrb[0].mxu0
  %v2459 = vadd.f32 %v2228, %v2458
  %v2460 = vpop.f32.mrb[0].mxu0
  %2461 = vmatprep.mubr.f32.mxu0 0.0
  %2462 = vmatmul.mubr.f32.gmra.mrb[0].mxu0 %v2315
  %v2463 = vpop.f32.mrb[0].mxu0
  %v2464 = vadd.f32 %v2229, %v2463
  %v2465 = vpop.f32.mrb[0].mxu0
  %2466 = vmatprep.mubr.f32.mxu0 0.0
  %2467 = vmatmul.mubr.f32.gmra.mrb[0].mxu0 %v2317
  %v2468 = vpop.f32.mrb[0].mxu0
  %v2469 = vadd.f32 %v2230, %v2468
  %v2470 = vpop.f32.mrb[0].mxu0
  %2471 = vmatprep.mubr.f32.mxu0 0.0
  %2472 = vmatmul.mubr.f32.gmra.mrb[0].mxu0 %v2319
  %v2473 = vpop.f32.mrb[0].mxu0
  %v2474 = vadd.f32 %v2231, %v2473
  %v2475 = vpop.f32.mrb[0].mxu0
  %2476 = vmatprep.mubr.f32.mxu0 0.0
  %2477 = vmatmul.mubr.f32.gmra.mrb[0].mxu0 %v2321
  %v2478 = vpop.f32.mrb[0].mxu0
  %v2479 = vadd.f32 %v2232, %v2478
  %v2480 = vpop.f32.mrb[0].mxu0
  %2481 = vmatprep.mubr.f32.mxu0 0.0
  %2482 = vmatmul.mubr.f32.gmra.mrb[0].mxu0 %v2323
  %v2483 = vpop.f32.mrb[0].mxu0
  %v2484 = vadd.f32 %v2233, %v2483
  %v2485 = vpop.f32.mrb[0].mxu0
  %2486 = vmatprep.mubr.f32.mxu0 0.0
  %2487 = vmatmul.mubr.f32.gmra.mrb[0].mxu0 %v2325
  %v2488 = vpop.f32.mrb[0].mxu0
  %v2489 = vadd.f32 %v2234, %v2488
  %v2490 = vpop.f32.mrb[0].mxu0
  %2491 = vmatprep.mubr.f32.mxu0 0.0
  %2492 = vmatmul.mubr.f32.gmra.mrb[0].mxu0 %v2327
  %v2493 = vpop.f32.mrb[0].mxu0
  %v2494 = vadd.f32 %v2235, %v2493
  %v2495 = vpop.f32.mrb[0].mxu0
  %2496 = vmatprep.mubr.f32.mxu0 0.0
  %2497 = vmatmul.mubr.f32.gmra.mrb[0].mxu0 %v2329
  %v2498 = vpop.f32.mrb[0].mxu0
  %v2499 = vadd.f32 %v2236, %v2498
  %v2500 = vpop.f32.mrb[0].mxu0
  %2501 = vmatprep.mubr.f32.mxu0 0.0
  %2502 = vmatmul.mubr.f32.gmra.mrb[0].mxu0 %v2331
  %v2503 = vpop.f32.mrb[0].mxu0
  %v2504 = vadd.f32 %v2237, %v2503
  %v2505 = vpop.f32.mrb[0].mxu0
  %2506 = vmatprep.mubr.f32.mxu0 0.0
  %2507 = vmatmul.mubr.f32.gmra.mrb[0].mxu0 %v2333
  %v2508 = vpop.f32.mrb[0].mxu0
  %v2509 = vadd.f32 %v2238, %v2508
  %v2510 = vpop.f32.mrb[0].mxu0
  %2511 = vdwg.mxu0
  %2512 = vmax.xlane.f32.xlu0 %v2434
  %v2513 = vpop.xlane.xlu0 %2512
  %2514 = vmax.xlane.f32.xlu0 %v2439
  %v2515 = vpop.xlane.xlu0 %2514
  %2516 = vmax.xlane.f32.xlu0 %v2444
  %v2517 = vpop.xlane.xlu0 %2516
  %2518 = vmax.xlane.f32.xlu0 %v2449
  %v2519 = vpop.xlane.xlu0 %2518
  %2520 = vmax.xlane.f32.xlu0 %v2454
  %v2521 = vpop.xlane.xlu0 %2520
  %2522 = vmax.xlane.f32.xlu0 %v2459
  %v2523 = vpop.xlane.xlu0 %2522
  %2524 = vmax.xlane.f32.xlu0 %v2464
  %v2525 = vpop.xlane.xlu0 %2524
  %2526 = vmax.xlane.f32.xlu0 %v2469
  %v2527 = vpop.xlane.xlu0 %2526
  %2528 = vmax.xlane.f32.xlu0 %v2474
  %v2529 = vpop.xlane.xlu0 %2528
  %2530 = vmax.xlane.f32.xlu0 %v2479
  %v2531 = vpop.xlane.xlu0 %2530
  %2532 = vmax.xlane.f32.xlu0 %v2484
  %v2533 = vpop.xlane.xlu0 %2532
  %2534 = vmax.xlane.f32.xlu0 %v2489
  %v2535 = vpop.xlane.xlu0 %2534
  %2536 = vmax.xlane.f32.xlu0 %v2494
  %v2537 = vpop.xlane.xlu0 %2536
  %2538 = vmax.xlane.f32.xlu0 %v2499
  %v2539 = vpop.xlane.xlu0 %2538
  %2540 = vmax.xlane.f32.xlu0 %v2504
  %v2541 = vpop.xlane.xlu0 %2540
  %2542 = vmax.xlane.f32.xlu0 %v2509
  %v2543 = vpop.xlane.xlu0 %2542
  %v2544 = vsub.f32 %v2434, %v2513
  %v2545 = vsub.f32 %v2439, %v2515
  %v2546 = vsub.f32 %v2444, %v2517
  %v2547 = vsub.f32 %v2449, %v2519
  %v2548 = vsub.f32 %v2454, %v2521
  %v2549 = vsub.f32 %v2459, %v2523
  %v2550 = vsub.f32 %v2464, %v2525
  %v2551 = vsub.f32 %v2469, %v2527
  %v2552 = vsub.f32 %v2474, %v2529
  %v2553 = vsub.f32 %v2479, %v2531
  %v2554 = vsub.f32 %v2484, %v2533
  %v2555 = vsub.f32 %v2489, %v2535
  %v2556 = vsub.f32 %v2494, %v2537
  %v2557 = vsub.f32 %v2499, %v2539
  %v2558 = vsub.f32 %v2504, %v2541
  %v2559 = vsub.f32 %v2509, %v2543
  %v2560 = vmul.f32 %v2544, 1.442695
  %v2561 = vpow.pop %v2560
  %v2562 = vmul.f32 %v2545, 1.442695
  %v2563 = vpow.pop %v2562
  %v2564 = vmul.f32 %v2546, 1.442695
  %v2565 = vpow.pop %v2564
  %v2566 = vmul.f32 %v2547, 1.442695
  %v2567 = vpow.pop %v2566
  %v2568 = vmul.f32 %v2548, 1.442695
  %v2569 = vpow.pop %v2568
  %v2570 = vmul.f32 %v2549, 1.442695
  %v2571 = vpow.pop %v2570
  %v2572 = vmul.f32 %v2550, 1.442695
  %v2573 = vpow.pop %v2572
  %v2574 = vmul.f32 %v2551, 1.442695
  %v2575 = vpow.pop %v2574
  %v2576 = vmul.f32 %v2552, 1.442695
  %v2577 = vpow.pop %v2576
  %v2578 = vmul.f32 %v2553, 1.442695
  %v2579 = vpow.pop %v2578
  %v2580 = vmul.f32 %v2554, 1.442695
  %v2581 = vpow.pop %v2580
  %v2582 = vmul.f32 %v2555, 1.442695
  %v2583 = vpow.pop %v2582
  %v2584 = vmul.f32 %v2556, 1.442695
  %v2585 = vpow.pop %v2584
  %v2586 = vmul.f32 %v2557, 1.442695
  %v2587 = vpow.pop %v2586
  %v2588 = vmul.f32 %v2558, 1.442695
  %v2589 = vpow.pop %v2588
  %v2590 = vmul.f32 %v2559, 1.442695
  %v2591 = vpow.pop %v2590
  %2592 = vadd.xlane.f32.xlu0 %v2561
  %v2593 = vpop.xlane.xlu0 %2592
  %2594 = vadd.xlane.f32.xlu0 %v2563
  %v2595 = vpop.xlane.xlu0 %2594
  %2596 = vadd.xlane.f32.xlu0 %v2565
  %v2597 = vpop.xlane.xlu0 %2596
  %2598 = vadd.xlane.f32.xlu0 %v2567
  %v2599 = vpop.xlane.xlu0 %2598
  %2600 = vadd.xlane.f32.xlu0 %v2569
  %v2601 = vpop.xlane.xlu0 %2600
  %2602 = vadd.xlane.f32.xlu0 %v2571
  %v2603 = vpop.xlane.xlu0 %2602
  %2604 = vadd.xlane.f32.xlu0 %v2573
  %v2605 = vpop.xlane.xlu0 %2604
  %2606 = vadd.xlane.f32.xlu0 %v2575
  %v2607 = vpop.xlane.xlu0 %2606
  %2608 = vadd.xlane.f32.xlu0 %v2577
  %v2609 = vpop.xlane.xlu0 %2608
  %2610 = vadd.xlane.f32.xlu0 %v2579
  %v2611 = vpop.xlane.xlu0 %2610
  %2612 = vadd.xlane.f32.xlu0 %v2581
  %v2613 = vpop.xlane.xlu0 %2612
  %2614 = vadd.xlane.f32.xlu0 %v2583
  %v2615 = vpop.xlane.xlu0 %2614
  %2616 = vadd.xlane.f32.xlu0 %v2585
  %v2617 = vpop.xlane.xlu0 %2616
  %2618 = vadd.xlane.f32.xlu0 %v2587
  %v2619 = vpop.xlane.xlu0 %2618
  %2620 = vadd.xlane.f32.xlu0 %v2589
  %v2621 = vpop.xlane.xlu0 %2620
  %2622 = vadd.xlane.f32.xlu0 %v2591
  %v2623 = vpop.xlane.xlu0 %2622
  %v2624 = vrcp.pop %v2593
  %v2625 = vrcp.pop %v2595
  %v2626 = vrcp.pop %v2597
  %v2627 = vrcp.pop %v2599
  %v2628 = vrcp.pop %v2601
  %v2629 = vrcp.pop %v2603
  %v2630 = vrcp.pop %v2605
  %v2631 = vrcp.pop %v2607
  %v2632 = vrcp.pop %v2609
  %v2633 = vrcp.pop %v2611
  %v2634 = vrcp.pop %v2613
  %v2635 = vrcp.pop %v2615
  %v2636 = vrcp.pop %v2617
  %v2637 = vrcp.pop %v2619
  %v2638 = vrcp.pop %v2621
  %v2639 = vrcp.pop %v2623
  %v2640 = vmul.f32 %v2561, %v2624
  %v2641 = vmul.f32 %v2563, %v2625
  %v2642 = vmul.f32 %v2565, %v2626
  %v2643 = vmul.f32 %v2567, %v2627
  %v2644 = vmul.f32 %v2569, %v2628
  %v2645 = vmul.f32 %v2571, %v2629
  %v2646 = vmul.f32 %v2573, %v2630
  %v2647 = vmul.f32 %v2575, %v2631
  %v2648 = vmul.f32 %v2577, %v2632
  %v2649 = vmul.f32 %v2579, %v2633
  %v2650 = vmul.f32 %v2581, %v2634
  %v2651 = vmul.f32 %v2583, %v2635
  %v2652 = vmul.f32 %v2585, %v2636
  %v2653 = vmul.f32 %v2587, %v2637
  %v2654 = vmul.f32 %v2589, %v2638
  %v2655 = vmul.f32 %v2591, %v2639
  %2656 = vrot.lane.b32.xlu0 %v484, 48
  %v2657 = vpop.permute.xlu0 %2656
  %2658 = vrot.lane.b32.xlu0 %v489, 48
  %v2659 = vpop.permute.xlu0 %2658
  %2660 = vrot.lane.b32.xlu0 %v494, 48
  %v2661 = vpop.permute.xlu0 %2660
  %2662 = vrot.lane.b32.xlu0 %v499, 48
  %v2663 = vpop.permute.xlu0 %2662
  %2664 = vrot.lane.b32.xlu0 %v504, 48
  %v2665 = vpop.permute.xlu0 %2664
  %2666 = vrot.lane.b32.xlu0 %v509, 48
  %v2667 = vpop.permute.xlu0 %2666
  %2668 = vrot.lane.b32.xlu0 %v514, 48
  %v2669 = vpop.permute.xlu0 %2668
  %2670 = vrot.lane.b32.xlu0 %v519, 48
  %v2671 = vpop.permute.xlu0 %2670
  %2672 = vrot.lane.b32.xlu0 %v524, 48
  %v2673 = vpop.permute.xlu0 %2672
  %2674 = vrot.lane.b32.xlu0 %v529, 48
  %v2675 = vpop.permute.xlu0 %2674
  %2676 = vrot.lane.b32.xlu0 %v534, 48
  %v2677 = vpop.permute.xlu0 %2676
  %2678 = vrot.lane.b32.xlu0 %v539, 48
  %v2679 = vpop.permute.xlu0 %2678
  %2680 = vrot.lane.b32.xlu0 %v544, 48
  %v2681 = vpop.permute.xlu0 %2680
  %2682 = vrot.lane.b32.xlu0 %v549, 48
  %v2683 = vpop.permute.xlu0 %2682
  %2684 = vrot.lane.b32.xlu0 %v554, 48
  %v2685 = vpop.permute.xlu0 %2684
  %2686 = vrot.lane.b32.xlu0 %v559, 48
  %v2687 = vpop.permute.xlu0 %2686
  %2704 = vmatprep.subr.mxu0 0.0
  %2705 = vmatpush1.msra.mxu0 %v2657
  %2706 = vmatprep.subr.mxu0 0.0
  %2707 = vmatpush1.msra.mxu0 %v2659
  %2708 = vmatprep.subr.mxu0 0.0
  %2709 = vmatpush1.msra.mxu0 %v2661
  %2710 = vmatprep.subr.mxu0 0.0
  %2711 = vmatpush1.msra.mxu0 %v2663
  %2712 = vmatprep.subr.mxu0 0.0
  %2713 = vmatpush1.msra.mxu0 %v2665
  %2714 = vmatprep.subr.mxu0 0.0
  %2715 = vmatpush1.msra.mxu0 %v2667
  %2716 = vmatprep.subr.mxu0 0.0
  %2717 = vmatpush1.msra.mxu0 %v2669
  %2718 = vmatprep.subr.mxu0 0.0
  %2719 = vmatpush1.msra.mxu0 %v2671
  %2720 = vmatprep.subr.mxu0 0.0
  %2721 = vmatpush1.msra.mxu0 %v2673
  %2722 = vmatprep.subr.mxu0 0.0
  %2723 = vmatpush1.msra.mxu0 %v2675
  %2724 = vmatprep.subr.mxu0 0.0
  %2725 = vmatpush1.msra.mxu0 %v2677
  %2726 = vmatprep.subr.mxu0 0.0
  %2727 = vmatpush1.msra.mxu0 %v2679
  %2728 = vmatprep.subr.mxu0 0.0
  %2729 = vmatpush1.msra.mxu0 %v2681
  %2730 = vmatprep.subr.mxu0 0.0
  %2731 = vmatpush1.msra.mxu0 %v2683
  %2732 = vmatprep.subr.mxu0 0.0
  %2733 = vmatpush1.msra.mxu0 %v2685
  %2734 = vmatprep.subr.mxu0 0.0
  %2735 = vmatpush1.msra.mxu0 %v2687
  %2736 = vmatprep.subr.mxu0 0.0
  %2737 = vmatpush1.msra.mxu0 0.0
  %2738 = vmatprep.subr.mxu0 0.0
  %2739 = vmatpush1.msra.mxu0 0.0
  %2740 = vmatprep.subr.mxu0 0.0
  %2741 = vmatpush1.msra.mxu0 0.0
  %2742 = vmatprep.subr.mxu0 0.0
  %2743 = vmatpush1.msra.mxu0 0.0
  %2744 = vmatprep.subr.mxu0 0.0
  %2745 = vmatpush1.msra.mxu0 0.0
  %2746 = vmatprep.subr.mxu0 0.0
  %2747 = vmatpush1.msra.mxu0 0.0
  %2748 = vmatprep.subr.mxu0 0.0
  %2749 = vmatpush1.msra.mxu0 0.0
  %2750 = vmatprep.subr.mxu0 0.0
  %2751 = vmatpush1.msra.mxu0 0.0
  %2752 = vmatprep.subr.mxu0 0.0
  %2753 = vmatpush1.msra.mxu0 0.0
  %2754 = vmatprep.subr.mxu0 0.0
  %2755 = vmatpush1.msra.mxu0 0.0
  %2756 = vmatprep.subr.mxu0 0.0
  %2757 = vmatpush1.msra.mxu0 0.0
  %2758 = vmatprep.subr.mxu0 0.0
  %2759 = vmatpush1.msra.mxu0 0.0
  %2760 = vmatprep.subr.mxu0 0.0
  %2761 = vmatpush1.msra.mxu0 0.0
  %2762 = vmatprep.subr.mxu0 0.0
  %2763 = vmatpush1.msra.mxu0 0.0
  %2764 = vmatprep.subr.mxu0 0.0
  %2765 = vmatpush1.msra.mxu0 0.0
  %2766 = vmatprep.subr.mxu0 0.0
  %2767 = vmatpush1.msra.mxu0 0.0
  %2768 = vmatprep.mubr.f32.mxu0 0.0
  %2769 = vmatmul.mubr.f32.gmra.mrb[0].mxu0 %v2640
  %v2770 = vpop.f32.mrb[0].mxu0
  %v2771 = vadd.f32 0.0, %v2770
  %v2772 = vpop.f32.mrb[0].mxu0
  %2773 = vmatprep.mubr.f32.mxu0 0.0
  %2774 = vmatmul.mubr.f32.gmra.mrb[0].mxu0 %v2641
  %v2775 = vpop.f32.mrb[0].mxu0
  %v2776 = vadd.f32 0.0, %v2775
  %v2777 = vpop.f32.mrb[0].mxu0
  %2778 = vmatprep.mubr.f32.mxu0 0.0
  %2779 = vmatmul.mubr.f32.gmra.mrb[0].mxu0 %v2642
  %v2780 = vpop.f32.mrb[0].mxu0
  %v2781 = vadd.f32 0.0, %v2780
  %v2782 = vpop.f32.mrb[0].mxu0
  %2783 = vmatprep.mubr.f32.mxu0 0.0
  %2784 = vmatmul.mubr.f32.gmra.mrb[0].mxu0 %v2643
  %v2785 = vpop.f32.mrb[0].mxu0
  %v2786 = vadd.f32 0.0, %v2785
  %v2787 = vpop.f32.mrb[0].mxu0
  %2788 = vmatprep.mubr.f32.mxu0 0.0
  %2789 = vmatmul.mubr.f32.gmra.mrb[0].mxu0 %v2644
  %v2790 = vpop.f32.mrb[0].mxu0
  %v2791 = vadd.f32 0.0, %v2790
  %v2792 = vpop.f32.mrb[0].mxu0
  %2793 = vmatprep.mubr.f32.mxu0 0.0
  %2794 = vmatmul.mubr.f32.gmra.mrb[0].mxu0 %v2645
  %v2795 = vpop.f32.mrb[0].mxu0
  %v2796 = vadd.f32 0.0, %v2795
  %v2797 = vpop.f32.mrb[0].mxu0
  %2798 = vmatprep.mubr.f32.mxu0 0.0
  %2799 = vmatmul.mubr.f32.gmra.mrb[0].mxu0 %v2646
  %v2800 = vpop.f32.mrb[0].mxu0
  %v2801 = vadd.f32 0.0, %v2800
  %v2802 = vpop.f32.mrb[0].mxu0
  %2803 = vmatprep.mubr.f32.mxu0 0.0
  %2804 = vmatmul.mubr.f32.gmra.mrb[0].mxu0 %v2647
  %v2805 = vpop.f32.mrb[0].mxu0
  %v2806 = vadd.f32 0.0, %v2805
  %v2807 = vpop.f32.mrb[0].mxu0
  %2808 = vmatprep.mubr.f32.mxu0 0.0
  %2809 = vmatmul.mubr.f32.gmra.mrb[0].mxu0 %v2648
  %v2810 = vpop.f32.mrb[0].mxu0
  %v2811 = vadd.f32 0.0, %v2810
  %v2812 = vpop.f32.mrb[0].mxu0
  %2813 = vmatprep.mubr.f32.mxu0 0.0
  %2814 = vmatmul.mubr.f32.gmra.mrb[0].mxu0 %v2649
  %v2815 = vpop.f32.mrb[0].mxu0
  %v2816 = vadd.f32 0.0, %v2815
  %v2817 = vpop.f32.mrb[0].mxu0
  %2818 = vmatprep.mubr.f32.mxu0 0.0
  %2819 = vmatmul.mubr.f32.gmra.mrb[0].mxu0 %v2650
  %v2820 = vpop.f32.mrb[0].mxu0
  %v2821 = vadd.f32 0.0, %v2820
  %v2822 = vpop.f32.mrb[0].mxu0
  %2823 = vmatprep.mubr.f32.mxu0 0.0
  %2824 = vmatmul.mubr.f32.gmra.mrb[0].mxu0 %v2651
  %v2825 = vpop.f32.mrb[0].mxu0
  %v2826 = vadd.f32 0.0, %v2825
  %v2827 = vpop.f32.mrb[0].mxu0
  %2828 = vmatprep.mubr.f32.mxu0 0.0
  %2829 = vmatmul.mubr.f32.gmra.mrb[0].mxu0 %v2652
  %v2830 = vpop.f32.mrb[0].mxu0
  %v2831 = vadd.f32 0.0, %v2830
  %v2832 = vpop.f32.mrb[0].mxu0
  %2833 = vmatprep.mubr.f32.mxu0 0.0
  %2834 = vmatmul.mubr.f32.gmra.mrb[0].mxu0 %v2653
  %v2835 = vpop.f32.mrb[0].mxu0
  %v2836 = vadd.f32 0.0, %v2835
  %v2837 = vpop.f32.mrb[0].mxu0
  %2838 = vmatprep.mubr.f32.mxu0 0.0
  %2839 = vmatmul.mubr.f32.gmra.mrb[0].mxu0 %v2654
  %v2840 = vpop.f32.mrb[0].mxu0
  %v2841 = vadd.f32 0.0, %v2840
  %v2842 = vpop.f32.mrb[0].mxu0
  %2843 = vmatprep.mubr.f32.mxu0 0.0
  %2844 = vmatmul.mubr.f32.gmra.mrb[0].mxu0 %v2655
  %v2845 = vpop.f32.mrb[0].mxu0
  %v2846 = vadd.f32 0.0, %v2845
  %v2847 = vpop.f32.mrb[0].mxu0
  %2848 = vdwg.mxu0
  %v2850 = vsel %vm646, %v2771, 0
  %v2853 = vsel %vm646, %v2776, 0
  %v2856 = vsel %vm646, %v2781, 0
  %v2859 = vsel %vm646, %v2786, 0
  %v2862 = vsel %vm646, %v2791, 0
  %v2865 = vsel %vm646, %v2796, 0
  %v2868 = vsel %vm646, %v2801, 0
  %v2871 = vsel %vm646, %v2806, 0
  %v2874 = vsel %vm646, %v2811, 0
  %v2877 = vsel %vm646, %v2816, 0
  %v2880 = vsel %vm646, %v2821, 0
  %v2883 = vsel %vm646, %v2826, 0
  %v2886 = vsel %vm646, %v2831, 0
  %v2889 = vsel %vm646, %v2836, 0
  %v2892 = vsel %vm646, %v2841, 0
  %v2895 = vsel %vm646, %v2846, 0
  %2897 = vmatprep.subr.mxu0 0.0
  %2898 = vmatpush1.msra.mxu0 %v564
  %2899 = vmatprep.subr.mxu0 0.0
  %2900 = vmatpush1.msra.mxu0 0.0
  %2901 = vmatprep.subr.mxu0 0.0
  %2902 = vmatpush1.msra.mxu0 0.0
  %2903 = vmatprep.subr.mxu0 0.0
  %2904 = vmatpush1.msra.mxu0 0.0
  %2905 = vmatprep.subr.mxu0 0.0
  %2906 = vmatpush1.msra.mxu0 0.0
  %2907 = vmatprep.subr.mxu0 0.0
  %2908 = vmatpush1.msra.mxu0 0.0
  %2909 = vmatprep.subr.mxu0 0.0
  %2910 = vmatpush1.msra.mxu0 0.0
  %2911 = vmatprep.subr.mxu0 0.0
  %2912 = vmatpush1.msra.mxu0 0.0
  %2913 = vmatprep.subr.mxu0 0.0
  %2914 = vmatpush1.msra.mxu0 0.0
  %2915 = vmatprep.subr.mxu0 0.0
  %2916 = vmatpush1.msra.mxu0 0.0
  %2917 = vmatprep.subr.mxu0 0.0
  %2918 = vmatpush1.msra.mxu0 0.0
  %2919 = vmatprep.subr.mxu0 0.0
  %2920 = vmatpush1.msra.mxu0 0.0
  %2921 = vmatprep.subr.mxu0 0.0
  %2922 = vmatpush1.msra.mxu0 0.0
  %2923 = vmatprep.subr.mxu0 0.0
  %2924 = vmatpush1.msra.mxu0 0.0
  %2925 = vmatprep.subr.mxu0 0.0
  %2926 = vmatpush1.msra.mxu0 0.0
  %2927 = vmatprep.subr.mxu0 0.0
  %2928 = vmatpush1.msra.mxu0 0.0
  %2929 = vmatprep.subr.mxu0 0.0
  %2930 = vmatpush1.msra.mxu0 0.0
  %2931 = vmatprep.subr.mxu0 0.0
  %2932 = vmatpush1.msra.mxu0 0.0
  %2933 = vmatprep.subr.mxu0 0.0
  %2934 = vmatpush1.msra.mxu0 0.0
  %2935 = vmatprep.subr.mxu0 0.0
  %2936 = vmatpush1.msra.mxu0 0.0
  %2937 = vmatprep.subr.mxu0 0.0
  %2938 = vmatpush1.msra.mxu0 0.0
  %2939 = vmatprep.subr.mxu0 0.0
  %2940 = vmatpush1.msra.mxu0 0.0
  %2941 = vmatprep.subr.mxu0 0.0
  %2942 = vmatpush1.msra.mxu0 0.0
  %2943 = vmatprep.subr.mxu0 0.0
  %2944 = vmatpush1.msra.mxu0 0.0
  %2945 = vmatprep.subr.mxu0 0.0
  %2946 = vmatpush1.msra.mxu0 0.0
  %2947 = vmatprep.subr.mxu0 0.0
  %2948 = vmatpush1.msra.mxu0 0.0
  %2949 = vmatprep.subr.mxu0 0.0
  %2950 = vmatpush1.msra.mxu0 0.0
  %2951 = vmatprep.subr.mxu0 0.0
  %2952 = vmatpush1.msra.mxu0 0.0
  %2953 = vmatprep.subr.mxu0 0.0
  %2954 = vmatpush1.msra.mxu0 0.0
  %2955 = vmatprep.subr.mxu0 0.0
  %2956 = vmatpush1.msra.mxu0 0.0
  %2957 = vmatprep.subr.mxu0 0.0
  %2958 = vmatpush1.msra.mxu0 0.0
  %2959 = vmatprep.subr.mxu0 0.0
  %2960 = vmatpush1.msra.mxu0 0.0
  %2961 = vmatprep.mubr.f32.mxu0 0.0
  %2962 = vmatmul.mubr.f32.gmra.mrb[0].mxu0 %v2850
  %v2963 = vpop.f32.mrb[0].mxu0
  %v2964 = vadd.f32 0.0, %v2963
  %v2965 = vpop.f32.mrb[0].mxu0
  %2966 = vmatprep.mubr.f32.mxu0 0.0
  %2967 = vmatmul.mubr.f32.gmra.mrb[0].mxu0 %v2853
  %v2968 = vpop.f32.mrb[0].mxu0
  %v2969 = vadd.f32 0.0, %v2968
  %v2970 = vpop.f32.mrb[0].mxu0
  %2971 = vmatprep.mubr.f32.mxu0 0.0
  %2972 = vmatmul.mubr.f32.gmra.mrb[0].mxu0 %v2856
  %v2973 = vpop.f32.mrb[0].mxu0
  %v2974 = vadd.f32 0.0, %v2973
  %v2975 = vpop.f32.mrb[0].mxu0
  %2976 = vmatprep.mubr.f32.mxu0 0.0
  %2977 = vmatmul.mubr.f32.gmra.mrb[0].mxu0 %v2859
  %v2978 = vpop.f32.mrb[0].mxu0
  %v2979 = vadd.f32 0.0, %v2978
  %v2980 = vpop.f32.mrb[0].mxu0
  %2981 = vmatprep.mubr.f32.mxu0 0.0
  %2982 = vmatmul.mubr.f32.gmra.mrb[0].mxu0 %v2862
  %v2983 = vpop.f32.mrb[0].mxu0
  %v2984 = vadd.f32 0.0, %v2983
  %v2985 = vpop.f32.mrb[0].mxu0
  %2986 = vmatprep.mubr.f32.mxu0 0.0
  %2987 = vmatmul.mubr.f32.gmra.mrb[0].mxu0 %v2865
  %v2988 = vpop.f32.mrb[0].mxu0
  %v2989 = vadd.f32 0.0, %v2988
  %v2990 = vpop.f32.mrb[0].mxu0
  %2991 = vmatprep.mubr.f32.mxu0 0.0
  %2992 = vmatmul.mubr.f32.gmra.mrb[0].mxu0 %v2868
  %v2993 = vpop.f32.mrb[0].mxu0
  %v2994 = vadd.f32 0.0, %v2993
  %v2995 = vpop.f32.mrb[0].mxu0
  %2996 = vmatprep.mubr.f32.mxu0 0.0
  %2997 = vmatmul.mubr.f32.gmra.mrb[0].mxu0 %v2871
  %v2998 = vpop.f32.mrb[0].mxu0
  %v2999 = vadd.f32 0.0, %v2998
  %v3000 = vpop.f32.mrb[0].mxu0
  %3001 = vmatprep.mubr.f32.mxu0 0.0
  %3002 = vmatmul.mubr.f32.gmra.mrb[0].mxu0 %v2874
  %v3003 = vpop.f32.mrb[0].mxu0
  %v3004 = vadd.f32 0.0, %v3003
  %v3005 = vpop.f32.mrb[0].mxu0
  %3006 = vmatprep.mubr.f32.mxu0 0.0
  %3007 = vmatmul.mubr.f32.gmra.mrb[0].mxu0 %v2877
  %v3008 = vpop.f32.mrb[0].mxu0
  %v3009 = vadd.f32 0.0, %v3008
  %v3010 = vpop.f32.mrb[0].mxu0
  %3011 = vmatprep.mubr.f32.mxu0 0.0
  %3012 = vmatmul.mubr.f32.gmra.mrb[0].mxu0 %v2880
  %v3013 = vpop.f32.mrb[0].mxu0
  %v3014 = vadd.f32 0.0, %v3013
  %v3015 = vpop.f32.mrb[0].mxu0
  %3016 = vmatprep.mubr.f32.mxu0 0.0
  %3017 = vmatmul.mubr.f32.gmra.mrb[0].mxu0 %v2883
  %v3018 = vpop.f32.mrb[0].mxu0
  %v3019 = vadd.f32 0.0, %v3018
  %v3020 = vpop.f32.mrb[0].mxu0
  %3021 = vmatprep.mubr.f32.mxu0 0.0
  %3022 = vmatmul.mubr.f32.gmra.mrb[0].mxu0 %v2886
  %v3023 = vpop.f32.mrb[0].mxu0
  %v3024 = vadd.f32 0.0, %v3023
  %v3025 = vpop.f32.mrb[0].mxu0
  %3026 = vmatprep.mubr.f32.mxu0 0.0
  %3027 = vmatmul.mubr.f32.gmra.mrb[0].mxu0 %v2889
  %v3028 = vpop.f32.mrb[0].mxu0
  %v3029 = vadd.f32 0.0, %v3028
  %v3030 = vpop.f32.mrb[0].mxu0
  %3031 = vmatprep.mubr.f32.mxu0 0.0
  %3032 = vmatmul.mubr.f32.gmra.mrb[0].mxu0 %v2892
  %v3033 = vpop.f32.mrb[0].mxu0
  %v3034 = vadd.f32 0.0, %v3033
  %v3035 = vpop.f32.mrb[0].mxu0
  %3036 = vmatprep.mubr.f32.mxu0 0.0
  %3037 = vmatmul.mubr.f32.gmra.mrb[0].mxu0 %v2895
  %v3038 = vpop.f32.mrb[0].mxu0
  %v3039 = vadd.f32 0.0, %v3038
  %v3040 = vpop.f32.mrb[0].mxu0
  %3041 = vdwg.mxu0
  %v3042 = vadd.f32 %v2144, %v2964
  %v3043 = vadd.f32 %v2149, %v2969
  %v3044 = vadd.f32 %v2154, %v2974
  %v3045 = vadd.f32 %v2159, %v2979
  %v3046 = vadd.f32 %v2164, %v2984
  %v3047 = vadd.f32 %v2169, %v2989
  %v3048 = vadd.f32 %v2174, %v2994
  %v3049 = vadd.f32 %v2179, %v2999
  %v3050 = vadd.f32 %v2184, %v3004
  %v3051 = vadd.f32 %v2189, %v3009
  %v3052 = vadd.f32 %v2194, %v3014
  %v3053 = vadd.f32 %v2199, %v3019
  %v3054 = vadd.f32 %v2204, %v3024
  %v3055 = vadd.f32 %v2209, %v3029
  %v3056 = vadd.f32 %v2214, %v3034
  %v3057 = vadd.f32 %v2219, %v3039
  %s3058 = scalar_lea.vmem %s1, 384
  %v3059 = vld [vmem:[%s3058] sm:$0xff]
  %v3060 = vld [vmem:[%s3058 + $0x8] sm:$0xff]
  %v3061 = vld [vmem:[%s3058 + $0x10] sm:$0xff]
  %v3062 = vld [vmem:[%s3058 + $0x18] sm:$0xff]
  %v3063 = vld [vmem:[%s3058 + $0x20] sm:$0xff]
  %v3064 = vld [vmem:[%s3058 + $0x28] sm:$0xff]
  %v3065 = vld [vmem:[%s3058 + $0x30] sm:$0xff]
  %v3066 = vld [vmem:[%s3058 + $0x38] sm:$0xff]
  %v3067 = vld [vmem:[%s3058 + $0x40] sm:$0xff]
  %v3068 = vld [vmem:[%s3058 + $0x48] sm:$0xff]
  %v3069 = vld [vmem:[%s3058 + $0x50] sm:$0xff]
  %v3070 = vld [vmem:[%s3058 + $0x58] sm:$0xff]
  %v3071 = vld [vmem:[%s3058 + $0x60] sm:$0xff]
  %v3072 = vld [vmem:[%s3058 + $0x68] sm:$0xff]
  %v3073 = vld [vmem:[%s3058 + $0x70] sm:$0xff]
  %v3074 = vld [vmem:[%s3058 + $0x78] sm:$0xff]
  %3075 = vrot.lane.b32.xlu0 %v566, 104
  %v3076 = vpop.permute.xlu0 %3075
  %3077 = vrot.lane.b32.xlu0 %v567, 104
  %v3078 = vpop.permute.xlu0 %3077
  %3079 = vrot.lane.b32.xlu0 %v568, 104
  %v3080 = vpop.permute.xlu0 %3079
  %3081 = vrot.lane.b32.xlu0 %v569, 104
  %v3082 = vpop.permute.xlu0 %3081
  %3083 = vrot.lane.b32.xlu0 %v570, 104
  %v3084 = vpop.permute.xlu0 %3083
  %3085 = vrot.lane.b32.xlu0 %v571, 104
  %v3086 = vpop.permute.xlu0 %3085
  %3087 = vrot.lane.b32.xlu0 %v572, 104
  %v3088 = vpop.permute.xlu0 %3087
  %3089 = vrot.lane.b32.xlu0 %v573, 104
  %v3090 = vpop.permute.xlu0 %3089
  %3091 = vrot.lane.b32.xlu0 %v574, 104
  %v3092 = vpop.permute.xlu0 %3091
  %3093 = vrot.lane.b32.xlu0 %v575, 104
  %v3094 = vpop.permute.xlu0 %3093
  %3095 = vrot.lane.b32.xlu0 %v576, 104
  %v3096 = vpop.permute.xlu0 %3095
  %3097 = vrot.lane.b32.xlu0 %v577, 104
  %v3098 = vpop.permute.xlu0 %3097
  %3099 = vrot.lane.b32.xlu0 %v578, 104
  %v3100 = vpop.permute.xlu0 %3099
  %3101 = vrot.lane.b32.xlu0 %v579, 104
  %v3102 = vpop.permute.xlu0 %3101
  %3103 = vrot.lane.b32.xlu0 %v580, 104
  %v3104 = vpop.permute.xlu0 %3103
  %3105 = vrot.lane.b32.xlu0 %v581, 104
  %v3106 = vpop.permute.xlu0 %3105
  %3107 = vrot.lane.b32.xlu0 %v484, 72
  %v3108 = vpop.permute.xlu0 %3107
  %3109 = vrot.lane.b32.xlu0 %v489, 72
  %v3110 = vpop.permute.xlu0 %3109
  %3111 = vrot.lane.b32.xlu0 %v494, 72
  %v3112 = vpop.permute.xlu0 %3111
  %3113 = vrot.lane.b32.xlu0 %v499, 72
  %v3114 = vpop.permute.xlu0 %3113
  %3115 = vrot.lane.b32.xlu0 %v504, 72
  %v3116 = vpop.permute.xlu0 %3115
  %3117 = vrot.lane.b32.xlu0 %v509, 72
  %v3118 = vpop.permute.xlu0 %3117
  %3119 = vrot.lane.b32.xlu0 %v514, 72
  %v3120 = vpop.permute.xlu0 %3119
  %3121 = vrot.lane.b32.xlu0 %v519, 72
  %v3122 = vpop.permute.xlu0 %3121
  %3123 = vrot.lane.b32.xlu0 %v524, 72
  %v3124 = vpop.permute.xlu0 %3123
  %3125 = vrot.lane.b32.xlu0 %v529, 72
  %v3126 = vpop.permute.xlu0 %3125
  %3127 = vrot.lane.b32.xlu0 %v534, 72
  %v3128 = vpop.permute.xlu0 %3127
  %3129 = vrot.lane.b32.xlu0 %v539, 72
  %v3130 = vpop.permute.xlu0 %3129
  %3131 = vrot.lane.b32.xlu0 %v544, 72
  %v3132 = vpop.permute.xlu0 %3131
  %3133 = vrot.lane.b32.xlu0 %v549, 72
  %v3134 = vpop.permute.xlu0 %3133
  %3135 = vrot.lane.b32.xlu0 %v554, 72
  %v3136 = vpop.permute.xlu0 %3135
  %3137 = vrot.lane.b32.xlu0 %v559, 72
  %v3138 = vpop.permute.xlu0 %3137
  %v3139 = vsel %vm646, %v3076, 0
  %v3141 = vsel %vm646, %v3078, 0
  %v3143 = vsel %vm646, %v3080, 0
  %v3145 = vsel %vm646, %v3082, 0
  %v3147 = vsel %vm646, %v3084, 0
  %v3149 = vsel %vm646, %v3086, 0
  %v3151 = vsel %vm646, %v3088, 0
  %v3153 = vsel %vm646, %v3090, 0
  %v3155 = vsel %vm646, %v3092, 0
  %v3157 = vsel %vm646, %v3094, 0
  %v3159 = vsel %vm646, %v3096, 0
  %v3161 = vsel %vm646, %v3098, 0
  %v3163 = vsel %vm646, %v3100, 0
  %v3165 = vsel %vm646, %v3102, 0
  %v3167 = vsel %vm646, %v3104, 0
  %v3169 = vsel %vm646, %v3106, 0
  %v3171 = vsel %vm646, %v3108, 0
  %v3173 = vsel %vm646, %v3110, 0
  %v3175 = vsel %vm646, %v3112, 0
  %v3177 = vsel %vm646, %v3114, 0
  %v3179 = vsel %vm646, %v3116, 0
  %v3181 = vsel %vm646, %v3118, 0
  %v3183 = vsel %vm646, %v3120, 0
  %v3185 = vsel %vm646, %v3122, 0
  %v3187 = vsel %vm646, %v3124, 0
  %v3189 = vsel %vm646, %v3126, 0
  %v3191 = vsel %vm646, %v3128, 0
  %v3193 = vsel %vm646, %v3130, 0
  %v3195 = vsel %vm646, %v3132, 0
  %v3197 = vsel %vm646, %v3134, 0
  %v3199 = vsel %vm646, %v3136, 0
  %v3201 = vsel %vm646, %v3138, 0
  %3203 = vmatprep.subr.mxu0 0.0
  %3204 = vmatpush1.xpose.msra.mxu0 %v3171
  %3205 = vmatprep.subr.mxu0 0.0
  %3206 = vmatpush1.xpose.msra.mxu0 %v3173
  %3207 = vmatprep.subr.mxu0 0.0
  %3208 = vmatpush1.xpose.msra.mxu0 %v3175
  %3209 = vmatprep.subr.mxu0 0.0
  %3210 = vmatpush1.xpose.msra.mxu0 %v3177
  %3211 = vmatprep.subr.mxu0 0.0
  %3212 = vmatpush1.xpose.msra.mxu0 %v3179
  %3213 = vmatprep.subr.mxu0 0.0
  %3214 = vmatpush1.xpose.msra.mxu0 %v3181
  %3215 = vmatprep.subr.mxu0 0.0
  %3216 = vmatpush1.xpose.msra.mxu0 %v3183
  %3217 = vmatprep.subr.mxu0 0.0
  %3218 = vmatpush1.xpose.msra.mxu0 %v3185
  %3219 = vmatprep.subr.mxu0 0.0
  %3220 = vmatpush1.xpose.msra.mxu0 %v3187
  %3221 = vmatprep.subr.mxu0 0.0
  %3222 = vmatpush1.xpose.msra.mxu0 %v3189
  %3223 = vmatprep.subr.mxu0 0.0
  %3224 = vmatpush1.xpose.msra.mxu0 %v3191
  %3225 = vmatprep.subr.mxu0 0.0
  %3226 = vmatpush1.xpose.msra.mxu0 %v3193
  %3227 = vmatprep.subr.mxu0 0.0
  %3228 = vmatpush1.xpose.msra.mxu0 %v3195
  %3229 = vmatprep.subr.mxu0 0.0
  %3230 = vmatpush1.xpose.msra.mxu0 %v3197
  %3231 = vmatprep.subr.mxu0 0.0
  %3232 = vmatpush1.xpose.msra.mxu0 %v3199
  %3233 = vmatprep.subr.mxu0 0.0
  %3234 = vmatpush1.xpose.msra.mxu0 %v3201
  %3235 = vmatprep.subr.mxu0 0.0
  %3236 = vmatpush1.xpose.msra.mxu0 0.0
  %3237 = vmatprep.subr.mxu0 0.0
  %3238 = vmatpush1.xpose.msra.mxu0 0.0
  %3239 = vmatprep.subr.mxu0 0.0
  %3240 = vmatpush1.xpose.msra.mxu0 0.0
  %3241 = vmatprep.subr.mxu0 0.0
  %3242 = vmatpush1.xpose.msra.mxu0 0.0
  %3243 = vmatprep.subr.mxu0 0.0
  %3244 = vmatpush1.xpose.msra.mxu0 0.0
  %3245 = vmatprep.subr.mxu0 0.0
  %3246 = vmatpush1.xpose.msra.mxu0 0.0
  %3247 = vmatprep.subr.mxu0 0.0
  %3248 = vmatpush1.xpose.msra.mxu0 0.0
  %3249 = vmatprep.subr.mxu0 0.0
  %3250 = vmatpush1.xpose.msra.mxu0 0.0
  %3251 = vmatprep.subr.mxu0 0.0
  %3252 = vmatpush1.xpose.msra.mxu0 0.0
  %3253 = vmatprep.subr.mxu0 0.0
  %3254 = vmatpush1.xpose.msra.mxu0 0.0
  %3255 = vmatprep.subr.mxu0 0.0
  %3256 = vmatpush1.xpose.msra.mxu0 0.0
  %3257 = vmatprep.subr.mxu0 0.0
  %3258 = vmatpush1.xpose.msra.mxu0 0.0
  %3259 = vmatprep.subr.mxu0 0.0
  %3260 = vmatpush1.xpose.msra.mxu0 0.0
  %3261 = vmatprep.subr.mxu0 0.0
  %3262 = vmatpush1.xpose.msra.mxu0 0.0
  %3263 = vmatprep.subr.mxu0 0.0
  %3264 = vmatpush1.xpose.msra.mxu0 0.0
  %3265 = vmatprep.subr.mxu0 0.0
  %3266 = vmatpush1.xpose.msra.mxu0 0.0
  %3267 = vmatprep.mubr.f32.mxu0 0.0
  %3268 = vmatmul.mubr.f32.gmra.mrb[0].mxu0 %v3139
  %v3269 = vpop.f32.mrb[0].mxu0
  %v3270 = vadd.f32 %v3059, %v3269
  %v3271 = vpop.f32.mrb[0].mxu0
  %3272 = vmatprep.mubr.f32.mxu0 0.0
  %3273 = vmatmul.mubr.f32.gmra.mrb[0].mxu0 %v3141
  %v3274 = vpop.f32.mrb[0].mxu0
  %v3275 = vadd.f32 %v3060, %v3274
  %v3276 = vpop.f32.mrb[0].mxu0
  %3277 = vmatprep.mubr.f32.mxu0 0.0
  %3278 = vmatmul.mubr.f32.gmra.mrb[0].mxu0 %v3143
  %v3279 = vpop.f32.mrb[0].mxu0
  %v3280 = vadd.f32 %v3061, %v3279
  %v3281 = vpop.f32.mrb[0].mxu0
  %3282 = vmatprep.mubr.f32.mxu0 0.0
  %3283 = vmatmul.mubr.f32.gmra.mrb[0].mxu0 %v3145
  %v3284 = vpop.f32.mrb[0].mxu0
  %v3285 = vadd.f32 %v3062, %v3284
  %v3286 = vpop.f32.mrb[0].mxu0
  %3287 = vmatprep.mubr.f32.mxu0 0.0
  %3288 = vmatmul.mubr.f32.gmra.mrb[0].mxu0 %v3147
  %v3289 = vpop.f32.mrb[0].mxu0
  %v3290 = vadd.f32 %v3063, %v3289
  %v3291 = vpop.f32.mrb[0].mxu0
  %3292 = vmatprep.mubr.f32.mxu0 0.0
  %3293 = vmatmul.mubr.f32.gmra.mrb[0].mxu0 %v3149
  %v3294 = vpop.f32.mrb[0].mxu0
  %v3295 = vadd.f32 %v3064, %v3294
  %v3296 = vpop.f32.mrb[0].mxu0
  %3297 = vmatprep.mubr.f32.mxu0 0.0
  %3298 = vmatmul.mubr.f32.gmra.mrb[0].mxu0 %v3151
  %v3299 = vpop.f32.mrb[0].mxu0
  %v3300 = vadd.f32 %v3065, %v3299
  %v3301 = vpop.f32.mrb[0].mxu0
  %3302 = vmatprep.mubr.f32.mxu0 0.0
  %3303 = vmatmul.mubr.f32.gmra.mrb[0].mxu0 %v3153
  %v3304 = vpop.f32.mrb[0].mxu0
  %v3305 = vadd.f32 %v3066, %v3304
  %v3306 = vpop.f32.mrb[0].mxu0
  %3307 = vmatprep.mubr.f32.mxu0 0.0
  %3308 = vmatmul.mubr.f32.gmra.mrb[0].mxu0 %v3155
  %v3309 = vpop.f32.mrb[0].mxu0
  %v3310 = vadd.f32 %v3067, %v3309
  %v3311 = vpop.f32.mrb[0].mxu0
  %3312 = vmatprep.mubr.f32.mxu0 0.0
  %3313 = vmatmul.mubr.f32.gmra.mrb[0].mxu0 %v3157
  %v3314 = vpop.f32.mrb[0].mxu0
  %v3315 = vadd.f32 %v3068, %v3314
  %v3316 = vpop.f32.mrb[0].mxu0
  %3317 = vmatprep.mubr.f32.mxu0 0.0
  %3318 = vmatmul.mubr.f32.gmra.mrb[0].mxu0 %v3159
  %v3319 = vpop.f32.mrb[0].mxu0
  %v3320 = vadd.f32 %v3069, %v3319
  %v3321 = vpop.f32.mrb[0].mxu0
  %3322 = vmatprep.mubr.f32.mxu0 0.0
  %3323 = vmatmul.mubr.f32.gmra.mrb[0].mxu0 %v3161
  %v3324 = vpop.f32.mrb[0].mxu0
  %v3325 = vadd.f32 %v3070, %v3324
  %v3326 = vpop.f32.mrb[0].mxu0
  %3327 = vmatprep.mubr.f32.mxu0 0.0
  %3328 = vmatmul.mubr.f32.gmra.mrb[0].mxu0 %v3163
  %v3329 = vpop.f32.mrb[0].mxu0
  %v3330 = vadd.f32 %v3071, %v3329
  %v3331 = vpop.f32.mrb[0].mxu0
  %3332 = vmatprep.mubr.f32.mxu0 0.0
  %3333 = vmatmul.mubr.f32.gmra.mrb[0].mxu0 %v3165
  %v3334 = vpop.f32.mrb[0].mxu0
  %v3335 = vadd.f32 %v3072, %v3334
  %v3336 = vpop.f32.mrb[0].mxu0
  %3337 = vmatprep.mubr.f32.mxu0 0.0
  %3338 = vmatmul.mubr.f32.gmra.mrb[0].mxu0 %v3167
  %v3339 = vpop.f32.mrb[0].mxu0
  %v3340 = vadd.f32 %v3073, %v3339
  %v3341 = vpop.f32.mrb[0].mxu0
  %3342 = vmatprep.mubr.f32.mxu0 0.0
  %3343 = vmatmul.mubr.f32.gmra.mrb[0].mxu0 %v3169
  %v3344 = vpop.f32.mrb[0].mxu0
  %v3345 = vadd.f32 %v3074, %v3344
  %v3346 = vpop.f32.mrb[0].mxu0
  %3347 = vdwg.mxu0
  %3348 = vmax.xlane.f32.xlu0 %v3270
  %v3349 = vpop.xlane.xlu0 %3348
  %3350 = vmax.xlane.f32.xlu0 %v3275
  %v3351 = vpop.xlane.xlu0 %3350
  %3352 = vmax.xlane.f32.xlu0 %v3280
  %v3353 = vpop.xlane.xlu0 %3352
  %3354 = vmax.xlane.f32.xlu0 %v3285
  %v3355 = vpop.xlane.xlu0 %3354
  %3356 = vmax.xlane.f32.xlu0 %v3290
  %v3357 = vpop.xlane.xlu0 %3356
  %3358 = vmax.xlane.f32.xlu0 %v3295
  %v3359 = vpop.xlane.xlu0 %3358
  %3360 = vmax.xlane.f32.xlu0 %v3300
  %v3361 = vpop.xlane.xlu0 %3360
  %3362 = vmax.xlane.f32.xlu0 %v3305
  %v3363 = vpop.xlane.xlu0 %3362
  %3364 = vmax.xlane.f32.xlu0 %v3310
  %v3365 = vpop.xlane.xlu0 %3364
  %3366 = vmax.xlane.f32.xlu0 %v3315
  %v3367 = vpop.xlane.xlu0 %3366
  %3368 = vmax.xlane.f32.xlu0 %v3320
  %v3369 = vpop.xlane.xlu0 %3368
  %3370 = vmax.xlane.f32.xlu0 %v3325
  %v3371 = vpop.xlane.xlu0 %3370
  %3372 = vmax.xlane.f32.xlu0 %v3330
  %v3373 = vpop.xlane.xlu0 %3372
  %3374 = vmax.xlane.f32.xlu0 %v3335
  %v3375 = vpop.xlane.xlu0 %3374
  %3376 = vmax.xlane.f32.xlu0 %v3340
  %v3377 = vpop.xlane.xlu0 %3376
  %3378 = vmax.xlane.f32.xlu0 %v3345
  %v3379 = vpop.xlane.xlu0 %3378
  %v3380 = vsub.f32 %v3270, %v3349
  %v3381 = vsub.f32 %v3275, %v3351
  %v3382 = vsub.f32 %v3280, %v3353
  %v3383 = vsub.f32 %v3285, %v3355
  %v3384 = vsub.f32 %v3290, %v3357
  %v3385 = vsub.f32 %v3295, %v3359
  %v3386 = vsub.f32 %v3300, %v3361
  %v3387 = vsub.f32 %v3305, %v3363
  %v3388 = vsub.f32 %v3310, %v3365
  %v3389 = vsub.f32 %v3315, %v3367
  %v3390 = vsub.f32 %v3320, %v3369
  %v3391 = vsub.f32 %v3325, %v3371
  %v3392 = vsub.f32 %v3330, %v3373
  %v3393 = vsub.f32 %v3335, %v3375
  %v3394 = vsub.f32 %v3340, %v3377
  %v3395 = vsub.f32 %v3345, %v3379
  %v3396 = vmul.f32 %v3380, 1.442695
  %v3397 = vpow.pop %v3396
  %v3398 = vmul.f32 %v3381, 1.442695
  %v3399 = vpow.pop %v3398
  %v3400 = vmul.f32 %v3382, 1.442695
  %v3401 = vpow.pop %v3400
  %v3402 = vmul.f32 %v3383, 1.442695
  %v3403 = vpow.pop %v3402
  %v3404 = vmul.f32 %v3384, 1.442695
  %v3405 = vpow.pop %v3404
  %v3406 = vmul.f32 %v3385, 1.442695
  %v3407 = vpow.pop %v3406
  %v3408 = vmul.f32 %v3386, 1.442695
  %v3409 = vpow.pop %v3408
  %v3410 = vmul.f32 %v3387, 1.442695
  %v3411 = vpow.pop %v3410
  %v3412 = vmul.f32 %v3388, 1.442695
  %v3413 = vpow.pop %v3412
  %v3414 = vmul.f32 %v3389, 1.442695
  %v3415 = vpow.pop %v3414
  %v3416 = vmul.f32 %v3390, 1.442695
  %v3417 = vpow.pop %v3416
  %v3418 = vmul.f32 %v3391, 1.442695
  %v3419 = vpow.pop %v3418
  %v3420 = vmul.f32 %v3392, 1.442695
  %v3421 = vpow.pop %v3420
  %v3422 = vmul.f32 %v3393, 1.442695
  %v3423 = vpow.pop %v3422
  %v3424 = vmul.f32 %v3394, 1.442695
  %v3425 = vpow.pop %v3424
  %v3426 = vmul.f32 %v3395, 1.442695
  %v3427 = vpow.pop %v3426
  %3428 = vadd.xlane.f32.xlu0 %v3397
  %v3429 = vpop.xlane.xlu0 %3428
  %3430 = vadd.xlane.f32.xlu0 %v3399
  %v3431 = vpop.xlane.xlu0 %3430
  %3432 = vadd.xlane.f32.xlu0 %v3401
  %v3433 = vpop.xlane.xlu0 %3432
  %3434 = vadd.xlane.f32.xlu0 %v3403
  %v3435 = vpop.xlane.xlu0 %3434
  %3436 = vadd.xlane.f32.xlu0 %v3405
  %v3437 = vpop.xlane.xlu0 %3436
  %3438 = vadd.xlane.f32.xlu0 %v3407
  %v3439 = vpop.xlane.xlu0 %3438
  %3440 = vadd.xlane.f32.xlu0 %v3409
  %v3441 = vpop.xlane.xlu0 %3440
  %3442 = vadd.xlane.f32.xlu0 %v3411
  %v3443 = vpop.xlane.xlu0 %3442
  %3444 = vadd.xlane.f32.xlu0 %v3413
  %v3445 = vpop.xlane.xlu0 %3444
  %3446 = vadd.xlane.f32.xlu0 %v3415
  %v3447 = vpop.xlane.xlu0 %3446
  %3448 = vadd.xlane.f32.xlu0 %v3417
  %v3449 = vpop.xlane.xlu0 %3448
  %3450 = vadd.xlane.f32.xlu0 %v3419
  %v3451 = vpop.xlane.xlu0 %3450
  %3452 = vadd.xlane.f32.xlu0 %v3421
  %v3453 = vpop.xlane.xlu0 %3452
  %3454 = vadd.xlane.f32.xlu0 %v3423
  %v3455 = vpop.xlane.xlu0 %3454
  %3456 = vadd.xlane.f32.xlu0 %v3425
  %v3457 = vpop.xlane.xlu0 %3456
  %3458 = vadd.xlane.f32.xlu0 %v3427
  %v3459 = vpop.xlane.xlu0 %3458
  %v3460 = vrcp.pop %v3429
  %v3461 = vrcp.pop %v3431
  %v3462 = vrcp.pop %v3433
  %v3463 = vrcp.pop %v3435
  %v3464 = vrcp.pop %v3437
  %v3465 = vrcp.pop %v3439
  %v3466 = vrcp.pop %v3441
  %v3467 = vrcp.pop %v3443
  %v3468 = vrcp.pop %v3445
  %v3469 = vrcp.pop %v3447
  %v3470 = vrcp.pop %v3449
  %v3471 = vrcp.pop %v3451
  %v3472 = vrcp.pop %v3453
  %v3473 = vrcp.pop %v3455
  %v3474 = vrcp.pop %v3457
  %v3475 = vrcp.pop %v3459
  %v3476 = vmul.f32 %v3397, %v3460
  %v3477 = vmul.f32 %v3399, %v3461
  %v3478 = vmul.f32 %v3401, %v3462
  %v3479 = vmul.f32 %v3403, %v3463
  %v3480 = vmul.f32 %v3405, %v3464
  %v3481 = vmul.f32 %v3407, %v3465
  %v3482 = vmul.f32 %v3409, %v3466
  %v3483 = vmul.f32 %v3411, %v3467
  %v3484 = vmul.f32 %v3413, %v3468
  %v3485 = vmul.f32 %v3415, %v3469
  %v3486 = vmul.f32 %v3417, %v3470
  %v3487 = vmul.f32 %v3419, %v3471
  %v3488 = vmul.f32 %v3421, %v3472
  %v3489 = vmul.f32 %v3423, %v3473
  %v3490 = vmul.f32 %v3425, %v3474
  %v3491 = vmul.f32 %v3427, %v3475
  %3492 = vrot.lane.b32.xlu0 %v484, 40
  %v3493 = vpop.permute.xlu0 %3492
  %3494 = vrot.lane.b32.xlu0 %v489, 40
  %v3495 = vpop.permute.xlu0 %3494
  %3496 = vrot.lane.b32.xlu0 %v494, 40
  %v3497 = vpop.permute.xlu0 %3496
  %3498 = vrot.lane.b32.xlu0 %v499, 40
  %v3499 = vpop.permute.xlu0 %3498
  %3500 = vrot.lane.b32.xlu0 %v504, 40
  %v3501 = vpop.permute.xlu0 %3500
  %3502 = vrot.lane.b32.xlu0 %v509, 40
  %v3503 = vpop.permute.xlu0 %3502
  %3504 = vrot.lane.b32.xlu0 %v514, 40
  %v3505 = vpop.permute.xlu0 %3504
  %3506 = vrot.lane.b32.xlu0 %v519, 40
  %v3507 = vpop.permute.xlu0 %3506
  %3508 = vrot.lane.b32.xlu0 %v524, 40
  %v3509 = vpop.permute.xlu0 %3508
  %3510 = vrot.lane.b32.xlu0 %v529, 40
  %v3511 = vpop.permute.xlu0 %3510
  %3512 = vrot.lane.b32.xlu0 %v534, 40
  %v3513 = vpop.permute.xlu0 %3512
  %3514 = vrot.lane.b32.xlu0 %v539, 40
  %v3515 = vpop.permute.xlu0 %3514
  %3516 = vrot.lane.b32.xlu0 %v544, 40
  %v3517 = vpop.permute.xlu0 %3516
  %3518 = vrot.lane.b32.xlu0 %v549, 40
  %v3519 = vpop.permute.xlu0 %3518
  %3520 = vrot.lane.b32.xlu0 %v554, 40
  %v3521 = vpop.permute.xlu0 %3520
  %3522 = vrot.lane.b32.xlu0 %v559, 40
  %v3523 = vpop.permute.xlu0 %3522
  %3540 = vmatprep.subr.mxu0 0.0
  %3541 = vmatpush1.msra.mxu0 %v3493
  %3542 = vmatprep.subr.mxu0 0.0
  %3543 = vmatpush1.msra.mxu0 %v3495
  %3544 = vmatprep.subr.mxu0 0.0
  %3545 = vmatpush1.msra.mxu0 %v3497
  %3546 = vmatprep.subr.mxu0 0.0
  %3547 = vmatpush1.msra.mxu0 %v3499
  %3548 = vmatprep.subr.mxu0 0.0
  %3549 = vmatpush1.msra.mxu0 %v3501
  %3550 = vmatprep.subr.mxu0 0.0
  %3551 = vmatpush1.msra.mxu0 %v3503
  %3552 = vmatprep.subr.mxu0 0.0
  %3553 = vmatpush1.msra.mxu0 %v3505
  %3554 = vmatprep.subr.mxu0 0.0
  %3555 = vmatpush1.msra.mxu0 %v3507
  %3556 = vmatprep.subr.mxu0 0.0
  %3557 = vmatpush1.msra.mxu0 %v3509
  %3558 = vmatprep.subr.mxu0 0.0
  %3559 = vmatpush1.msra.mxu0 %v3511
  %3560 = vmatprep.subr.mxu0 0.0
  %3561 = vmatpush1.msra.mxu0 %v3513
  %3562 = vmatprep.subr.mxu0 0.0
  %3563 = vmatpush1.msra.mxu0 %v3515
  %3564 = vmatprep.subr.mxu0 0.0
  %3565 = vmatpush1.msra.mxu0 %v3517
  %3566 = vmatprep.subr.mxu0 0.0
  %3567 = vmatpush1.msra.mxu0 %v3519
  %3568 = vmatprep.subr.mxu0 0.0
  %3569 = vmatpush1.msra.mxu0 %v3521
  %3570 = vmatprep.subr.mxu0 0.0
  %3571 = vmatpush1.msra.mxu0 %v3523
  %3572 = vmatprep.subr.mxu0 0.0
  %3573 = vmatpush1.msra.mxu0 0.0
  %3574 = vmatprep.subr.mxu0 0.0
  %3575 = vmatpush1.msra.mxu0 0.0
  %3576 = vmatprep.subr.mxu0 0.0
  %3577 = vmatpush1.msra.mxu0 0.0
  %3578 = vmatprep.subr.mxu0 0.0
  %3579 = vmatpush1.msra.mxu0 0.0
  %3580 = vmatprep.subr.mxu0 0.0
  %3581 = vmatpush1.msra.mxu0 0.0
  %3582 = vmatprep.subr.mxu0 0.0
  %3583 = vmatpush1.msra.mxu0 0.0
  %3584 = vmatprep.subr.mxu0 0.0
  %3585 = vmatpush1.msra.mxu0 0.0
  %3586 = vmatprep.subr.mxu0 0.0
  %3587 = vmatpush1.msra.mxu0 0.0
  %3588 = vmatprep.subr.mxu0 0.0
  %3589 = vmatpush1.msra.mxu0 0.0
  %3590 = vmatprep.subr.mxu0 0.0
  %3591 = vmatpush1.msra.mxu0 0.0
  %3592 = vmatprep.subr.mxu0 0.0
  %3593 = vmatpush1.msra.mxu0 0.0
  %3594 = vmatprep.subr.mxu0 0.0
  %3595 = vmatpush1.msra.mxu0 0.0
  %3596 = vmatprep.subr.mxu0 0.0
  %3597 = vmatpush1.msra.mxu0 0.0
  %3598 = vmatprep.subr.mxu0 0.0
  %3599 = vmatpush1.msra.mxu0 0.0
  %3600 = vmatprep.subr.mxu0 0.0
  %3601 = vmatpush1.msra.mxu0 0.0
  %3602 = vmatprep.subr.mxu0 0.0
  %3603 = vmatpush1.msra.mxu0 0.0
  %3604 = vmatprep.mubr.f32.mxu0 0.0
  %3605 = vmatmul.mubr.f32.gmra.mrb[0].mxu0 %v3476
  %v3606 = vpop.f32.mrb[0].mxu0
  %v3607 = vadd.f32 0.0, %v3606
  %v3608 = vpop.f32.mrb[0].mxu0
  %3609 = vmatprep.mubr.f32.mxu0 0.0
  %3610 = vmatmul.mubr.f32.gmra.mrb[0].mxu0 %v3477
  %v3611 = vpop.f32.mrb[0].mxu0
  %v3612 = vadd.f32 0.0, %v3611
  %v3613 = vpop.f32.mrb[0].mxu0
  %3614 = vmatprep.mubr.f32.mxu0 0.0
  %3615 = vmatmul.mubr.f32.gmra.mrb[0].mxu0 %v3478
  %v3616 = vpop.f32.mrb[0].mxu0
  %v3617 = vadd.f32 0.0, %v3616
  %v3618 = vpop.f32.mrb[0].mxu0
  %3619 = vmatprep.mubr.f32.mxu0 0.0
  %3620 = vmatmul.mubr.f32.gmra.mrb[0].mxu0 %v3479
  %v3621 = vpop.f32.mrb[0].mxu0
  %v3622 = vadd.f32 0.0, %v3621
  %v3623 = vpop.f32.mrb[0].mxu0
  %3624 = vmatprep.mubr.f32.mxu0 0.0
  %3625 = vmatmul.mubr.f32.gmra.mrb[0].mxu0 %v3480
  %v3626 = vpop.f32.mrb[0].mxu0
  %v3627 = vadd.f32 0.0, %v3626
  %v3628 = vpop.f32.mrb[0].mxu0
  %3629 = vmatprep.mubr.f32.mxu0 0.0
  %3630 = vmatmul.mubr.f32.gmra.mrb[0].mxu0 %v3481
  %v3631 = vpop.f32.mrb[0].mxu0
  %v3632 = vadd.f32 0.0, %v3631
  %v3633 = vpop.f32.mrb[0].mxu0
  %3634 = vmatprep.mubr.f32.mxu0 0.0
  %3635 = vmatmul.mubr.f32.gmra.mrb[0].mxu0 %v3482
  %v3636 = vpop.f32.mrb[0].mxu0
  %v3637 = vadd.f32 0.0, %v3636
  %v3638 = vpop.f32.mrb[0].mxu0
  %3639 = vmatprep.mubr.f32.mxu0 0.0
  %3640 = vmatmul.mubr.f32.gmra.mrb[0].mxu0 %v3483
  %v3641 = vpop.f32.mrb[0].mxu0
  %v3642 = vadd.f32 0.0, %v3641
  %v3643 = vpop.f32.mrb[0].mxu0
  %3644 = vmatprep.mubr.f32.mxu0 0.0
  %3645 = vmatmul.mubr.f32.gmra.mrb[0].mxu0 %v3484
  %v3646 = vpop.f32.mrb[0].mxu0
  %v3647 = vadd.f32 0.0, %v3646
  %v3648 = vpop.f32.mrb[0].mxu0
  %3649 = vmatprep.mubr.f32.mxu0 0.0
  %3650 = vmatmul.mubr.f32.gmra.mrb[0].mxu0 %v3485
  %v3651 = vpop.f32.mrb[0].mxu0
  %v3652 = vadd.f32 0.0, %v3651
  %v3653 = vpop.f32.mrb[0].mxu0
  %3654 = vmatprep.mubr.f32.mxu0 0.0
  %3655 = vmatmul.mubr.f32.gmra.mrb[0].mxu0 %v3486
  %v3656 = vpop.f32.mrb[0].mxu0
  %v3657 = vadd.f32 0.0, %v3656
  %v3658 = vpop.f32.mrb[0].mxu0
  %3659 = vmatprep.mubr.f32.mxu0 0.0
  %3660 = vmatmul.mubr.f32.gmra.mrb[0].mxu0 %v3487
  %v3661 = vpop.f32.mrb[0].mxu0
  %v3662 = vadd.f32 0.0, %v3661
  %v3663 = vpop.f32.mrb[0].mxu0
  %3664 = vmatprep.mubr.f32.mxu0 0.0
  %3665 = vmatmul.mubr.f32.gmra.mrb[0].mxu0 %v3488
  %v3666 = vpop.f32.mrb[0].mxu0
  %v3667 = vadd.f32 0.0, %v3666
  %v3668 = vpop.f32.mrb[0].mxu0
  %3669 = vmatprep.mubr.f32.mxu0 0.0
  %3670 = vmatmul.mubr.f32.gmra.mrb[0].mxu0 %v3489
  %v3671 = vpop.f32.mrb[0].mxu0
  %v3672 = vadd.f32 0.0, %v3671
  %v3673 = vpop.f32.mrb[0].mxu0
  %3674 = vmatprep.mubr.f32.mxu0 0.0
  %3675 = vmatmul.mubr.f32.gmra.mrb[0].mxu0 %v3490
  %v3676 = vpop.f32.mrb[0].mxu0
  %v3677 = vadd.f32 0.0, %v3676
  %v3678 = vpop.f32.mrb[0].mxu0
  %3679 = vmatprep.mubr.f32.mxu0 0.0
  %3680 = vmatmul.mubr.f32.gmra.mrb[0].mxu0 %v3491
  %v3681 = vpop.f32.mrb[0].mxu0
  %v3682 = vadd.f32 0.0, %v3681
  %v3683 = vpop.f32.mrb[0].mxu0
  %3684 = vdwg.mxu0
  %v3686 = vsel %vm646, %v3607, 0
  %v3689 = vsel %vm646, %v3612, 0
  %v3692 = vsel %vm646, %v3617, 0
  %v3695 = vsel %vm646, %v3622, 0
  %v3698 = vsel %vm646, %v3627, 0
  %v3701 = vsel %vm646, %v3632, 0
  %v3704 = vsel %vm646, %v3637, 0
  %v3707 = vsel %vm646, %v3642, 0
  %v3710 = vsel %vm646, %v3647, 0
  %v3713 = vsel %vm646, %v3652, 0
  %v3716 = vsel %vm646, %v3657, 0
  %v3719 = vsel %vm646, %v3662, 0
  %v3722 = vsel %vm646, %v3667, 0
  %v3725 = vsel %vm646, %v3672, 0
  %v3728 = vsel %vm646, %v3677, 0
  %v3731 = vsel %vm646, %v3682, 0
  %3733 = vmatprep.subr.mxu0 0.0
  %3734 = vmatpush1.msra.mxu0 %v565
  %3735 = vmatprep.subr.mxu0 0.0
  %3736 = vmatpush1.msra.mxu0 0.0
  %3737 = vmatprep.subr.mxu0 0.0
  %3738 = vmatpush1.msra.mxu0 0.0
  %3739 = vmatprep.subr.mxu0 0.0
  %3740 = vmatpush1.msra.mxu0 0.0
  %3741 = vmatprep.subr.mxu0 0.0
  %3742 = vmatpush1.msra.mxu0 0.0
  %3743 = vmatprep.subr.mxu0 0.0
  %3744 = vmatpush1.msra.mxu0 0.0
  %3745 = vmatprep.subr.mxu0 0.0
  %3746 = vmatpush1.msra.mxu0 0.0
  %3747 = vmatprep.subr.mxu0 0.0
  %3748 = vmatpush1.msra.mxu0 0.0
  %3749 = vmatprep.subr.mxu0 0.0
  %3750 = vmatpush1.msra.mxu0 0.0
  %3751 = vmatprep.subr.mxu0 0.0
  %3752 = vmatpush1.msra.mxu0 0.0
  %3753 = vmatprep.subr.mxu0 0.0
  %3754 = vmatpush1.msra.mxu0 0.0
  %3755 = vmatprep.subr.mxu0 0.0
  %3756 = vmatpush1.msra.mxu0 0.0
  %3757 = vmatprep.subr.mxu0 0.0
  %3758 = vmatpush1.msra.mxu0 0.0
  %3759 = vmatprep.subr.mxu0 0.0
  %3760 = vmatpush1.msra.mxu0 0.0
  %3761 = vmatprep.subr.mxu0 0.0
  %3762 = vmatpush1.msra.mxu0 0.0
  %3763 = vmatprep.subr.mxu0 0.0
  %3764 = vmatpush1.msra.mxu0 0.0
  %3765 = vmatprep.subr.mxu0 0.0
  %3766 = vmatpush1.msra.mxu0 0.0
  %3767 = vmatprep.subr.mxu0 0.0
  %3768 = vmatpush1.msra.mxu0 0.0
  %3769 = vmatprep.subr.mxu0 0.0
  %3770 = vmatpush1.msra.mxu0 0.0
  %3771 = vmatprep.subr.mxu0 0.0
  %3772 = vmatpush1.msra.mxu0 0.0
  %3773 = vmatprep.subr.mxu0 0.0
  %3774 = vmatpush1.msra.mxu0 0.0
  %3775 = vmatprep.subr.mxu0 0.0
  %3776 = vmatpush1.msra.mxu0 0.0
  %3777 = vmatprep.subr.mxu0 0.0
  %3778 = vmatpush1.msra.mxu0 0.0
  %3779 = vmatprep.subr.mxu0 0.0
  %3780 = vmatpush1.msra.mxu0 0.0
  %3781 = vmatprep.subr.mxu0 0.0
  %3782 = vmatpush1.msra.mxu0 0.0
  %3783 = vmatprep.subr.mxu0 0.0
  %3784 = vmatpush1.msra.mxu0 0.0
  %3785 = vmatprep.subr.mxu0 0.0
  %3786 = vmatpush1.msra.mxu0 0.0
  %3787 = vmatprep.subr.mxu0 0.0
  %3788 = vmatpush1.msra.mxu0 0.0
  %3789 = vmatprep.subr.mxu0 0.0
  %3790 = vmatpush1.msra.mxu0 0.0
  %3791 = vmatprep.subr.mxu0 0.0
  %3792 = vmatpush1.msra.mxu0 0.0
  %3793 = vmatprep.subr.mxu0 0.0
  %3794 = vmatpush1.msra.mxu0 0.0
  %3795 = vmatprep.subr.mxu0 0.0
  %3796 = vmatpush1.msra.mxu0 0.0
  %3797 = vmatprep.mubr.f32.mxu0 0.0
  %3798 = vmatmul.mubr.f32.gmra.mrb[0].mxu0 %v3686
  %v3799 = vpop.f32.mrb[0].mxu0
  %v3800 = vadd.f32 0.0, %v3799
  %v3801 = vpop.f32.mrb[0].mxu0
  %3802 = vmatprep.mubr.f32.mxu0 0.0
  %3803 = vmatmul.mubr.f32.gmra.mrb[0].mxu0 %v3689
  %v3804 = vpop.f32.mrb[0].mxu0
  %v3805 = vadd.f32 0.0, %v3804
  %v3806 = vpop.f32.mrb[0].mxu0
  %3807 = vmatprep.mubr.f32.mxu0 0.0
  %3808 = vmatmul.mubr.f32.gmra.mrb[0].mxu0 %v3692
  %v3809 = vpop.f32.mrb[0].mxu0
  %v3810 = vadd.f32 0.0, %v3809
  %v3811 = vpop.f32.mrb[0].mxu0
  %3812 = vmatprep.mubr.f32.mxu0 0.0
  %3813 = vmatmul.mubr.f32.gmra.mrb[0].mxu0 %v3695
  %v3814 = vpop.f32.mrb[0].mxu0
  %v3815 = vadd.f32 0.0, %v3814
  %v3816 = vpop.f32.mrb[0].mxu0
  %3817 = vmatprep.mubr.f32.mxu0 0.0
  %3818 = vmatmul.mubr.f32.gmra.mrb[0].mxu0 %v3698
  %v3819 = vpop.f32.mrb[0].mxu0
  %v3820 = vadd.f32 0.0, %v3819
  %v3821 = vpop.f32.mrb[0].mxu0
  %3822 = vmatprep.mubr.f32.mxu0 0.0
  %3823 = vmatmul.mubr.f32.gmra.mrb[0].mxu0 %v3701
  %v3824 = vpop.f32.mrb[0].mxu0
  %v3825 = vadd.f32 0.0, %v3824
  %v3826 = vpop.f32.mrb[0].mxu0
  %3827 = vmatprep.mubr.f32.mxu0 0.0
  %3828 = vmatmul.mubr.f32.gmra.mrb[0].mxu0 %v3704
  %v3829 = vpop.f32.mrb[0].mxu0
  %v3830 = vadd.f32 0.0, %v3829
  %v3831 = vpop.f32.mrb[0].mxu0
  %3832 = vmatprep.mubr.f32.mxu0 0.0
  %3833 = vmatmul.mubr.f32.gmra.mrb[0].mxu0 %v3707
  %v3834 = vpop.f32.mrb[0].mxu0
  %v3835 = vadd.f32 0.0, %v3834
  %v3836 = vpop.f32.mrb[0].mxu0
  %3837 = vmatprep.mubr.f32.mxu0 0.0
  %3838 = vmatmul.mubr.f32.gmra.mrb[0].mxu0 %v3710
  %v3839 = vpop.f32.mrb[0].mxu0
  %v3840 = vadd.f32 0.0, %v3839
  %v3841 = vpop.f32.mrb[0].mxu0
  %3842 = vmatprep.mubr.f32.mxu0 0.0
  %3843 = vmatmul.mubr.f32.gmra.mrb[0].mxu0 %v3713
  %v3844 = vpop.f32.mrb[0].mxu0
  %v3845 = vadd.f32 0.0, %v3844
  %v3846 = vpop.f32.mrb[0].mxu0
  %3847 = vmatprep.mubr.f32.mxu0 0.0
  %3848 = vmatmul.mubr.f32.gmra.mrb[0].mxu0 %v3716
  %v3849 = vpop.f32.mrb[0].mxu0
  %v3850 = vadd.f32 0.0, %v3849
  %v3851 = vpop.f32.mrb[0].mxu0
  %3852 = vmatprep.mubr.f32.mxu0 0.0
  %3853 = vmatmul.mubr.f32.gmra.mrb[0].mxu0 %v3719
  %v3854 = vpop.f32.mrb[0].mxu0
  %v3855 = vadd.f32 0.0, %v3854
  %v3856 = vpop.f32.mrb[0].mxu0
  %3857 = vmatprep.mubr.f32.mxu0 0.0
  %3858 = vmatmul.mubr.f32.gmra.mrb[0].mxu0 %v3722
  %v3859 = vpop.f32.mrb[0].mxu0
  %v3860 = vadd.f32 0.0, %v3859
  %v3861 = vpop.f32.mrb[0].mxu0
  %3862 = vmatprep.mubr.f32.mxu0 0.0
  %3863 = vmatmul.mubr.f32.gmra.mrb[0].mxu0 %v3725
  %v3864 = vpop.f32.mrb[0].mxu0
  %v3865 = vadd.f32 0.0, %v3864
  %v3866 = vpop.f32.mrb[0].mxu0
  %3867 = vmatprep.mubr.f32.mxu0 0.0
  %3868 = vmatmul.mubr.f32.gmra.mrb[0].mxu0 %v3728
  %v3869 = vpop.f32.mrb[0].mxu0
  %v3870 = vadd.f32 0.0, %v3869
  %v3871 = vpop.f32.mrb[0].mxu0
  %3872 = vmatprep.mubr.f32.mxu0 0.0
  %3873 = vmatmul.mubr.f32.gmra.mrb[0].mxu0 %v3731
  %v3874 = vpop.f32.mrb[0].mxu0
  %v3875 = vadd.f32 0.0, %v3874
  %v3876 = vpop.f32.mrb[0].mxu0
  %3877 = vdwg.mxu0
  %v3878 = vadd.f32 %v3042, %v3800
  %v3879 = vadd.f32 %v3043, %v3805
  %v3880 = vadd.f32 %v3044, %v3810
  %v3881 = vadd.f32 %v3045, %v3815
  %v3882 = vadd.f32 %v3046, %v3820
  %v3883 = vadd.f32 %v3047, %v3825
  %v3884 = vadd.f32 %v3048, %v3830
  %v3885 = vadd.f32 %v3049, %v3835
  %v3886 = vadd.f32 %v3050, %v3840
  %v3887 = vadd.f32 %v3051, %v3845
  %v3888 = vadd.f32 %v3052, %v3850
  %v3889 = vadd.f32 %v3053, %v3855
  %v3890 = vadd.f32 %v3054, %v3860
  %v3891 = vadd.f32 %v3055, %v3865
  %v3892 = vadd.f32 %v3056, %v3870
  %v3893 = vadd.f32 %v3057, %v3875
  %v3894 = vadd.f32 %v86, %v3878
  %v3895 = vadd.f32 %v87, %v3879
  %v3896 = vadd.f32 %v88, %v3880
  %v3897 = vadd.f32 %v89, %v3881
  %v3898 = vadd.f32 %v90, %v3882
  %v3899 = vadd.f32 %v91, %v3883
  %v3900 = vadd.f32 %v92, %v3884
  %v3901 = vadd.f32 %v93, %v3885
  %v3902 = vadd.f32 %v94, %v3886
  %v3903 = vadd.f32 %v95, %v3887
  %v3904 = vadd.f32 %v96, %v3888
  %v3905 = vadd.f32 %v97, %v3889
  %v3906 = vadd.f32 %v98, %v3890
  %v3907 = vadd.f32 %v99, %v3891
  %v3908 = vadd.f32 %v100, %v3892
  %v3909 = vadd.f32 %v101, %v3893
  %v3910 = vld [vmem:[%s7] sm:$0x1]
  %v3912 = vlaneseq
  %v3913 = vshrl.u32 %v3912, 7
  %v3914 = vsub.s32 0, %v3913
  %v3915 = vrot.slane %v3910, %v3914
  %v3917 = vadd.f32 %v3894, %v3915
  %v3918 = vadd.f32 %v3895, %v3915
  %v3919 = vadd.f32 %v3896, %v3915
  %v3920 = vadd.f32 %v3897, %v3915
  %v3921 = vadd.f32 %v3898, %v3915
  %v3922 = vadd.f32 %v3899, %v3915
  %v3923 = vadd.f32 %v3900, %v3915
  %v3924 = vadd.f32 %v3901, %v3915
  %v3925 = vadd.f32 %v3902, %v3915
  %v3926 = vadd.f32 %v3903, %v3915
  %v3927 = vadd.f32 %v3904, %v3915
  %v3928 = vadd.f32 %v3905, %v3915
  %v3929 = vadd.f32 %v3906, %v3915
  %v3930 = vadd.f32 %v3907, %v3915
  %v3931 = vadd.f32 %v3908, %v3915
  %v3932 = vadd.f32 %v3909, %v3915
  %v3933 = vld [vmem:[%s8] sm:$0x1]
  %v3934 = vld [vmem:[%s9] sm:$0x1]
  %v3935 = vsel %vm104, %v3917, 0.0
  %3936 = vadd.xlane.f32.xlu0 %v3935
  %v3937 = vpop.xlane.xlu0 %3936
  %v3938 = vsel %vm104, %v3918, 0.0
  %3939 = vadd.xlane.f32.xlu0 %v3938
  %v3940 = vpop.xlane.xlu0 %3939
  %v3941 = vsel %vm104, %v3919, 0.0
  %3942 = vadd.xlane.f32.xlu0 %v3941
  %v3943 = vpop.xlane.xlu0 %3942
  %v3944 = vsel %vm104, %v3920, 0.0
  %3945 = vadd.xlane.f32.xlu0 %v3944
  %v3946 = vpop.xlane.xlu0 %3945
  %v3947 = vsel %vm104, %v3921, 0.0
  %3948 = vadd.xlane.f32.xlu0 %v3947
  %v3949 = vpop.xlane.xlu0 %3948
  %v3950 = vsel %vm104, %v3922, 0.0
  %3951 = vadd.xlane.f32.xlu0 %v3950
  %v3952 = vpop.xlane.xlu0 %3951
  %v3953 = vsel %vm104, %v3923, 0.0
  %3954 = vadd.xlane.f32.xlu0 %v3953
  %v3955 = vpop.xlane.xlu0 %3954
  %v3956 = vsel %vm104, %v3924, 0.0
  %3957 = vadd.xlane.f32.xlu0 %v3956
  %v3958 = vpop.xlane.xlu0 %3957
  %v3959 = vsel %vm104, %v3925, 0.0
  %3960 = vadd.xlane.f32.xlu0 %v3959
  %v3961 = vpop.xlane.xlu0 %3960
  %v3962 = vsel %vm104, %v3926, 0.0
  %3963 = vadd.xlane.f32.xlu0 %v3962
  %v3964 = vpop.xlane.xlu0 %3963
  %v3965 = vsel %vm104, %v3927, 0.0
  %3966 = vadd.xlane.f32.xlu0 %v3965
  %v3967 = vpop.xlane.xlu0 %3966
  %v3968 = vsel %vm104, %v3928, 0.0
  %3969 = vadd.xlane.f32.xlu0 %v3968
  %v3970 = vpop.xlane.xlu0 %3969
  %v3971 = vsel %vm104, %v3929, 0.0
  %3972 = vadd.xlane.f32.xlu0 %v3971
  %v3973 = vpop.xlane.xlu0 %3972
  %v3974 = vsel %vm104, %v3930, 0.0
  %3975 = vadd.xlane.f32.xlu0 %v3974
  %v3976 = vpop.xlane.xlu0 %3975
  %v3977 = vsel %vm104, %v3931, 0.0
  %3978 = vadd.xlane.f32.xlu0 %v3977
  %v3979 = vpop.xlane.xlu0 %3978
  %v3980 = vsel %vm104, %v3932, 0.0
  %3981 = vadd.xlane.f32.xlu0 %v3980
  %v3982 = vpop.xlane.xlu0 %3981
  %v3983 = vmul.f32 %v3937, %v153
  %v3984 = vmul.f32 %v3940, %v153
  %v3985 = vmul.f32 %v3943, %v153
  %v3986 = vmul.f32 %v3946, %v153
  %v3987 = vmul.f32 %v3949, %v153
  %v3988 = vmul.f32 %v3952, %v153
  %v3989 = vmul.f32 %v3955, %v153
  %v3990 = vmul.f32 %v3958, %v153
  %v3991 = vmul.f32 %v3961, %v153
  %v3992 = vmul.f32 %v3964, %v153
  %v3993 = vmul.f32 %v3967, %v153
  %v3994 = vmul.f32 %v3970, %v153
  %v3995 = vmul.f32 %v3973, %v153
  %v3996 = vmul.f32 %v3976, %v153
  %v3997 = vmul.f32 %v3979, %v153
  %v3998 = vmul.f32 %v3982, %v153
  %v3999 = vsub.f32 %v3917, %v3983
  %v4000 = vsub.f32 %v3918, %v3984
  %v4001 = vsub.f32 %v3919, %v3985
  %v4002 = vsub.f32 %v3920, %v3986
  %v4003 = vsub.f32 %v3921, %v3987
  %v4004 = vsub.f32 %v3922, %v3988
  %v4005 = vsub.f32 %v3923, %v3989
  %v4006 = vsub.f32 %v3924, %v3990
  %v4007 = vsub.f32 %v3925, %v3991
  %v4008 = vsub.f32 %v3926, %v3992
  %v4009 = vsub.f32 %v3927, %v3993
  %v4010 = vsub.f32 %v3928, %v3994
  %v4011 = vsub.f32 %v3929, %v3995
  %v4012 = vsub.f32 %v3930, %v3996
  %v4013 = vsub.f32 %v3931, %v3997
  %v4014 = vsub.f32 %v3932, %v3998
  %v4015 = vmul.f32 %v3999, %v3999
  %v4016 = vmul.f32 %v4000, %v4000
  %v4017 = vmul.f32 %v4001, %v4001
  %v4018 = vmul.f32 %v4002, %v4002
  %v4019 = vmul.f32 %v4003, %v4003
  %v4020 = vmul.f32 %v4004, %v4004
  %v4021 = vmul.f32 %v4005, %v4005
  %v4022 = vmul.f32 %v4006, %v4006
  %v4023 = vmul.f32 %v4007, %v4007
  %v4024 = vmul.f32 %v4008, %v4008
  %v4025 = vmul.f32 %v4009, %v4009
  %v4026 = vmul.f32 %v4010, %v4010
  %v4027 = vmul.f32 %v4011, %v4011
  %v4028 = vmul.f32 %v4012, %v4012
  %v4029 = vmul.f32 %v4013, %v4013
  %v4030 = vmul.f32 %v4014, %v4014
  %v4031 = vsel %vm104, %v4015, 0.0
  %4032 = vadd.xlane.f32.xlu0 %v4031
  %v4033 = vpop.xlane.xlu0 %4032
  %v4034 = vsel %vm104, %v4016, 0.0
  %4035 = vadd.xlane.f32.xlu0 %v4034
  %v4036 = vpop.xlane.xlu0 %4035
  %v4037 = vsel %vm104, %v4017, 0.0
  %4038 = vadd.xlane.f32.xlu0 %v4037
  %v4039 = vpop.xlane.xlu0 %4038
  %v4040 = vsel %vm104, %v4018, 0.0
  %4041 = vadd.xlane.f32.xlu0 %v4040
  %v4042 = vpop.xlane.xlu0 %4041
  %v4043 = vsel %vm104, %v4019, 0.0
  %4044 = vadd.xlane.f32.xlu0 %v4043
  %v4045 = vpop.xlane.xlu0 %4044
  %v4046 = vsel %vm104, %v4020, 0.0
  %4047 = vadd.xlane.f32.xlu0 %v4046
  %v4048 = vpop.xlane.xlu0 %4047
  %v4049 = vsel %vm104, %v4021, 0.0
  %4050 = vadd.xlane.f32.xlu0 %v4049
  %v4051 = vpop.xlane.xlu0 %4050
  %v4052 = vsel %vm104, %v4022, 0.0
  %4053 = vadd.xlane.f32.xlu0 %v4052
  %v4054 = vpop.xlane.xlu0 %4053
  %v4055 = vsel %vm104, %v4023, 0.0
  %4056 = vadd.xlane.f32.xlu0 %v4055
  %v4057 = vpop.xlane.xlu0 %4056
  %v4058 = vsel %vm104, %v4024, 0.0
  %4059 = vadd.xlane.f32.xlu0 %v4058
  %v4060 = vpop.xlane.xlu0 %4059
  %v4061 = vsel %vm104, %v4025, 0.0
  %4062 = vadd.xlane.f32.xlu0 %v4061
  %v4063 = vpop.xlane.xlu0 %4062
  %v4064 = vsel %vm104, %v4026, 0.0
  %4065 = vadd.xlane.f32.xlu0 %v4064
  %v4066 = vpop.xlane.xlu0 %4065
  %v4067 = vsel %vm104, %v4027, 0.0
  %4068 = vadd.xlane.f32.xlu0 %v4067
  %v4069 = vpop.xlane.xlu0 %4068
  %v4070 = vsel %vm104, %v4028, 0.0
  %4071 = vadd.xlane.f32.xlu0 %v4070
  %v4072 = vpop.xlane.xlu0 %4071
  %v4073 = vsel %vm104, %v4029, 0.0
  %4074 = vadd.xlane.f32.xlu0 %v4073
  %v4075 = vpop.xlane.xlu0 %4074
  %v4076 = vsel %vm104, %v4030, 0.0
  %4077 = vadd.xlane.f32.xlu0 %v4076
  %v4078 = vpop.xlane.xlu0 %4077
  %v4079 = vmul.f32 %v4033, %v153
  %v4080 = vmul.f32 %v4036, %v153
  %v4081 = vmul.f32 %v4039, %v153
  %v4082 = vmul.f32 %v4042, %v153
  %v4083 = vmul.f32 %v4045, %v153
  %v4084 = vmul.f32 %v4048, %v153
  %v4085 = vmul.f32 %v4051, %v153
  %v4086 = vmul.f32 %v4054, %v153
  %v4087 = vmul.f32 %v4057, %v153
  %v4088 = vmul.f32 %v4060, %v153
  %v4089 = vmul.f32 %v4063, %v153
  %v4090 = vmul.f32 %v4066, %v153
  %v4091 = vmul.f32 %v4069, %v153
  %v4092 = vmul.f32 %v4072, %v153
  %v4093 = vmul.f32 %v4075, %v153
  %v4094 = vmul.f32 %v4078, %v153
  %v4095 = vadd.f32 %v4079, 1e-05
  %v4096 = vadd.f32 %v4080, 1e-05
  %v4097 = vadd.f32 %v4081, 1e-05
  %v4098 = vadd.f32 %v4082, 1e-05
  %v4099 = vadd.f32 %v4083, 1e-05
  %v4100 = vadd.f32 %v4084, 1e-05
  %v4101 = vadd.f32 %v4085, 1e-05
  %v4102 = vadd.f32 %v4086, 1e-05
  %v4103 = vadd.f32 %v4087, 1e-05
  %v4104 = vadd.f32 %v4088, 1e-05
  %v4105 = vadd.f32 %v4089, 1e-05
  %v4106 = vadd.f32 %v4090, 1e-05
  %v4107 = vadd.f32 %v4091, 1e-05
  %v4108 = vadd.f32 %v4092, 1e-05
  %v4109 = vadd.f32 %v4093, 1e-05
  %v4110 = vadd.f32 %v4094, 1e-05
  %v4111 = vrsqrt.pop %v4095
  %v4112 = vrsqrt.pop %v4096
  %v4113 = vrsqrt.pop %v4097
  %v4114 = vrsqrt.pop %v4098
  %v4115 = vrsqrt.pop %v4099
  %v4116 = vrsqrt.pop %v4100
  %v4117 = vrsqrt.pop %v4101
  %v4118 = vrsqrt.pop %v4102
  %v4119 = vrsqrt.pop %v4103
  %v4120 = vrsqrt.pop %v4104
  %v4121 = vrsqrt.pop %v4105
  %v4122 = vrsqrt.pop %v4106
  %v4123 = vrsqrt.pop %v4107
  %v4124 = vrsqrt.pop %v4108
  %v4125 = vrsqrt.pop %v4109
  %v4126 = vrsqrt.pop %v4110
  %v4127 = vmul.f32 %v3999, %v4111
  %v4128 = vmul.f32 %v4000, %v4112
  %v4129 = vmul.f32 %v4001, %v4113
  %v4130 = vmul.f32 %v4002, %v4114
  %v4131 = vmul.f32 %v4003, %v4115
  %v4132 = vmul.f32 %v4004, %v4116
  %v4133 = vmul.f32 %v4005, %v4117
  %v4134 = vmul.f32 %v4006, %v4118
  %v4135 = vmul.f32 %v4007, %v4119
  %v4136 = vmul.f32 %v4008, %v4120
  %v4137 = vmul.f32 %v4009, %v4121
  %v4138 = vmul.f32 %v4010, %v4122
  %v4139 = vmul.f32 %v4011, %v4123
  %v4140 = vmul.f32 %v4012, %v4124
  %v4141 = vmul.f32 %v4013, %v4125
  %v4142 = vmul.f32 %v4014, %v4126
  %v4144 = vlaneseq
  %v4145 = vshrl.u32 %v4144, 7
  %v4146 = vsub.s32 0, %v4145
  %v4147 = vrot.slane %v3933, %v4146
  %v4149 = vmul.f32 %v4127, %v4147
  %v4150 = vmul.f32 %v4128, %v4147
  %v4151 = vmul.f32 %v4129, %v4147
  %v4152 = vmul.f32 %v4130, %v4147
  %v4153 = vmul.f32 %v4131, %v4147
  %v4154 = vmul.f32 %v4132, %v4147
  %v4155 = vmul.f32 %v4133, %v4147
  %v4156 = vmul.f32 %v4134, %v4147
  %v4157 = vmul.f32 %v4135, %v4147
  %v4158 = vmul.f32 %v4136, %v4147
  %v4159 = vmul.f32 %v4137, %v4147
  %v4160 = vmul.f32 %v4138, %v4147
  %v4161 = vmul.f32 %v4139, %v4147
  %v4162 = vmul.f32 %v4140, %v4147
  %v4163 = vmul.f32 %v4141, %v4147
  %v4164 = vmul.f32 %v4142, %v4147
  %v4166 = vlaneseq
  %v4167 = vshrl.u32 %v4166, 7
  %v4168 = vsub.s32 0, %v4167
  %v4169 = vrot.slane %v3934, %v4168
  %v4171 = vadd.f32 %v4149, %v4169
  %v4172 = vadd.f32 %v4150, %v4169
  %v4173 = vadd.f32 %v4151, %v4169
  %v4174 = vadd.f32 %v4152, %v4169
  %v4175 = vadd.f32 %v4153, %v4169
  %v4176 = vadd.f32 %v4154, %v4169
  %v4177 = vadd.f32 %v4155, %v4169
  %v4178 = vadd.f32 %v4156, %v4169
  %v4179 = vadd.f32 %v4157, %v4169
  %v4180 = vadd.f32 %v4158, %v4169
  %v4181 = vadd.f32 %v4159, %v4169
  %v4182 = vadd.f32 %v4160, %v4169
  %v4183 = vadd.f32 %v4161, %v4169
  %v4184 = vadd.f32 %v4162, %v4169
  %v4185 = vadd.f32 %v4163, %v4169
  %v4186 = vadd.f32 %v4164, %v4169
  %v4187 = vld [vmem:[%s10] sm:$0xff]
  %v4188 = vld [vmem:[%s10 + $0x8] sm:$0xff]
  %v4189 = vld [vmem:[%s10 + $0x10] sm:$0xff]
  %v4190 = vld [vmem:[%s10 + $0x18] sm:$0xff]
  %v4191 = vld [vmem:[%s11] sm:$0x1]
  %v4193 = vlaneseq
  %v4194 = vshrl.u32 %v4193, 7
  %v4195 = vsub.s32 0, %v4194
  %v4196 = vrot.slane %v4191, %v4195
  %v4199 = vsel %vm104, %v4171, 0
  %v4202 = vsel %vm104, %v4172, 0
  %v4205 = vsel %vm104, %v4173, 0
  %v4208 = vsel %vm104, %v4174, 0
  %v4211 = vsel %vm104, %v4175, 0
  %v4214 = vsel %vm104, %v4176, 0
  %v4217 = vsel %vm104, %v4177, 0
  %v4220 = vsel %vm104, %v4178, 0
  %v4223 = vsel %vm104, %v4179, 0
  %v4226 = vsel %vm104, %v4180, 0
  %v4229 = vsel %vm104, %v4181, 0
  %v4232 = vsel %vm104, %v4182, 0
  %v4235 = vsel %vm104, %v4183, 0
  %v4238 = vsel %vm104, %v4184, 0
  %v4241 = vsel %vm104, %v4185, 0
  %v4244 = vsel %vm104, %v4186, 0
  %4246 = vmatprep.subr.mxu0 0.0
  %4247 = vmatpush1.msra.mxu0 %v4187
  %4248 = vmatprep.subr.mxu0 0.0
  %4249 = vmatpush1.msra.mxu0 %v4188
  %4250 = vmatprep.subr.mxu0 0.0
  %4251 = vmatpush1.msra.mxu0 %v4189
  %4252 = vmatprep.subr.mxu0 0.0
  %4253 = vmatpush1.msra.mxu0 %v4190
  %4254 = vmatprep.subr.mxu0 0.0
  %4255 = vmatpush1.msra.mxu0 0.0
  %4256 = vmatprep.subr.mxu0 0.0
  %4257 = vmatpush1.msra.mxu0 0.0
  %4258 = vmatprep.subr.mxu0 0.0
  %4259 = vmatpush1.msra.mxu0 0.0
  %4260 = vmatprep.subr.mxu0 0.0
  %4261 = vmatpush1.msra.mxu0 0.0
  %4262 = vmatprep.subr.mxu0 0.0
  %4263 = vmatpush1.msra.mxu0 0.0
  %4264 = vmatprep.subr.mxu0 0.0
  %4265 = vmatpush1.msra.mxu0 0.0
  %4266 = vmatprep.subr.mxu0 0.0
  %4267 = vmatpush1.msra.mxu0 0.0
  %4268 = vmatprep.subr.mxu0 0.0
  %4269 = vmatpush1.msra.mxu0 0.0
  %4270 = vmatprep.subr.mxu0 0.0
  %4271 = vmatpush1.msra.mxu0 0.0
  %4272 = vmatprep.subr.mxu0 0.0
  %4273 = vmatpush1.msra.mxu0 0.0
  %4274 = vmatprep.subr.mxu0 0.0
  %4275 = vmatpush1.msra.mxu0 0.0
  %4276 = vmatprep.subr.mxu0 0.0
  %4277 = vmatpush1.msra.mxu0 0.0
  %4278 = vmatprep.subr.mxu0 0.0
  %4279 = vmatpush1.msra.mxu0 0.0
  %4280 = vmatprep.subr.mxu0 0.0
  %4281 = vmatpush1.msra.mxu0 0.0
  %4282 = vmatprep.subr.mxu0 0.0
  %4283 = vmatpush1.msra.mxu0 0.0
  %4284 = vmatprep.subr.mxu0 0.0
  %4285 = vmatpush1.msra.mxu0 0.0
  %4286 = vmatprep.subr.mxu0 0.0
  %4287 = vmatpush1.msra.mxu0 0.0
  %4288 = vmatprep.subr.mxu0 0.0
  %4289 = vmatpush1.msra.mxu0 0.0
  %4290 = vmatprep.subr.mxu0 0.0
  %4291 = vmatpush1.msra.mxu0 0.0
  %4292 = vmatprep.subr.mxu0 0.0
  %4293 = vmatpush1.msra.mxu0 0.0
  %4294 = vmatprep.subr.mxu0 0.0
  %4295 = vmatpush1.msra.mxu0 0.0
  %4296 = vmatprep.subr.mxu0 0.0
  %4297 = vmatpush1.msra.mxu0 0.0
  %4298 = vmatprep.subr.mxu0 0.0
  %4299 = vmatpush1.msra.mxu0 0.0
  %4300 = vmatprep.subr.mxu0 0.0
  %4301 = vmatpush1.msra.mxu0 0.0
  %4302 = vmatprep.subr.mxu0 0.0
  %4303 = vmatpush1.msra.mxu0 0.0
  %4304 = vmatprep.subr.mxu0 0.0
  %4305 = vmatpush1.msra.mxu0 0.0
  %4306 = vmatprep.subr.mxu0 0.0
  %4307 = vmatpush1.msra.mxu0 0.0
  %4308 = vmatprep.subr.mxu0 0.0
  %4309 = vmatpush1.msra.mxu0 0.0
  %4310 = vmatprep.mubr.f32.mxu0 0.0
  %4311 = vmatmul.mubr.f32.gmra.mrb[0].mxu0 %v4199
  %v4312 = vpop.f32.mrb[0].mxu0
  %v4313 = vadd.f32 %v4196, %v4312
  %v4314 = vpop.f32.mrb[0].mxu0
  %4315 = vmatprep.mubr.f32.mxu0 0.0
  %4316 = vmatmul.mubr.f32.gmra.mrb[0].mxu0 %v4202
  %v4317 = vpop.f32.mrb[0].mxu0
  %v4318 = vadd.f32 %v4196, %v4317
  %v4319 = vpop.f32.mrb[0].mxu0
  %4320 = vmatprep.mubr.f32.mxu0 0.0
  %4321 = vmatmul.mubr.f32.gmra.mrb[0].mxu0 %v4205
  %v4322 = vpop.f32.mrb[0].mxu0
  %v4323 = vadd.f32 %v4196, %v4322
  %v4324 = vpop.f32.mrb[0].mxu0
  %4325 = vmatprep.mubr.f32.mxu0 0.0
  %4326 = vmatmul.mubr.f32.gmra.mrb[0].mxu0 %v4208
  %v4327 = vpop.f32.mrb[0].mxu0
  %v4328 = vadd.f32 %v4196, %v4327
  %v4329 = vpop.f32.mrb[0].mxu0
  %4330 = vmatprep.mubr.f32.mxu0 0.0
  %4331 = vmatmul.mubr.f32.gmra.mrb[0].mxu0 %v4211
  %v4332 = vpop.f32.mrb[0].mxu0
  %v4333 = vadd.f32 %v4196, %v4332
  %v4334 = vpop.f32.mrb[0].mxu0
  %4335 = vmatprep.mubr.f32.mxu0 0.0
  %4336 = vmatmul.mubr.f32.gmra.mrb[0].mxu0 %v4214
  %v4337 = vpop.f32.mrb[0].mxu0
  %v4338 = vadd.f32 %v4196, %v4337
  %v4339 = vpop.f32.mrb[0].mxu0
  %4340 = vmatprep.mubr.f32.mxu0 0.0
  %4341 = vmatmul.mubr.f32.gmra.mrb[0].mxu0 %v4217
  %v4342 = vpop.f32.mrb[0].mxu0
  %v4343 = vadd.f32 %v4196, %v4342
  %v4344 = vpop.f32.mrb[0].mxu0
  %4345 = vmatprep.mubr.f32.mxu0 0.0
  %4346 = vmatmul.mubr.f32.gmra.mrb[0].mxu0 %v4220
  %v4347 = vpop.f32.mrb[0].mxu0
  %v4348 = vadd.f32 %v4196, %v4347
  %v4349 = vpop.f32.mrb[0].mxu0
  %4350 = vmatprep.mubr.f32.mxu0 0.0
  %4351 = vmatmul.mubr.f32.gmra.mrb[0].mxu0 %v4223
  %v4352 = vpop.f32.mrb[0].mxu0
  %v4353 = vadd.f32 %v4196, %v4352
  %v4354 = vpop.f32.mrb[0].mxu0
  %4355 = vmatprep.mubr.f32.mxu0 0.0
  %4356 = vmatmul.mubr.f32.gmra.mrb[0].mxu0 %v4226
  %v4357 = vpop.f32.mrb[0].mxu0
  %v4358 = vadd.f32 %v4196, %v4357
  %v4359 = vpop.f32.mrb[0].mxu0
  %4360 = vmatprep.mubr.f32.mxu0 0.0
  %4361 = vmatmul.mubr.f32.gmra.mrb[0].mxu0 %v4229
  %v4362 = vpop.f32.mrb[0].mxu0
  %v4363 = vadd.f32 %v4196, %v4362
  %v4364 = vpop.f32.mrb[0].mxu0
  %4365 = vmatprep.mubr.f32.mxu0 0.0
  %4366 = vmatmul.mubr.f32.gmra.mrb[0].mxu0 %v4232
  %v4367 = vpop.f32.mrb[0].mxu0
  %v4368 = vadd.f32 %v4196, %v4367
  %v4369 = vpop.f32.mrb[0].mxu0
  %4370 = vmatprep.mubr.f32.mxu0 0.0
  %4371 = vmatmul.mubr.f32.gmra.mrb[0].mxu0 %v4235
  %v4372 = vpop.f32.mrb[0].mxu0
  %v4373 = vadd.f32 %v4196, %v4372
  %v4374 = vpop.f32.mrb[0].mxu0
  %4375 = vmatprep.mubr.f32.mxu0 0.0
  %4376 = vmatmul.mubr.f32.gmra.mrb[0].mxu0 %v4238
  %v4377 = vpop.f32.mrb[0].mxu0
  %v4378 = vadd.f32 %v4196, %v4377
  %v4379 = vpop.f32.mrb[0].mxu0
  %4380 = vmatprep.mubr.f32.mxu0 0.0
  %4381 = vmatmul.mubr.f32.gmra.mrb[0].mxu0 %v4241
  %v4382 = vpop.f32.mrb[0].mxu0
  %v4383 = vadd.f32 %v4196, %v4382
  %v4384 = vpop.f32.mrb[0].mxu0
  %4385 = vmatprep.mubr.f32.mxu0 0.0
  %4386 = vmatmul.mubr.f32.gmra.mrb[0].mxu0 %v4244
  %v4387 = vpop.f32.mrb[0].mxu0
  %v4388 = vadd.f32 %v4196, %v4387
  %v4389 = vpop.f32.mrb[0].mxu0
  %4390 = vdwg.mxu0
  %v4391 = vmul.f32 %v4313, 0.5
  %v4392 = vmul.f32 %v4318, 0.5
  %v4393 = vmul.f32 %v4323, 0.5
  %v4394 = vmul.f32 %v4328, 0.5
  %v4395 = vmul.f32 %v4333, 0.5
  %v4396 = vmul.f32 %v4338, 0.5
  %v4397 = vmul.f32 %v4343, 0.5
  %v4398 = vmul.f32 %v4348, 0.5
  %v4399 = vmul.f32 %v4353, 0.5
  %v4400 = vmul.f32 %v4358, 0.5
  %v4401 = vmul.f32 %v4363, 0.5
  %v4402 = vmul.f32 %v4368, 0.5
  %v4403 = vmul.f32 %v4373, 0.5
  %v4404 = vmul.f32 %v4378, 0.5
  %v4405 = vmul.f32 %v4383, 0.5
  %v4406 = vmul.f32 %v4388, 0.5
  %v4407 = vmul.f32 %v4313, 0.70710677
  %v4408 = vmul.f32 %v4318, 0.70710677
  %v4409 = vmul.f32 %v4323, 0.70710677
  %v4410 = vmul.f32 %v4328, 0.70710677
  %v4411 = vmul.f32 %v4333, 0.70710677
  %v4412 = vmul.f32 %v4338, 0.70710677
  %v4413 = vmul.f32 %v4343, 0.70710677
  %v4414 = vmul.f32 %v4348, 0.70710677
  %v4415 = vmul.f32 %v4353, 0.70710677
  %v4416 = vmul.f32 %v4358, 0.70710677
  %v4417 = vmul.f32 %v4363, 0.70710677
  %v4418 = vmul.f32 %v4368, 0.70710677
  %v4419 = vmul.f32 %v4373, 0.70710677
  %v4420 = vmul.f32 %v4378, 0.70710677
  %v4421 = vmul.f32 %v4383, 0.70710677
  %v4422 = vmul.f32 %v4388, 0.70710677
  %vm4423 = vcmp.ge.f32.partialorder %v4407, 0.0
  %vm4424 = vcmp.ge.f32.partialorder %v4408, 0.0
  %vm4425 = vcmp.ge.f32.partialorder %v4409, 0.0
  %vm4426 = vcmp.ge.f32.partialorder %v4410, 0.0
  %vm4427 = vcmp.ge.f32.partialorder %v4411, 0.0
  %vm4428 = vcmp.ge.f32.partialorder %v4412, 0.0
  %vm4429 = vcmp.ge.f32.partialorder %v4413, 0.0
  %vm4430 = vcmp.ge.f32.partialorder %v4414, 0.0
  %vm4431 = vcmp.ge.f32.partialorder %v4415, 0.0
  %vm4432 = vcmp.ge.f32.partialorder %v4416, 0.0
  %vm4433 = vcmp.ge.f32.partialorder %v4417, 0.0
  %vm4434 = vcmp.ge.f32.partialorder %v4418, 0.0
  %vm4435 = vcmp.ge.f32.partialorder %v4419, 0.0
  %vm4436 = vcmp.ge.f32.partialorder %v4420, 0.0
  %vm4437 = vcmp.ge.f32.partialorder %v4421, 0.0
  %vm4438 = vcmp.ge.f32.partialorder %v4422, 0.0
  %v4439 = vsel %vm4423, 1.0, -1.0
  %v4440 = vsel %vm4424, 1.0, -1.0
  %v4441 = vsel %vm4425, 1.0, -1.0
  %v4442 = vsel %vm4426, 1.0, -1.0
  %v4443 = vsel %vm4427, 1.0, -1.0
  %v4444 = vsel %vm4428, 1.0, -1.0
  %v4445 = vsel %vm4429, 1.0, -1.0
  %v4446 = vsel %vm4430, 1.0, -1.0
  %v4447 = vsel %vm4431, 1.0, -1.0
  %v4448 = vsel %vm4432, 1.0, -1.0
  %v4449 = vsel %vm4433, 1.0, -1.0
  %v4450 = vsel %vm4434, 1.0, -1.0
  %v4451 = vsel %vm4435, 1.0, -1.0
  %v4452 = vsel %vm4436, 1.0, -1.0
  %v4453 = vsel %vm4437, 1.0, -1.0
  %v4454 = vsel %vm4438, 1.0, -1.0
  %v4455 = vand.u32 2147483647, %v4407
  %v4456 = vand.u32 2147483647, %v4408
  %v4457 = vand.u32 2147483647, %v4409
  %v4458 = vand.u32 2147483647, %v4410
  %v4459 = vand.u32 2147483647, %v4411
  %v4460 = vand.u32 2147483647, %v4412
  %v4461 = vand.u32 2147483647, %v4413
  %v4462 = vand.u32 2147483647, %v4414
  %v4463 = vand.u32 2147483647, %v4415
  %v4464 = vand.u32 2147483647, %v4416
  %v4465 = vand.u32 2147483647, %v4417
  %v4466 = vand.u32 2147483647, %v4418
  %v4467 = vand.u32 2147483647, %v4419
  %v4468 = vand.u32 2147483647, %v4420
  %v4469 = vand.u32 2147483647, %v4421
  %v4470 = vand.u32 2147483647, %v4422
  %v4471 = vmul.f32 %v4455, 0.3275911
  %v4472 = vmul.f32 %v4456, 0.3275911
  %v4473 = vmul.f32 %v4457, 0.3275911
  %v4474 = vmul.f32 %v4458, 0.3275911
  %v4475 = vmul.f32 %v4459, 0.3275911
  %v4476 = vmul.f32 %v4460, 0.3275911
  %v4477 = vmul.f32 %v4461, 0.3275911
  %v4478 = vmul.f32 %v4462, 0.3275911
  %v4479 = vmul.f32 %v4463, 0.3275911
  %v4480 = vmul.f32 %v4464, 0.3275911
  %v4481 = vmul.f32 %v4465, 0.3275911
  %v4482 = vmul.f32 %v4466, 0.3275911
  %v4483 = vmul.f32 %v4467, 0.3275911
  %v4484 = vmul.f32 %v4468, 0.3275911
  %v4485 = vmul.f32 %v4469, 0.3275911
  %v4486 = vmul.f32 %v4470, 0.3275911
  %v4487 = vadd.f32 %v4471, 1.0
  %v4488 = vadd.f32 %v4472, 1.0
  %v4489 = vadd.f32 %v4473, 1.0
  %v4490 = vadd.f32 %v4474, 1.0
  %v4491 = vadd.f32 %v4475, 1.0
  %v4492 = vadd.f32 %v4476, 1.0
  %v4493 = vadd.f32 %v4477, 1.0
  %v4494 = vadd.f32 %v4478, 1.0
  %v4495 = vadd.f32 %v4479, 1.0
  %v4496 = vadd.f32 %v4480, 1.0
  %v4497 = vadd.f32 %v4481, 1.0
  %v4498 = vadd.f32 %v4482, 1.0
  %v4499 = vadd.f32 %v4483, 1.0
  %v4500 = vadd.f32 %v4484, 1.0
  %v4501 = vadd.f32 %v4485, 1.0
  %v4502 = vadd.f32 %v4486, 1.0
  %v4503 = vrcp.pop %v4487
  %v4504 = vmul.f32 1.0, %v4503
  %v4505 = vrcp.pop %v4488
  %v4506 = vmul.f32 1.0, %v4505
  %v4507 = vrcp.pop %v4489
  %v4508 = vmul.f32 1.0, %v4507
  %v4509 = vrcp.pop %v4490
  %v4510 = vmul.f32 1.0, %v4509
  %v4511 = vrcp.pop %v4491
  %v4512 = vmul.f32 1.0, %v4511
  %v4513 = vrcp.pop %v4492
  %v4514 = vmul.f32 1.0, %v4513
  %v4515 = vrcp.pop %v4493
  %v4516 = vmul.f32 1.0, %v4515
  %v4517 = vrcp.pop %v4494
  %v4518 = vmul.f32 1.0, %v4517
  %v4519 = vrcp.pop %v4495
  %v4520 = vmul.f32 1.0, %v4519
  %v4521 = vrcp.pop %v4496
  %v4522 = vmul.f32 1.0, %v4521
  %v4523 = vrcp.pop %v4497
  %v4524 = vmul.f32 1.0, %v4523
  %v4525 = vrcp.pop %v4498
  %v4526 = vmul.f32 1.0, %v4525
  %v4527 = vrcp.pop %v4499
  %v4528 = vmul.f32 1.0, %v4527
  %v4529 = vrcp.pop %v4500
  %v4530 = vmul.f32 1.0, %v4529
  %v4531 = vrcp.pop %v4501
  %v4532 = vmul.f32 1.0, %v4531
  %v4533 = vrcp.pop %v4502
  %v4534 = vmul.f32 1.0, %v4533
  %v4535 = vmul.f32 %v4504, 1.0614054
  %v4536 = vmul.f32 %v4506, 1.0614054
  %v4537 = vmul.f32 %v4508, 1.0614054
  %v4538 = vmul.f32 %v4510, 1.0614054
  %v4539 = vmul.f32 %v4512, 1.0614054
  %v4540 = vmul.f32 %v4514, 1.0614054
  %v4541 = vmul.f32 %v4516, 1.0614054
  %v4542 = vmul.f32 %v4518, 1.0614054
  %v4543 = vmul.f32 %v4520, 1.0614054
  %v4544 = vmul.f32 %v4522, 1.0614054
  %v4545 = vmul.f32 %v4524, 1.0614054
  %v4546 = vmul.f32 %v4526, 1.0614054
  %v4547 = vmul.f32 %v4528, 1.0614054
  %v4548 = vmul.f32 %v4530, 1.0614054
  %v4549 = vmul.f32 %v4532, 1.0614054
  %v4550 = vmul.f32 %v4534, 1.0614054
  %v4551 = vadd.f32 %v4535, -1.4531521
  %v4552 = vadd.f32 %v4536, -1.4531521
  %v4553 = vadd.f32 %v4537, -1.4531521
  %v4554 = vadd.f32 %v4538, -1.4531521
  %v4555 = vadd.f32 %v4539, -1.4531521
  %v4556 = vadd.f32 %v4540, -1.4531521
  %v4557 = vadd.f32 %v4541, -1.4531521
  %v4558 = vadd.f32 %v4542, -1.4531521
  %v4559 = vadd.f32 %v4543, -1.4531521
  %v4560 = vadd.f32 %v4544, -1.4531521
  %v4561 = vadd.f32 %v4545, -1.4531521
  %v4562 = vadd.f32 %v4546, -1.4531521
  %v4563 = vadd.f32 %v4547, -1.4531521
  %v4564 = vadd.f32 %v4548, -1.4531521
  %v4565 = vadd.f32 %v4549, -1.4531521
  %v4566 = vadd.f32 %v4550, -1.4531521
  %v4567 = vmul.f32 %v4551, %v4504
  %v4568 = vmul.f32 %v4552, %v4506
  %v4569 = vmul.f32 %v4553, %v4508
  %v4570 = vmul.f32 %v4554, %v4510
  %v4571 = vmul.f32 %v4555, %v4512
  %v4572 = vmul.f32 %v4556, %v4514
  %v4573 = vmul.f32 %v4557, %v4516
  %v4574 = vmul.f32 %v4558, %v4518
  %v4575 = vmul.f32 %v4559, %v4520
  %v4576 = vmul.f32 %v4560, %v4522
  %v4577 = vmul.f32 %v4561, %v4524
  %v4578 = vmul.f32 %v4562, %v4526
  %v4579 = vmul.f32 %v4563, %v4528
  %v4580 = vmul.f32 %v4564, %v4530
  %v4581 = vmul.f32 %v4565, %v4532
  %v4582 = vmul.f32 %v4566, %v4534
  %v4583 = vadd.f32 %v4567, 1.4214138
  %v4584 = vadd.f32 %v4568, 1.4214138
  %v4585 = vadd.f32 %v4569, 1.4214138
  %v4586 = vadd.f32 %v4570, 1.4214138
  %v4587 = vadd.f32 %v4571, 1.4214138
  %v4588 = vadd.f32 %v4572, 1.4214138
  %v4589 = vadd.f32 %v4573, 1.4214138
  %v4590 = vadd.f32 %v4574, 1.4214138
  %v4591 = vadd.f32 %v4575, 1.4214138
  %v4592 = vadd.f32 %v4576, 1.4214138
  %v4593 = vadd.f32 %v4577, 1.4214138
  %v4594 = vadd.f32 %v4578, 1.4214138
  %v4595 = vadd.f32 %v4579, 1.4214138
  %v4596 = vadd.f32 %v4580, 1.4214138
  %v4597 = vadd.f32 %v4581, 1.4214138
  %v4598 = vadd.f32 %v4582, 1.4214138
  %v4599 = vmul.f32 %v4583, %v4504
  %v4600 = vmul.f32 %v4584, %v4506
  %v4601 = vmul.f32 %v4585, %v4508
  %v4602 = vmul.f32 %v4586, %v4510
  %v4603 = vmul.f32 %v4587, %v4512
  %v4604 = vmul.f32 %v4588, %v4514
  %v4605 = vmul.f32 %v4589, %v4516
  %v4606 = vmul.f32 %v4590, %v4518
  %v4607 = vmul.f32 %v4591, %v4520
  %v4608 = vmul.f32 %v4592, %v4522
  %v4609 = vmul.f32 %v4593, %v4524
  %v4610 = vmul.f32 %v4594, %v4526
  %v4611 = vmul.f32 %v4595, %v4528
  %v4612 = vmul.f32 %v4596, %v4530
  %v4613 = vmul.f32 %v4597, %v4532
  %v4614 = vmul.f32 %v4598, %v4534
  %v4615 = vadd.f32 %v4599, -0.28449672
  %v4616 = vadd.f32 %v4600, -0.28449672
  %v4617 = vadd.f32 %v4601, -0.28449672
  %v4618 = vadd.f32 %v4602, -0.28449672
  %v4619 = vadd.f32 %v4603, -0.28449672
  %v4620 = vadd.f32 %v4604, -0.28449672
  %v4621 = vadd.f32 %v4605, -0.28449672
  %v4622 = vadd.f32 %v4606, -0.28449672
  %v4623 = vadd.f32 %v4607, -0.28449672
  %v4624 = vadd.f32 %v4608, -0.28449672
  %v4625 = vadd.f32 %v4609, -0.28449672
  %v4626 = vadd.f32 %v4610, -0.28449672
  %v4627 = vadd.f32 %v4611, -0.28449672
  %v4628 = vadd.f32 %v4612, -0.28449672
  %v4629 = vadd.f32 %v4613, -0.28449672
  %v4630 = vadd.f32 %v4614, -0.28449672
  %v4631 = vmul.f32 %v4615, %v4504
  %v4632 = vmul.f32 %v4616, %v4506
  %v4633 = vmul.f32 %v4617, %v4508
  %v4634 = vmul.f32 %v4618, %v4510
  %v4635 = vmul.f32 %v4619, %v4512
  %v4636 = vmul.f32 %v4620, %v4514
  %v4637 = vmul.f32 %v4621, %v4516
  %v4638 = vmul.f32 %v4622, %v4518
  %v4639 = vmul.f32 %v4623, %v4520
  %v4640 = vmul.f32 %v4624, %v4522
  %v4641 = vmul.f32 %v4625, %v4524
  %v4642 = vmul.f32 %v4626, %v4526
  %v4643 = vmul.f32 %v4627, %v4528
  %v4644 = vmul.f32 %v4628, %v4530
  %v4645 = vmul.f32 %v4629, %v4532
  %v4646 = vmul.f32 %v4630, %v4534
  %v4647 = vadd.f32 %v4631, 0.2548296
  %v4648 = vadd.f32 %v4632, 0.2548296
  %v4649 = vadd.f32 %v4633, 0.2548296
  %v4650 = vadd.f32 %v4634, 0.2548296
  %v4651 = vadd.f32 %v4635, 0.2548296
  %v4652 = vadd.f32 %v4636, 0.2548296
  %v4653 = vadd.f32 %v4637, 0.2548296
  %v4654 = vadd.f32 %v4638, 0.2548296
  %v4655 = vadd.f32 %v4639, 0.2548296
  %v4656 = vadd.f32 %v4640, 0.2548296
  %v4657 = vadd.f32 %v4641, 0.2548296
  %v4658 = vadd.f32 %v4642, 0.2548296
  %v4659 = vadd.f32 %v4643, 0.2548296
  %v4660 = vadd.f32 %v4644, 0.2548296
  %v4661 = vadd.f32 %v4645, 0.2548296
  %v4662 = vadd.f32 %v4646, 0.2548296
  %v4663 = vmul.f32 %v4647, %v4504
  %v4664 = vmul.f32 %v4648, %v4506
  %v4665 = vmul.f32 %v4649, %v4508
  %v4666 = vmul.f32 %v4650, %v4510
  %v4667 = vmul.f32 %v4651, %v4512
  %v4668 = vmul.f32 %v4652, %v4514
  %v4669 = vmul.f32 %v4653, %v4516
  %v4670 = vmul.f32 %v4654, %v4518
  %v4671 = vmul.f32 %v4655, %v4520
  %v4672 = vmul.f32 %v4656, %v4522
  %v4673 = vmul.f32 %v4657, %v4524
  %v4674 = vmul.f32 %v4658, %v4526
  %v4675 = vmul.f32 %v4659, %v4528
  %v4676 = vmul.f32 %v4660, %v4530
  %v4677 = vmul.f32 %v4661, %v4532
  %v4678 = vmul.f32 %v4662, %v4534
  %v4679 = vsub.f32 0.0, %v4455
  %v4680 = vsub.f32 0.0, %v4456
  %v4681 = vsub.f32 0.0, %v4457
  %v4682 = vsub.f32 0.0, %v4458
  %v4683 = vsub.f32 0.0, %v4459
  %v4684 = vsub.f32 0.0, %v4460
  %v4685 = vsub.f32 0.0, %v4461
  %v4686 = vsub.f32 0.0, %v4462
  %v4687 = vsub.f32 0.0, %v4463
  %v4688 = vsub.f32 0.0, %v4464
  %v4689 = vsub.f32 0.0, %v4465
  %v4690 = vsub.f32 0.0, %v4466
  %v4691 = vsub.f32 0.0, %v4467
  %v4692 = vsub.f32 0.0, %v4468
  %v4693 = vsub.f32 0.0, %v4469
  %v4694 = vsub.f32 0.0, %v4470
  %v4695 = vmul.f32 %v4679, %v4455
  %v4696 = vmul.f32 %v4680, %v4456
  %v4697 = vmul.f32 %v4681, %v4457
  %v4698 = vmul.f32 %v4682, %v4458
  %v4699 = vmul.f32 %v4683, %v4459
  %v4700 = vmul.f32 %v4684, %v4460
  %v4701 = vmul.f32 %v4685, %v4461
  %v4702 = vmul.f32 %v4686, %v4462
  %v4703 = vmul.f32 %v4687, %v4463
  %v4704 = vmul.f32 %v4688, %v4464
  %v4705 = vmul.f32 %v4689, %v4465
  %v4706 = vmul.f32 %v4690, %v4466
  %v4707 = vmul.f32 %v4691, %v4467
  %v4708 = vmul.f32 %v4692, %v4468
  %v4709 = vmul.f32 %v4693, %v4469
  %v4710 = vmul.f32 %v4694, %v4470
  %v4711 = vmul.f32 %v4695, 1.442695
  %v4712 = vpow.pop %v4711
  %v4713 = vmul.f32 %v4696, 1.442695
  %v4714 = vpow.pop %v4713
  %v4715 = vmul.f32 %v4697, 1.442695
  %v4716 = vpow.pop %v4715
  %v4717 = vmul.f32 %v4698, 1.442695
  %v4718 = vpow.pop %v4717
  %v4719 = vmul.f32 %v4699, 1.442695
  %v4720 = vpow.pop %v4719
  %v4721 = vmul.f32 %v4700, 1.442695
  %v4722 = vpow.pop %v4721
  %v4723 = vmul.f32 %v4701, 1.442695
  %v4724 = vpow.pop %v4723
  %v4725 = vmul.f32 %v4702, 1.442695
  %v4726 = vpow.pop %v4725
  %v4727 = vmul.f32 %v4703, 1.442695
  %v4728 = vpow.pop %v4727
  %v4729 = vmul.f32 %v4704, 1.442695
  %v4730 = vpow.pop %v4729
  %v4731 = vmul.f32 %v4705, 1.442695
  %v4732 = vpow.pop %v4731
  %v4733 = vmul.f32 %v4706, 1.442695
  %v4734 = vpow.pop %v4733
  %v4735 = vmul.f32 %v4707, 1.442695
  %v4736 = vpow.pop %v4735
  %v4737 = vmul.f32 %v4708, 1.442695
  %v4738 = vpow.pop %v4737
  %v4739 = vmul.f32 %v4709, 1.442695
  %v4740 = vpow.pop %v4739
  %v4741 = vmul.f32 %v4710, 1.442695
  %v4742 = vpow.pop %v4741
  %v4743 = vmul.f32 %v4663, %v4712
  %v4744 = vmul.f32 %v4664, %v4714
  %v4745 = vmul.f32 %v4665, %v4716
  %v4746 = vmul.f32 %v4666, %v4718
  %v4747 = vmul.f32 %v4667, %v4720
  %v4748 = vmul.f32 %v4668, %v4722
  %v4749 = vmul.f32 %v4669, %v4724
  %v4750 = vmul.f32 %v4670, %v4726
  %v4751 = vmul.f32 %v4671, %v4728
  %v4752 = vmul.f32 %v4672, %v4730
  %v4753 = vmul.f32 %v4673, %v4732
  %v4754 = vmul.f32 %v4674, %v4734
  %v4755 = vmul.f32 %v4675, %v4736
  %v4756 = vmul.f32 %v4676, %v4738
  %v4757 = vmul.f32 %v4677, %v4740
  %v4758 = vmul.f32 %v4678, %v4742
  %v4759 = vsub.f32 1.0, %v4743
  %v4760 = vsub.f32 1.0, %v4744
  %v4761 = vsub.f32 1.0, %v4745
  %v4762 = vsub.f32 1.0, %v4746
  %v4763 = vsub.f32 1.0, %v4747
  %v4764 = vsub.f32 1.0, %v4748
  %v4765 = vsub.f32 1.0, %v4749
  %v4766 = vsub.f32 1.0, %v4750
  %v4767 = vsub.f32 1.0, %v4751
  %v4768 = vsub.f32 1.0, %v4752
  %v4769 = vsub.f32 1.0, %v4753
  %v4770 = vsub.f32 1.0, %v4754
  %v4771 = vsub.f32 1.0, %v4755
  %v4772 = vsub.f32 1.0, %v4756
  %v4773 = vsub.f32 1.0, %v4757
  %v4774 = vsub.f32 1.0, %v4758
  %v4775 = vmul.f32 %v4439, %v4759
  %v4776 = vmul.f32 %v4440, %v4760
  %v4777 = vmul.f32 %v4441, %v4761
  %v4778 = vmul.f32 %v4442, %v4762
  %v4779 = vmul.f32 %v4443, %v4763
  %v4780 = vmul.f32 %v4444, %v4764
  %v4781 = vmul.f32 %v4445, %v4765
  %v4782 = vmul.f32 %v4446, %v4766
  %v4783 = vmul.f32 %v4447, %v4767
  %v4784 = vmul.f32 %v4448, %v4768
  %v4785 = vmul.f32 %v4449, %v4769
  %v4786 = vmul.f32 %v4450, %v4770
  %v4787 = vmul.f32 %v4451, %v4771
  %v4788 = vmul.f32 %v4452, %v4772
  %v4789 = vmul.f32 %v4453, %v4773
  %v4790 = vmul.f32 %v4454, %v4774
  %v4791 = vadd.f32 %v4775, 1.0
  %v4792 = vadd.f32 %v4776, 1.0
  %v4793 = vadd.f32 %v4777, 1.0
  %v4794 = vadd.f32 %v4778, 1.0
  %v4795 = vadd.f32 %v4779, 1.0
  %v4796 = vadd.f32 %v4780, 1.0
  %v4797 = vadd.f32 %v4781, 1.0
  %v4798 = vadd.f32 %v4782, 1.0
  %v4799 = vadd.f32 %v4783, 1.0
  %v4800 = vadd.f32 %v4784, 1.0
  %v4801 = vadd.f32 %v4785, 1.0
  %v4802 = vadd.f32 %v4786, 1.0
  %v4803 = vadd.f32 %v4787, 1.0
  %v4804 = vadd.f32 %v4788, 1.0
  %v4805 = vadd.f32 %v4789, 1.0
  %v4806 = vadd.f32 %v4790, 1.0
  %v4807 = vmul.f32 %v4391, %v4791
  %v4808 = vmul.f32 %v4392, %v4792
  %v4809 = vmul.f32 %v4393, %v4793
  %v4810 = vmul.f32 %v4394, %v4794
  %v4811 = vmul.f32 %v4395, %v4795
  %v4812 = vmul.f32 %v4396, %v4796
  %v4813 = vmul.f32 %v4397, %v4797
  %v4814 = vmul.f32 %v4398, %v4798
  %v4815 = vmul.f32 %v4399, %v4799
  %v4816 = vmul.f32 %v4400, %v4800
  %v4817 = vmul.f32 %v4401, %v4801
  %v4818 = vmul.f32 %v4402, %v4802
  %v4819 = vmul.f32 %v4403, %v4803
  %v4820 = vmul.f32 %v4404, %v4804
  %v4821 = vmul.f32 %v4405, %v4805
  %v4822 = vmul.f32 %v4406, %v4806
  %v4823 = vld [vmem:[%s12] sm:$0xff]
  %v4824 = vld [vmem:[%s12 + $0x8] sm:$0xff]
  %v4825 = vld [vmem:[%s12 + $0x10] sm:$0xff]
  %v4826 = vld [vmem:[%s12 + $0x18] sm:$0xff]
  %v4827 = vld [vmem:[%s12 + $0x20] sm:$0xff]
  %v4828 = vld [vmem:[%s12 + $0x28] sm:$0xff]
  %v4829 = vld [vmem:[%s12 + $0x30] sm:$0xff]
  %v4830 = vld [vmem:[%s12 + $0x38] sm:$0xff]
  %v4831 = vld [vmem:[%s12 + $0x40] sm:$0xff]
  %v4832 = vld [vmem:[%s12 + $0x48] sm:$0xff]
  %v4833 = vld [vmem:[%s12 + $0x50] sm:$0xff]
  %v4834 = vld [vmem:[%s12 + $0x58] sm:$0xff]
  %v4835 = vld [vmem:[%s12 + $0x60] sm:$0xff]
  %v4836 = vld [vmem:[%s12 + $0x68] sm:$0xff]
  %v4837 = vld [vmem:[%s12 + $0x70] sm:$0xff]
  %v4838 = vld [vmem:[%s12 + $0x78] sm:$0xff]
  %4839 = vmatprep.subr.mxu0 0.0
  %4840 = vmatpush1.msra.mxu0 %v4823
  %4841 = vmatprep.subr.mxu0 0.0
  %4842 = vmatpush1.msra.mxu0 %v4824
  %4843 = vmatprep.subr.mxu0 0.0
  %4844 = vmatpush1.msra.mxu0 %v4825
  %4845 = vmatprep.subr.mxu0 0.0
  %4846 = vmatpush1.msra.mxu0 %v4826
  %4847 = vmatprep.subr.mxu0 0.0
  %4848 = vmatpush1.msra.mxu0 %v4827
  %4849 = vmatprep.subr.mxu0 0.0
  %4850 = vmatpush1.msra.mxu0 %v4828
  %4851 = vmatprep.subr.mxu0 0.0
  %4852 = vmatpush1.msra.mxu0 %v4829
  %4853 = vmatprep.subr.mxu0 0.0
  %4854 = vmatpush1.msra.mxu0 %v4830
  %4855 = vmatprep.subr.mxu0 0.0
  %4856 = vmatpush1.msra.mxu0 %v4831
  %4857 = vmatprep.subr.mxu0 0.0
  %4858 = vmatpush1.msra.mxu0 %v4832
  %4859 = vmatprep.subr.mxu0 0.0
  %4860 = vmatpush1.msra.mxu0 %v4833
  %4861 = vmatprep.subr.mxu0 0.0
  %4862 = vmatpush1.msra.mxu0 %v4834
  %4863 = vmatprep.subr.mxu0 0.0
  %4864 = vmatpush1.msra.mxu0 %v4835
  %4865 = vmatprep.subr.mxu0 0.0
  %4866 = vmatpush1.msra.mxu0 %v4836
  %4867 = vmatprep.subr.mxu0 0.0
  %4868 = vmatpush1.msra.mxu0 %v4837
  %4869 = vmatprep.subr.mxu0 0.0
  %4870 = vmatpush1.msra.mxu0 %v4838
  %4871 = vmatprep.subr.mxu0 0.0
  %4872 = vmatpush1.msra.mxu0 0.0
  %4873 = vmatprep.subr.mxu0 0.0
  %4874 = vmatpush1.msra.mxu0 0.0
  %4875 = vmatprep.subr.mxu0 0.0
  %4876 = vmatpush1.msra.mxu0 0.0
  %4877 = vmatprep.subr.mxu0 0.0
  %4878 = vmatpush1.msra.mxu0 0.0
  %4879 = vmatprep.subr.mxu0 0.0
  %4880 = vmatpush1.msra.mxu0 0.0
  %4881 = vmatprep.subr.mxu0 0.0
  %4882 = vmatpush1.msra.mxu0 0.0
  %4883 = vmatprep.subr.mxu0 0.0
  %4884 = vmatpush1.msra.mxu0 0.0
  %4885 = vmatprep.subr.mxu0 0.0
  %4886 = vmatpush1.msra.mxu0 0.0
  %4887 = vmatprep.subr.mxu0 0.0
  %4888 = vmatpush1.msra.mxu0 0.0
  %4889 = vmatprep.subr.mxu0 0.0
  %4890 = vmatpush1.msra.mxu0 0.0
  %4891 = vmatprep.subr.mxu0 0.0
  %4892 = vmatpush1.msra.mxu0 0.0
  %4893 = vmatprep.subr.mxu0 0.0
  %4894 = vmatpush1.msra.mxu0 0.0
  %4895 = vmatprep.subr.mxu0 0.0
  %4896 = vmatpush1.msra.mxu0 0.0
  %4897 = vmatprep.subr.mxu0 0.0
  %4898 = vmatpush1.msra.mxu0 0.0
  %4899 = vmatprep.subr.mxu0 0.0
  %4900 = vmatpush1.msra.mxu0 0.0
  %4901 = vmatprep.subr.mxu0 0.0
  %4902 = vmatpush1.msra.mxu0 0.0
  %4903 = vmatprep.mubr.f32.mxu0 0.0
  %4904 = vmatmul.mubr.f32.gmra.mrb[0].mxu0 %v4807
  %v4905 = vpop.f32.mrb[0].mxu0
  %v4906 = vadd.f32 0.0, %v4905
  %v4907 = vpop.f32.mrb[0].mxu0
  %4908 = vmatprep.mubr.f32.mxu0 0.0
  %4909 = vmatmul.mubr.f32.gmra.mrb[0].mxu0 %v4808
  %v4910 = vpop.f32.mrb[0].mxu0
  %v4911 = vadd.f32 0.0, %v4910
  %v4912 = vpop.f32.mrb[0].mxu0
  %4913 = vmatprep.mubr.f32.mxu0 0.0
  %4914 = vmatmul.mubr.f32.gmra.mrb[0].mxu0 %v4809
  %v4915 = vpop.f32.mrb[0].mxu0
  %v4916 = vadd.f32 0.0, %v4915
  %v4917 = vpop.f32.mrb[0].mxu0
  %4918 = vmatprep.mubr.f32.mxu0 0.0
  %4919 = vmatmul.mubr.f32.gmra.mrb[0].mxu0 %v4810
  %v4920 = vpop.f32.mrb[0].mxu0
  %v4921 = vadd.f32 0.0, %v4920
  %v4922 = vpop.f32.mrb[0].mxu0
  %4923 = vmatprep.mubr.f32.mxu0 0.0
  %4924 = vmatmul.mubr.f32.gmra.mrb[0].mxu0 %v4811
  %v4925 = vpop.f32.mrb[0].mxu0
  %v4926 = vadd.f32 0.0, %v4925
  %v4927 = vpop.f32.mrb[0].mxu0
  %4928 = vmatprep.mubr.f32.mxu0 0.0
  %4929 = vmatmul.mubr.f32.gmra.mrb[0].mxu0 %v4812
  %v4930 = vpop.f32.mrb[0].mxu0
  %v4931 = vadd.f32 0.0, %v4930
  %v4932 = vpop.f32.mrb[0].mxu0
  %4933 = vmatprep.mubr.f32.mxu0 0.0
  %4934 = vmatmul.mubr.f32.gmra.mrb[0].mxu0 %v4813
  %v4935 = vpop.f32.mrb[0].mxu0
  %v4936 = vadd.f32 0.0, %v4935
  %v4937 = vpop.f32.mrb[0].mxu0
  %4938 = vmatprep.mubr.f32.mxu0 0.0
  %4939 = vmatmul.mubr.f32.gmra.mrb[0].mxu0 %v4814
  %v4940 = vpop.f32.mrb[0].mxu0
  %v4941 = vadd.f32 0.0, %v4940
  %v4942 = vpop.f32.mrb[0].mxu0
  %4943 = vmatprep.mubr.f32.mxu0 0.0
  %4944 = vmatmul.mubr.f32.gmra.mrb[0].mxu0 %v4815
  %v4945 = vpop.f32.mrb[0].mxu0
  %v4946 = vadd.f32 0.0, %v4945
  %v4947 = vpop.f32.mrb[0].mxu0
  %4948 = vmatprep.mubr.f32.mxu0 0.0
  %4949 = vmatmul.mubr.f32.gmra.mrb[0].mxu0 %v4816
  %v4950 = vpop.f32.mrb[0].mxu0
  %v4951 = vadd.f32 0.0, %v4950
  %v4952 = vpop.f32.mrb[0].mxu0
  %4953 = vmatprep.mubr.f32.mxu0 0.0
  %4954 = vmatmul.mubr.f32.gmra.mrb[0].mxu0 %v4817
  %v4955 = vpop.f32.mrb[0].mxu0
  %v4956 = vadd.f32 0.0, %v4955
  %v4957 = vpop.f32.mrb[0].mxu0
  %4958 = vmatprep.mubr.f32.mxu0 0.0
  %4959 = vmatmul.mubr.f32.gmra.mrb[0].mxu0 %v4818
  %v4960 = vpop.f32.mrb[0].mxu0
  %v4961 = vadd.f32 0.0, %v4960
  %v4962 = vpop.f32.mrb[0].mxu0
  %4963 = vmatprep.mubr.f32.mxu0 0.0
  %4964 = vmatmul.mubr.f32.gmra.mrb[0].mxu0 %v4819
  %v4965 = vpop.f32.mrb[0].mxu0
  %v4966 = vadd.f32 0.0, %v4965
  %v4967 = vpop.f32.mrb[0].mxu0
  %4968 = vmatprep.mubr.f32.mxu0 0.0
  %4969 = vmatmul.mubr.f32.gmra.mrb[0].mxu0 %v4820
  %v4970 = vpop.f32.mrb[0].mxu0
  %v4971 = vadd.f32 0.0, %v4970
  %v4972 = vpop.f32.mrb[0].mxu0
  %4973 = vmatprep.mubr.f32.mxu0 0.0
  %4974 = vmatmul.mubr.f32.gmra.mrb[0].mxu0 %v4821
  %v4975 = vpop.f32.mrb[0].mxu0
  %v4976 = vadd.f32 0.0, %v4975
  %v4977 = vpop.f32.mrb[0].mxu0
  %4978 = vmatprep.mubr.f32.mxu0 0.0
  %4979 = vmatmul.mubr.f32.gmra.mrb[0].mxu0 %v4822
  %v4980 = vpop.f32.mrb[0].mxu0
  %v4981 = vadd.f32 0.0, %v4980
  %v4982 = vpop.f32.mrb[0].mxu0
  %4983 = vdwg.mxu0
  %v4984 = vadd.f32 %v3917, %v4906
  %v4985 = vadd.f32 %v3918, %v4911
  %v4986 = vadd.f32 %v3919, %v4916
  %v4987 = vadd.f32 %v3920, %v4921
  %v4988 = vadd.f32 %v3921, %v4926
  %v4989 = vadd.f32 %v3922, %v4931
  %v4990 = vadd.f32 %v3923, %v4936
  %v4991 = vadd.f32 %v3924, %v4941
  %v4992 = vadd.f32 %v3925, %v4946
  %v4993 = vadd.f32 %v3926, %v4951
  %v4994 = vadd.f32 %v3927, %v4956
  %v4995 = vadd.f32 %v3928, %v4961
  %v4996 = vadd.f32 %v3929, %v4966
  %v4997 = vadd.f32 %v3930, %v4971
  %v4998 = vadd.f32 %v3931, %v4976
  %v4999 = vadd.f32 %v3932, %v4981
  %v5000 = vld [vmem:[%s13] sm:$0x1]
  %v5002 = vlaneseq
  %v5003 = vshrl.u32 %v5002, 7
  %v5004 = vsub.s32 0, %v5003
  %v5005 = vrot.slane %v5000, %v5004
  %v5007 = vadd.f32 %v4984, %v5005
  %v5008 = vadd.f32 %v4985, %v5005
  %v5009 = vadd.f32 %v4986, %v5005
  %v5010 = vadd.f32 %v4987, %v5005
  %v5011 = vadd.f32 %v4988, %v5005
  %v5012 = vadd.f32 %v4989, %v5005
  %v5013 = vadd.f32 %v4990, %v5005
  %v5014 = vadd.f32 %v4991, %v5005
  %v5015 = vadd.f32 %v4992, %v5005
  %v5016 = vadd.f32 %v4993, %v5005
  %v5017 = vadd.f32 %v4994, %v5005
  %v5018 = vadd.f32 %v4995, %v5005
  %v5019 = vadd.f32 %v4996, %v5005
  %v5020 = vadd.f32 %v4997, %v5005
  %v5021 = vadd.f32 %v4998, %v5005
  %v5022 = vadd.f32 %v4999, %v5005
  %v5023 = vld [vmem:[%s15] sm:$0x1]
  %v5024 = vld [vmem:[%s16] sm:$0x1]
  %v5025 = vsel %vm104, %v5007, 0.0
  %5026 = vadd.xlane.f32.xlu0 %v5025
  %v5027 = vpop.xlane.xlu0 %5026
  %v5028 = vsel %vm104, %v5008, 0.0
  %5029 = vadd.xlane.f32.xlu0 %v5028
  %v5030 = vpop.xlane.xlu0 %5029
  %v5031 = vsel %vm104, %v5009, 0.0
  %5032 = vadd.xlane.f32.xlu0 %v5031
  %v5033 = vpop.xlane.xlu0 %5032
  %v5034 = vsel %vm104, %v5010, 0.0
  %5035 = vadd.xlane.f32.xlu0 %v5034
  %v5036 = vpop.xlane.xlu0 %5035
  %v5037 = vsel %vm104, %v5011, 0.0
  %5038 = vadd.xlane.f32.xlu0 %v5037
  %v5039 = vpop.xlane.xlu0 %5038
  %v5040 = vsel %vm104, %v5012, 0.0
  %5041 = vadd.xlane.f32.xlu0 %v5040
  %v5042 = vpop.xlane.xlu0 %5041
  %v5043 = vsel %vm104, %v5013, 0.0
  %5044 = vadd.xlane.f32.xlu0 %v5043
  %v5045 = vpop.xlane.xlu0 %5044
  %v5046 = vsel %vm104, %v5014, 0.0
  %5047 = vadd.xlane.f32.xlu0 %v5046
  %v5048 = vpop.xlane.xlu0 %5047
  %v5049 = vsel %vm104, %v5015, 0.0
  %5050 = vadd.xlane.f32.xlu0 %v5049
  %v5051 = vpop.xlane.xlu0 %5050
  %v5052 = vsel %vm104, %v5016, 0.0
  %5053 = vadd.xlane.f32.xlu0 %v5052
  %v5054 = vpop.xlane.xlu0 %5053
  %v5055 = vsel %vm104, %v5017, 0.0
  %5056 = vadd.xlane.f32.xlu0 %v5055
  %v5057 = vpop.xlane.xlu0 %5056
  %v5058 = vsel %vm104, %v5018, 0.0
  %5059 = vadd.xlane.f32.xlu0 %v5058
  %v5060 = vpop.xlane.xlu0 %5059
  %v5061 = vsel %vm104, %v5019, 0.0
  %5062 = vadd.xlane.f32.xlu0 %v5061
  %v5063 = vpop.xlane.xlu0 %5062
  %v5064 = vsel %vm104, %v5020, 0.0
  %5065 = vadd.xlane.f32.xlu0 %v5064
  %v5066 = vpop.xlane.xlu0 %5065
  %v5067 = vsel %vm104, %v5021, 0.0
  %5068 = vadd.xlane.f32.xlu0 %v5067
  %v5069 = vpop.xlane.xlu0 %5068
  %v5070 = vsel %vm104, %v5022, 0.0
  %5071 = vadd.xlane.f32.xlu0 %v5070
  %v5072 = vpop.xlane.xlu0 %5071
  %v5073 = vmul.f32 %v5027, %v153
  %v5074 = vmul.f32 %v5030, %v153
  %v5075 = vmul.f32 %v5033, %v153
  %v5076 = vmul.f32 %v5036, %v153
  %v5077 = vmul.f32 %v5039, %v153
  %v5078 = vmul.f32 %v5042, %v153
  %v5079 = vmul.f32 %v5045, %v153
  %v5080 = vmul.f32 %v5048, %v153
  %v5081 = vmul.f32 %v5051, %v153
  %v5082 = vmul.f32 %v5054, %v153
  %v5083 = vmul.f32 %v5057, %v153
  %v5084 = vmul.f32 %v5060, %v153
  %v5085 = vmul.f32 %v5063, %v153
  %v5086 = vmul.f32 %v5066, %v153
  %v5087 = vmul.f32 %v5069, %v153
  %v5088 = vmul.f32 %v5072, %v153
  %v5089 = vsub.f32 %v5007, %v5073
  %v5090 = vsub.f32 %v5008, %v5074
  %v5091 = vsub.f32 %v5009, %v5075
  %v5092 = vsub.f32 %v5010, %v5076
  %v5093 = vsub.f32 %v5011, %v5077
  %v5094 = vsub.f32 %v5012, %v5078
  %v5095 = vsub.f32 %v5013, %v5079
  %v5096 = vsub.f32 %v5014, %v5080
  %v5097 = vsub.f32 %v5015, %v5081
  %v5098 = vsub.f32 %v5016, %v5082
  %v5099 = vsub.f32 %v5017, %v5083
  %v5100 = vsub.f32 %v5018, %v5084
  %v5101 = vsub.f32 %v5019, %v5085
  %v5102 = vsub.f32 %v5020, %v5086
  %v5103 = vsub.f32 %v5021, %v5087
  %v5104 = vsub.f32 %v5022, %v5088
  %v5105 = vmul.f32 %v5089, %v5089
  %v5106 = vmul.f32 %v5090, %v5090
  %v5107 = vmul.f32 %v5091, %v5091
  %v5108 = vmul.f32 %v5092, %v5092
  %v5109 = vmul.f32 %v5093, %v5093
  %v5110 = vmul.f32 %v5094, %v5094
  %v5111 = vmul.f32 %v5095, %v5095
  %v5112 = vmul.f32 %v5096, %v5096
  %v5113 = vmul.f32 %v5097, %v5097
  %v5114 = vmul.f32 %v5098, %v5098
  %v5115 = vmul.f32 %v5099, %v5099
  %v5116 = vmul.f32 %v5100, %v5100
  %v5117 = vmul.f32 %v5101, %v5101
  %v5118 = vmul.f32 %v5102, %v5102
  %v5119 = vmul.f32 %v5103, %v5103
  %v5120 = vmul.f32 %v5104, %v5104
  %v5121 = vsel %vm104, %v5105, 0.0
  %5122 = vadd.xlane.f32.xlu0 %v5121
  %v5123 = vpop.xlane.xlu0 %5122
  %v5124 = vsel %vm104, %v5106, 0.0
  %5125 = vadd.xlane.f32.xlu0 %v5124
  %v5126 = vpop.xlane.xlu0 %5125
  %v5127 = vsel %vm104, %v5107, 0.0
  %5128 = vadd.xlane.f32.xlu0 %v5127
  %v5129 = vpop.xlane.xlu0 %5128
  %v5130 = vsel %vm104, %v5108, 0.0
  %5131 = vadd.xlane.f32.xlu0 %v5130
  %v5132 = vpop.xlane.xlu0 %5131
  %v5133 = vsel %vm104, %v5109, 0.0
  %5134 = vadd.xlane.f32.xlu0 %v5133
  %v5135 = vpop.xlane.xlu0 %5134
  %v5136 = vsel %vm104, %v5110, 0.0
  %5137 = vadd.xlane.f32.xlu0 %v5136
  %v5138 = vpop.xlane.xlu0 %5137
  %v5139 = vsel %vm104, %v5111, 0.0
  %5140 = vadd.xlane.f32.xlu0 %v5139
  %v5141 = vpop.xlane.xlu0 %5140
  %v5142 = vsel %vm104, %v5112, 0.0
  %5143 = vadd.xlane.f32.xlu0 %v5142
  %v5144 = vpop.xlane.xlu0 %5143
  %v5145 = vsel %vm104, %v5113, 0.0
  %5146 = vadd.xlane.f32.xlu0 %v5145
  %v5147 = vpop.xlane.xlu0 %5146
  %v5148 = vsel %vm104, %v5114, 0.0
  %5149 = vadd.xlane.f32.xlu0 %v5148
  %v5150 = vpop.xlane.xlu0 %5149
  %v5151 = vsel %vm104, %v5115, 0.0
  %5152 = vadd.xlane.f32.xlu0 %v5151
  %v5153 = vpop.xlane.xlu0 %5152
  %v5154 = vsel %vm104, %v5116, 0.0
  %5155 = vadd.xlane.f32.xlu0 %v5154
  %v5156 = vpop.xlane.xlu0 %5155
  %v5157 = vsel %vm104, %v5117, 0.0
  %5158 = vadd.xlane.f32.xlu0 %v5157
  %v5159 = vpop.xlane.xlu0 %5158
  %v5160 = vsel %vm104, %v5118, 0.0
  %5161 = vadd.xlane.f32.xlu0 %v5160
  %v5162 = vpop.xlane.xlu0 %5161
  %v5163 = vsel %vm104, %v5119, 0.0
  %5164 = vadd.xlane.f32.xlu0 %v5163
  %v5165 = vpop.xlane.xlu0 %5164
  %v5166 = vsel %vm104, %v5120, 0.0
  %5167 = vadd.xlane.f32.xlu0 %v5166
  %v5168 = vpop.xlane.xlu0 %5167
  %v5169 = vmul.f32 %v5123, %v153
  %v5170 = vmul.f32 %v5126, %v153
  %v5171 = vmul.f32 %v5129, %v153
  %v5172 = vmul.f32 %v5132, %v153
  %v5173 = vmul.f32 %v5135, %v153
  %v5174 = vmul.f32 %v5138, %v153
  %v5175 = vmul.f32 %v5141, %v153
  %v5176 = vmul.f32 %v5144, %v153
  %v5177 = vmul.f32 %v5147, %v153
  %v5178 = vmul.f32 %v5150, %v153
  %v5179 = vmul.f32 %v5153, %v153
  %v5180 = vmul.f32 %v5156, %v153
  %v5181 = vmul.f32 %v5159, %v153
  %v5182 = vmul.f32 %v5162, %v153
  %v5183 = vmul.f32 %v5165, %v153
  %v5184 = vmul.f32 %v5168, %v153
  %v5185 = vadd.f32 %v5169, 1e-05
  %v5186 = vadd.f32 %v5170, 1e-05
  %v5187 = vadd.f32 %v5171, 1e-05
  %v5188 = vadd.f32 %v5172, 1e-05
  %v5189 = vadd.f32 %v5173, 1e-05
  %v5190 = vadd.f32 %v5174, 1e-05
  %v5191 = vadd.f32 %v5175, 1e-05
  %v5192 = vadd.f32 %v5176, 1e-05
  %v5193 = vadd.f32 %v5177, 1e-05
  %v5194 = vadd.f32 %v5178, 1e-05
  %v5195 = vadd.f32 %v5179, 1e-05
  %v5196 = vadd.f32 %v5180, 1e-05
  %v5197 = vadd.f32 %v5181, 1e-05
  %v5198 = vadd.f32 %v5182, 1e-05
  %v5199 = vadd.f32 %v5183, 1e-05
  %v5200 = vadd.f32 %v5184, 1e-05
  %v5201 = vrsqrt.pop %v5185
  %v5202 = vrsqrt.pop %v5186
  %v5203 = vrsqrt.pop %v5187
  %v5204 = vrsqrt.pop %v5188
  %v5205 = vrsqrt.pop %v5189
  %v5206 = vrsqrt.pop %v5190
  %v5207 = vrsqrt.pop %v5191
  %v5208 = vrsqrt.pop %v5192
  %v5209 = vrsqrt.pop %v5193
  %v5210 = vrsqrt.pop %v5194
  %v5211 = vrsqrt.pop %v5195
  %v5212 = vrsqrt.pop %v5196
  %v5213 = vrsqrt.pop %v5197
  %v5214 = vrsqrt.pop %v5198
  %v5215 = vrsqrt.pop %v5199
  %v5216 = vrsqrt.pop %v5200
  %v5217 = vmul.f32 %v5089, %v5201
  %v5218 = vmul.f32 %v5090, %v5202
  %v5219 = vmul.f32 %v5091, %v5203
  %v5220 = vmul.f32 %v5092, %v5204
  %v5221 = vmul.f32 %v5093, %v5205
  %v5222 = vmul.f32 %v5094, %v5206
  %v5223 = vmul.f32 %v5095, %v5207
  %v5224 = vmul.f32 %v5096, %v5208
  %v5225 = vmul.f32 %v5097, %v5209
  %v5226 = vmul.f32 %v5098, %v5210
  %v5227 = vmul.f32 %v5099, %v5211
  %v5228 = vmul.f32 %v5100, %v5212
  %v5229 = vmul.f32 %v5101, %v5213
  %v5230 = vmul.f32 %v5102, %v5214
  %v5231 = vmul.f32 %v5103, %v5215
  %v5232 = vmul.f32 %v5104, %v5216
  %v5234 = vlaneseq
  %v5235 = vshrl.u32 %v5234, 7
  %v5236 = vsub.s32 0, %v5235
  %v5237 = vrot.slane %v5023, %v5236
  %v5239 = vmul.f32 %v5217, %v5237
  %v5240 = vmul.f32 %v5218, %v5237
  %v5241 = vmul.f32 %v5219, %v5237
  %v5242 = vmul.f32 %v5220, %v5237
  %v5243 = vmul.f32 %v5221, %v5237
  %v5244 = vmul.f32 %v5222, %v5237
  %v5245 = vmul.f32 %v5223, %v5237
  %v5246 = vmul.f32 %v5224, %v5237
  %v5247 = vmul.f32 %v5225, %v5237
  %v5248 = vmul.f32 %v5226, %v5237
  %v5249 = vmul.f32 %v5227, %v5237
  %v5250 = vmul.f32 %v5228, %v5237
  %v5251 = vmul.f32 %v5229, %v5237
  %v5252 = vmul.f32 %v5230, %v5237
  %v5253 = vmul.f32 %v5231, %v5237
  %v5254 = vmul.f32 %v5232, %v5237
  %v5256 = vlaneseq
  %v5257 = vshrl.u32 %v5256, 7
  %v5258 = vsub.s32 0, %v5257
  %v5259 = vrot.slane %v5024, %v5258
  %v5261 = vadd.f32 %v5239, %v5259
  %v5262 = vadd.f32 %v5240, %v5259
  %v5263 = vadd.f32 %v5241, %v5259
  %v5264 = vadd.f32 %v5242, %v5259
  %v5265 = vadd.f32 %v5243, %v5259
  %v5266 = vadd.f32 %v5244, %v5259
  %v5267 = vadd.f32 %v5245, %v5259
  %v5268 = vadd.f32 %v5246, %v5259
  %v5269 = vadd.f32 %v5247, %v5259
  %v5270 = vadd.f32 %v5248, %v5259
  %v5271 = vadd.f32 %v5249, %v5259
  %v5272 = vadd.f32 %v5250, %v5259
  %v5273 = vadd.f32 %v5251, %v5259
  %v5274 = vadd.f32 %v5252, %v5259
  %v5275 = vadd.f32 %v5253, %v5259
  %v5276 = vadd.f32 %v5254, %v5259
  %v5277 = vld [vmem:[%s17] sm:$0xff]
  %v5278 = vld [vmem:[%s17 + $0x8] sm:$0xff]
  %v5279 = vld [vmem:[%s17 + $0x10] sm:$0xff]
  %v5280 = vld [vmem:[%s17 + $0x18] sm:$0xff]
  %v5281 = vld [vmem:[%s18] sm:$0x1]
  %v5283 = vlaneseq
  %v5284 = vshrl.u32 %v5283, 7
  %v5285 = vsub.s32 0, %v5284
  %v5286 = vrot.slane %v5281, %v5285
  %v5289 = vsel %vm104, %v5261, 0
  %v5292 = vsel %vm104, %v5262, 0
  %v5295 = vsel %vm104, %v5263, 0
  %v5298 = vsel %vm104, %v5264, 0
  %v5301 = vsel %vm104, %v5265, 0
  %v5304 = vsel %vm104, %v5266, 0
  %v5307 = vsel %vm104, %v5267, 0
  %v5310 = vsel %vm104, %v5268, 0
  %v5313 = vsel %vm104, %v5269, 0
  %v5316 = vsel %vm104, %v5270, 0
  %v5319 = vsel %vm104, %v5271, 0
  %v5322 = vsel %vm104, %v5272, 0
  %v5325 = vsel %vm104, %v5273, 0
  %v5328 = vsel %vm104, %v5274, 0
  %v5331 = vsel %vm104, %v5275, 0
  %v5334 = vsel %vm104, %v5276, 0
  %5336 = vmatprep.subr.mxu0 0.0
  %5337 = vmatpush1.msra.mxu0 %v5277
  %5338 = vmatprep.subr.mxu0 0.0
  %5339 = vmatpush1.msra.mxu0 %v5278
  %5340 = vmatprep.subr.mxu0 0.0
  %5341 = vmatpush1.msra.mxu0 %v5279
  %5342 = vmatprep.subr.mxu0 0.0
  %5343 = vmatpush1.msra.mxu0 %v5280
  %5344 = vmatprep.subr.mxu0 0.0
  %5345 = vmatpush1.msra.mxu0 0.0
  %5346 = vmatprep.subr.mxu0 0.0
  %5347 = vmatpush1.msra.mxu0 0.0
  %5348 = vmatprep.subr.mxu0 0.0
  %5349 = vmatpush1.msra.mxu0 0.0
  %5350 = vmatprep.subr.mxu0 0.0
  %5351 = vmatpush1.msra.mxu0 0.0
  %5352 = vmatprep.subr.mxu0 0.0
  %5353 = vmatpush1.msra.mxu0 0.0
  %5354 = vmatprep.subr.mxu0 0.0
  %5355 = vmatpush1.msra.mxu0 0.0
  %5356 = vmatprep.subr.mxu0 0.0
  %5357 = vmatpush1.msra.mxu0 0.0
  %5358 = vmatprep.subr.mxu0 0.0
  %5359 = vmatpush1.msra.mxu0 0.0
  %5360 = vmatprep.subr.mxu0 0.0
  %5361 = vmatpush1.msra.mxu0 0.0
  %5362 = vmatprep.subr.mxu0 0.0
  %5363 = vmatpush1.msra.mxu0 0.0
  %5364 = vmatprep.subr.mxu0 0.0
  %5365 = vmatpush1.msra.mxu0 0.0
  %5366 = vmatprep.subr.mxu0 0.0
  %5367 = vmatpush1.msra.mxu0 0.0
  %5368 = vmatprep.subr.mxu0 0.0
  %5369 = vmatpush1.msra.mxu0 0.0
  %5370 = vmatprep.subr.mxu0 0.0
  %5371 = vmatpush1.msra.mxu0 0.0
  %5372 = vmatprep.subr.mxu0 0.0
  %5373 = vmatpush1.msra.mxu0 0.0
  %5374 = vmatprep.subr.mxu0 0.0
  %5375 = vmatpush1.msra.mxu0 0.0
  %5376 = vmatprep.subr.mxu0 0.0
  %5377 = vmatpush1.msra.mxu0 0.0
  %5378 = vmatprep.subr.mxu0 0.0
  %5379 = vmatpush1.msra.mxu0 0.0
  %5380 = vmatprep.subr.mxu0 0.0
  %5381 = vmatpush1.msra.mxu0 0.0
  %5382 = vmatprep.subr.mxu0 0.0
  %5383 = vmatpush1.msra.mxu0 0.0
  %5384 = vmatprep.subr.mxu0 0.0
  %5385 = vmatpush1.msra.mxu0 0.0
  %5386 = vmatprep.subr.mxu0 0.0
  %5387 = vmatpush1.msra.mxu0 0.0
  %5388 = vmatprep.subr.mxu0 0.0
  %5389 = vmatpush1.msra.mxu0 0.0
  %5390 = vmatprep.subr.mxu0 0.0
  %5391 = vmatpush1.msra.mxu0 0.0
  %5392 = vmatprep.subr.mxu0 0.0
  %5393 = vmatpush1.msra.mxu0 0.0
  %5394 = vmatprep.subr.mxu0 0.0
  %5395 = vmatpush1.msra.mxu0 0.0
  %5396 = vmatprep.subr.mxu0 0.0
  %5397 = vmatpush1.msra.mxu0 0.0
  %5398 = vmatprep.subr.mxu0 0.0
  %5399 = vmatpush1.msra.mxu0 0.0
  %5400 = vmatprep.mubr.f32.mxu0 0.0
  %5401 = vmatmul.mubr.f32.gmra.mrb[0].mxu0 %v5289
  %v5402 = vpop.f32.mrb[0].mxu0
  %v5403 = vadd.f32 %v5286, %v5402
  %v5404 = vpop.f32.mrb[0].mxu0
  %5405 = vmatprep.mubr.f32.mxu0 0.0
  %5406 = vmatmul.mubr.f32.gmra.mrb[0].mxu0 %v5292
  %v5407 = vpop.f32.mrb[0].mxu0
  %v5408 = vadd.f32 %v5286, %v5407
  %v5409 = vpop.f32.mrb[0].mxu0
  %5410 = vmatprep.mubr.f32.mxu0 0.0
  %5411 = vmatmul.mubr.f32.gmra.mrb[0].mxu0 %v5295
  %v5412 = vpop.f32.mrb[0].mxu0
  %v5413 = vadd.f32 %v5286, %v5412
  %v5414 = vpop.f32.mrb[0].mxu0
  %5415 = vmatprep.mubr.f32.mxu0 0.0
  %5416 = vmatmul.mubr.f32.gmra.mrb[0].mxu0 %v5298
  %v5417 = vpop.f32.mrb[0].mxu0
  %v5418 = vadd.f32 %v5286, %v5417
  %v5419 = vpop.f32.mrb[0].mxu0
  %5420 = vmatprep.mubr.f32.mxu0 0.0
  %5421 = vmatmul.mubr.f32.gmra.mrb[0].mxu0 %v5301
  %v5422 = vpop.f32.mrb[0].mxu0
  %v5423 = vadd.f32 %v5286, %v5422
  %v5424 = vpop.f32.mrb[0].mxu0
  %5425 = vmatprep.mubr.f32.mxu0 0.0
  %5426 = vmatmul.mubr.f32.gmra.mrb[0].mxu0 %v5304
  %v5427 = vpop.f32.mrb[0].mxu0
  %v5428 = vadd.f32 %v5286, %v5427
  %v5429 = vpop.f32.mrb[0].mxu0
  %5430 = vmatprep.mubr.f32.mxu0 0.0
  %5431 = vmatmul.mubr.f32.gmra.mrb[0].mxu0 %v5307
  %v5432 = vpop.f32.mrb[0].mxu0
  %v5433 = vadd.f32 %v5286, %v5432
  %v5434 = vpop.f32.mrb[0].mxu0
  %5435 = vmatprep.mubr.f32.mxu0 0.0
  %5436 = vmatmul.mubr.f32.gmra.mrb[0].mxu0 %v5310
  %v5437 = vpop.f32.mrb[0].mxu0
  %v5438 = vadd.f32 %v5286, %v5437
  %v5439 = vpop.f32.mrb[0].mxu0
  %5440 = vmatprep.mubr.f32.mxu0 0.0
  %5441 = vmatmul.mubr.f32.gmra.mrb[0].mxu0 %v5313
  %v5442 = vpop.f32.mrb[0].mxu0
  %v5443 = vadd.f32 %v5286, %v5442
  %v5444 = vpop.f32.mrb[0].mxu0
  %5445 = vmatprep.mubr.f32.mxu0 0.0
  %5446 = vmatmul.mubr.f32.gmra.mrb[0].mxu0 %v5316
  %v5447 = vpop.f32.mrb[0].mxu0
  %v5448 = vadd.f32 %v5286, %v5447
  %v5449 = vpop.f32.mrb[0].mxu0
  %5450 = vmatprep.mubr.f32.mxu0 0.0
  %5451 = vmatmul.mubr.f32.gmra.mrb[0].mxu0 %v5319
  %v5452 = vpop.f32.mrb[0].mxu0
  %v5453 = vadd.f32 %v5286, %v5452
  %v5454 = vpop.f32.mrb[0].mxu0
  %5455 = vmatprep.mubr.f32.mxu0 0.0
  %5456 = vmatmul.mubr.f32.gmra.mrb[0].mxu0 %v5322
  %v5457 = vpop.f32.mrb[0].mxu0
  %v5458 = vadd.f32 %v5286, %v5457
  %v5459 = vpop.f32.mrb[0].mxu0
  %5460 = vmatprep.mubr.f32.mxu0 0.0
  %5461 = vmatmul.mubr.f32.gmra.mrb[0].mxu0 %v5325
  %v5462 = vpop.f32.mrb[0].mxu0
  %v5463 = vadd.f32 %v5286, %v5462
  %v5464 = vpop.f32.mrb[0].mxu0
  %5465 = vmatprep.mubr.f32.mxu0 0.0
  %5466 = vmatmul.mubr.f32.gmra.mrb[0].mxu0 %v5328
  %v5467 = vpop.f32.mrb[0].mxu0
  %v5468 = vadd.f32 %v5286, %v5467
  %v5469 = vpop.f32.mrb[0].mxu0
  %5470 = vmatprep.mubr.f32.mxu0 0.0
  %5471 = vmatmul.mubr.f32.gmra.mrb[0].mxu0 %v5331
  %v5472 = vpop.f32.mrb[0].mxu0
  %v5473 = vadd.f32 %v5286, %v5472
  %v5474 = vpop.f32.mrb[0].mxu0
  %5475 = vmatprep.mubr.f32.mxu0 0.0
  %5476 = vmatmul.mubr.f32.gmra.mrb[0].mxu0 %v5334
  %v5477 = vpop.f32.mrb[0].mxu0
  %v5478 = vadd.f32 %v5286, %v5477
  %v5479 = vpop.f32.mrb[0].mxu0
  %5480 = vdwg.mxu0
  %v5481 = vld [vmem:[%s19] sm:$0xff]
  %v5482 = vld [vmem:[%s19 + $0x8] sm:$0xff]
  %v5483 = vld [vmem:[%s19 + $0x10] sm:$0xff]
  %v5484 = vld [vmem:[%s19 + $0x18] sm:$0xff]
  %v5485 = vmul.f32 %v5403, 0.35355338
  %v5486 = vmul.f32 %v5408, 0.35355338
  %v5487 = vmul.f32 %v5413, 0.35355338
  %v5488 = vmul.f32 %v5418, 0.35355338
  %v5489 = vmul.f32 %v5423, 0.35355338
  %v5490 = vmul.f32 %v5428, 0.35355338
  %v5491 = vmul.f32 %v5433, 0.35355338
  %v5492 = vmul.f32 %v5438, 0.35355338
  %v5493 = vmul.f32 %v5443, 0.35355338
  %v5494 = vmul.f32 %v5448, 0.35355338
  %v5495 = vmul.f32 %v5453, 0.35355338
  %v5496 = vmul.f32 %v5458, 0.35355338
  %v5497 = vmul.f32 %v5463, 0.35355338
  %v5498 = vmul.f32 %v5468, 0.35355338
  %v5499 = vmul.f32 %v5473, 0.35355338
  %v5500 = vmul.f32 %v5478, 0.35355338
  %v5501 = vld [vmem:[%s14] sm:$0xff]
  %v5502 = vld [vmem:[%s14 + $0x8] sm:$0xff]
  %v5503 = vld [vmem:[%s14 + $0x10] sm:$0xff]
  %v5504 = vld [vmem:[%s14 + $0x18] sm:$0xff]
  %v5505 = vld [vmem:[%s14 + $0x20] sm:$0xff]
  %v5506 = vld [vmem:[%s14 + $0x28] sm:$0xff]
  %v5507 = vld [vmem:[%s14 + $0x30] sm:$0xff]
  %v5508 = vld [vmem:[%s14 + $0x38] sm:$0xff]
  %v5509 = vld [vmem:[%s14 + $0x40] sm:$0xff]
  %v5510 = vld [vmem:[%s14 + $0x48] sm:$0xff]
  %v5511 = vld [vmem:[%s14 + $0x50] sm:$0xff]
  %v5512 = vld [vmem:[%s14 + $0x58] sm:$0xff]
  %v5513 = vld [vmem:[%s14 + $0x60] sm:$0xff]
  %v5514 = vld [vmem:[%s14 + $0x68] sm:$0xff]
  %v5515 = vld [vmem:[%s14 + $0x70] sm:$0xff]
  %v5516 = vld [vmem:[%s14 + $0x78] sm:$0xff]
  %5533 = vrot.lane.b32.xlu0 %v5403, 96
  %v5534 = vpop.permute.xlu0 %5533
  %5535 = vrot.lane.b32.xlu0 %v5408, 96
  %v5536 = vpop.permute.xlu0 %5535
  %5537 = vrot.lane.b32.xlu0 %v5413, 96
  %v5538 = vpop.permute.xlu0 %5537
  %5539 = vrot.lane.b32.xlu0 %v5418, 96
  %v5540 = vpop.permute.xlu0 %5539
  %5541 = vrot.lane.b32.xlu0 %v5423, 96
  %v5542 = vpop.permute.xlu0 %5541
  %5543 = vrot.lane.b32.xlu0 %v5428, 96
  %v5544 = vpop.permute.xlu0 %5543
  %5545 = vrot.lane.b32.xlu0 %v5433, 96
  %v5546 = vpop.permute.xlu0 %5545
  %5547 = vrot.lane.b32.xlu0 %v5438, 96
  %v5548 = vpop.permute.xlu0 %5547
  %5549 = vrot.lane.b32.xlu0 %v5443, 96
  %v5550 = vpop.permute.xlu0 %5549
  %5551 = vrot.lane.b32.xlu0 %v5448, 96
  %v5552 = vpop.permute.xlu0 %5551
  %5553 = vrot.lane.b32.xlu0 %v5453, 96
  %v5554 = vpop.permute.xlu0 %5553
  %5555 = vrot.lane.b32.xlu0 %v5458, 96
  %v5556 = vpop.permute.xlu0 %5555
  %5557 = vrot.lane.b32.xlu0 %v5463, 96
  %v5558 = vpop.permute.xlu0 %5557
  %5559 = vrot.lane.b32.xlu0 %v5468, 96
  %v5560 = vpop.permute.xlu0 %5559
  %5561 = vrot.lane.b32.xlu0 %v5473, 96
  %v5562 = vpop.permute.xlu0 %5561
  %5563 = vrot.lane.b32.xlu0 %v5478, 96
  %v5564 = vpop.permute.xlu0 %5563
  %v5566 = vsel %vm646, %v5485, 0
  %v5569 = vsel %vm646, %v5486, 0
  %v5572 = vsel %vm646, %v5487, 0
  %v5575 = vsel %vm646, %v5488, 0
  %v5578 = vsel %vm646, %v5489, 0
  %v5581 = vsel %vm646, %v5490, 0
  %v5584 = vsel %vm646, %v5491, 0
  %v5587 = vsel %vm646, %v5492, 0
  %v5590 = vsel %vm646, %v5493, 0
  %v5593 = vsel %vm646, %v5494, 0
  %v5596 = vsel %vm646, %v5495, 0
  %v5599 = vsel %vm646, %v5496, 0
  %v5602 = vsel %vm646, %v5497, 0
  %v5605 = vsel %vm646, %v5498, 0
  %v5608 = vsel %vm646, %v5499, 0
  %v5611 = vsel %vm646, %v5500, 0
  %v5613 = vsel %vm646, %v5534, 0
  %v5615 = vsel %vm646, %v5536, 0
  %v5617 = vsel %vm646, %v5538, 0
  %v5619 = vsel %vm646, %v5540, 0
  %v5621 = vsel %vm646, %v5542, 0
  %v5623 = vsel %vm646, %v5544, 0
  %v5625 = vsel %vm646, %v5546, 0
  %v5627 = vsel %vm646, %v5548, 0
  %v5629 = vsel %vm646, %v5550, 0
  %v5631 = vsel %vm646, %v5552, 0
  %v5633 = vsel %vm646, %v5554, 0
  %v5635 = vsel %vm646, %v5556, 0
  %v5637 = vsel %vm646, %v5558, 0
  %v5639 = vsel %vm646, %v5560, 0
  %v5641 = vsel %vm646, %v5562, 0
  %v5643 = vsel %vm646, %v5564, 0
  %5645 = vmatprep.subr.mxu0 0.0
  %5646 = vmatpush1.xpose.msra.mxu0 %v5613
  %5647 = vmatprep.subr.mxu0 0.0
  %5648 = vmatpush1.xpose.msra.mxu0 %v5615
  %5649 = vmatprep.subr.mxu0 0.0
  %5650 = vmatpush1.xpose.msra.mxu0 %v5617
  %5651 = vmatprep.subr.mxu0 0.0
  %5652 = vmatpush1.xpose.msra.mxu0 %v5619
  %5653 = vmatprep.subr.mxu0 0.0
  %5654 = vmatpush1.xpose.msra.mxu0 %v5621
  %5655 = vmatprep.subr.mxu0 0.0
  %5656 = vmatpush1.xpose.msra.mxu0 %v5623
  %5657 = vmatprep.subr.mxu0 0.0
  %5658 = vmatpush1.xpose.msra.mxu0 %v5625
  %5659 = vmatprep.subr.mxu0 0.0
  %5660 = vmatpush1.xpose.msra.mxu0 %v5627
  %5661 = vmatprep.subr.mxu0 0.0
  %5662 = vmatpush1.xpose.msra.mxu0 %v5629
  %5663 = vmatprep.subr.mxu0 0.0
  %5664 = vmatpush1.xpose.msra.mxu0 %v5631
  %5665 = vmatprep.subr.mxu0 0.0
  %5666 = vmatpush1.xpose.msra.mxu0 %v5633
  %5667 = vmatprep.subr.mxu0 0.0
  %5668 = vmatpush1.xpose.msra.mxu0 %v5635
  %5669 = vmatprep.subr.mxu0 0.0
  %5670 = vmatpush1.xpose.msra.mxu0 %v5637
  %5671 = vmatprep.subr.mxu0 0.0
  %5672 = vmatpush1.xpose.msra.mxu0 %v5639
  %5673 = vmatprep.subr.mxu0 0.0
  %5674 = vmatpush1.xpose.msra.mxu0 %v5641
  %5675 = vmatprep.subr.mxu0 0.0
  %5676 = vmatpush1.xpose.msra.mxu0 %v5643
  %5677 = vmatprep.subr.mxu0 0.0
  %5678 = vmatpush1.xpose.msra.mxu0 0.0
  %5679 = vmatprep.subr.mxu0 0.0
  %5680 = vmatpush1.xpose.msra.mxu0 0.0
  %5681 = vmatprep.subr.mxu0 0.0
  %5682 = vmatpush1.xpose.msra.mxu0 0.0
  %5683 = vmatprep.subr.mxu0 0.0
  %5684 = vmatpush1.xpose.msra.mxu0 0.0
  %5685 = vmatprep.subr.mxu0 0.0
  %5686 = vmatpush1.xpose.msra.mxu0 0.0
  %5687 = vmatprep.subr.mxu0 0.0
  %5688 = vmatpush1.xpose.msra.mxu0 0.0
  %5689 = vmatprep.subr.mxu0 0.0
  %5690 = vmatpush1.xpose.msra.mxu0 0.0
  %5691 = vmatprep.subr.mxu0 0.0
  %5692 = vmatpush1.xpose.msra.mxu0 0.0
  %5693 = vmatprep.subr.mxu0 0.0
  %5694 = vmatpush1.xpose.msra.mxu0 0.0
  %5695 = vmatprep.subr.mxu0 0.0
  %5696 = vmatpush1.xpose.msra.mxu0 0.0
  %5697 = vmatprep.subr.mxu0 0.0
  %5698 = vmatpush1.xpose.msra.mxu0 0.0
  %5699 = vmatprep.subr.mxu0 0.0
  %5700 = vmatpush1.xpose.msra.mxu0 0.0
  %5701 = vmatprep.subr.mxu0 0.0
  %5702 = vmatpush1.xpose.msra.mxu0 0.0
  %5703 = vmatprep.subr.mxu0 0.0
  %5704 = vmatpush1.xpose.msra.mxu0 0.0
  %5705 = vmatprep.subr.mxu0 0.0
  %5706 = vmatpush1.xpose.msra.mxu0 0.0
  %5707 = vmatprep.subr.mxu0 0.0
  %5708 = vmatpush1.xpose.msra.mxu0 0.0
  %5709 = vmatprep.mubr.f32.mxu0 0.0
  %5710 = vmatmul.mubr.f32.gmra.mrb[0].mxu0 %v5566
  %v5711 = vpop.f32.mrb[0].mxu0
  %v5712 = vadd.f32 %v5501, %v5711
  %v5713 = vpop.f32.mrb[0].mxu0
  %5714 = vmatprep.mubr.f32.mxu0 0.0
  %5715 = vmatmul.mubr.f32.gmra.mrb[0].mxu0 %v5569
  %v5716 = vpop.f32.mrb[0].mxu0
  %v5717 = vadd.f32 %v5502, %v5716
  %v5718 = vpop.f32.mrb[0].mxu0
  %5719 = vmatprep.mubr.f32.mxu0 0.0
  %5720 = vmatmul.mubr.f32.gmra.mrb[0].mxu0 %v5572
  %v5721 = vpop.f32.mrb[0].mxu0
  %v5722 = vadd.f32 %v5503, %v5721
  %v5723 = vpop.f32.mrb[0].mxu0
  %5724 = vmatprep.mubr.f32.mxu0 0.0
  %5725 = vmatmul.mubr.f32.gmra.mrb[0].mxu0 %v5575
  %v5726 = vpop.f32.mrb[0].mxu0
  %v5727 = vadd.f32 %v5504, %v5726
  %v5728 = vpop.f32.mrb[0].mxu0
  %5729 = vmatprep.mubr.f32.mxu0 0.0
  %5730 = vmatmul.mubr.f32.gmra.mrb[0].mxu0 %v5578
  %v5731 = vpop.f32.mrb[0].mxu0
  %v5732 = vadd.f32 %v5505, %v5731
  %v5733 = vpop.f32.mrb[0].mxu0
  %5734 = vmatprep.mubr.f32.mxu0 0.0
  %5735 = vmatmul.mubr.f32.gmra.mrb[0].mxu0 %v5581
  %v5736 = vpop.f32.mrb[0].mxu0
  %v5737 = vadd.f32 %v5506, %v5736
  %v5738 = vpop.f32.mrb[0].mxu0
  %5739 = vmatprep.mubr.f32.mxu0 0.0
  %5740 = vmatmul.mubr.f32.gmra.mrb[0].mxu0 %v5584
  %v5741 = vpop.f32.mrb[0].mxu0
  %v5742 = vadd.f32 %v5507, %v5741
  %v5743 = vpop.f32.mrb[0].mxu0
  %5744 = vmatprep.mubr.f32.mxu0 0.0
  %5745 = vmatmul.mubr.f32.gmra.mrb[0].mxu0 %v5587
  %v5746 = vpop.f32.mrb[0].mxu0
  %v5747 = vadd.f32 %v5508, %v5746
  %v5748 = vpop.f32.mrb[0].mxu0
  %5749 = vmatprep.mubr.f32.mxu0 0.0
  %5750 = vmatmul.mubr.f32.gmra.mrb[0].mxu0 %v5590
  %v5751 = vpop.f32.mrb[0].mxu0
  %v5752 = vadd.f32 %v5509, %v5751
  %v5753 = vpop.f32.mrb[0].mxu0
  %5754 = vmatprep.mubr.f32.mxu0 0.0
  %5755 = vmatmul.mubr.f32.gmra.mrb[0].mxu0 %v5593
  %v5756 = vpop.f32.mrb[0].mxu0
  %v5757 = vadd.f32 %v5510, %v5756
  %v5758 = vpop.f32.mrb[0].mxu0
  %5759 = vmatprep.mubr.f32.mxu0 0.0
  %5760 = vmatmul.mubr.f32.gmra.mrb[0].mxu0 %v5596
  %v5761 = vpop.f32.mrb[0].mxu0
  %v5762 = vadd.f32 %v5511, %v5761
  %v5763 = vpop.f32.mrb[0].mxu0
  %5764 = vmatprep.mubr.f32.mxu0 0.0
  %5765 = vmatmul.mubr.f32.gmra.mrb[0].mxu0 %v5599
  %v5766 = vpop.f32.mrb[0].mxu0
  %v5767 = vadd.f32 %v5512, %v5766
  %v5768 = vpop.f32.mrb[0].mxu0
  %5769 = vmatprep.mubr.f32.mxu0 0.0
  %5770 = vmatmul.mubr.f32.gmra.mrb[0].mxu0 %v5602
  %v5771 = vpop.f32.mrb[0].mxu0
  %v5772 = vadd.f32 %v5513, %v5771
  %v5773 = vpop.f32.mrb[0].mxu0
  %5774 = vmatprep.mubr.f32.mxu0 0.0
  %5775 = vmatmul.mubr.f32.gmra.mrb[0].mxu0 %v5605
  %v5776 = vpop.f32.mrb[0].mxu0
  %v5777 = vadd.f32 %v5514, %v5776
  %v5778 = vpop.f32.mrb[0].mxu0
  %5779 = vmatprep.mubr.f32.mxu0 0.0
  %5780 = vmatmul.mubr.f32.gmra.mrb[0].mxu0 %v5608
  %v5781 = vpop.f32.mrb[0].mxu0
  %v5782 = vadd.f32 %v5515, %v5781
  %v5783 = vpop.f32.mrb[0].mxu0
  %5784 = vmatprep.mubr.f32.mxu0 0.0
  %5785 = vmatmul.mubr.f32.gmra.mrb[0].mxu0 %v5611
  %v5786 = vpop.f32.mrb[0].mxu0
  %v5787 = vadd.f32 %v5516, %v5786
  %v5788 = vpop.f32.mrb[0].mxu0
  %5789 = vdwg.mxu0
  %5790 = vmax.xlane.f32.xlu0 %v5712
  %v5791 = vpop.xlane.xlu0 %5790
  %5792 = vmax.xlane.f32.xlu0 %v5717
  %v5793 = vpop.xlane.xlu0 %5792
  %5794 = vmax.xlane.f32.xlu0 %v5722
  %v5795 = vpop.xlane.xlu0 %5794
  %5796 = vmax.xlane.f32.xlu0 %v5727
  %v5797 = vpop.xlane.xlu0 %5796
  %5798 = vmax.xlane.f32.xlu0 %v5732
  %v5799 = vpop.xlane.xlu0 %5798
  %5800 = vmax.xlane.f32.xlu0 %v5737
  %v5801 = vpop.xlane.xlu0 %5800
  %5802 = vmax.xlane.f32.xlu0 %v5742
  %v5803 = vpop.xlane.xlu0 %5802
  %5804 = vmax.xlane.f32.xlu0 %v5747
  %v5805 = vpop.xlane.xlu0 %5804
  %5806 = vmax.xlane.f32.xlu0 %v5752
  %v5807 = vpop.xlane.xlu0 %5806
  %5808 = vmax.xlane.f32.xlu0 %v5757
  %v5809 = vpop.xlane.xlu0 %5808
  %5810 = vmax.xlane.f32.xlu0 %v5762
  %v5811 = vpop.xlane.xlu0 %5810
  %5812 = vmax.xlane.f32.xlu0 %v5767
  %v5813 = vpop.xlane.xlu0 %5812
  %5814 = vmax.xlane.f32.xlu0 %v5772
  %v5815 = vpop.xlane.xlu0 %5814
  %5816 = vmax.xlane.f32.xlu0 %v5777
  %v5817 = vpop.xlane.xlu0 %5816
  %5818 = vmax.xlane.f32.xlu0 %v5782
  %v5819 = vpop.xlane.xlu0 %5818
  %5820 = vmax.xlane.f32.xlu0 %v5787
  %v5821 = vpop.xlane.xlu0 %5820
  %v5822 = vsub.f32 %v5712, %v5791
  %v5823 = vsub.f32 %v5717, %v5793
  %v5824 = vsub.f32 %v5722, %v5795
  %v5825 = vsub.f32 %v5727, %v5797
  %v5826 = vsub.f32 %v5732, %v5799
  %v5827 = vsub.f32 %v5737, %v5801
  %v5828 = vsub.f32 %v5742, %v5803
  %v5829 = vsub.f32 %v5747, %v5805
  %v5830 = vsub.f32 %v5752, %v5807
  %v5831 = vsub.f32 %v5757, %v5809
  %v5832 = vsub.f32 %v5762, %v5811
  %v5833 = vsub.f32 %v5767, %v5813
  %v5834 = vsub.f32 %v5772, %v5815
  %v5835 = vsub.f32 %v5777, %v5817
  %v5836 = vsub.f32 %v5782, %v5819
  %v5837 = vsub.f32 %v5787, %v5821
  %v5838 = vmul.f32 %v5822, 1.442695
  %v5839 = vpow.pop %v5838
  %v5840 = vmul.f32 %v5823, 1.442695
  %v5841 = vpow.pop %v5840
  %v5842 = vmul.f32 %v5824, 1.442695
  %v5843 = vpow.pop %v5842
  %v5844 = vmul.f32 %v5825, 1.442695
  %v5845 = vpow.pop %v5844
  %v5846 = vmul.f32 %v5826, 1.442695
  %v5847 = vpow.pop %v5846
  %v5848 = vmul.f32 %v5827, 1.442695
  %v5849 = vpow.pop %v5848
  %v5850 = vmul.f32 %v5828, 1.442695
  %v5851 = vpow.pop %v5850
  %v5852 = vmul.f32 %v5829, 1.442695
  %v5853 = vpow.pop %v5852
  %v5854 = vmul.f32 %v5830, 1.442695
  %v5855 = vpow.pop %v5854
  %v5856 = vmul.f32 %v5831, 1.442695
  %v5857 = vpow.pop %v5856
  %v5858 = vmul.f32 %v5832, 1.442695
  %v5859 = vpow.pop %v5858
  %v5860 = vmul.f32 %v5833, 1.442695
  %v5861 = vpow.pop %v5860
  %v5862 = vmul.f32 %v5834, 1.442695
  %v5863 = vpow.pop %v5862
  %v5864 = vmul.f32 %v5835, 1.442695
  %v5865 = vpow.pop %v5864
  %v5866 = vmul.f32 %v5836, 1.442695
  %v5867 = vpow.pop %v5866
  %v5868 = vmul.f32 %v5837, 1.442695
  %v5869 = vpow.pop %v5868
  %5870 = vadd.xlane.f32.xlu0 %v5839
  %v5871 = vpop.xlane.xlu0 %5870
  %5872 = vadd.xlane.f32.xlu0 %v5841
  %v5873 = vpop.xlane.xlu0 %5872
  %5874 = vadd.xlane.f32.xlu0 %v5843
  %v5875 = vpop.xlane.xlu0 %5874
  %5876 = vadd.xlane.f32.xlu0 %v5845
  %v5877 = vpop.xlane.xlu0 %5876
  %5878 = vadd.xlane.f32.xlu0 %v5847
  %v5879 = vpop.xlane.xlu0 %5878
  %5880 = vadd.xlane.f32.xlu0 %v5849
  %v5881 = vpop.xlane.xlu0 %5880
  %5882 = vadd.xlane.f32.xlu0 %v5851
  %v5883 = vpop.xlane.xlu0 %5882
  %5884 = vadd.xlane.f32.xlu0 %v5853
  %v5885 = vpop.xlane.xlu0 %5884
  %5886 = vadd.xlane.f32.xlu0 %v5855
  %v5887 = vpop.xlane.xlu0 %5886
  %5888 = vadd.xlane.f32.xlu0 %v5857
  %v5889 = vpop.xlane.xlu0 %5888
  %5890 = vadd.xlane.f32.xlu0 %v5859
  %v5891 = vpop.xlane.xlu0 %5890
  %5892 = vadd.xlane.f32.xlu0 %v5861
  %v5893 = vpop.xlane.xlu0 %5892
  %5894 = vadd.xlane.f32.xlu0 %v5863
  %v5895 = vpop.xlane.xlu0 %5894
  %5896 = vadd.xlane.f32.xlu0 %v5865
  %v5897 = vpop.xlane.xlu0 %5896
  %5898 = vadd.xlane.f32.xlu0 %v5867
  %v5899 = vpop.xlane.xlu0 %5898
  %5900 = vadd.xlane.f32.xlu0 %v5869
  %v5901 = vpop.xlane.xlu0 %5900
  %v5902 = vrcp.pop %v5871
  %v5903 = vrcp.pop %v5873
  %v5904 = vrcp.pop %v5875
  %v5905 = vrcp.pop %v5877
  %v5906 = vrcp.pop %v5879
  %v5907 = vrcp.pop %v5881
  %v5908 = vrcp.pop %v5883
  %v5909 = vrcp.pop %v5885
  %v5910 = vrcp.pop %v5887
  %v5911 = vrcp.pop %v5889
  %v5912 = vrcp.pop %v5891
  %v5913 = vrcp.pop %v5893
  %v5914 = vrcp.pop %v5895
  %v5915 = vrcp.pop %v5897
  %v5916 = vrcp.pop %v5899
  %v5917 = vrcp.pop %v5901
  %v5918 = vmul.f32 %v5839, %v5902
  %v5919 = vmul.f32 %v5841, %v5903
  %v5920 = vmul.f32 %v5843, %v5904
  %v5921 = vmul.f32 %v5845, %v5905
  %v5922 = vmul.f32 %v5847, %v5906
  %v5923 = vmul.f32 %v5849, %v5907
  %v5924 = vmul.f32 %v5851, %v5908
  %v5925 = vmul.f32 %v5853, %v5909
  %v5926 = vmul.f32 %v5855, %v5910
  %v5927 = vmul.f32 %v5857, %v5911
  %v5928 = vmul.f32 %v5859, %v5912
  %v5929 = vmul.f32 %v5861, %v5913
  %v5930 = vmul.f32 %v5863, %v5914
  %v5931 = vmul.f32 %v5865, %v5915
  %v5932 = vmul.f32 %v5867, %v5916
  %v5933 = vmul.f32 %v5869, %v5917
  %5934 = vrot.lane.b32.xlu0 %v5403, 64
  %v5935 = vpop.permute.xlu0 %5934
  %5936 = vrot.lane.b32.xlu0 %v5408, 64
  %v5937 = vpop.permute.xlu0 %5936
  %5938 = vrot.lane.b32.xlu0 %v5413, 64
  %v5939 = vpop.permute.xlu0 %5938
  %5940 = vrot.lane.b32.xlu0 %v5418, 64
  %v5941 = vpop.permute.xlu0 %5940
  %5942 = vrot.lane.b32.xlu0 %v5423, 64
  %v5943 = vpop.permute.xlu0 %5942
  %5944 = vrot.lane.b32.xlu0 %v5428, 64
  %v5945 = vpop.permute.xlu0 %5944
  %5946 = vrot.lane.b32.xlu0 %v5433, 64
  %v5947 = vpop.permute.xlu0 %5946
  %5948 = vrot.lane.b32.xlu0 %v5438, 64
  %v5949 = vpop.permute.xlu0 %5948
  %5950 = vrot.lane.b32.xlu0 %v5443, 64
  %v5951 = vpop.permute.xlu0 %5950
  %5952 = vrot.lane.b32.xlu0 %v5448, 64
  %v5953 = vpop.permute.xlu0 %5952
  %5954 = vrot.lane.b32.xlu0 %v5453, 64
  %v5955 = vpop.permute.xlu0 %5954
  %5956 = vrot.lane.b32.xlu0 %v5458, 64
  %v5957 = vpop.permute.xlu0 %5956
  %5958 = vrot.lane.b32.xlu0 %v5463, 64
  %v5959 = vpop.permute.xlu0 %5958
  %5960 = vrot.lane.b32.xlu0 %v5468, 64
  %v5961 = vpop.permute.xlu0 %5960
  %5962 = vrot.lane.b32.xlu0 %v5473, 64
  %v5963 = vpop.permute.xlu0 %5962
  %5964 = vrot.lane.b32.xlu0 %v5478, 64
  %v5965 = vpop.permute.xlu0 %5964
  %5982 = vmatprep.subr.mxu0 0.0
  %5983 = vmatpush1.msra.mxu0 %v5935
  %5984 = vmatprep.subr.mxu0 0.0
  %5985 = vmatpush1.msra.mxu0 %v5937
  %5986 = vmatprep.subr.mxu0 0.0
  %5987 = vmatpush1.msra.mxu0 %v5939
  %5988 = vmatprep.subr.mxu0 0.0
  %5989 = vmatpush1.msra.mxu0 %v5941
  %5990 = vmatprep.subr.mxu0 0.0
  %5991 = vmatpush1.msra.mxu0 %v5943
  %5992 = vmatprep.subr.mxu0 0.0
  %5993 = vmatpush1.msra.mxu0 %v5945
  %5994 = vmatprep.subr.mxu0 0.0
  %5995 = vmatpush1.msra.mxu0 %v5947
  %5996 = vmatprep.subr.mxu0 0.0
  %5997 = vmatpush1.msra.mxu0 %v5949
  %5998 = vmatprep.subr.mxu0 0.0
  %5999 = vmatpush1.msra.mxu0 %v5951
  %6000 = vmatprep.subr.mxu0 0.0
  %6001 = vmatpush1.msra.mxu0 %v5953
  %6002 = vmatprep.subr.mxu0 0.0
  %6003 = vmatpush1.msra.mxu0 %v5955
  %6004 = vmatprep.subr.mxu0 0.0
  %6005 = vmatpush1.msra.mxu0 %v5957
  %6006 = vmatprep.subr.mxu0 0.0
  %6007 = vmatpush1.msra.mxu0 %v5959
  %6008 = vmatprep.subr.mxu0 0.0
  %6009 = vmatpush1.msra.mxu0 %v5961
  %6010 = vmatprep.subr.mxu0 0.0
  %6011 = vmatpush1.msra.mxu0 %v5963
  %6012 = vmatprep.subr.mxu0 0.0
  %6013 = vmatpush1.msra.mxu0 %v5965
  %6014 = vmatprep.subr.mxu0 0.0
  %6015 = vmatpush1.msra.mxu0 0.0
  %6016 = vmatprep.subr.mxu0 0.0
  %6017 = vmatpush1.msra.mxu0 0.0
  %6018 = vmatprep.subr.mxu0 0.0
  %6019 = vmatpush1.msra.mxu0 0.0
  %6020 = vmatprep.subr.mxu0 0.0
  %6021 = vmatpush1.msra.mxu0 0.0
  %6022 = vmatprep.subr.mxu0 0.0
  %6023 = vmatpush1.msra.mxu0 0.0
  %6024 = vmatprep.subr.mxu0 0.0
  %6025 = vmatpush1.msra.mxu0 0.0
  %6026 = vmatprep.subr.mxu0 0.0
  %6027 = vmatpush1.msra.mxu0 0.0
  %6028 = vmatprep.subr.mxu0 0.0
  %6029 = vmatpush1.msra.mxu0 0.0
  %6030 = vmatprep.subr.mxu0 0.0
  %6031 = vmatpush1.msra.mxu0 0.0
  %6032 = vmatprep.subr.mxu0 0.0
  %6033 = vmatpush1.msra.mxu0 0.0
  %6034 = vmatprep.subr.mxu0 0.0
  %6035 = vmatpush1.msra.mxu0 0.0
  %6036 = vmatprep.subr.mxu0 0.0
  %6037 = vmatpush1.msra.mxu0 0.0
  %6038 = vmatprep.subr.mxu0 0.0
  %6039 = vmatpush1.msra.mxu0 0.0
  %6040 = vmatprep.subr.mxu0 0.0
  %6041 = vmatpush1.msra.mxu0 0.0
  %6042 = vmatprep.subr.mxu0 0.0
  %6043 = vmatpush1.msra.mxu0 0.0
  %6044 = vmatprep.subr.mxu0 0.0
  %6045 = vmatpush1.msra.mxu0 0.0
  %6046 = vmatprep.mubr.f32.mxu0 0.0
  %6047 = vmatmul.mubr.f32.gmra.mrb[0].mxu0 %v5918
  %v6048 = vpop.f32.mrb[0].mxu0
  %v6049 = vadd.f32 0.0, %v6048
  %v6050 = vpop.f32.mrb[0].mxu0
  %6051 = vmatprep.mubr.f32.mxu0 0.0
  %6052 = vmatmul.mubr.f32.gmra.mrb[0].mxu0 %v5919
  %v6053 = vpop.f32.mrb[0].mxu0
  %v6054 = vadd.f32 0.0, %v6053
  %v6055 = vpop.f32.mrb[0].mxu0
  %6056 = vmatprep.mubr.f32.mxu0 0.0
  %6057 = vmatmul.mubr.f32.gmra.mrb[0].mxu0 %v5920
  %v6058 = vpop.f32.mrb[0].mxu0
  %v6059 = vadd.f32 0.0, %v6058
  %v6060 = vpop.f32.mrb[0].mxu0
  %6061 = vmatprep.mubr.f32.mxu0 0.0
  %6062 = vmatmul.mubr.f32.gmra.mrb[0].mxu0 %v5921
  %v6063 = vpop.f32.mrb[0].mxu0
  %v6064 = vadd.f32 0.0, %v6063
  %v6065 = vpop.f32.mrb[0].mxu0
  %6066 = vmatprep.mubr.f32.mxu0 0.0
  %6067 = vmatmul.mubr.f32.gmra.mrb[0].mxu0 %v5922
  %v6068 = vpop.f32.mrb[0].mxu0
  %v6069 = vadd.f32 0.0, %v6068
  %v6070 = vpop.f32.mrb[0].mxu0
  %6071 = vmatprep.mubr.f32.mxu0 0.0
  %6072 = vmatmul.mubr.f32.gmra.mrb[0].mxu0 %v5923
  %v6073 = vpop.f32.mrb[0].mxu0
  %v6074 = vadd.f32 0.0, %v6073
  %v6075 = vpop.f32.mrb[0].mxu0
  %6076 = vmatprep.mubr.f32.mxu0 0.0
  %6077 = vmatmul.mubr.f32.gmra.mrb[0].mxu0 %v5924
  %v6078 = vpop.f32.mrb[0].mxu0
  %v6079 = vadd.f32 0.0, %v6078
  %v6080 = vpop.f32.mrb[0].mxu0
  %6081 = vmatprep.mubr.f32.mxu0 0.0
  %6082 = vmatmul.mubr.f32.gmra.mrb[0].mxu0 %v5925
  %v6083 = vpop.f32.mrb[0].mxu0
  %v6084 = vadd.f32 0.0, %v6083
  %v6085 = vpop.f32.mrb[0].mxu0
  %6086 = vmatprep.mubr.f32.mxu0 0.0
  %6087 = vmatmul.mubr.f32.gmra.mrb[0].mxu0 %v5926
  %v6088 = vpop.f32.mrb[0].mxu0
  %v6089 = vadd.f32 0.0, %v6088
  %v6090 = vpop.f32.mrb[0].mxu0
  %6091 = vmatprep.mubr.f32.mxu0 0.0
  %6092 = vmatmul.mubr.f32.gmra.mrb[0].mxu0 %v5927
  %v6093 = vpop.f32.mrb[0].mxu0
  %v6094 = vadd.f32 0.0, %v6093
  %v6095 = vpop.f32.mrb[0].mxu0
  %6096 = vmatprep.mubr.f32.mxu0 0.0
  %6097 = vmatmul.mubr.f32.gmra.mrb[0].mxu0 %v5928
  %v6098 = vpop.f32.mrb[0].mxu0
  %v6099 = vadd.f32 0.0, %v6098
  %v6100 = vpop.f32.mrb[0].mxu0
  %6101 = vmatprep.mubr.f32.mxu0 0.0
  %6102 = vmatmul.mubr.f32.gmra.mrb[0].mxu0 %v5929
  %v6103 = vpop.f32.mrb[0].mxu0
  %v6104 = vadd.f32 0.0, %v6103
  %v6105 = vpop.f32.mrb[0].mxu0
  %6106 = vmatprep.mubr.f32.mxu0 0.0
  %6107 = vmatmul.mubr.f32.gmra.mrb[0].mxu0 %v5930
  %v6108 = vpop.f32.mrb[0].mxu0
  %v6109 = vadd.f32 0.0, %v6108
  %v6110 = vpop.f32.mrb[0].mxu0
  %6111 = vmatprep.mubr.f32.mxu0 0.0
  %6112 = vmatmul.mubr.f32.gmra.mrb[0].mxu0 %v5931
  %v6113 = vpop.f32.mrb[0].mxu0
  %v6114 = vadd.f32 0.0, %v6113
  %v6115 = vpop.f32.mrb[0].mxu0
  %6116 = vmatprep.mubr.f32.mxu0 0.0
  %6117 = vmatmul.mubr.f32.gmra.mrb[0].mxu0 %v5932
  %v6118 = vpop.f32.mrb[0].mxu0
  %v6119 = vadd.f32 0.0, %v6118
  %v6120 = vpop.f32.mrb[0].mxu0
  %6121 = vmatprep.mubr.f32.mxu0 0.0
  %6122 = vmatmul.mubr.f32.gmra.mrb[0].mxu0 %v5933
  %v6123 = vpop.f32.mrb[0].mxu0
  %v6124 = vadd.f32 0.0, %v6123
  %v6125 = vpop.f32.mrb[0].mxu0
  %6126 = vdwg.mxu0
  %s6127 = scalar_lea.vmem %s14, 128
  %v6128 = vld [vmem:[%s6127] sm:$0xff]
  %v6129 = vld [vmem:[%s6127 + $0x8] sm:$0xff]
  %v6130 = vld [vmem:[%s6127 + $0x10] sm:$0xff]
  %v6131 = vld [vmem:[%s6127 + $0x18] sm:$0xff]
  %v6132 = vld [vmem:[%s6127 + $0x20] sm:$0xff]
  %v6133 = vld [vmem:[%s6127 + $0x28] sm:$0xff]
  %v6134 = vld [vmem:[%s6127 + $0x30] sm:$0xff]
  %v6135 = vld [vmem:[%s6127 + $0x38] sm:$0xff]
  %v6136 = vld [vmem:[%s6127 + $0x40] sm:$0xff]
  %v6137 = vld [vmem:[%s6127 + $0x48] sm:$0xff]
  %v6138 = vld [vmem:[%s6127 + $0x50] sm:$0xff]
  %v6139 = vld [vmem:[%s6127 + $0x58] sm:$0xff]
  %v6140 = vld [vmem:[%s6127 + $0x60] sm:$0xff]
  %v6141 = vld [vmem:[%s6127 + $0x68] sm:$0xff]
  %v6142 = vld [vmem:[%s6127 + $0x70] sm:$0xff]
  %v6143 = vld [vmem:[%s6127 + $0x78] sm:$0xff]
  %6144 = vrot.lane.b32.xlu0 %v5485, 120
  %v6145 = vpop.permute.xlu0 %6144
  %6146 = vrot.lane.b32.xlu0 %v5486, 120
  %v6147 = vpop.permute.xlu0 %6146
  %6148 = vrot.lane.b32.xlu0 %v5487, 120
  %v6149 = vpop.permute.xlu0 %6148
  %6150 = vrot.lane.b32.xlu0 %v5488, 120
  %v6151 = vpop.permute.xlu0 %6150
  %6152 = vrot.lane.b32.xlu0 %v5489, 120
  %v6153 = vpop.permute.xlu0 %6152
  %6154 = vrot.lane.b32.xlu0 %v5490, 120
  %v6155 = vpop.permute.xlu0 %6154
  %6156 = vrot.lane.b32.xlu0 %v5491, 120
  %v6157 = vpop.permute.xlu0 %6156
  %6158 = vrot.lane.b32.xlu0 %v5492, 120
  %v6159 = vpop.permute.xlu0 %6158
  %6160 = vrot.lane.b32.xlu0 %v5493, 120
  %v6161 = vpop.permute.xlu0 %6160
  %6162 = vrot.lane.b32.xlu0 %v5494, 120
  %v6163 = vpop.permute.xlu0 %6162
  %6164 = vrot.lane.b32.xlu0 %v5495, 120
  %v6165 = vpop.permute.xlu0 %6164
  %6166 = vrot.lane.b32.xlu0 %v5496, 120
  %v6167 = vpop.permute.xlu0 %6166
  %6168 = vrot.lane.b32.xlu0 %v5497, 120
  %v6169 = vpop.permute.xlu0 %6168
  %6170 = vrot.lane.b32.xlu0 %v5498, 120
  %v6171 = vpop.permute.xlu0 %6170
  %6172 = vrot.lane.b32.xlu0 %v5499, 120
  %v6173 = vpop.permute.xlu0 %6172
  %6174 = vrot.lane.b32.xlu0 %v5500, 120
  %v6175 = vpop.permute.xlu0 %6174
  %6176 = vrot.lane.b32.xlu0 %v5403, 88
  %v6177 = vpop.permute.xlu0 %6176
  %6178 = vrot.lane.b32.xlu0 %v5408, 88
  %v6179 = vpop.permute.xlu0 %6178
  %6180 = vrot.lane.b32.xlu0 %v5413, 88
  %v6181 = vpop.permute.xlu0 %6180
  %6182 = vrot.lane.b32.xlu0 %v5418, 88
  %v6183 = vpop.permute.xlu0 %6182
  %6184 = vrot.lane.b32.xlu0 %v5423, 88
  %v6185 = vpop.permute.xlu0 %6184
  %6186 = vrot.lane.b32.xlu0 %v5428, 88
  %v6187 = vpop.permute.xlu0 %6186
  %6188 = vrot.lane.b32.xlu0 %v5433, 88
  %v6189 = vpop.permute.xlu0 %6188
  %6190 = vrot.lane.b32.xlu0 %v5438, 88
  %v6191 = vpop.permute.xlu0 %6190
  %6192 = vrot.lane.b32.xlu0 %v5443, 88
  %v6193 = vpop.permute.xlu0 %6192
  %6194 = vrot.lane.b32.xlu0 %v5448, 88
  %v6195 = vpop.permute.xlu0 %6194
  %6196 = vrot.lane.b32.xlu0 %v5453, 88
  %v6197 = vpop.permute.xlu0 %6196
  %6198 = vrot.lane.b32.xlu0 %v5458, 88
  %v6199 = vpop.permute.xlu0 %6198
  %6200 = vrot.lane.b32.xlu0 %v5463, 88
  %v6201 = vpop.permute.xlu0 %6200
  %6202 = vrot.lane.b32.xlu0 %v5468, 88
  %v6203 = vpop.permute.xlu0 %6202
  %6204 = vrot.lane.b32.xlu0 %v5473, 88
  %v6205 = vpop.permute.xlu0 %6204
  %6206 = vrot.lane.b32.xlu0 %v5478, 88
  %v6207 = vpop.permute.xlu0 %6206
  %v6208 = vsel %vm646, %v6145, 0
  %v6210 = vsel %vm646, %v6147, 0
  %v6212 = vsel %vm646, %v6149, 0
  %v6214 = vsel %vm646, %v6151, 0
  %v6216 = vsel %vm646, %v6153, 0
  %v6218 = vsel %vm646, %v6155, 0
  %v6220 = vsel %vm646, %v6157, 0
  %v6222 = vsel %vm646, %v6159, 0
  %v6224 = vsel %vm646, %v6161, 0
  %v6226 = vsel %vm646, %v6163, 0
  %v6228 = vsel %vm646, %v6165, 0
  %v6230 = vsel %vm646, %v6167, 0
  %v6232 = vsel %vm646, %v6169, 0
  %v6234 = vsel %vm646, %v6171, 0
  %v6236 = vsel %vm646, %v6173, 0
  %v6238 = vsel %vm646, %v6175, 0
  %v6240 = vsel %vm646, %v6177, 0
  %v6242 = vsel %vm646, %v6179, 0
  %v6244 = vsel %vm646, %v6181, 0
  %v6246 = vsel %vm646, %v6183, 0
  %v6248 = vsel %vm646, %v6185, 0
  %v6250 = vsel %vm646, %v6187, 0
  %v6252 = vsel %vm646, %v6189, 0
  %v6254 = vsel %vm646, %v6191, 0
  %v6256 = vsel %vm646, %v6193, 0
  %v6258 = vsel %vm646, %v6195, 0
  %v6260 = vsel %vm646, %v6197, 0
  %v6262 = vsel %vm646, %v6199, 0
  %v6264 = vsel %vm646, %v6201, 0
  %v6266 = vsel %vm646, %v6203, 0
  %v6268 = vsel %vm646, %v6205, 0
  %v6270 = vsel %vm646, %v6207, 0
  %6272 = vmatprep.subr.mxu0 0.0
  %6273 = vmatpush1.xpose.msra.mxu0 %v6240
  %6274 = vmatprep.subr.mxu0 0.0
  %6275 = vmatpush1.xpose.msra.mxu0 %v6242
  %6276 = vmatprep.subr.mxu0 0.0
  %6277 = vmatpush1.xpose.msra.mxu0 %v6244
  %6278 = vmatprep.subr.mxu0 0.0
  %6279 = vmatpush1.xpose.msra.mxu0 %v6246
  %6280 = vmatprep.subr.mxu0 0.0
  %6281 = vmatpush1.xpose.msra.mxu0 %v6248
  %6282 = vmatprep.subr.mxu0 0.0
  %6283 = vmatpush1.xpose.msra.mxu0 %v6250
  %6284 = vmatprep.subr.mxu0 0.0
  %6285 = vmatpush1.xpose.msra.mxu0 %v6252
  %6286 = vmatprep.subr.mxu0 0.0
  %6287 = vmatpush1.xpose.msra.mxu0 %v6254
  %6288 = vmatprep.subr.mxu0 0.0
  %6289 = vmatpush1.xpose.msra.mxu0 %v6256
  %6290 = vmatprep.subr.mxu0 0.0
  %6291 = vmatpush1.xpose.msra.mxu0 %v6258
  %6292 = vmatprep.subr.mxu0 0.0
  %6293 = vmatpush1.xpose.msra.mxu0 %v6260
  %6294 = vmatprep.subr.mxu0 0.0
  %6295 = vmatpush1.xpose.msra.mxu0 %v6262
  %6296 = vmatprep.subr.mxu0 0.0
  %6297 = vmatpush1.xpose.msra.mxu0 %v6264
  %6298 = vmatprep.subr.mxu0 0.0
  %6299 = vmatpush1.xpose.msra.mxu0 %v6266
  %6300 = vmatprep.subr.mxu0 0.0
  %6301 = vmatpush1.xpose.msra.mxu0 %v6268
  %6302 = vmatprep.subr.mxu0 0.0
  %6303 = vmatpush1.xpose.msra.mxu0 %v6270
  %6304 = vmatprep.subr.mxu0 0.0
  %6305 = vmatpush1.xpose.msra.mxu0 0.0
  %6306 = vmatprep.subr.mxu0 0.0
  %6307 = vmatpush1.xpose.msra.mxu0 0.0
  %6308 = vmatprep.subr.mxu0 0.0
  %6309 = vmatpush1.xpose.msra.mxu0 0.0
  %6310 = vmatprep.subr.mxu0 0.0
  %6311 = vmatpush1.xpose.msra.mxu0 0.0
  %6312 = vmatprep.subr.mxu0 0.0
  %6313 = vmatpush1.xpose.msra.mxu0 0.0
  %6314 = vmatprep.subr.mxu0 0.0
  %6315 = vmatpush1.xpose.msra.mxu0 0.0
  %6316 = vmatprep.subr.mxu0 0.0
  %6317 = vmatpush1.xpose.msra.mxu0 0.0
  %6318 = vmatprep.subr.mxu0 0.0
  %6319 = vmatpush1.xpose.msra.mxu0 0.0
  %6320 = vmatprep.subr.mxu0 0.0
  %6321 = vmatpush1.xpose.msra.mxu0 0.0
  %6322 = vmatprep.subr.mxu0 0.0
  %6323 = vmatpush1.xpose.msra.mxu0 0.0
  %6324 = vmatprep.subr.mxu0 0.0
  %6325 = vmatpush1.xpose.msra.mxu0 0.0
  %6326 = vmatprep.subr.mxu0 0.0
  %6327 = vmatpush1.xpose.msra.mxu0 0.0
  %6328 = vmatprep.subr.mxu0 0.0
  %6329 = vmatpush1.xpose.msra.mxu0 0.0
  %6330 = vmatprep.subr.mxu0 0.0
  %6331 = vmatpush1.xpose.msra.mxu0 0.0
  %6332 = vmatprep.subr.mxu0 0.0
  %6333 = vmatpush1.xpose.msra.mxu0 0.0
  %6334 = vmatprep.subr.mxu0 0.0
  %6335 = vmatpush1.xpose.msra.mxu0 0.0
  %6336 = vmatprep.mubr.f32.mxu0 0.0
  %6337 = vmatmul.mubr.f32.gmra.mrb[0].mxu0 %v6208
  %v6338 = vpop.f32.mrb[0].mxu0
  %v6339 = vadd.f32 %v6128, %v6338
  %v6340 = vpop.f32.mrb[0].mxu0
  %6341 = vmatprep.mubr.f32.mxu0 0.0
  %6342 = vmatmul.mubr.f32.gmra.mrb[0].mxu0 %v6210
  %v6343 = vpop.f32.mrb[0].mxu0
  %v6344 = vadd.f32 %v6129, %v6343
  %v6345 = vpop.f32.mrb[0].mxu0
  %6346 = vmatprep.mubr.f32.mxu0 0.0
  %6347 = vmatmul.mubr.f32.gmra.mrb[0].mxu0 %v6212
  %v6348 = vpop.f32.mrb[0].mxu0
  %v6349 = vadd.f32 %v6130, %v6348
  %v6350 = vpop.f32.mrb[0].mxu0
  %6351 = vmatprep.mubr.f32.mxu0 0.0
  %6352 = vmatmul.mubr.f32.gmra.mrb[0].mxu0 %v6214
  %v6353 = vpop.f32.mrb[0].mxu0
  %v6354 = vadd.f32 %v6131, %v6353
  %v6355 = vpop.f32.mrb[0].mxu0
  %6356 = vmatprep.mubr.f32.mxu0 0.0
  %6357 = vmatmul.mubr.f32.gmra.mrb[0].mxu0 %v6216
  %v6358 = vpop.f32.mrb[0].mxu0
  %v6359 = vadd.f32 %v6132, %v6358
  %v6360 = vpop.f32.mrb[0].mxu0
  %6361 = vmatprep.mubr.f32.mxu0 0.0
  %6362 = vmatmul.mubr.f32.gmra.mrb[0].mxu0 %v6218
  %v6363 = vpop.f32.mrb[0].mxu0
  %v6364 = vadd.f32 %v6133, %v6363
  %v6365 = vpop.f32.mrb[0].mxu0
  %6366 = vmatprep.mubr.f32.mxu0 0.0
  %6367 = vmatmul.mubr.f32.gmra.mrb[0].mxu0 %v6220
  %v6368 = vpop.f32.mrb[0].mxu0
  %v6369 = vadd.f32 %v6134, %v6368
  %v6370 = vpop.f32.mrb[0].mxu0
  %6371 = vmatprep.mubr.f32.mxu0 0.0
  %6372 = vmatmul.mubr.f32.gmra.mrb[0].mxu0 %v6222
  %v6373 = vpop.f32.mrb[0].mxu0
  %v6374 = vadd.f32 %v6135, %v6373
  %v6375 = vpop.f32.mrb[0].mxu0
  %6376 = vmatprep.mubr.f32.mxu0 0.0
  %6377 = vmatmul.mubr.f32.gmra.mrb[0].mxu0 %v6224
  %v6378 = vpop.f32.mrb[0].mxu0
  %v6379 = vadd.f32 %v6136, %v6378
  %v6380 = vpop.f32.mrb[0].mxu0
  %6381 = vmatprep.mubr.f32.mxu0 0.0
  %6382 = vmatmul.mubr.f32.gmra.mrb[0].mxu0 %v6226
  %v6383 = vpop.f32.mrb[0].mxu0
  %v6384 = vadd.f32 %v6137, %v6383
  %v6385 = vpop.f32.mrb[0].mxu0
  %6386 = vmatprep.mubr.f32.mxu0 0.0
  %6387 = vmatmul.mubr.f32.gmra.mrb[0].mxu0 %v6228
  %v6388 = vpop.f32.mrb[0].mxu0
  %v6389 = vadd.f32 %v6138, %v6388
  %v6390 = vpop.f32.mrb[0].mxu0
  %6391 = vmatprep.mubr.f32.mxu0 0.0
  %6392 = vmatmul.mubr.f32.gmra.mrb[0].mxu0 %v6230
  %v6393 = vpop.f32.mrb[0].mxu0
  %v6394 = vadd.f32 %v6139, %v6393
  %v6395 = vpop.f32.mrb[0].mxu0
  %6396 = vmatprep.mubr.f32.mxu0 0.0
  %6397 = vmatmul.mubr.f32.gmra.mrb[0].mxu0 %v6232
  %v6398 = vpop.f32.mrb[0].mxu0
  %v6399 = vadd.f32 %v6140, %v6398
  %v6400 = vpop.f32.mrb[0].mxu0
  %6401 = vmatprep.mubr.f32.mxu0 0.0
  %6402 = vmatmul.mubr.f32.gmra.mrb[0].mxu0 %v6234
  %v6403 = vpop.f32.mrb[0].mxu0
  %v6404 = vadd.f32 %v6141, %v6403
  %v6405 = vpop.f32.mrb[0].mxu0
  %6406 = vmatprep.mubr.f32.mxu0 0.0
  %6407 = vmatmul.mubr.f32.gmra.mrb[0].mxu0 %v6236
  %v6408 = vpop.f32.mrb[0].mxu0
  %v6409 = vadd.f32 %v6142, %v6408
  %v6410 = vpop.f32.mrb[0].mxu0
  %6411 = vmatprep.mubr.f32.mxu0 0.0
  %6412 = vmatmul.mubr.f32.gmra.mrb[0].mxu0 %v6238
  %v6413 = vpop.f32.mrb[0].mxu0
  %v6414 = vadd.f32 %v6143, %v6413
  %v6415 = vpop.f32.mrb[0].mxu0
  %6416 = vdwg.mxu0
  %6417 = vmax.xlane.f32.xlu0 %v6339
  %v6418 = vpop.xlane.xlu0 %6417
  %6419 = vmax.xlane.f32.xlu0 %v6344
  %v6420 = vpop.xlane.xlu0 %6419
  %6421 = vmax.xlane.f32.xlu0 %v6349
  %v6422 = vpop.xlane.xlu0 %6421
  %6423 = vmax.xlane.f32.xlu0 %v6354
  %v6424 = vpop.xlane.xlu0 %6423
  %6425 = vmax.xlane.f32.xlu0 %v6359
  %v6426 = vpop.xlane.xlu0 %6425
  %6427 = vmax.xlane.f32.xlu0 %v6364
  %v6428 = vpop.xlane.xlu0 %6427
  %6429 = vmax.xlane.f32.xlu0 %v6369
  %v6430 = vpop.xlane.xlu0 %6429
  %6431 = vmax.xlane.f32.xlu0 %v6374
  %v6432 = vpop.xlane.xlu0 %6431
  %6433 = vmax.xlane.f32.xlu0 %v6379
  %v6434 = vpop.xlane.xlu0 %6433
  %6435 = vmax.xlane.f32.xlu0 %v6384
  %v6436 = vpop.xlane.xlu0 %6435
  %6437 = vmax.xlane.f32.xlu0 %v6389
  %v6438 = vpop.xlane.xlu0 %6437
  %6439 = vmax.xlane.f32.xlu0 %v6394
  %v6440 = vpop.xlane.xlu0 %6439
  %6441 = vmax.xlane.f32.xlu0 %v6399
  %v6442 = vpop.xlane.xlu0 %6441
  %6443 = vmax.xlane.f32.xlu0 %v6404
  %v6444 = vpop.xlane.xlu0 %6443
  %6445 = vmax.xlane.f32.xlu0 %v6409
  %v6446 = vpop.xlane.xlu0 %6445
  %6447 = vmax.xlane.f32.xlu0 %v6414
  %v6448 = vpop.xlane.xlu0 %6447
  %v6449 = vsub.f32 %v6339, %v6418
  %v6450 = vsub.f32 %v6344, %v6420
  %v6451 = vsub.f32 %v6349, %v6422
  %v6452 = vsub.f32 %v6354, %v6424
  %v6453 = vsub.f32 %v6359, %v6426
  %v6454 = vsub.f32 %v6364, %v6428
  %v6455 = vsub.f32 %v6369, %v6430
  %v6456 = vsub.f32 %v6374, %v6432
  %v6457 = vsub.f32 %v6379, %v6434
  %v6458 = vsub.f32 %v6384, %v6436
  %v6459 = vsub.f32 %v6389, %v6438
  %v6460 = vsub.f32 %v6394, %v6440
  %v6461 = vsub.f32 %v6399, %v6442
  %v6462 = vsub.f32 %v6404, %v6444
  %v6463 = vsub.f32 %v6409, %v6446
  %v6464 = vsub.f32 %v6414, %v6448
  %v6465 = vmul.f32 %v6449, 1.442695
  %v6466 = vpow.pop %v6465
  %v6467 = vmul.f32 %v6450, 1.442695
  %v6468 = vpow.pop %v6467
  %v6469 = vmul.f32 %v6451, 1.442695
  %v6470 = vpow.pop %v6469
  %v6471 = vmul.f32 %v6452, 1.442695
  %v6472 = vpow.pop %v6471
  %v6473 = vmul.f32 %v6453, 1.442695
  %v6474 = vpow.pop %v6473
  %v6475 = vmul.f32 %v6454, 1.442695
  %v6476 = vpow.pop %v6475
  %v6477 = vmul.f32 %v6455, 1.442695
  %v6478 = vpow.pop %v6477
  %v6479 = vmul.f32 %v6456, 1.442695
  %v6480 = vpow.pop %v6479
  %v6481 = vmul.f32 %v6457, 1.442695
  %v6482 = vpow.pop %v6481
  %v6483 = vmul.f32 %v6458, 1.442695
  %v6484 = vpow.pop %v6483
  %v6485 = vmul.f32 %v6459, 1.442695
  %v6486 = vpow.pop %v6485
  %v6487 = vmul.f32 %v6460, 1.442695
  %v6488 = vpow.pop %v6487
  %v6489 = vmul.f32 %v6461, 1.442695
  %v6490 = vpow.pop %v6489
  %v6491 = vmul.f32 %v6462, 1.442695
  %v6492 = vpow.pop %v6491
  %v6493 = vmul.f32 %v6463, 1.442695
  %v6494 = vpow.pop %v6493
  %v6495 = vmul.f32 %v6464, 1.442695
  %v6496 = vpow.pop %v6495
  %6497 = vadd.xlane.f32.xlu0 %v6466
  %v6498 = vpop.xlane.xlu0 %6497
  %6499 = vadd.xlane.f32.xlu0 %v6468
  %v6500 = vpop.xlane.xlu0 %6499
  %6501 = vadd.xlane.f32.xlu0 %v6470
  %v6502 = vpop.xlane.xlu0 %6501
  %6503 = vadd.xlane.f32.xlu0 %v6472
  %v6504 = vpop.xlane.xlu0 %6503
  %6505 = vadd.xlane.f32.xlu0 %v6474
  %v6506 = vpop.xlane.xlu0 %6505
  %6507 = vadd.xlane.f32.xlu0 %v6476
  %v6508 = vpop.xlane.xlu0 %6507
  %6509 = vadd.xlane.f32.xlu0 %v6478
  %v6510 = vpop.xlane.xlu0 %6509
  %6511 = vadd.xlane.f32.xlu0 %v6480
  %v6512 = vpop.xlane.xlu0 %6511
  %6513 = vadd.xlane.f32.xlu0 %v6482
  %v6514 = vpop.xlane.xlu0 %6513
  %6515 = vadd.xlane.f32.xlu0 %v6484
  %v6516 = vpop.xlane.xlu0 %6515
  %6517 = vadd.xlane.f32.xlu0 %v6486
  %v6518 = vpop.xlane.xlu0 %6517
  %6519 = vadd.xlane.f32.xlu0 %v6488
  %v6520 = vpop.xlane.xlu0 %6519
  %6521 = vadd.xlane.f32.xlu0 %v6490
  %v6522 = vpop.xlane.xlu0 %6521
  %6523 = vadd.xlane.f32.xlu0 %v6492
  %v6524 = vpop.xlane.xlu0 %6523
  %6525 = vadd.xlane.f32.xlu0 %v6494
  %v6526 = vpop.xlane.xlu0 %6525
  %6527 = vadd.xlane.f32.xlu0 %v6496
  %v6528 = vpop.xlane.xlu0 %6527
  %v6529 = vrcp.pop %v6498
  %v6530 = vrcp.pop %v6500
  %v6531 = vrcp.pop %v6502
  %v6532 = vrcp.pop %v6504
  %v6533 = vrcp.pop %v6506
  %v6534 = vrcp.pop %v6508
  %v6535 = vrcp.pop %v6510
  %v6536 = vrcp.pop %v6512
  %v6537 = vrcp.pop %v6514
  %v6538 = vrcp.pop %v6516
  %v6539 = vrcp.pop %v6518
  %v6540 = vrcp.pop %v6520
  %v6541 = vrcp.pop %v6522
  %v6542 = vrcp.pop %v6524
  %v6543 = vrcp.pop %v6526
  %v6544 = vrcp.pop %v6528
  %v6545 = vmul.f32 %v6466, %v6529
  %v6546 = vmul.f32 %v6468, %v6530
  %v6547 = vmul.f32 %v6470, %v6531
  %v6548 = vmul.f32 %v6472, %v6532
  %v6549 = vmul.f32 %v6474, %v6533
  %v6550 = vmul.f32 %v6476, %v6534
  %v6551 = vmul.f32 %v6478, %v6535
  %v6552 = vmul.f32 %v6480, %v6536
  %v6553 = vmul.f32 %v6482, %v6537
  %v6554 = vmul.f32 %v6484, %v6538
  %v6555 = vmul.f32 %v6486, %v6539
  %v6556 = vmul.f32 %v6488, %v6540
  %v6557 = vmul.f32 %v6490, %v6541
  %v6558 = vmul.f32 %v6492, %v6542
  %v6559 = vmul.f32 %v6494, %v6543
  %v6560 = vmul.f32 %v6496, %v6544
  %6561 = vrot.lane.b32.xlu0 %v5403, 56
  %v6562 = vpop.permute.xlu0 %6561
  %6563 = vrot.lane.b32.xlu0 %v5408, 56
  %v6564 = vpop.permute.xlu0 %6563
  %6565 = vrot.lane.b32.xlu0 %v5413, 56
  %v6566 = vpop.permute.xlu0 %6565
  %6567 = vrot.lane.b32.xlu0 %v5418, 56
  %v6568 = vpop.permute.xlu0 %6567
  %6569 = vrot.lane.b32.xlu0 %v5423, 56
  %v6570 = vpop.permute.xlu0 %6569
  %6571 = vrot.lane.b32.xlu0 %v5428, 56
  %v6572 = vpop.permute.xlu0 %6571
  %6573 = vrot.lane.b32.xlu0 %v5433, 56
  %v6574 = vpop.permute.xlu0 %6573
  %6575 = vrot.lane.b32.xlu0 %v5438, 56
  %v6576 = vpop.permute.xlu0 %6575
  %6577 = vrot.lane.b32.xlu0 %v5443, 56
  %v6578 = vpop.permute.xlu0 %6577
  %6579 = vrot.lane.b32.xlu0 %v5448, 56
  %v6580 = vpop.permute.xlu0 %6579
  %6581 = vrot.lane.b32.xlu0 %v5453, 56
  %v6582 = vpop.permute.xlu0 %6581
  %6583 = vrot.lane.b32.xlu0 %v5458, 56
  %v6584 = vpop.permute.xlu0 %6583
  %6585 = vrot.lane.b32.xlu0 %v5463, 56
  %v6586 = vpop.permute.xlu0 %6585
  %6587 = vrot.lane.b32.xlu0 %v5468, 56
  %v6588 = vpop.permute.xlu0 %6587
  %6589 = vrot.lane.b32.xlu0 %v5473, 56
  %v6590 = vpop.permute.xlu0 %6589
  %6591 = vrot.lane.b32.xlu0 %v5478, 56
  %v6592 = vpop.permute.xlu0 %6591
  %6609 = vmatprep.subr.mxu0 0.0
  %6610 = vmatpush1.msra.mxu0 %v6562
  %6611 = vmatprep.subr.mxu0 0.0
  %6612 = vmatpush1.msra.mxu0 %v6564
  %6613 = vmatprep.subr.mxu0 0.0
  %6614 = vmatpush1.msra.mxu0 %v6566
  %6615 = vmatprep.subr.mxu0 0.0
  %6616 = vmatpush1.msra.mxu0 %v6568
  %6617 = vmatprep.subr.mxu0 0.0
  %6618 = vmatpush1.msra.mxu0 %v6570
  %6619 = vmatprep.subr.mxu0 0.0
  %6620 = vmatpush1.msra.mxu0 %v6572
  %6621 = vmatprep.subr.mxu0 0.0
  %6622 = vmatpush1.msra.mxu0 %v6574
  %6623 = vmatprep.subr.mxu0 0.0
  %6624 = vmatpush1.msra.mxu0 %v6576
  %6625 = vmatprep.subr.mxu0 0.0
  %6626 = vmatpush1.msra.mxu0 %v6578
  %6627 = vmatprep.subr.mxu0 0.0
  %6628 = vmatpush1.msra.mxu0 %v6580
  %6629 = vmatprep.subr.mxu0 0.0
  %6630 = vmatpush1.msra.mxu0 %v6582
  %6631 = vmatprep.subr.mxu0 0.0
  %6632 = vmatpush1.msra.mxu0 %v6584
  %6633 = vmatprep.subr.mxu0 0.0
  %6634 = vmatpush1.msra.mxu0 %v6586
  %6635 = vmatprep.subr.mxu0 0.0
  %6636 = vmatpush1.msra.mxu0 %v6588
  %6637 = vmatprep.subr.mxu0 0.0
  %6638 = vmatpush1.msra.mxu0 %v6590
  %6639 = vmatprep.subr.mxu0 0.0
  %6640 = vmatpush1.msra.mxu0 %v6592
  %6641 = vmatprep.subr.mxu0 0.0
  %6642 = vmatpush1.msra.mxu0 0.0
  %6643 = vmatprep.subr.mxu0 0.0
  %6644 = vmatpush1.msra.mxu0 0.0
  %6645 = vmatprep.subr.mxu0 0.0
  %6646 = vmatpush1.msra.mxu0 0.0
  %6647 = vmatprep.subr.mxu0 0.0
  %6648 = vmatpush1.msra.mxu0 0.0
  %6649 = vmatprep.subr.mxu0 0.0
  %6650 = vmatpush1.msra.mxu0 0.0
  %6651 = vmatprep.subr.mxu0 0.0
  %6652 = vmatpush1.msra.mxu0 0.0
  %6653 = vmatprep.subr.mxu0 0.0
  %6654 = vmatpush1.msra.mxu0 0.0
  %6655 = vmatprep.subr.mxu0 0.0
  %6656 = vmatpush1.msra.mxu0 0.0
  %6657 = vmatprep.subr.mxu0 0.0
  %6658 = vmatpush1.msra.mxu0 0.0
  %6659 = vmatprep.subr.mxu0 0.0
  %6660 = vmatpush1.msra.mxu0 0.0
  %6661 = vmatprep.subr.mxu0 0.0
  %6662 = vmatpush1.msra.mxu0 0.0
  %6663 = vmatprep.subr.mxu0 0.0
  %6664 = vmatpush1.msra.mxu0 0.0
  %6665 = vmatprep.subr.mxu0 0.0
  %6666 = vmatpush1.msra.mxu0 0.0
  %6667 = vmatprep.subr.mxu0 0.0
  %6668 = vmatpush1.msra.mxu0 0.0
  %6669 = vmatprep.subr.mxu0 0.0
  %6670 = vmatpush1.msra.mxu0 0.0
  %6671 = vmatprep.subr.mxu0 0.0
  %6672 = vmatpush1.msra.mxu0 0.0
  %6673 = vmatprep.mubr.f32.mxu0 0.0
  %6674 = vmatmul.mubr.f32.gmra.mrb[0].mxu0 %v6545
  %v6675 = vpop.f32.mrb[0].mxu0
  %v6676 = vadd.f32 0.0, %v6675
  %v6677 = vpop.f32.mrb[0].mxu0
  %6678 = vmatprep.mubr.f32.mxu0 0.0
  %6679 = vmatmul.mubr.f32.gmra.mrb[0].mxu0 %v6546
  %v6680 = vpop.f32.mrb[0].mxu0
  %v6681 = vadd.f32 0.0, %v6680
  %v6682 = vpop.f32.mrb[0].mxu0
  %6683 = vmatprep.mubr.f32.mxu0 0.0
  %6684 = vmatmul.mubr.f32.gmra.mrb[0].mxu0 %v6547
  %v6685 = vpop.f32.mrb[0].mxu0
  %v6686 = vadd.f32 0.0, %v6685
  %v6687 = vpop.f32.mrb[0].mxu0
  %6688 = vmatprep.mubr.f32.mxu0 0.0
  %6689 = vmatmul.mubr.f32.gmra.mrb[0].mxu0 %v6548
  %v6690 = vpop.f32.mrb[0].mxu0
  %v6691 = vadd.f32 0.0, %v6690
  %v6692 = vpop.f32.mrb[0].mxu0
  %6693 = vmatprep.mubr.f32.mxu0 0.0
  %6694 = vmatmul.mubr.f32.gmra.mrb[0].mxu0 %v6549
  %v6695 = vpop.f32.mrb[0].mxu0
  %v6696 = vadd.f32 0.0, %v6695
  %v6697 = vpop.f32.mrb[0].mxu0
  %6698 = vmatprep.mubr.f32.mxu0 0.0
  %6699 = vmatmul.mubr.f32.gmra.mrb[0].mxu0 %v6550
  %v6700 = vpop.f32.mrb[0].mxu0
  %v6701 = vadd.f32 0.0, %v6700
  %v6702 = vpop.f32.mrb[0].mxu0
  %6703 = vmatprep.mubr.f32.mxu0 0.0
  %6704 = vmatmul.mubr.f32.gmra.mrb[0].mxu0 %v6551
  %v6705 = vpop.f32.mrb[0].mxu0
  %v6706 = vadd.f32 0.0, %v6705
  %v6707 = vpop.f32.mrb[0].mxu0
  %6708 = vmatprep.mubr.f32.mxu0 0.0
  %6709 = vmatmul.mubr.f32.gmra.mrb[0].mxu0 %v6552
  %v6710 = vpop.f32.mrb[0].mxu0
  %v6711 = vadd.f32 0.0, %v6710
  %v6712 = vpop.f32.mrb[0].mxu0
  %6713 = vmatprep.mubr.f32.mxu0 0.0
  %6714 = vmatmul.mubr.f32.gmra.mrb[0].mxu0 %v6553
  %v6715 = vpop.f32.mrb[0].mxu0
  %v6716 = vadd.f32 0.0, %v6715
  %v6717 = vpop.f32.mrb[0].mxu0
  %6718 = vmatprep.mubr.f32.mxu0 0.0
  %6719 = vmatmul.mubr.f32.gmra.mrb[0].mxu0 %v6554
  %v6720 = vpop.f32.mrb[0].mxu0
  %v6721 = vadd.f32 0.0, %v6720
  %v6722 = vpop.f32.mrb[0].mxu0
  %6723 = vmatprep.mubr.f32.mxu0 0.0
  %6724 = vmatmul.mubr.f32.gmra.mrb[0].mxu0 %v6555
  %v6725 = vpop.f32.mrb[0].mxu0
  %v6726 = vadd.f32 0.0, %v6725
  %v6727 = vpop.f32.mrb[0].mxu0
  %6728 = vmatprep.mubr.f32.mxu0 0.0
  %6729 = vmatmul.mubr.f32.gmra.mrb[0].mxu0 %v6556
  %v6730 = vpop.f32.mrb[0].mxu0
  %v6731 = vadd.f32 0.0, %v6730
  %v6732 = vpop.f32.mrb[0].mxu0
  %6733 = vmatprep.mubr.f32.mxu0 0.0
  %6734 = vmatmul.mubr.f32.gmra.mrb[0].mxu0 %v6557
  %v6735 = vpop.f32.mrb[0].mxu0
  %v6736 = vadd.f32 0.0, %v6735
  %v6737 = vpop.f32.mrb[0].mxu0
  %6738 = vmatprep.mubr.f32.mxu0 0.0
  %6739 = vmatmul.mubr.f32.gmra.mrb[0].mxu0 %v6558
  %v6740 = vpop.f32.mrb[0].mxu0
  %v6741 = vadd.f32 0.0, %v6740
  %v6742 = vpop.f32.mrb[0].mxu0
  %6743 = vmatprep.mubr.f32.mxu0 0.0
  %6744 = vmatmul.mubr.f32.gmra.mrb[0].mxu0 %v6559
  %v6745 = vpop.f32.mrb[0].mxu0
  %v6746 = vadd.f32 0.0, %v6745
  %v6747 = vpop.f32.mrb[0].mxu0
  %6748 = vmatprep.mubr.f32.mxu0 0.0
  %6749 = vmatmul.mubr.f32.gmra.mrb[0].mxu0 %v6560
  %v6750 = vpop.f32.mrb[0].mxu0
  %v6751 = vadd.f32 0.0, %v6750
  %v6752 = vpop.f32.mrb[0].mxu0
  %6753 = vdwg.mxu0
  %v6755 = vsel %vm646, %v6676, 0
  %v6758 = vsel %vm646, %v6681, 0
  %v6761 = vsel %vm646, %v6686, 0
  %v6764 = vsel %vm646, %v6691, 0
  %v6767 = vsel %vm646, %v6696, 0
  %v6770 = vsel %vm646, %v6701, 0
  %v6773 = vsel %vm646, %v6706, 0
  %v6776 = vsel %vm646, %v6711, 0
  %v6779 = vsel %vm646, %v6716, 0
  %v6782 = vsel %vm646, %v6721, 0
  %v6785 = vsel %vm646, %v6726, 0
  %v6788 = vsel %vm646, %v6731, 0
  %v6791 = vsel %vm646, %v6736, 0
  %v6794 = vsel %vm646, %v6741, 0
  %v6797 = vsel %vm646, %v6746, 0
  %v6800 = vsel %vm646, %v6751, 0
  %6802 = vmatprep.subr.mxu0 0.0
  %6803 = vmatpush1.msra.mxu0 %v5482
  %6804 = vmatprep.subr.mxu0 0.0
  %6805 = vmatpush1.msra.mxu0 0.0
  %6806 = vmatprep.subr.mxu0 0.0
  %6807 = vmatpush1.msra.mxu0 0.0
  %6808 = vmatprep.subr.mxu0 0.0
  %6809 = vmatpush1.msra.mxu0 0.0
  %6810 = vmatprep.subr.mxu0 0.0
  %6811 = vmatpush1.msra.mxu0 0.0
  %6812 = vmatprep.subr.mxu0 0.0
  %6813 = vmatpush1.msra.mxu0 0.0
  %6814 = vmatprep.subr.mxu0 0.0
  %6815 = vmatpush1.msra.mxu0 0.0
  %6816 = vmatprep.subr.mxu0 0.0
  %6817 = vmatpush1.msra.mxu0 0.0
  %6818 = vmatprep.subr.mxu0 0.0
  %6819 = vmatpush1.msra.mxu0 0.0
  %6820 = vmatprep.subr.mxu0 0.0
  %6821 = vmatpush1.msra.mxu0 0.0
  %6822 = vmatprep.subr.mxu0 0.0
  %6823 = vmatpush1.msra.mxu0 0.0
  %6824 = vmatprep.subr.mxu0 0.0
  %6825 = vmatpush1.msra.mxu0 0.0
  %6826 = vmatprep.subr.mxu0 0.0
  %6827 = vmatpush1.msra.mxu0 0.0
  %6828 = vmatprep.subr.mxu0 0.0
  %6829 = vmatpush1.msra.mxu0 0.0
  %6830 = vmatprep.subr.mxu0 0.0
  %6831 = vmatpush1.msra.mxu0 0.0
  %6832 = vmatprep.subr.mxu0 0.0
  %6833 = vmatpush1.msra.mxu0 0.0
  %6834 = vmatprep.subr.mxu0 0.0
  %6835 = vmatpush1.msra.mxu0 0.0
  %6836 = vmatprep.subr.mxu0 0.0
  %6837 = vmatpush1.msra.mxu0 0.0
  %6838 = vmatprep.subr.mxu0 0.0
  %6839 = vmatpush1.msra.mxu0 0.0
  %6840 = vmatprep.subr.mxu0 0.0
  %6841 = vmatpush1.msra.mxu0 0.0
  %6842 = vmatprep.subr.mxu0 0.0
  %6843 = vmatpush1.msra.mxu0 0.0
  %6844 = vmatprep.subr.mxu0 0.0
  %6845 = vmatpush1.msra.mxu0 0.0
  %6846 = vmatprep.subr.mxu0 0.0
  %6847 = vmatpush1.msra.mxu0 0.0
  %6848 = vmatprep.subr.mxu0 0.0
  %6849 = vmatpush1.msra.mxu0 0.0
  %6850 = vmatprep.subr.mxu0 0.0
  %6851 = vmatpush1.msra.mxu0 0.0
  %6852 = vmatprep.subr.mxu0 0.0
  %6853 = vmatpush1.msra.mxu0 0.0
  %6854 = vmatprep.subr.mxu0 0.0
  %6855 = vmatpush1.msra.mxu0 0.0
  %6856 = vmatprep.subr.mxu0 0.0
  %6857 = vmatpush1.msra.mxu0 0.0
  %6858 = vmatprep.subr.mxu0 0.0
  %6859 = vmatpush1.msra.mxu0 0.0
  %6860 = vmatprep.subr.mxu0 0.0
  %6861 = vmatpush1.msra.mxu0 0.0
  %6862 = vmatprep.subr.mxu0 0.0
  %6863 = vmatpush1.msra.mxu0 0.0
  %6864 = vmatprep.subr.mxu0 0.0
  %6865 = vmatpush1.msra.mxu0 0.0
  %6866 = vmatprep.mubr.f32.mxu0 0.0
  %6867 = vmatmul.mubr.f32.gmra.mrb[0].mxu0 %v6755
  %v6868 = vpop.f32.mrb[0].mxu0
  %v6869 = vadd.f32 0.0, %v6868
  %v6870 = vpop.f32.mrb[0].mxu0
  %6871 = vmatprep.mubr.f32.mxu0 0.0
  %6872 = vmatmul.mubr.f32.gmra.mrb[0].mxu0 %v6758
  %v6873 = vpop.f32.mrb[0].mxu0
  %v6874 = vadd.f32 0.0, %v6873
  %v6875 = vpop.f32.mrb[0].mxu0
  %6876 = vmatprep.mubr.f32.mxu0 0.0
  %6877 = vmatmul.mubr.f32.gmra.mrb[0].mxu0 %v6761
  %v6878 = vpop.f32.mrb[0].mxu0
  %v6879 = vadd.f32 0.0, %v6878
  %v6880 = vpop.f32.mrb[0].mxu0
  %6881 = vmatprep.mubr.f32.mxu0 0.0
  %6882 = vmatmul.mubr.f32.gmra.mrb[0].mxu0 %v6764
  %v6883 = vpop.f32.mrb[0].mxu0
  %v6884 = vadd.f32 0.0, %v6883
  %v6885 = vpop.f32.mrb[0].mxu0
  %6886 = vmatprep.mubr.f32.mxu0 0.0
  %6887 = vmatmul.mubr.f32.gmra.mrb[0].mxu0 %v6767
  %v6888 = vpop.f32.mrb[0].mxu0
  %v6889 = vadd.f32 0.0, %v6888
  %v6890 = vpop.f32.mrb[0].mxu0
  %6891 = vmatprep.mubr.f32.mxu0 0.0
  %6892 = vmatmul.mubr.f32.gmra.mrb[0].mxu0 %v6770
  %v6893 = vpop.f32.mrb[0].mxu0
  %v6894 = vadd.f32 0.0, %v6893
  %v6895 = vpop.f32.mrb[0].mxu0
  %6896 = vmatprep.mubr.f32.mxu0 0.0
  %6897 = vmatmul.mubr.f32.gmra.mrb[0].mxu0 %v6773
  %v6898 = vpop.f32.mrb[0].mxu0
  %v6899 = vadd.f32 0.0, %v6898
  %v6900 = vpop.f32.mrb[0].mxu0
  %6901 = vmatprep.mubr.f32.mxu0 0.0
  %6902 = vmatmul.mubr.f32.gmra.mrb[0].mxu0 %v6776
  %v6903 = vpop.f32.mrb[0].mxu0
  %v6904 = vadd.f32 0.0, %v6903
  %v6905 = vpop.f32.mrb[0].mxu0
  %6906 = vmatprep.mubr.f32.mxu0 0.0
  %6907 = vmatmul.mubr.f32.gmra.mrb[0].mxu0 %v6779
  %v6908 = vpop.f32.mrb[0].mxu0
  %v6909 = vadd.f32 0.0, %v6908
  %v6910 = vpop.f32.mrb[0].mxu0
  %6911 = vmatprep.mubr.f32.mxu0 0.0
  %6912 = vmatmul.mubr.f32.gmra.mrb[0].mxu0 %v6782
  %v6913 = vpop.f32.mrb[0].mxu0
  %v6914 = vadd.f32 0.0, %v6913
  %v6915 = vpop.f32.mrb[0].mxu0
  %6916 = vmatprep.mubr.f32.mxu0 0.0
  %6917 = vmatmul.mubr.f32.gmra.mrb[0].mxu0 %v6785
  %v6918 = vpop.f32.mrb[0].mxu0
  %v6919 = vadd.f32 0.0, %v6918
  %v6920 = vpop.f32.mrb[0].mxu0
  %6921 = vmatprep.mubr.f32.mxu0 0.0
  %6922 = vmatmul.mubr.f32.gmra.mrb[0].mxu0 %v6788
  %v6923 = vpop.f32.mrb[0].mxu0
  %v6924 = vadd.f32 0.0, %v6923
  %v6925 = vpop.f32.mrb[0].mxu0
  %6926 = vmatprep.mubr.f32.mxu0 0.0
  %6927 = vmatmul.mubr.f32.gmra.mrb[0].mxu0 %v6791
  %v6928 = vpop.f32.mrb[0].mxu0
  %v6929 = vadd.f32 0.0, %v6928
  %v6930 = vpop.f32.mrb[0].mxu0
  %6931 = vmatprep.mubr.f32.mxu0 0.0
  %6932 = vmatmul.mubr.f32.gmra.mrb[0].mxu0 %v6794
  %v6933 = vpop.f32.mrb[0].mxu0
  %v6934 = vadd.f32 0.0, %v6933
  %v6935 = vpop.f32.mrb[0].mxu0
  %6936 = vmatprep.mubr.f32.mxu0 0.0
  %6937 = vmatmul.mubr.f32.gmra.mrb[0].mxu0 %v6797
  %v6938 = vpop.f32.mrb[0].mxu0
  %v6939 = vadd.f32 0.0, %v6938
  %v6940 = vpop.f32.mrb[0].mxu0
  %6941 = vmatprep.mubr.f32.mxu0 0.0
  %6942 = vmatmul.mubr.f32.gmra.mrb[0].mxu0 %v6800
  %v6943 = vpop.f32.mrb[0].mxu0
  %v6944 = vadd.f32 0.0, %v6943
  %v6945 = vpop.f32.mrb[0].mxu0
  %6946 = vdwg.mxu0
  %v6948 = vsel %vm646, %v6049, 0
  %v6951 = vsel %vm646, %v6054, 0
  %v6954 = vsel %vm646, %v6059, 0
  %v6957 = vsel %vm646, %v6064, 0
  %v6960 = vsel %vm646, %v6069, 0
  %v6963 = vsel %vm646, %v6074, 0
  %v6966 = vsel %vm646, %v6079, 0
  %v6969 = vsel %vm646, %v6084, 0
  %v6972 = vsel %vm646, %v6089, 0
  %v6975 = vsel %vm646, %v6094, 0
  %v6978 = vsel %vm646, %v6099, 0
  %v6981 = vsel %vm646, %v6104, 0
  %v6984 = vsel %vm646, %v6109, 0
  %v6987 = vsel %vm646, %v6114, 0
  %v6990 = vsel %vm646, %v6119, 0
  %v6993 = vsel %vm646, %v6124, 0
  %6995 = vmatprep.subr.mxu0 0.0
  %6996 = vmatpush1.msra.mxu0 %v5481
  %6997 = vmatprep.subr.mxu0 0.0
  %6998 = vmatpush1.msra.mxu0 0.0
  %6999 = vmatprep.subr.mxu0 0.0
  %7000 = vmatpush1.msra.mxu0 0.0
  %7001 = vmatprep.subr.mxu0 0.0
  %7002 = vmatpush1.msra.mxu0 0.0
  %7003 = vmatprep.subr.mxu0 0.0
  %7004 = vmatpush1.msra.mxu0 0.0
  %7005 = vmatprep.subr.mxu0 0.0
  %7006 = vmatpush1.msra.mxu0 0.0
  %7007 = vmatprep.subr.mxu0 0.0
  %7008 = vmatpush1.msra.mxu0 0.0
  %7009 = vmatprep.subr.mxu0 0.0
  %7010 = vmatpush1.msra.mxu0 0.0
  %7011 = vmatprep.subr.mxu0 0.0
  %7012 = vmatpush1.msra.mxu0 0.0
  %7013 = vmatprep.subr.mxu0 0.0
  %7014 = vmatpush1.msra.mxu0 0.0
  %7015 = vmatprep.subr.mxu0 0.0
  %7016 = vmatpush1.msra.mxu0 0.0
  %7017 = vmatprep.subr.mxu0 0.0
  %7018 = vmatpush1.msra.mxu0 0.0
  %7019 = vmatprep.subr.mxu0 0.0
  %7020 = vmatpush1.msra.mxu0 0.0
  %7021 = vmatprep.subr.mxu0 0.0
  %7022 = vmatpush1.msra.mxu0 0.0
  %7023 = vmatprep.subr.mxu0 0.0
  %7024 = vmatpush1.msra.mxu0 0.0
  %7025 = vmatprep.subr.mxu0 0.0
  %7026 = vmatpush1.msra.mxu0 0.0
  %7027 = vmatprep.subr.mxu0 0.0
  %7028 = vmatpush1.msra.mxu0 0.0
  %7029 = vmatprep.subr.mxu0 0.0
  %7030 = vmatpush1.msra.mxu0 0.0
  %7031 = vmatprep.subr.mxu0 0.0
  %7032 = vmatpush1.msra.mxu0 0.0
  %7033 = vmatprep.subr.mxu0 0.0
  %7034 = vmatpush1.msra.mxu0 0.0
  %7035 = vmatprep.subr.mxu0 0.0
  %7036 = vmatpush1.msra.mxu0 0.0
  %7037 = vmatprep.subr.mxu0 0.0
  %7038 = vmatpush1.msra.mxu0 0.0
  %7039 = vmatprep.subr.mxu0 0.0
  %7040 = vmatpush1.msra.mxu0 0.0
  %7041 = vmatprep.subr.mxu0 0.0
  %7042 = vmatpush1.msra.mxu0 0.0
  %7043 = vmatprep.subr.mxu0 0.0
  %7044 = vmatpush1.msra.mxu0 0.0
  %7045 = vmatprep.subr.mxu0 0.0
  %7046 = vmatpush1.msra.mxu0 0.0
  %7047 = vmatprep.subr.mxu0 0.0
  %7048 = vmatpush1.msra.mxu0 0.0
  %7049 = vmatprep.subr.mxu0 0.0
  %7050 = vmatpush1.msra.mxu0 0.0
  %7051 = vmatprep.subr.mxu0 0.0
  %7052 = vmatpush1.msra.mxu0 0.0
  %7053 = vmatprep.subr.mxu0 0.0
  %7054 = vmatpush1.msra.mxu0 0.0
  %7055 = vmatprep.subr.mxu0 0.0
  %7056 = vmatpush1.msra.mxu0 0.0
  %7057 = vmatprep.subr.mxu0 0.0
  %7058 = vmatpush1.msra.mxu0 0.0
  %7059 = vmatprep.mubr.f32.mxu0 0.0
  %7060 = vmatmul.mubr.f32.gmra.mrb[0].mxu0 %v6948
  %v7061 = vpop.f32.mrb[0].mxu0
  %v7062 = vadd.f32 %v6869, %v7061
  %v7063 = vpop.f32.mrb[0].mxu0
  %7064 = vmatprep.mubr.f32.mxu0 0.0
  %7065 = vmatmul.mubr.f32.gmra.mrb[0].mxu0 %v6951
  %v7066 = vpop.f32.mrb[0].mxu0
  %v7067 = vadd.f32 %v6874, %v7066
  %v7068 = vpop.f32.mrb[0].mxu0
  %7069 = vmatprep.mubr.f32.mxu0 0.0
  %7070 = vmatmul.mubr.f32.gmra.mrb[0].mxu0 %v6954
  %v7071 = vpop.f32.mrb[0].mxu0
  %v7072 = vadd.f32 %v6879, %v7071
  %v7073 = vpop.f32.mrb[0].mxu0
  %7074 = vmatprep.mubr.f32.mxu0 0.0
  %7075 = vmatmul.mubr.f32.gmra.mrb[0].mxu0 %v6957
  %v7076 = vpop.f32.mrb[0].mxu0
  %v7077 = vadd.f32 %v6884, %v7076
  %v7078 = vpop.f32.mrb[0].mxu0
  %7079 = vmatprep.mubr.f32.mxu0 0.0
  %7080 = vmatmul.mubr.f32.gmra.mrb[0].mxu0 %v6960
  %v7081 = vpop.f32.mrb[0].mxu0
  %v7082 = vadd.f32 %v6889, %v7081
  %v7083 = vpop.f32.mrb[0].mxu0
  %7084 = vmatprep.mubr.f32.mxu0 0.0
  %7085 = vmatmul.mubr.f32.gmra.mrb[0].mxu0 %v6963
  %v7086 = vpop.f32.mrb[0].mxu0
  %v7087 = vadd.f32 %v6894, %v7086
  %v7088 = vpop.f32.mrb[0].mxu0
  %7089 = vmatprep.mubr.f32.mxu0 0.0
  %7090 = vmatmul.mubr.f32.gmra.mrb[0].mxu0 %v6966
  %v7091 = vpop.f32.mrb[0].mxu0
  %v7092 = vadd.f32 %v6899, %v7091
  %v7093 = vpop.f32.mrb[0].mxu0
  %7094 = vmatprep.mubr.f32.mxu0 0.0
  %7095 = vmatmul.mubr.f32.gmra.mrb[0].mxu0 %v6969
  %v7096 = vpop.f32.mrb[0].mxu0
  %v7097 = vadd.f32 %v6904, %v7096
  %v7098 = vpop.f32.mrb[0].mxu0
  %7099 = vmatprep.mubr.f32.mxu0 0.0
  %7100 = vmatmul.mubr.f32.gmra.mrb[0].mxu0 %v6972
  %v7101 = vpop.f32.mrb[0].mxu0
  %v7102 = vadd.f32 %v6909, %v7101
  %v7103 = vpop.f32.mrb[0].mxu0
  %7104 = vmatprep.mubr.f32.mxu0 0.0
  %7105 = vmatmul.mubr.f32.gmra.mrb[0].mxu0 %v6975
  %v7106 = vpop.f32.mrb[0].mxu0
  %v7107 = vadd.f32 %v6914, %v7106
  %v7108 = vpop.f32.mrb[0].mxu0
  %7109 = vmatprep.mubr.f32.mxu0 0.0
  %7110 = vmatmul.mubr.f32.gmra.mrb[0].mxu0 %v6978
  %v7111 = vpop.f32.mrb[0].mxu0
  %v7112 = vadd.f32 %v6919, %v7111
  %v7113 = vpop.f32.mrb[0].mxu0
  %7114 = vmatprep.mubr.f32.mxu0 0.0
  %7115 = vmatmul.mubr.f32.gmra.mrb[0].mxu0 %v6981
  %v7116 = vpop.f32.mrb[0].mxu0
  %v7117 = vadd.f32 %v6924, %v7116
  %v7118 = vpop.f32.mrb[0].mxu0
  %7119 = vmatprep.mubr.f32.mxu0 0.0
  %7120 = vmatmul.mubr.f32.gmra.mrb[0].mxu0 %v6984
  %v7121 = vpop.f32.mrb[0].mxu0
  %v7122 = vadd.f32 %v6929, %v7121
  %v7123 = vpop.f32.mrb[0].mxu0
  %7124 = vmatprep.mubr.f32.mxu0 0.0
  %7125 = vmatmul.mubr.f32.gmra.mrb[0].mxu0 %v6987
  %v7126 = vpop.f32.mrb[0].mxu0
  %v7127 = vadd.f32 %v6934, %v7126
  %v7128 = vpop.f32.mrb[0].mxu0
  %7129 = vmatprep.mubr.f32.mxu0 0.0
  %7130 = vmatmul.mubr.f32.gmra.mrb[0].mxu0 %v6990
  %v7131 = vpop.f32.mrb[0].mxu0
  %v7132 = vadd.f32 %v6939, %v7131
  %v7133 = vpop.f32.mrb[0].mxu0
  %7134 = vmatprep.mubr.f32.mxu0 0.0
  %7135 = vmatmul.mubr.f32.gmra.mrb[0].mxu0 %v6993
  %v7136 = vpop.f32.mrb[0].mxu0
  %v7137 = vadd.f32 %v6944, %v7136
  %v7138 = vpop.f32.mrb[0].mxu0
  %7139 = vdwg.mxu0
  %s7140 = scalar_lea.vmem %s14, 256
  %v7141 = vld [vmem:[%s7140] sm:$0xff]
  %v7142 = vld [vmem:[%s7140 + $0x8] sm:$0xff]
  %v7143 = vld [vmem:[%s7140 + $0x10] sm:$0xff]
  %v7144 = vld [vmem:[%s7140 + $0x18] sm:$0xff]
  %v7145 = vld [vmem:[%s7140 + $0x20] sm:$0xff]
  %v7146 = vld [vmem:[%s7140 + $0x28] sm:$0xff]
  %v7147 = vld [vmem:[%s7140 + $0x30] sm:$0xff]
  %v7148 = vld [vmem:[%s7140 + $0x38] sm:$0xff]
  %v7149 = vld [vmem:[%s7140 + $0x40] sm:$0xff]
  %v7150 = vld [vmem:[%s7140 + $0x48] sm:$0xff]
  %v7151 = vld [vmem:[%s7140 + $0x50] sm:$0xff]
  %v7152 = vld [vmem:[%s7140 + $0x58] sm:$0xff]
  %v7153 = vld [vmem:[%s7140 + $0x60] sm:$0xff]
  %v7154 = vld [vmem:[%s7140 + $0x68] sm:$0xff]
  %v7155 = vld [vmem:[%s7140 + $0x70] sm:$0xff]
  %v7156 = vld [vmem:[%s7140 + $0x78] sm:$0xff]
  %7157 = vrot.lane.b32.xlu0 %v5485, 112
  %v7158 = vpop.permute.xlu0 %7157
  %7159 = vrot.lane.b32.xlu0 %v5486, 112
  %v7160 = vpop.permute.xlu0 %7159
  %7161 = vrot.lane.b32.xlu0 %v5487, 112
  %v7162 = vpop.permute.xlu0 %7161
  %7163 = vrot.lane.b32.xlu0 %v5488, 112
  %v7164 = vpop.permute.xlu0 %7163
  %7165 = vrot.lane.b32.xlu0 %v5489, 112
  %v7166 = vpop.permute.xlu0 %7165
  %7167 = vrot.lane.b32.xlu0 %v5490, 112
  %v7168 = vpop.permute.xlu0 %7167
  %7169 = vrot.lane.b32.xlu0 %v5491, 112
  %v7170 = vpop.permute.xlu0 %7169
  %7171 = vrot.lane.b32.xlu0 %v5492, 112
  %v7172 = vpop.permute.xlu0 %7171
  %7173 = vrot.lane.b32.xlu0 %v5493, 112
  %v7174 = vpop.permute.xlu0 %7173
  %7175 = vrot.lane.b32.xlu0 %v5494, 112
  %v7176 = vpop.permute.xlu0 %7175
  %7177 = vrot.lane.b32.xlu0 %v5495, 112
  %v7178 = vpop.permute.xlu0 %7177
  %7179 = vrot.lane.b32.xlu0 %v5496, 112
  %v7180 = vpop.permute.xlu0 %7179
  %7181 = vrot.lane.b32.xlu0 %v5497, 112
  %v7182 = vpop.permute.xlu0 %7181
  %7183 = vrot.lane.b32.xlu0 %v5498, 112
  %v7184 = vpop.permute.xlu0 %7183
  %7185 = vrot.lane.b32.xlu0 %v5499, 112
  %v7186 = vpop.permute.xlu0 %7185
  %7187 = vrot.lane.b32.xlu0 %v5500, 112
  %v7188 = vpop.permute.xlu0 %7187
  %7189 = vrot.lane.b32.xlu0 %v5403, 80
  %v7190 = vpop.permute.xlu0 %7189
  %7191 = vrot.lane.b32.xlu0 %v5408, 80
  %v7192 = vpop.permute.xlu0 %7191
  %7193 = vrot.lane.b32.xlu0 %v5413, 80
  %v7194 = vpop.permute.xlu0 %7193
  %7195 = vrot.lane.b32.xlu0 %v5418, 80
  %v7196 = vpop.permute.xlu0 %7195
  %7197 = vrot.lane.b32.xlu0 %v5423, 80
  %v7198 = vpop.permute.xlu0 %7197
  %7199 = vrot.lane.b32.xlu0 %v5428, 80
  %v7200 = vpop.permute.xlu0 %7199
  %7201 = vrot.lane.b32.xlu0 %v5433, 80
  %v7202 = vpop.permute.xlu0 %7201
  %7203 = vrot.lane.b32.xlu0 %v5438, 80
  %v7204 = vpop.permute.xlu0 %7203
  %7205 = vrot.lane.b32.xlu0 %v5443, 80
  %v7206 = vpop.permute.xlu0 %7205
  %7207 = vrot.lane.b32.xlu0 %v5448, 80
  %v7208 = vpop.permute.xlu0 %7207
  %7209 = vrot.lane.b32.xlu0 %v5453, 80
  %v7210 = vpop.permute.xlu0 %7209
  %7211 = vrot.lane.b32.xlu0 %v5458, 80
  %v7212 = vpop.permute.xlu0 %7211
  %7213 = vrot.lane.b32.xlu0 %v5463, 80
  %v7214 = vpop.permute.xlu0 %7213
  %7215 = vrot.lane.b32.xlu0 %v5468, 80
  %v7216 = vpop.permute.xlu0 %7215
  %7217 = vrot.lane.b32.xlu0 %v5473, 80
  %v7218 = vpop.permute.xlu0 %7217
  %7219 = vrot.lane.b32.xlu0 %v5478, 80
  %v7220 = vpop.permute.xlu0 %7219
  %v7221 = vsel %vm646, %v7158, 0
  %v7223 = vsel %vm646, %v7160, 0
  %v7225 = vsel %vm646, %v7162, 0
  %v7227 = vsel %vm646, %v7164, 0
  %v7229 = vsel %vm646, %v7166, 0
  %v7231 = vsel %vm646, %v7168, 0
  %v7233 = vsel %vm646, %v7170, 0
  %v7235 = vsel %vm646, %v7172, 0
  %v7237 = vsel %vm646, %v7174, 0
  %v7239 = vsel %vm646, %v7176, 0
  %v7241 = vsel %vm646, %v7178, 0
  %v7243 = vsel %vm646, %v7180, 0
  %v7245 = vsel %vm646, %v7182, 0
  %v7247 = vsel %vm646, %v7184, 0
  %v7249 = vsel %vm646, %v7186, 0
  %v7251 = vsel %vm646, %v7188, 0
  %v7253 = vsel %vm646, %v7190, 0
  %v7255 = vsel %vm646, %v7192, 0
  %v7257 = vsel %vm646, %v7194, 0
  %v7259 = vsel %vm646, %v7196, 0
  %v7261 = vsel %vm646, %v7198, 0
  %v7263 = vsel %vm646, %v7200, 0
  %v7265 = vsel %vm646, %v7202, 0
  %v7267 = vsel %vm646, %v7204, 0
  %v7269 = vsel %vm646, %v7206, 0
  %v7271 = vsel %vm646, %v7208, 0
  %v7273 = vsel %vm646, %v7210, 0
  %v7275 = vsel %vm646, %v7212, 0
  %v7277 = vsel %vm646, %v7214, 0
  %v7279 = vsel %vm646, %v7216, 0
  %v7281 = vsel %vm646, %v7218, 0
  %v7283 = vsel %vm646, %v7220, 0
  %7285 = vmatprep.subr.mxu0 0.0
  %7286 = vmatpush1.xpose.msra.mxu0 %v7253
  %7287 = vmatprep.subr.mxu0 0.0
  %7288 = vmatpush1.xpose.msra.mxu0 %v7255
  %7289 = vmatprep.subr.mxu0 0.0
  %7290 = vmatpush1.xpose.msra.mxu0 %v7257
  %7291 = vmatprep.subr.mxu0 0.0
  %7292 = vmatpush1.xpose.msra.mxu0 %v7259
  %7293 = vmatprep.subr.mxu0 0.0
  %7294 = vmatpush1.xpose.msra.mxu0 %v7261
  %7295 = vmatprep.subr.mxu0 0.0
  %7296 = vmatpush1.xpose.msra.mxu0 %v7263
  %7297 = vmatprep.subr.mxu0 0.0
  %7298 = vmatpush1.xpose.msra.mxu0 %v7265
  %7299 = vmatprep.subr.mxu0 0.0
  %7300 = vmatpush1.xpose.msra.mxu0 %v7267
  %7301 = vmatprep.subr.mxu0 0.0
  %7302 = vmatpush1.xpose.msra.mxu0 %v7269
  %7303 = vmatprep.subr.mxu0 0.0
  %7304 = vmatpush1.xpose.msra.mxu0 %v7271
  %7305 = vmatprep.subr.mxu0 0.0
  %7306 = vmatpush1.xpose.msra.mxu0 %v7273
  %7307 = vmatprep.subr.mxu0 0.0
  %7308 = vmatpush1.xpose.msra.mxu0 %v7275
  %7309 = vmatprep.subr.mxu0 0.0
  %7310 = vmatpush1.xpose.msra.mxu0 %v7277
  %7311 = vmatprep.subr.mxu0 0.0
  %7312 = vmatpush1.xpose.msra.mxu0 %v7279
  %7313 = vmatprep.subr.mxu0 0.0
  %7314 = vmatpush1.xpose.msra.mxu0 %v7281
  %7315 = vmatprep.subr.mxu0 0.0
  %7316 = vmatpush1.xpose.msra.mxu0 %v7283
  %7317 = vmatprep.subr.mxu0 0.0
  %7318 = vmatpush1.xpose.msra.mxu0 0.0
  %7319 = vmatprep.subr.mxu0 0.0
  %7320 = vmatpush1.xpose.msra.mxu0 0.0
  %7321 = vmatprep.subr.mxu0 0.0
  %7322 = vmatpush1.xpose.msra.mxu0 0.0
  %7323 = vmatprep.subr.mxu0 0.0
  %7324 = vmatpush1.xpose.msra.mxu0 0.0
  %7325 = vmatprep.subr.mxu0 0.0
  %7326 = vmatpush1.xpose.msra.mxu0 0.0
  %7327 = vmatprep.subr.mxu0 0.0
  %7328 = vmatpush1.xpose.msra.mxu0 0.0
  %7329 = vmatprep.subr.mxu0 0.0
  %7330 = vmatpush1.xpose.msra.mxu0 0.0
  %7331 = vmatprep.subr.mxu0 0.0
  %7332 = vmatpush1.xpose.msra.mxu0 0.0
  %7333 = vmatprep.subr.mxu0 0.0
  %7334 = vmatpush1.xpose.msra.mxu0 0.0
  %7335 = vmatprep.subr.mxu0 0.0
  %7336 = vmatpush1.xpose.msra.mxu0 0.0
  %7337 = vmatprep.subr.mxu0 0.0
  %7338 = vmatpush1.xpose.msra.mxu0 0.0
  %7339 = vmatprep.subr.mxu0 0.0
  %7340 = vmatpush1.xpose.msra.mxu0 0.0
  %7341 = vmatprep.subr.mxu0 0.0
  %7342 = vmatpush1.xpose.msra.mxu0 0.0
  %7343 = vmatprep.subr.mxu0 0.0
  %7344 = vmatpush1.xpose.msra.mxu0 0.0
  %7345 = vmatprep.subr.mxu0 0.0
  %7346 = vmatpush1.xpose.msra.mxu0 0.0
  %7347 = vmatprep.subr.mxu0 0.0
  %7348 = vmatpush1.xpose.msra.mxu0 0.0
  %7349 = vmatprep.mubr.f32.mxu0 0.0
  %7350 = vmatmul.mubr.f32.gmra.mrb[0].mxu0 %v7221
  %v7351 = vpop.f32.mrb[0].mxu0
  %v7352 = vadd.f32 %v7141, %v7351
  %v7353 = vpop.f32.mrb[0].mxu0
  %7354 = vmatprep.mubr.f32.mxu0 0.0
  %7355 = vmatmul.mubr.f32.gmra.mrb[0].mxu0 %v7223
  %v7356 = vpop.f32.mrb[0].mxu0
  %v7357 = vadd.f32 %v7142, %v7356
  %v7358 = vpop.f32.mrb[0].mxu0
  %7359 = vmatprep.mubr.f32.mxu0 0.0
  %7360 = vmatmul.mubr.f32.gmra.mrb[0].mxu0 %v7225
  %v7361 = vpop.f32.mrb[0].mxu0
  %v7362 = vadd.f32 %v7143, %v7361
  %v7363 = vpop.f32.mrb[0].mxu0
  %7364 = vmatprep.mubr.f32.mxu0 0.0
  %7365 = vmatmul.mubr.f32.gmra.mrb[0].mxu0 %v7227
  %v7366 = vpop.f32.mrb[0].mxu0
  %v7367 = vadd.f32 %v7144, %v7366
  %v7368 = vpop.f32.mrb[0].mxu0
  %7369 = vmatprep.mubr.f32.mxu0 0.0
  %7370 = vmatmul.mubr.f32.gmra.mrb[0].mxu0 %v7229
  %v7371 = vpop.f32.mrb[0].mxu0
  %v7372 = vadd.f32 %v7145, %v7371
  %v7373 = vpop.f32.mrb[0].mxu0
  %7374 = vmatprep.mubr.f32.mxu0 0.0
  %7375 = vmatmul.mubr.f32.gmra.mrb[0].mxu0 %v7231
  %v7376 = vpop.f32.mrb[0].mxu0
  %v7377 = vadd.f32 %v7146, %v7376
  %v7378 = vpop.f32.mrb[0].mxu0
  %7379 = vmatprep.mubr.f32.mxu0 0.0
  %7380 = vmatmul.mubr.f32.gmra.mrb[0].mxu0 %v7233
  %v7381 = vpop.f32.mrb[0].mxu0
  %v7382 = vadd.f32 %v7147, %v7381
  %v7383 = vpop.f32.mrb[0].mxu0
  %7384 = vmatprep.mubr.f32.mxu0 0.0
  %7385 = vmatmul.mubr.f32.gmra.mrb[0].mxu0 %v7235
  %v7386 = vpop.f32.mrb[0].mxu0
  %v7387 = vadd.f32 %v7148, %v7386
  %v7388 = vpop.f32.mrb[0].mxu0
  %7389 = vmatprep.mubr.f32.mxu0 0.0
  %7390 = vmatmul.mubr.f32.gmra.mrb[0].mxu0 %v7237
  %v7391 = vpop.f32.mrb[0].mxu0
  %v7392 = vadd.f32 %v7149, %v7391
  %v7393 = vpop.f32.mrb[0].mxu0
  %7394 = vmatprep.mubr.f32.mxu0 0.0
  %7395 = vmatmul.mubr.f32.gmra.mrb[0].mxu0 %v7239
  %v7396 = vpop.f32.mrb[0].mxu0
  %v7397 = vadd.f32 %v7150, %v7396
  %v7398 = vpop.f32.mrb[0].mxu0
  %7399 = vmatprep.mubr.f32.mxu0 0.0
  %7400 = vmatmul.mubr.f32.gmra.mrb[0].mxu0 %v7241
  %v7401 = vpop.f32.mrb[0].mxu0
  %v7402 = vadd.f32 %v7151, %v7401
  %v7403 = vpop.f32.mrb[0].mxu0
  %7404 = vmatprep.mubr.f32.mxu0 0.0
  %7405 = vmatmul.mubr.f32.gmra.mrb[0].mxu0 %v7243
  %v7406 = vpop.f32.mrb[0].mxu0
  %v7407 = vadd.f32 %v7152, %v7406
  %v7408 = vpop.f32.mrb[0].mxu0
  %7409 = vmatprep.mubr.f32.mxu0 0.0
  %7410 = vmatmul.mubr.f32.gmra.mrb[0].mxu0 %v7245
  %v7411 = vpop.f32.mrb[0].mxu0
  %v7412 = vadd.f32 %v7153, %v7411
  %v7413 = vpop.f32.mrb[0].mxu0
  %7414 = vmatprep.mubr.f32.mxu0 0.0
  %7415 = vmatmul.mubr.f32.gmra.mrb[0].mxu0 %v7247
  %v7416 = vpop.f32.mrb[0].mxu0
  %v7417 = vadd.f32 %v7154, %v7416
  %v7418 = vpop.f32.mrb[0].mxu0
  %7419 = vmatprep.mubr.f32.mxu0 0.0
  %7420 = vmatmul.mubr.f32.gmra.mrb[0].mxu0 %v7249
  %v7421 = vpop.f32.mrb[0].mxu0
  %v7422 = vadd.f32 %v7155, %v7421
  %v7423 = vpop.f32.mrb[0].mxu0
  %7424 = vmatprep.mubr.f32.mxu0 0.0
  %7425 = vmatmul.mubr.f32.gmra.mrb[0].mxu0 %v7251
  %v7426 = vpop.f32.mrb[0].mxu0
  %v7427 = vadd.f32 %v7156, %v7426
  %v7428 = vpop.f32.mrb[0].mxu0
  %7429 = vdwg.mxu0
  %7430 = vmax.xlane.f32.xlu0 %v7352
  %v7431 = vpop.xlane.xlu0 %7430
  %7432 = vmax.xlane.f32.xlu0 %v7357
  %v7433 = vpop.xlane.xlu0 %7432
  %7434 = vmax.xlane.f32.xlu0 %v7362
  %v7435 = vpop.xlane.xlu0 %7434
  %7436 = vmax.xlane.f32.xlu0 %v7367
  %v7437 = vpop.xlane.xlu0 %7436
  %7438 = vmax.xlane.f32.xlu0 %v7372
  %v7439 = vpop.xlane.xlu0 %7438
  %7440 = vmax.xlane.f32.xlu0 %v7377
  %v7441 = vpop.xlane.xlu0 %7440
  %7442 = vmax.xlane.f32.xlu0 %v7382
  %v7443 = vpop.xlane.xlu0 %7442
  %7444 = vmax.xlane.f32.xlu0 %v7387
  %v7445 = vpop.xlane.xlu0 %7444
  %7446 = vmax.xlane.f32.xlu0 %v7392
  %v7447 = vpop.xlane.xlu0 %7446
  %7448 = vmax.xlane.f32.xlu0 %v7397
  %v7449 = vpop.xlane.xlu0 %7448
  %7450 = vmax.xlane.f32.xlu0 %v7402
  %v7451 = vpop.xlane.xlu0 %7450
  %7452 = vmax.xlane.f32.xlu0 %v7407
  %v7453 = vpop.xlane.xlu0 %7452
  %7454 = vmax.xlane.f32.xlu0 %v7412
  %v7455 = vpop.xlane.xlu0 %7454
  %7456 = vmax.xlane.f32.xlu0 %v7417
  %v7457 = vpop.xlane.xlu0 %7456
  %7458 = vmax.xlane.f32.xlu0 %v7422
  %v7459 = vpop.xlane.xlu0 %7458
  %7460 = vmax.xlane.f32.xlu0 %v7427
  %v7461 = vpop.xlane.xlu0 %7460
  %v7462 = vsub.f32 %v7352, %v7431
  %v7463 = vsub.f32 %v7357, %v7433
  %v7464 = vsub.f32 %v7362, %v7435
  %v7465 = vsub.f32 %v7367, %v7437
  %v7466 = vsub.f32 %v7372, %v7439
  %v7467 = vsub.f32 %v7377, %v7441
  %v7468 = vsub.f32 %v7382, %v7443
  %v7469 = vsub.f32 %v7387, %v7445
  %v7470 = vsub.f32 %v7392, %v7447
  %v7471 = vsub.f32 %v7397, %v7449
  %v7472 = vsub.f32 %v7402, %v7451
  %v7473 = vsub.f32 %v7407, %v7453
  %v7474 = vsub.f32 %v7412, %v7455
  %v7475 = vsub.f32 %v7417, %v7457
  %v7476 = vsub.f32 %v7422, %v7459
  %v7477 = vsub.f32 %v7427, %v7461
  %v7478 = vmul.f32 %v7462, 1.442695
  %v7479 = vpow.pop %v7478
  %v7480 = vmul.f32 %v7463, 1.442695
  %v7481 = vpow.pop %v7480
  %v7482 = vmul.f32 %v7464, 1.442695
  %v7483 = vpow.pop %v7482
  %v7484 = vmul.f32 %v7465, 1.442695
  %v7485 = vpow.pop %v7484
  %v7486 = vmul.f32 %v7466, 1.442695
  %v7487 = vpow.pop %v7486
  %v7488 = vmul.f32 %v7467, 1.442695
  %v7489 = vpow.pop %v7488
  %v7490 = vmul.f32 %v7468, 1.442695
  %v7491 = vpow.pop %v7490
  %v7492 = vmul.f32 %v7469, 1.442695
  %v7493 = vpow.pop %v7492
  %v7494 = vmul.f32 %v7470, 1.442695
  %v7495 = vpow.pop %v7494
  %v7496 = vmul.f32 %v7471, 1.442695
  %v7497 = vpow.pop %v7496
  %v7498 = vmul.f32 %v7472, 1.442695
  %v7499 = vpow.pop %v7498
  %v7500 = vmul.f32 %v7473, 1.442695
  %v7501 = vpow.pop %v7500
  %v7502 = vmul.f32 %v7474, 1.442695
  %v7503 = vpow.pop %v7502
  %v7504 = vmul.f32 %v7475, 1.442695
  %v7505 = vpow.pop %v7504
  %v7506 = vmul.f32 %v7476, 1.442695
  %v7507 = vpow.pop %v7506
  %v7508 = vmul.f32 %v7477, 1.442695
  %v7509 = vpow.pop %v7508
  %7510 = vadd.xlane.f32.xlu0 %v7479
  %v7511 = vpop.xlane.xlu0 %7510
  %7512 = vadd.xlane.f32.xlu0 %v7481
  %v7513 = vpop.xlane.xlu0 %7512
  %7514 = vadd.xlane.f32.xlu0 %v7483
  %v7515 = vpop.xlane.xlu0 %7514
  %7516 = vadd.xlane.f32.xlu0 %v7485
  %v7517 = vpop.xlane.xlu0 %7516
  %7518 = vadd.xlane.f32.xlu0 %v7487
  %v7519 = vpop.xlane.xlu0 %7518
  %7520 = vadd.xlane.f32.xlu0 %v7489
  %v7521 = vpop.xlane.xlu0 %7520
  %7522 = vadd.xlane.f32.xlu0 %v7491
  %v7523 = vpop.xlane.xlu0 %7522
  %7524 = vadd.xlane.f32.xlu0 %v7493
  %v7525 = vpop.xlane.xlu0 %7524
  %7526 = vadd.xlane.f32.xlu0 %v7495
  %v7527 = vpop.xlane.xlu0 %7526
  %7528 = vadd.xlane.f32.xlu0 %v7497
  %v7529 = vpop.xlane.xlu0 %7528
  %7530 = vadd.xlane.f32.xlu0 %v7499
  %v7531 = vpop.xlane.xlu0 %7530
  %7532 = vadd.xlane.f32.xlu0 %v7501
  %v7533 = vpop.xlane.xlu0 %7532
  %7534 = vadd.xlane.f32.xlu0 %v7503
  %v7535 = vpop.xlane.xlu0 %7534
  %7536 = vadd.xlane.f32.xlu0 %v7505
  %v7537 = vpop.xlane.xlu0 %7536
  %7538 = vadd.xlane.f32.xlu0 %v7507
  %v7539 = vpop.xlane.xlu0 %7538
  %7540 = vadd.xlane.f32.xlu0 %v7509
  %v7541 = vpop.xlane.xlu0 %7540
  %v7542 = vrcp.pop %v7511
  %v7543 = vrcp.pop %v7513
  %v7544 = vrcp.pop %v7515
  %v7545 = vrcp.pop %v7517
  %v7546 = vrcp.pop %v7519
  %v7547 = vrcp.pop %v7521
  %v7548 = vrcp.pop %v7523
  %v7549 = vrcp.pop %v7525
  %v7550 = vrcp.pop %v7527
  %v7551 = vrcp.pop %v7529
  %v7552 = vrcp.pop %v7531
  %v7553 = vrcp.pop %v7533
  %v7554 = vrcp.pop %v7535
  %v7555 = vrcp.pop %v7537
  %v7556 = vrcp.pop %v7539
  %v7557 = vrcp.pop %v7541
  %v7558 = vmul.f32 %v7479, %v7542
  %v7559 = vmul.f32 %v7481, %v7543
  %v7560 = vmul.f32 %v7483, %v7544
  %v7561 = vmul.f32 %v7485, %v7545
  %v7562 = vmul.f32 %v7487, %v7546
  %v7563 = vmul.f32 %v7489, %v7547
  %v7564 = vmul.f32 %v7491, %v7548
  %v7565 = vmul.f32 %v7493, %v7549
  %v7566 = vmul.f32 %v7495, %v7550
  %v7567 = vmul.f32 %v7497, %v7551
  %v7568 = vmul.f32 %v7499, %v7552
  %v7569 = vmul.f32 %v7501, %v7553
  %v7570 = vmul.f32 %v7503, %v7554
  %v7571 = vmul.f32 %v7505, %v7555
  %v7572 = vmul.f32 %v7507, %v7556
  %v7573 = vmul.f32 %v7509, %v7557
  %7574 = vrot.lane.b32.xlu0 %v5403, 48
  %v7575 = vpop.permute.xlu0 %7574
  %7576 = vrot.lane.b32.xlu0 %v5408, 48
  %v7577 = vpop.permute.xlu0 %7576
  %7578 = vrot.lane.b32.xlu0 %v5413, 48
  %v7579 = vpop.permute.xlu0 %7578
  %7580 = vrot.lane.b32.xlu0 %v5418, 48
  %v7581 = vpop.permute.xlu0 %7580
  %7582 = vrot.lane.b32.xlu0 %v5423, 48
  %v7583 = vpop.permute.xlu0 %7582
  %7584 = vrot.lane.b32.xlu0 %v5428, 48
  %v7585 = vpop.permute.xlu0 %7584
  %7586 = vrot.lane.b32.xlu0 %v5433, 48
  %v7587 = vpop.permute.xlu0 %7586
  %7588 = vrot.lane.b32.xlu0 %v5438, 48
  %v7589 = vpop.permute.xlu0 %7588
  %7590 = vrot.lane.b32.xlu0 %v5443, 48
  %v7591 = vpop.permute.xlu0 %7590
  %7592 = vrot.lane.b32.xlu0 %v5448, 48
  %v7593 = vpop.permute.xlu0 %7592
  %7594 = vrot.lane.b32.xlu0 %v5453, 48
  %v7595 = vpop.permute.xlu0 %7594
  %7596 = vrot.lane.b32.xlu0 %v5458, 48
  %v7597 = vpop.permute.xlu0 %7596
  %7598 = vrot.lane.b32.xlu0 %v5463, 48
  %v7599 = vpop.permute.xlu0 %7598
  %7600 = vrot.lane.b32.xlu0 %v5468, 48
  %v7601 = vpop.permute.xlu0 %7600
  %7602 = vrot.lane.b32.xlu0 %v5473, 48
  %v7603 = vpop.permute.xlu0 %7602
  %7604 = vrot.lane.b32.xlu0 %v5478, 48
  %v7605 = vpop.permute.xlu0 %7604
  %7622 = vmatprep.subr.mxu0 0.0
  %7623 = vmatpush1.msra.mxu0 %v7575
  %7624 = vmatprep.subr.mxu0 0.0
  %7625 = vmatpush1.msra.mxu0 %v7577
  %7626 = vmatprep.subr.mxu0 0.0
  %7627 = vmatpush1.msra.mxu0 %v7579
  %7628 = vmatprep.subr.mxu0 0.0
  %7629 = vmatpush1.msra.mxu0 %v7581
  %7630 = vmatprep.subr.mxu0 0.0
  %7631 = vmatpush1.msra.mxu0 %v7583
  %7632 = vmatprep.subr.mxu0 0.0
  %7633 = vmatpush1.msra.mxu0 %v7585
  %7634 = vmatprep.subr.mxu0 0.0
  %7635 = vmatpush1.msra.mxu0 %v7587
  %7636 = vmatprep.subr.mxu0 0.0
  %7637 = vmatpush1.msra.mxu0 %v7589
  %7638 = vmatprep.subr.mxu0 0.0
  %7639 = vmatpush1.msra.mxu0 %v7591
  %7640 = vmatprep.subr.mxu0 0.0
  %7641 = vmatpush1.msra.mxu0 %v7593
  %7642 = vmatprep.subr.mxu0 0.0
  %7643 = vmatpush1.msra.mxu0 %v7595
  %7644 = vmatprep.subr.mxu0 0.0
  %7645 = vmatpush1.msra.mxu0 %v7597
  %7646 = vmatprep.subr.mxu0 0.0
  %7647 = vmatpush1.msra.mxu0 %v7599
  %7648 = vmatprep.subr.mxu0 0.0
  %7649 = vmatpush1.msra.mxu0 %v7601
  %7650 = vmatprep.subr.mxu0 0.0
  %7651 = vmatpush1.msra.mxu0 %v7603
  %7652 = vmatprep.subr.mxu0 0.0
  %7653 = vmatpush1.msra.mxu0 %v7605
  %7654 = vmatprep.subr.mxu0 0.0
  %7655 = vmatpush1.msra.mxu0 0.0
  %7656 = vmatprep.subr.mxu0 0.0
  %7657 = vmatpush1.msra.mxu0 0.0
  %7658 = vmatprep.subr.mxu0 0.0
  %7659 = vmatpush1.msra.mxu0 0.0
  %7660 = vmatprep.subr.mxu0 0.0
  %7661 = vmatpush1.msra.mxu0 0.0
  %7662 = vmatprep.subr.mxu0 0.0
  %7663 = vmatpush1.msra.mxu0 0.0
  %7664 = vmatprep.subr.mxu0 0.0
  %7665 = vmatpush1.msra.mxu0 0.0
  %7666 = vmatprep.subr.mxu0 0.0
  %7667 = vmatpush1.msra.mxu0 0.0
  %7668 = vmatprep.subr.mxu0 0.0
  %7669 = vmatpush1.msra.mxu0 0.0
  %7670 = vmatprep.subr.mxu0 0.0
  %7671 = vmatpush1.msra.mxu0 0.0
  %7672 = vmatprep.subr.mxu0 0.0
  %7673 = vmatpush1.msra.mxu0 0.0
  %7674 = vmatprep.subr.mxu0 0.0
  %7675 = vmatpush1.msra.mxu0 0.0
  %7676 = vmatprep.subr.mxu0 0.0
  %7677 = vmatpush1.msra.mxu0 0.0
  %7678 = vmatprep.subr.mxu0 0.0
  %7679 = vmatpush1.msra.mxu0 0.0
  %7680 = vmatprep.subr.mxu0 0.0
  %7681 = vmatpush1.msra.mxu0 0.0
  %7682 = vmatprep.subr.mxu0 0.0
  %7683 = vmatpush1.msra.mxu0 0.0
  %7684 = vmatprep.subr.mxu0 0.0
  %7685 = vmatpush1.msra.mxu0 0.0
  %7686 = vmatprep.mubr.f32.mxu0 0.0
  %7687 = vmatmul.mubr.f32.gmra.mrb[0].mxu0 %v7558
  %v7688 = vpop.f32.mrb[0].mxu0
  %v7689 = vadd.f32 0.0, %v7688
  %v7690 = vpop.f32.mrb[0].mxu0
  %7691 = vmatprep.mubr.f32.mxu0 0.0
  %7692 = vmatmul.mubr.f32.gmra.mrb[0].mxu0 %v7559
  %v7693 = vpop.f32.mrb[0].mxu0
  %v7694 = vadd.f32 0.0, %v7693
  %v7695 = vpop.f32.mrb[0].mxu0
  %7696 = vmatprep.mubr.f32.mxu0 0.0
  %7697 = vmatmul.mubr.f32.gmra.mrb[0].mxu0 %v7560
  %v7698 = vpop.f32.mrb[0].mxu0
  %v7699 = vadd.f32 0.0, %v7698
  %v7700 = vpop.f32.mrb[0].mxu0
  %7701 = vmatprep.mubr.f32.mxu0 0.0
  %7702 = vmatmul.mubr.f32.gmra.mrb[0].mxu0 %v7561
  %v7703 = vpop.f32.mrb[0].mxu0
  %v7704 = vadd.f32 0.0, %v7703
  %v7705 = vpop.f32.mrb[0].mxu0
  %7706 = vmatprep.mubr.f32.mxu0 0.0
  %7707 = vmatmul.mubr.f32.gmra.mrb[0].mxu0 %v7562
  %v7708 = vpop.f32.mrb[0].mxu0
  %v7709 = vadd.f32 0.0, %v7708
  %v7710 = vpop.f32.mrb[0].mxu0
  %7711 = vmatprep.mubr.f32.mxu0 0.0
  %7712 = vmatmul.mubr.f32.gmra.mrb[0].mxu0 %v7563
  %v7713 = vpop.f32.mrb[0].mxu0
  %v7714 = vadd.f32 0.0, %v7713
  %v7715 = vpop.f32.mrb[0].mxu0
  %7716 = vmatprep.mubr.f32.mxu0 0.0
  %7717 = vmatmul.mubr.f32.gmra.mrb[0].mxu0 %v7564
  %v7718 = vpop.f32.mrb[0].mxu0
  %v7719 = vadd.f32 0.0, %v7718
  %v7720 = vpop.f32.mrb[0].mxu0
  %7721 = vmatprep.mubr.f32.mxu0 0.0
  %7722 = vmatmul.mubr.f32.gmra.mrb[0].mxu0 %v7565
  %v7723 = vpop.f32.mrb[0].mxu0
  %v7724 = vadd.f32 0.0, %v7723
  %v7725 = vpop.f32.mrb[0].mxu0
  %7726 = vmatprep.mubr.f32.mxu0 0.0
  %7727 = vmatmul.mubr.f32.gmra.mrb[0].mxu0 %v7566
  %v7728 = vpop.f32.mrb[0].mxu0
  %v7729 = vadd.f32 0.0, %v7728
  %v7730 = vpop.f32.mrb[0].mxu0
  %7731 = vmatprep.mubr.f32.mxu0 0.0
  %7732 = vmatmul.mubr.f32.gmra.mrb[0].mxu0 %v7567
  %v7733 = vpop.f32.mrb[0].mxu0
  %v7734 = vadd.f32 0.0, %v7733
  %v7735 = vpop.f32.mrb[0].mxu0
  %7736 = vmatprep.mubr.f32.mxu0 0.0
  %7737 = vmatmul.mubr.f32.gmra.mrb[0].mxu0 %v7568
  %v7738 = vpop.f32.mrb[0].mxu0
  %v7739 = vadd.f32 0.0, %v7738
  %v7740 = vpop.f32.mrb[0].mxu0
  %7741 = vmatprep.mubr.f32.mxu0 0.0
  %7742 = vmatmul.mubr.f32.gmra.mrb[0].mxu0 %v7569
  %v7743 = vpop.f32.mrb[0].mxu0
  %v7744 = vadd.f32 0.0, %v7743
  %v7745 = vpop.f32.mrb[0].mxu0
  %7746 = vmatprep.mubr.f32.mxu0 0.0
  %7747 = vmatmul.mubr.f32.gmra.mrb[0].mxu0 %v7570
  %v7748 = vpop.f32.mrb[0].mxu0
  %v7749 = vadd.f32 0.0, %v7748
  %v7750 = vpop.f32.mrb[0].mxu0
  %7751 = vmatprep.mubr.f32.mxu0 0.0
  %7752 = vmatmul.mubr.f32.gmra.mrb[0].mxu0 %v7571
  %v7753 = vpop.f32.mrb[0].mxu0
  %v7754 = vadd.f32 0.0, %v7753
  %v7755 = vpop.f32.mrb[0].mxu0
  %7756 = vmatprep.mubr.f32.mxu0 0.0
  %7757 = vmatmul.mubr.f32.gmra.mrb[0].mxu0 %v7572
  %v7758 = vpop.f32.mrb[0].mxu0
  %v7759 = vadd.f32 0.0, %v7758
  %v7760 = vpop.f32.mrb[0].mxu0
  %7761 = vmatprep.mubr.f32.mxu0 0.0
  %7762 = vmatmul.mubr.f32.gmra.mrb[0].mxu0 %v7573
  %v7763 = vpop.f32.mrb[0].mxu0
  %v7764 = vadd.f32 0.0, %v7763
  %v7765 = vpop.f32.mrb[0].mxu0
  %7766 = vdwg.mxu0
  %v7768 = vsel %vm646, %v7689, 0
  %v7771 = vsel %vm646, %v7694, 0
  %v7774 = vsel %vm646, %v7699, 0
  %v7777 = vsel %vm646, %v7704, 0
  %v7780 = vsel %vm646, %v7709, 0
  %v7783 = vsel %vm646, %v7714, 0
  %v7786 = vsel %vm646, %v7719, 0
  %v7789 = vsel %vm646, %v7724, 0
  %v7792 = vsel %vm646, %v7729, 0
  %v7795 = vsel %vm646, %v7734, 0
  %v7798 = vsel %vm646, %v7739, 0
  %v7801 = vsel %vm646, %v7744, 0
  %v7804 = vsel %vm646, %v7749, 0
  %v7807 = vsel %vm646, %v7754, 0
  %v7810 = vsel %vm646, %v7759, 0
  %v7813 = vsel %vm646, %v7764, 0
  %7815 = vmatprep.subr.mxu0 0.0
  %7816 = vmatpush1.msra.mxu0 %v5483
  %7817 = vmatprep.subr.mxu0 0.0
  %7818 = vmatpush1.msra.mxu0 0.0
  %7819 = vmatprep.subr.mxu0 0.0
  %7820 = vmatpush1.msra.mxu0 0.0
  %7821 = vmatprep.subr.mxu0 0.0
  %7822 = vmatpush1.msra.mxu0 0.0
  %7823 = vmatprep.subr.mxu0 0.0
  %7824 = vmatpush1.msra.mxu0 0.0
  %7825 = vmatprep.subr.mxu0 0.0
  %7826 = vmatpush1.msra.mxu0 0.0
  %7827 = vmatprep.subr.mxu0 0.0
  %7828 = vmatpush1.msra.mxu0 0.0
  %7829 = vmatprep.subr.mxu0 0.0
  %7830 = vmatpush1.msra.mxu0 0.0
  %7831 = vmatprep.subr.mxu0 0.0
  %7832 = vmatpush1.msra.mxu0 0.0
  %7833 = vmatprep.subr.mxu0 0.0
  %7834 = vmatpush1.msra.mxu0 0.0
  %7835 = vmatprep.subr.mxu0 0.0
  %7836 = vmatpush1.msra.mxu0 0.0
  %7837 = vmatprep.subr.mxu0 0.0
  %7838 = vmatpush1.msra.mxu0 0.0
  %7839 = vmatprep.subr.mxu0 0.0
  %7840 = vmatpush1.msra.mxu0 0.0
  %7841 = vmatprep.subr.mxu0 0.0
  %7842 = vmatpush1.msra.mxu0 0.0
  %7843 = vmatprep.subr.mxu0 0.0
  %7844 = vmatpush1.msra.mxu0 0.0
  %7845 = vmatprep.subr.mxu0 0.0
  %7846 = vmatpush1.msra.mxu0 0.0
  %7847 = vmatprep.subr.mxu0 0.0
  %7848 = vmatpush1.msra.mxu0 0.0
  %7849 = vmatprep.subr.mxu0 0.0
  %7850 = vmatpush1.msra.mxu0 0.0
  %7851 = vmatprep.subr.mxu0 0.0
  %7852 = vmatpush1.msra.mxu0 0.0
  %7853 = vmatprep.subr.mxu0 0.0
  %7854 = vmatpush1.msra.mxu0 0.0
  %7855 = vmatprep.subr.mxu0 0.0
  %7856 = vmatpush1.msra.mxu0 0.0
  %7857 = vmatprep.subr.mxu0 0.0
  %7858 = vmatpush1.msra.mxu0 0.0
  %7859 = vmatprep.subr.mxu0 0.0
  %7860 = vmatpush1.msra.mxu0 0.0
  %7861 = vmatprep.subr.mxu0 0.0
  %7862 = vmatpush1.msra.mxu0 0.0
  %7863 = vmatprep.subr.mxu0 0.0
  %7864 = vmatpush1.msra.mxu0 0.0
  %7865 = vmatprep.subr.mxu0 0.0
  %7866 = vmatpush1.msra.mxu0 0.0
  %7867 = vmatprep.subr.mxu0 0.0
  %7868 = vmatpush1.msra.mxu0 0.0
  %7869 = vmatprep.subr.mxu0 0.0
  %7870 = vmatpush1.msra.mxu0 0.0
  %7871 = vmatprep.subr.mxu0 0.0
  %7872 = vmatpush1.msra.mxu0 0.0
  %7873 = vmatprep.subr.mxu0 0.0
  %7874 = vmatpush1.msra.mxu0 0.0
  %7875 = vmatprep.subr.mxu0 0.0
  %7876 = vmatpush1.msra.mxu0 0.0
  %7877 = vmatprep.subr.mxu0 0.0
  %7878 = vmatpush1.msra.mxu0 0.0
  %7879 = vmatprep.mubr.f32.mxu0 0.0
  %7880 = vmatmul.mubr.f32.gmra.mrb[0].mxu0 %v7768
  %v7881 = vpop.f32.mrb[0].mxu0
  %v7882 = vadd.f32 0.0, %v7881
  %v7883 = vpop.f32.mrb[0].mxu0
  %7884 = vmatprep.mubr.f32.mxu0 0.0
  %7885 = vmatmul.mubr.f32.gmra.mrb[0].mxu0 %v7771
  %v7886 = vpop.f32.mrb[0].mxu0
  %v7887 = vadd.f32 0.0, %v7886
  %v7888 = vpop.f32.mrb[0].mxu0
  %7889 = vmatprep.mubr.f32.mxu0 0.0
  %7890 = vmatmul.mubr.f32.gmra.mrb[0].mxu0 %v7774
  %v7891 = vpop.f32.mrb[0].mxu0
  %v7892 = vadd.f32 0.0, %v7891
  %v7893 = vpop.f32.mrb[0].mxu0
  %7894 = vmatprep.mubr.f32.mxu0 0.0
  %7895 = vmatmul.mubr.f32.gmra.mrb[0].mxu0 %v7777
  %v7896 = vpop.f32.mrb[0].mxu0
  %v7897 = vadd.f32 0.0, %v7896
  %v7898 = vpop.f32.mrb[0].mxu0
  %7899 = vmatprep.mubr.f32.mxu0 0.0
  %7900 = vmatmul.mubr.f32.gmra.mrb[0].mxu0 %v7780
  %v7901 = vpop.f32.mrb[0].mxu0
  %v7902 = vadd.f32 0.0, %v7901
  %v7903 = vpop.f32.mrb[0].mxu0
  %7904 = vmatprep.mubr.f32.mxu0 0.0
  %7905 = vmatmul.mubr.f32.gmra.mrb[0].mxu0 %v7783
  %v7906 = vpop.f32.mrb[0].mxu0
  %v7907 = vadd.f32 0.0, %v7906
  %v7908 = vpop.f32.mrb[0].mxu0
  %7909 = vmatprep.mubr.f32.mxu0 0.0
  %7910 = vmatmul.mubr.f32.gmra.mrb[0].mxu0 %v7786
  %v7911 = vpop.f32.mrb[0].mxu0
  %v7912 = vadd.f32 0.0, %v7911
  %v7913 = vpop.f32.mrb[0].mxu0
  %7914 = vmatprep.mubr.f32.mxu0 0.0
  %7915 = vmatmul.mubr.f32.gmra.mrb[0].mxu0 %v7789
  %v7916 = vpop.f32.mrb[0].mxu0
  %v7917 = vadd.f32 0.0, %v7916
  %v7918 = vpop.f32.mrb[0].mxu0
  %7919 = vmatprep.mubr.f32.mxu0 0.0
  %7920 = vmatmul.mubr.f32.gmra.mrb[0].mxu0 %v7792
  %v7921 = vpop.f32.mrb[0].mxu0
  %v7922 = vadd.f32 0.0, %v7921
  %v7923 = vpop.f32.mrb[0].mxu0
  %7924 = vmatprep.mubr.f32.mxu0 0.0
  %7925 = vmatmul.mubr.f32.gmra.mrb[0].mxu0 %v7795
  %v7926 = vpop.f32.mrb[0].mxu0
  %v7927 = vadd.f32 0.0, %v7926
  %v7928 = vpop.f32.mrb[0].mxu0
  %7929 = vmatprep.mubr.f32.mxu0 0.0
  %7930 = vmatmul.mubr.f32.gmra.mrb[0].mxu0 %v7798
  %v7931 = vpop.f32.mrb[0].mxu0
  %v7932 = vadd.f32 0.0, %v7931
  %v7933 = vpop.f32.mrb[0].mxu0
  %7934 = vmatprep.mubr.f32.mxu0 0.0
  %7935 = vmatmul.mubr.f32.gmra.mrb[0].mxu0 %v7801
  %v7936 = vpop.f32.mrb[0].mxu0
  %v7937 = vadd.f32 0.0, %v7936
  %v7938 = vpop.f32.mrb[0].mxu0
  %7939 = vmatprep.mubr.f32.mxu0 0.0
  %7940 = vmatmul.mubr.f32.gmra.mrb[0].mxu0 %v7804
  %v7941 = vpop.f32.mrb[0].mxu0
  %v7942 = vadd.f32 0.0, %v7941
  %v7943 = vpop.f32.mrb[0].mxu0
  %7944 = vmatprep.mubr.f32.mxu0 0.0
  %7945 = vmatmul.mubr.f32.gmra.mrb[0].mxu0 %v7807
  %v7946 = vpop.f32.mrb[0].mxu0
  %v7947 = vadd.f32 0.0, %v7946
  %v7948 = vpop.f32.mrb[0].mxu0
  %7949 = vmatprep.mubr.f32.mxu0 0.0
  %7950 = vmatmul.mubr.f32.gmra.mrb[0].mxu0 %v7810
  %v7951 = vpop.f32.mrb[0].mxu0
  %v7952 = vadd.f32 0.0, %v7951
  %v7953 = vpop.f32.mrb[0].mxu0
  %7954 = vmatprep.mubr.f32.mxu0 0.0
  %7955 = vmatmul.mubr.f32.gmra.mrb[0].mxu0 %v7813
  %v7956 = vpop.f32.mrb[0].mxu0
  %v7957 = vadd.f32 0.0, %v7956
  %v7958 = vpop.f32.mrb[0].mxu0
  %7959 = vdwg.mxu0
  %v7960 = vadd.f32 %v7062, %v7882
  %v7961 = vadd.f32 %v7067, %v7887
  %v7962 = vadd.f32 %v7072, %v7892
  %v7963 = vadd.f32 %v7077, %v7897
  %v7964 = vadd.f32 %v7082, %v7902
  %v7965 = vadd.f32 %v7087, %v7907
  %v7966 = vadd.f32 %v7092, %v7912
  %v7967 = vadd.f32 %v7097, %v7917
  %v7968 = vadd.f32 %v7102, %v7922
  %v7969 = vadd.f32 %v7107, %v7927
  %v7970 = vadd.f32 %v7112, %v7932
  %v7971 = vadd.f32 %v7117, %v7937
  %v7972 = vadd.f32 %v7122, %v7942
  %v7973 = vadd.f32 %v7127, %v7947
  %v7974 = vadd.f32 %v7132, %v7952
  %v7975 = vadd.f32 %v7137, %v7957
  %s7976 = scalar_lea.vmem %s14, 384
  %v7977 = vld [vmem:[%s7976] sm:$0xff]
  %v7978 = vld [vmem:[%s7976 + $0x8] sm:$0xff]
  %v7979 = vld [vmem:[%s7976 + $0x10] sm:$0xff]
  %v7980 = vld [vmem:[%s7976 + $0x18] sm:$0xff]
  %v7981 = vld [vmem:[%s7976 + $0x20] sm:$0xff]
  %v7982 = vld [vmem:[%s7976 + $0x28] sm:$0xff]
  %v7983 = vld [vmem:[%s7976 + $0x30] sm:$0xff]
  %v7984 = vld [vmem:[%s7976 + $0x38] sm:$0xff]
  %v7985 = vld [vmem:[%s7976 + $0x40] sm:$0xff]
  %v7986 = vld [vmem:[%s7976 + $0x48] sm:$0xff]
  %v7987 = vld [vmem:[%s7976 + $0x50] sm:$0xff]
  %v7988 = vld [vmem:[%s7976 + $0x58] sm:$0xff]
  %v7989 = vld [vmem:[%s7976 + $0x60] sm:$0xff]
  %v7990 = vld [vmem:[%s7976 + $0x68] sm:$0xff]
  %v7991 = vld [vmem:[%s7976 + $0x70] sm:$0xff]
  %v7992 = vld [vmem:[%s7976 + $0x78] sm:$0xff]
  %7993 = vrot.lane.b32.xlu0 %v5485, 104
  %v7994 = vpop.permute.xlu0 %7993
  %7995 = vrot.lane.b32.xlu0 %v5486, 104
  %v7996 = vpop.permute.xlu0 %7995
  %7997 = vrot.lane.b32.xlu0 %v5487, 104
  %v7998 = vpop.permute.xlu0 %7997
  %7999 = vrot.lane.b32.xlu0 %v5488, 104
  %v8000 = vpop.permute.xlu0 %7999
  %8001 = vrot.lane.b32.xlu0 %v5489, 104
  %v8002 = vpop.permute.xlu0 %8001
  %8003 = vrot.lane.b32.xlu0 %v5490, 104
  %v8004 = vpop.permute.xlu0 %8003
  %8005 = vrot.lane.b32.xlu0 %v5491, 104
  %v8006 = vpop.permute.xlu0 %8005
  %8007 = vrot.lane.b32.xlu0 %v5492, 104
  %v8008 = vpop.permute.xlu0 %8007
  %8009 = vrot.lane.b32.xlu0 %v5493, 104
  %v8010 = vpop.permute.xlu0 %8009
  %8011 = vrot.lane.b32.xlu0 %v5494, 104
  %v8012 = vpop.permute.xlu0 %8011
  %8013 = vrot.lane.b32.xlu0 %v5495, 104
  %v8014 = vpop.permute.xlu0 %8013
  %8015 = vrot.lane.b32.xlu0 %v5496, 104
  %v8016 = vpop.permute.xlu0 %8015
  %8017 = vrot.lane.b32.xlu0 %v5497, 104
  %v8018 = vpop.permute.xlu0 %8017
  %8019 = vrot.lane.b32.xlu0 %v5498, 104
  %v8020 = vpop.permute.xlu0 %8019
  %8021 = vrot.lane.b32.xlu0 %v5499, 104
  %v8022 = vpop.permute.xlu0 %8021
  %8023 = vrot.lane.b32.xlu0 %v5500, 104
  %v8024 = vpop.permute.xlu0 %8023
  %8025 = vrot.lane.b32.xlu0 %v5403, 72
  %v8026 = vpop.permute.xlu0 %8025
  %8027 = vrot.lane.b32.xlu0 %v5408, 72
  %v8028 = vpop.permute.xlu0 %8027
  %8029 = vrot.lane.b32.xlu0 %v5413, 72
  %v8030 = vpop.permute.xlu0 %8029
  %8031 = vrot.lane.b32.xlu0 %v5418, 72
  %v8032 = vpop.permute.xlu0 %8031
  %8033 = vrot.lane.b32.xlu0 %v5423, 72
  %v8034 = vpop.permute.xlu0 %8033
  %8035 = vrot.lane.b32.xlu0 %v5428, 72
  %v8036 = vpop.permute.xlu0 %8035
  %8037 = vrot.lane.b32.xlu0 %v5433, 72
  %v8038 = vpop.permute.xlu0 %8037
  %8039 = vrot.lane.b32.xlu0 %v5438, 72
  %v8040 = vpop.permute.xlu0 %8039
  %8041 = vrot.lane.b32.xlu0 %v5443, 72
  %v8042 = vpop.permute.xlu0 %8041
  %8043 = vrot.lane.b32.xlu0 %v5448, 72
  %v8044 = vpop.permute.xlu0 %8043
  %8045 = vrot.lane.b32.xlu0 %v5453, 72
  %v8046 = vpop.permute.xlu0 %8045
  %8047 = vrot.lane.b32.xlu0 %v5458, 72
  %v8048 = vpop.permute.xlu0 %8047
  %8049 = vrot.lane.b32.xlu0 %v5463, 72
  %v8050 = vpop.permute.xlu0 %8049
  %8051 = vrot.lane.b32.xlu0 %v5468, 72
  %v8052 = vpop.permute.xlu0 %8051
  %8053 = vrot.lane.b32.xlu0 %v5473, 72
  %v8054 = vpop.permute.xlu0 %8053
  %8055 = vrot.lane.b32.xlu0 %v5478, 72
  %v8056 = vpop.permute.xlu0 %8055
  %v8057 = vsel %vm646, %v7994, 0
  %v8059 = vsel %vm646, %v7996, 0
  %v8061 = vsel %vm646, %v7998, 0
  %v8063 = vsel %vm646, %v8000, 0
  %v8065 = vsel %vm646, %v8002, 0
  %v8067 = vsel %vm646, %v8004, 0
  %v8069 = vsel %vm646, %v8006, 0
  %v8071 = vsel %vm646, %v8008, 0
  %v8073 = vsel %vm646, %v8010, 0
  %v8075 = vsel %vm646, %v8012, 0
  %v8077 = vsel %vm646, %v8014, 0
  %v8079 = vsel %vm646, %v8016, 0
  %v8081 = vsel %vm646, %v8018, 0
  %v8083 = vsel %vm646, %v8020, 0
  %v8085 = vsel %vm646, %v8022, 0
  %v8087 = vsel %vm646, %v8024, 0
  %v8089 = vsel %vm646, %v8026, 0
  %v8091 = vsel %vm646, %v8028, 0
  %v8093 = vsel %vm646, %v8030, 0
  %v8095 = vsel %vm646, %v8032, 0
  %v8097 = vsel %vm646, %v8034, 0
  %v8099 = vsel %vm646, %v8036, 0
  %v8101 = vsel %vm646, %v8038, 0
  %v8103 = vsel %vm646, %v8040, 0
  %v8105 = vsel %vm646, %v8042, 0
  %v8107 = vsel %vm646, %v8044, 0
  %v8109 = vsel %vm646, %v8046, 0
  %v8111 = vsel %vm646, %v8048, 0
  %v8113 = vsel %vm646, %v8050, 0
  %v8115 = vsel %vm646, %v8052, 0
  %v8117 = vsel %vm646, %v8054, 0
  %v8119 = vsel %vm646, %v8056, 0
  %8121 = vmatprep.subr.mxu0 0.0
  %8122 = vmatpush1.xpose.msra.mxu0 %v8089
  %8123 = vmatprep.subr.mxu0 0.0
  %8124 = vmatpush1.xpose.msra.mxu0 %v8091
  %8125 = vmatprep.subr.mxu0 0.0
  %8126 = vmatpush1.xpose.msra.mxu0 %v8093
  %8127 = vmatprep.subr.mxu0 0.0
  %8128 = vmatpush1.xpose.msra.mxu0 %v8095
  %8129 = vmatprep.subr.mxu0 0.0
  %8130 = vmatpush1.xpose.msra.mxu0 %v8097
  %8131 = vmatprep.subr.mxu0 0.0
  %8132 = vmatpush1.xpose.msra.mxu0 %v8099
  %8133 = vmatprep.subr.mxu0 0.0
  %8134 = vmatpush1.xpose.msra.mxu0 %v8101
  %8135 = vmatprep.subr.mxu0 0.0
  %8136 = vmatpush1.xpose.msra.mxu0 %v8103
  %8137 = vmatprep.subr.mxu0 0.0
  %8138 = vmatpush1.xpose.msra.mxu0 %v8105
  %8139 = vmatprep.subr.mxu0 0.0
  %8140 = vmatpush1.xpose.msra.mxu0 %v8107
  %8141 = vmatprep.subr.mxu0 0.0
  %8142 = vmatpush1.xpose.msra.mxu0 %v8109
  %8143 = vmatprep.subr.mxu0 0.0
  %8144 = vmatpush1.xpose.msra.mxu0 %v8111
  %8145 = vmatprep.subr.mxu0 0.0
  %8146 = vmatpush1.xpose.msra.mxu0 %v8113
  %8147 = vmatprep.subr.mxu0 0.0
  %8148 = vmatpush1.xpose.msra.mxu0 %v8115
  %8149 = vmatprep.subr.mxu0 0.0
  %8150 = vmatpush1.xpose.msra.mxu0 %v8117
  %8151 = vmatprep.subr.mxu0 0.0
  %8152 = vmatpush1.xpose.msra.mxu0 %v8119
  %8153 = vmatprep.subr.mxu0 0.0
  %8154 = vmatpush1.xpose.msra.mxu0 0.0
  %8155 = vmatprep.subr.mxu0 0.0
  %8156 = vmatpush1.xpose.msra.mxu0 0.0
  %8157 = vmatprep.subr.mxu0 0.0
  %8158 = vmatpush1.xpose.msra.mxu0 0.0
  %8159 = vmatprep.subr.mxu0 0.0
  %8160 = vmatpush1.xpose.msra.mxu0 0.0
  %8161 = vmatprep.subr.mxu0 0.0
  %8162 = vmatpush1.xpose.msra.mxu0 0.0
  %8163 = vmatprep.subr.mxu0 0.0
  %8164 = vmatpush1.xpose.msra.mxu0 0.0
  %8165 = vmatprep.subr.mxu0 0.0
  %8166 = vmatpush1.xpose.msra.mxu0 0.0
  %8167 = vmatprep.subr.mxu0 0.0
  %8168 = vmatpush1.xpose.msra.mxu0 0.0
  %8169 = vmatprep.subr.mxu0 0.0
  %8170 = vmatpush1.xpose.msra.mxu0 0.0
  %8171 = vmatprep.subr.mxu0 0.0
  %8172 = vmatpush1.xpose.msra.mxu0 0.0
  %8173 = vmatprep.subr.mxu0 0.0
  %8174 = vmatpush1.xpose.msra.mxu0 0.0
  %8175 = vmatprep.subr.mxu0 0.0
  %8176 = vmatpush1.xpose.msra.mxu0 0.0
  %8177 = vmatprep.subr.mxu0 0.0
  %8178 = vmatpush1.xpose.msra.mxu0 0.0
  %8179 = vmatprep.subr.mxu0 0.0
  %8180 = vmatpush1.xpose.msra.mxu0 0.0
  %8181 = vmatprep.subr.mxu0 0.0
  %8182 = vmatpush1.xpose.msra.mxu0 0.0
  %8183 = vmatprep.subr.mxu0 0.0
  %8184 = vmatpush1.xpose.msra.mxu0 0.0
  %8185 = vmatprep.mubr.f32.mxu0 0.0
  %8186 = vmatmul.mubr.f32.gmra.mrb[0].mxu0 %v8057
  %v8187 = vpop.f32.mrb[0].mxu0
  %v8188 = vadd.f32 %v7977, %v8187
  %v8189 = vpop.f32.mrb[0].mxu0
  %8190 = vmatprep.mubr.f32.mxu0 0.0
  %8191 = vmatmul.mubr.f32.gmra.mrb[0].mxu0 %v8059
  %v8192 = vpop.f32.mrb[0].mxu0
  %v8193 = vadd.f32 %v7978, %v8192
  %v8194 = vpop.f32.mrb[0].mxu0
  %8195 = vmatprep.mubr.f32.mxu0 0.0
  %8196 = vmatmul.mubr.f32.gmra.mrb[0].mxu0 %v8061
  %v8197 = vpop.f32.mrb[0].mxu0
  %v8198 = vadd.f32 %v7979, %v8197
  %v8199 = vpop.f32.mrb[0].mxu0
  %8200 = vmatprep.mubr.f32.mxu0 0.0
  %8201 = vmatmul.mubr.f32.gmra.mrb[0].mxu0 %v8063
  %v8202 = vpop.f32.mrb[0].mxu0
  %v8203 = vadd.f32 %v7980, %v8202
  %v8204 = vpop.f32.mrb[0].mxu0
  %8205 = vmatprep.mubr.f32.mxu0 0.0
  %8206 = vmatmul.mubr.f32.gmra.mrb[0].mxu0 %v8065
  %v8207 = vpop.f32.mrb[0].mxu0
  %v8208 = vadd.f32 %v7981, %v8207
  %v8209 = vpop.f32.mrb[0].mxu0
  %8210 = vmatprep.mubr.f32.mxu0 0.0
  %8211 = vmatmul.mubr.f32.gmra.mrb[0].mxu0 %v8067
  %v8212 = vpop.f32.mrb[0].mxu0
  %v8213 = vadd.f32 %v7982, %v8212
  %v8214 = vpop.f32.mrb[0].mxu0
  %8215 = vmatprep.mubr.f32.mxu0 0.0
  %8216 = vmatmul.mubr.f32.gmra.mrb[0].mxu0 %v8069
  %v8217 = vpop.f32.mrb[0].mxu0
  %v8218 = vadd.f32 %v7983, %v8217
  %v8219 = vpop.f32.mrb[0].mxu0
  %8220 = vmatprep.mubr.f32.mxu0 0.0
  %8221 = vmatmul.mubr.f32.gmra.mrb[0].mxu0 %v8071
  %v8222 = vpop.f32.mrb[0].mxu0
  %v8223 = vadd.f32 %v7984, %v8222
  %v8224 = vpop.f32.mrb[0].mxu0
  %8225 = vmatprep.mubr.f32.mxu0 0.0
  %8226 = vmatmul.mubr.f32.gmra.mrb[0].mxu0 %v8073
  %v8227 = vpop.f32.mrb[0].mxu0
  %v8228 = vadd.f32 %v7985, %v8227
  %v8229 = vpop.f32.mrb[0].mxu0
  %8230 = vmatprep.mubr.f32.mxu0 0.0
  %8231 = vmatmul.mubr.f32.gmra.mrb[0].mxu0 %v8075
  %v8232 = vpop.f32.mrb[0].mxu0
  %v8233 = vadd.f32 %v7986, %v8232
  %v8234 = vpop.f32.mrb[0].mxu0
  %8235 = vmatprep.mubr.f32.mxu0 0.0
  %8236 = vmatmul.mubr.f32.gmra.mrb[0].mxu0 %v8077
  %v8237 = vpop.f32.mrb[0].mxu0
  %v8238 = vadd.f32 %v7987, %v8237
  %v8239 = vpop.f32.mrb[0].mxu0
  %8240 = vmatprep.mubr.f32.mxu0 0.0
  %8241 = vmatmul.mubr.f32.gmra.mrb[0].mxu0 %v8079
  %v8242 = vpop.f32.mrb[0].mxu0
  %v8243 = vadd.f32 %v7988, %v8242
  %v8244 = vpop.f32.mrb[0].mxu0
  %8245 = vmatprep.mubr.f32.mxu0 0.0
  %8246 = vmatmul.mubr.f32.gmra.mrb[0].mxu0 %v8081
  %v8247 = vpop.f32.mrb[0].mxu0
  %v8248 = vadd.f32 %v7989, %v8247
  %v8249 = vpop.f32.mrb[0].mxu0
  %8250 = vmatprep.mubr.f32.mxu0 0.0
  %8251 = vmatmul.mubr.f32.gmra.mrb[0].mxu0 %v8083
  %v8252 = vpop.f32.mrb[0].mxu0
  %v8253 = vadd.f32 %v7990, %v8252
  %v8254 = vpop.f32.mrb[0].mxu0
  %8255 = vmatprep.mubr.f32.mxu0 0.0
  %8256 = vmatmul.mubr.f32.gmra.mrb[0].mxu0 %v8085
  %v8257 = vpop.f32.mrb[0].mxu0
  %v8258 = vadd.f32 %v7991, %v8257
  %v8259 = vpop.f32.mrb[0].mxu0
  %8260 = vmatprep.mubr.f32.mxu0 0.0
  %8261 = vmatmul.mubr.f32.gmra.mrb[0].mxu0 %v8087
  %v8262 = vpop.f32.mrb[0].mxu0
  %v8263 = vadd.f32 %v7992, %v8262
  %v8264 = vpop.f32.mrb[0].mxu0
  %8265 = vdwg.mxu0
  %8266 = vmax.xlane.f32.xlu0 %v8188
  %v8267 = vpop.xlane.xlu0 %8266
  %8268 = vmax.xlane.f32.xlu0 %v8193
  %v8269 = vpop.xlane.xlu0 %8268
  %8270 = vmax.xlane.f32.xlu0 %v8198
  %v8271 = vpop.xlane.xlu0 %8270
  %8272 = vmax.xlane.f32.xlu0 %v8203
  %v8273 = vpop.xlane.xlu0 %8272
  %8274 = vmax.xlane.f32.xlu0 %v8208
  %v8275 = vpop.xlane.xlu0 %8274
  %8276 = vmax.xlane.f32.xlu0 %v8213
  %v8277 = vpop.xlane.xlu0 %8276
  %8278 = vmax.xlane.f32.xlu0 %v8218
  %v8279 = vpop.xlane.xlu0 %8278
  %8280 = vmax.xlane.f32.xlu0 %v8223
  %v8281 = vpop.xlane.xlu0 %8280
  %8282 = vmax.xlane.f32.xlu0 %v8228
  %v8283 = vpop.xlane.xlu0 %8282
  %8284 = vmax.xlane.f32.xlu0 %v8233
  %v8285 = vpop.xlane.xlu0 %8284
  %8286 = vmax.xlane.f32.xlu0 %v8238
  %v8287 = vpop.xlane.xlu0 %8286
  %8288 = vmax.xlane.f32.xlu0 %v8243
  %v8289 = vpop.xlane.xlu0 %8288
  %8290 = vmax.xlane.f32.xlu0 %v8248
  %v8291 = vpop.xlane.xlu0 %8290
  %8292 = vmax.xlane.f32.xlu0 %v8253
  %v8293 = vpop.xlane.xlu0 %8292
  %8294 = vmax.xlane.f32.xlu0 %v8258
  %v8295 = vpop.xlane.xlu0 %8294
  %8296 = vmax.xlane.f32.xlu0 %v8263
  %v8297 = vpop.xlane.xlu0 %8296
  %v8298 = vsub.f32 %v8188, %v8267
  %v8299 = vsub.f32 %v8193, %v8269
  %v8300 = vsub.f32 %v8198, %v8271
  %v8301 = vsub.f32 %v8203, %v8273
  %v8302 = vsub.f32 %v8208, %v8275
  %v8303 = vsub.f32 %v8213, %v8277
  %v8304 = vsub.f32 %v8218, %v8279
  %v8305 = vsub.f32 %v8223, %v8281
  %v8306 = vsub.f32 %v8228, %v8283
  %v8307 = vsub.f32 %v8233, %v8285
  %v8308 = vsub.f32 %v8238, %v8287
  %v8309 = vsub.f32 %v8243, %v8289
  %v8310 = vsub.f32 %v8248, %v8291
  %v8311 = vsub.f32 %v8253, %v8293
  %v8312 = vsub.f32 %v8258, %v8295
  %v8313 = vsub.f32 %v8263, %v8297
  %v8314 = vmul.f32 %v8298, 1.442695
  %v8315 = vpow.pop %v8314
  %v8316 = vmul.f32 %v8299, 1.442695
  %v8317 = vpow.pop %v8316
  %v8318 = vmul.f32 %v8300, 1.442695
  %v8319 = vpow.pop %v8318
  %v8320 = vmul.f32 %v8301, 1.442695
  %v8321 = vpow.pop %v8320
  %v8322 = vmul.f32 %v8302, 1.442695
  %v8323 = vpow.pop %v8322
  %v8324 = vmul.f32 %v8303, 1.442695
  %v8325 = vpow.pop %v8324
  %v8326 = vmul.f32 %v8304, 1.442695
  %v8327 = vpow.pop %v8326
  %v8328 = vmul.f32 %v8305, 1.442695
  %v8329 = vpow.pop %v8328
  %v8330 = vmul.f32 %v8306, 1.442695
  %v8331 = vpow.pop %v8330
  %v8332 = vmul.f32 %v8307, 1.442695
  %v8333 = vpow.pop %v8332
  %v8334 = vmul.f32 %v8308, 1.442695
  %v8335 = vpow.pop %v8334
  %v8336 = vmul.f32 %v8309, 1.442695
  %v8337 = vpow.pop %v8336
  %v8338 = vmul.f32 %v8310, 1.442695
  %v8339 = vpow.pop %v8338
  %v8340 = vmul.f32 %v8311, 1.442695
  %v8341 = vpow.pop %v8340
  %v8342 = vmul.f32 %v8312, 1.442695
  %v8343 = vpow.pop %v8342
  %v8344 = vmul.f32 %v8313, 1.442695
  %v8345 = vpow.pop %v8344
  %8346 = vadd.xlane.f32.xlu0 %v8315
  %v8347 = vpop.xlane.xlu0 %8346
  %8348 = vadd.xlane.f32.xlu0 %v8317
  %v8349 = vpop.xlane.xlu0 %8348
  %8350 = vadd.xlane.f32.xlu0 %v8319
  %v8351 = vpop.xlane.xlu0 %8350
  %8352 = vadd.xlane.f32.xlu0 %v8321
  %v8353 = vpop.xlane.xlu0 %8352
  %8354 = vadd.xlane.f32.xlu0 %v8323
  %v8355 = vpop.xlane.xlu0 %8354
  %8356 = vadd.xlane.f32.xlu0 %v8325
  %v8357 = vpop.xlane.xlu0 %8356
  %8358 = vadd.xlane.f32.xlu0 %v8327
  %v8359 = vpop.xlane.xlu0 %8358
  %8360 = vadd.xlane.f32.xlu0 %v8329
  %v8361 = vpop.xlane.xlu0 %8360
  %8362 = vadd.xlane.f32.xlu0 %v8331
  %v8363 = vpop.xlane.xlu0 %8362
  %8364 = vadd.xlane.f32.xlu0 %v8333
  %v8365 = vpop.xlane.xlu0 %8364
  %8366 = vadd.xlane.f32.xlu0 %v8335
  %v8367 = vpop.xlane.xlu0 %8366
  %8368 = vadd.xlane.f32.xlu0 %v8337
  %v8369 = vpop.xlane.xlu0 %8368
  %8370 = vadd.xlane.f32.xlu0 %v8339
  %v8371 = vpop.xlane.xlu0 %8370
  %8372 = vadd.xlane.f32.xlu0 %v8341
  %v8373 = vpop.xlane.xlu0 %8372
  %8374 = vadd.xlane.f32.xlu0 %v8343
  %v8375 = vpop.xlane.xlu0 %8374
  %8376 = vadd.xlane.f32.xlu0 %v8345
  %v8377 = vpop.xlane.xlu0 %8376
  %v8378 = vrcp.pop %v8347
  %v8379 = vrcp.pop %v8349
  %v8380 = vrcp.pop %v8351
  %v8381 = vrcp.pop %v8353
  %v8382 = vrcp.pop %v8355
  %v8383 = vrcp.pop %v8357
  %v8384 = vrcp.pop %v8359
  %v8385 = vrcp.pop %v8361
  %v8386 = vrcp.pop %v8363
  %v8387 = vrcp.pop %v8365
  %v8388 = vrcp.pop %v8367
  %v8389 = vrcp.pop %v8369
  %v8390 = vrcp.pop %v8371
  %v8391 = vrcp.pop %v8373
  %v8392 = vrcp.pop %v8375
  %v8393 = vrcp.pop %v8377
  %v8394 = vmul.f32 %v8315, %v8378
  %v8395 = vmul.f32 %v8317, %v8379
  %v8396 = vmul.f32 %v8319, %v8380
  %v8397 = vmul.f32 %v8321, %v8381
  %v8398 = vmul.f32 %v8323, %v8382
  %v8399 = vmul.f32 %v8325, %v8383
  %v8400 = vmul.f32 %v8327, %v8384
  %v8401 = vmul.f32 %v8329, %v8385
  %v8402 = vmul.f32 %v8331, %v8386
  %v8403 = vmul.f32 %v8333, %v8387
  %v8404 = vmul.f32 %v8335, %v8388
  %v8405 = vmul.f32 %v8337, %v8389
  %v8406 = vmul.f32 %v8339, %v8390
  %v8407 = vmul.f32 %v8341, %v8391
  %v8408 = vmul.f32 %v8343, %v8392
  %v8409 = vmul.f32 %v8345, %v8393
  %8410 = vrot.lane.b32.xlu0 %v5403, 40
  %v8411 = vpop.permute.xlu0 %8410
  %8412 = vrot.lane.b32.xlu0 %v5408, 40
  %v8413 = vpop.permute.xlu0 %8412
  %8414 = vrot.lane.b32.xlu0 %v5413, 40
  %v8415 = vpop.permute.xlu0 %8414
  %8416 = vrot.lane.b32.xlu0 %v5418, 40
  %v8417 = vpop.permute.xlu0 %8416
  %8418 = vrot.lane.b32.xlu0 %v5423, 40
  %v8419 = vpop.permute.xlu0 %8418
  %8420 = vrot.lane.b32.xlu0 %v5428, 40
  %v8421 = vpop.permute.xlu0 %8420
  %8422 = vrot.lane.b32.xlu0 %v5433, 40
  %v8423 = vpop.permute.xlu0 %8422
  %8424 = vrot.lane.b32.xlu0 %v5438, 40
  %v8425 = vpop.permute.xlu0 %8424
  %8426 = vrot.lane.b32.xlu0 %v5443, 40
  %v8427 = vpop.permute.xlu0 %8426
  %8428 = vrot.lane.b32.xlu0 %v5448, 40
  %v8429 = vpop.permute.xlu0 %8428
  %8430 = vrot.lane.b32.xlu0 %v5453, 40
  %v8431 = vpop.permute.xlu0 %8430
  %8432 = vrot.lane.b32.xlu0 %v5458, 40
  %v8433 = vpop.permute.xlu0 %8432
  %8434 = vrot.lane.b32.xlu0 %v5463, 40
  %v8435 = vpop.permute.xlu0 %8434
  %8436 = vrot.lane.b32.xlu0 %v5468, 40
  %v8437 = vpop.permute.xlu0 %8436
  %8438 = vrot.lane.b32.xlu0 %v5473, 40
  %v8439 = vpop.permute.xlu0 %8438
  %8440 = vrot.lane.b32.xlu0 %v5478, 40
  %v8441 = vpop.permute.xlu0 %8440
  %8458 = vmatprep.subr.mxu0 0.0
  %8459 = vmatpush1.msra.mxu0 %v8411
  %8460 = vmatprep.subr.mxu0 0.0
  %8461 = vmatpush1.msra.mxu0 %v8413
  %8462 = vmatprep.subr.mxu0 0.0
  %8463 = vmatpush1.msra.mxu0 %v8415
  %8464 = vmatprep.subr.mxu0 0.0
  %8465 = vmatpush1.msra.mxu0 %v8417
  %8466 = vmatprep.subr.mxu0 0.0
  %8467 = vmatpush1.msra.mxu0 %v8419
  %8468 = vmatprep.subr.mxu0 0.0
  %8469 = vmatpush1.msra.mxu0 %v8421
  %8470 = vmatprep.subr.mxu0 0.0
  %8471 = vmatpush1.msra.mxu0 %v8423
  %8472 = vmatprep.subr.mxu0 0.0
  %8473 = vmatpush1.msra.mxu0 %v8425
  %8474 = vmatprep.subr.mxu0 0.0
  %8475 = vmatpush1.msra.mxu0 %v8427
  %8476 = vmatprep.subr.mxu0 0.0
  %8477 = vmatpush1.msra.mxu0 %v8429
  %8478 = vmatprep.subr.mxu0 0.0
  %8479 = vmatpush1.msra.mxu0 %v8431
  %8480 = vmatprep.subr.mxu0 0.0
  %8481 = vmatpush1.msra.mxu0 %v8433
  %8482 = vmatprep.subr.mxu0 0.0
  %8483 = vmatpush1.msra.mxu0 %v8435
  %8484 = vmatprep.subr.mxu0 0.0
  %8485 = vmatpush1.msra.mxu0 %v8437
  %8486 = vmatprep.subr.mxu0 0.0
  %8487 = vmatpush1.msra.mxu0 %v8439
  %8488 = vmatprep.subr.mxu0 0.0
  %8489 = vmatpush1.msra.mxu0 %v8441
  %8490 = vmatprep.subr.mxu0 0.0
  %8491 = vmatpush1.msra.mxu0 0.0
  %8492 = vmatprep.subr.mxu0 0.0
  %8493 = vmatpush1.msra.mxu0 0.0
  %8494 = vmatprep.subr.mxu0 0.0
  %8495 = vmatpush1.msra.mxu0 0.0
  %8496 = vmatprep.subr.mxu0 0.0
  %8497 = vmatpush1.msra.mxu0 0.0
  %8498 = vmatprep.subr.mxu0 0.0
  %8499 = vmatpush1.msra.mxu0 0.0
  %8500 = vmatprep.subr.mxu0 0.0
  %8501 = vmatpush1.msra.mxu0 0.0
  %8502 = vmatprep.subr.mxu0 0.0
  %8503 = vmatpush1.msra.mxu0 0.0
  %8504 = vmatprep.subr.mxu0 0.0
  %8505 = vmatpush1.msra.mxu0 0.0
  %8506 = vmatprep.subr.mxu0 0.0
  %8507 = vmatpush1.msra.mxu0 0.0
  %8508 = vmatprep.subr.mxu0 0.0
  %8509 = vmatpush1.msra.mxu0 0.0
  %8510 = vmatprep.subr.mxu0 0.0
  %8511 = vmatpush1.msra.mxu0 0.0
  %8512 = vmatprep.subr.mxu0 0.0
  %8513 = vmatpush1.msra.mxu0 0.0
  %8514 = vmatprep.subr.mxu0 0.0
  %8515 = vmatpush1.msra.mxu0 0.0
  %8516 = vmatprep.subr.mxu0 0.0
  %8517 = vmatpush1.msra.mxu0 0.0
  %8518 = vmatprep.subr.mxu0 0.0
  %8519 = vmatpush1.msra.mxu0 0.0
  %8520 = vmatprep.subr.mxu0 0.0
  %8521 = vmatpush1.msra.mxu0 0.0
  %8522 = vmatprep.mubr.f32.mxu0 0.0
  %8523 = vmatmul.mubr.f32.gmra.mrb[0].mxu0 %v8394
  %v8524 = vpop.f32.mrb[0].mxu0
  %v8525 = vadd.f32 0.0, %v8524
  %v8526 = vpop.f32.mrb[0].mxu0
  %8527 = vmatprep.mubr.f32.mxu0 0.0
  %8528 = vmatmul.mubr.f32.gmra.mrb[0].mxu0 %v8395
  %v8529 = vpop.f32.mrb[0].mxu0
  %v8530 = vadd.f32 0.0, %v8529
  %v8531 = vpop.f32.mrb[0].mxu0
  %8532 = vmatprep.mubr.f32.mxu0 0.0
  %8533 = vmatmul.mubr.f32.gmra.mrb[0].mxu0 %v8396
  %v8534 = vpop.f32.mrb[0].mxu0
  %v8535 = vadd.f32 0.0, %v8534
  %v8536 = vpop.f32.mrb[0].mxu0
  %8537 = vmatprep.mubr.f32.mxu0 0.0
  %8538 = vmatmul.mubr.f32.gmra.mrb[0].mxu0 %v8397
  %v8539 = vpop.f32.mrb[0].mxu0
  %v8540 = vadd.f32 0.0, %v8539
  %v8541 = vpop.f32.mrb[0].mxu0
  %8542 = vmatprep.mubr.f32.mxu0 0.0
  %8543 = vmatmul.mubr.f32.gmra.mrb[0].mxu0 %v8398
  %v8544 = vpop.f32.mrb[0].mxu0
  %v8545 = vadd.f32 0.0, %v8544
  %v8546 = vpop.f32.mrb[0].mxu0
  %8547 = vmatprep.mubr.f32.mxu0 0.0
  %8548 = vmatmul.mubr.f32.gmra.mrb[0].mxu0 %v8399
  %v8549 = vpop.f32.mrb[0].mxu0
  %v8550 = vadd.f32 0.0, %v8549
  %v8551 = vpop.f32.mrb[0].mxu0
  %8552 = vmatprep.mubr.f32.mxu0 0.0
  %8553 = vmatmul.mubr.f32.gmra.mrb[0].mxu0 %v8400
  %v8554 = vpop.f32.mrb[0].mxu0
  %v8555 = vadd.f32 0.0, %v8554
  %v8556 = vpop.f32.mrb[0].mxu0
  %8557 = vmatprep.mubr.f32.mxu0 0.0
  %8558 = vmatmul.mubr.f32.gmra.mrb[0].mxu0 %v8401
  %v8559 = vpop.f32.mrb[0].mxu0
  %v8560 = vadd.f32 0.0, %v8559
  %v8561 = vpop.f32.mrb[0].mxu0
  %8562 = vmatprep.mubr.f32.mxu0 0.0
  %8563 = vmatmul.mubr.f32.gmra.mrb[0].mxu0 %v8402
  %v8564 = vpop.f32.mrb[0].mxu0
  %v8565 = vadd.f32 0.0, %v8564
  %v8566 = vpop.f32.mrb[0].mxu0
  %8567 = vmatprep.mubr.f32.mxu0 0.0
  %8568 = vmatmul.mubr.f32.gmra.mrb[0].mxu0 %v8403
  %v8569 = vpop.f32.mrb[0].mxu0
  %v8570 = vadd.f32 0.0, %v8569
  %v8571 = vpop.f32.mrb[0].mxu0
  %8572 = vmatprep.mubr.f32.mxu0 0.0
  %8573 = vmatmul.mubr.f32.gmra.mrb[0].mxu0 %v8404
  %v8574 = vpop.f32.mrb[0].mxu0
  %v8575 = vadd.f32 0.0, %v8574
  %v8576 = vpop.f32.mrb[0].mxu0
  %8577 = vmatprep.mubr.f32.mxu0 0.0
  %8578 = vmatmul.mubr.f32.gmra.mrb[0].mxu0 %v8405
  %v8579 = vpop.f32.mrb[0].mxu0
  %v8580 = vadd.f32 0.0, %v8579
  %v8581 = vpop.f32.mrb[0].mxu0
  %8582 = vmatprep.mubr.f32.mxu0 0.0
  %8583 = vmatmul.mubr.f32.gmra.mrb[0].mxu0 %v8406
  %v8584 = vpop.f32.mrb[0].mxu0
  %v8585 = vadd.f32 0.0, %v8584
  %v8586 = vpop.f32.mrb[0].mxu0
  %8587 = vmatprep.mubr.f32.mxu0 0.0
  %8588 = vmatmul.mubr.f32.gmra.mrb[0].mxu0 %v8407
  %v8589 = vpop.f32.mrb[0].mxu0
  %v8590 = vadd.f32 0.0, %v8589
  %v8591 = vpop.f32.mrb[0].mxu0
  %8592 = vmatprep.mubr.f32.mxu0 0.0
  %8593 = vmatmul.mubr.f32.gmra.mrb[0].mxu0 %v8408
  %v8594 = vpop.f32.mrb[0].mxu0
  %v8595 = vadd.f32 0.0, %v8594
  %v8596 = vpop.f32.mrb[0].mxu0
  %8597 = vmatprep.mubr.f32.mxu0 0.0
  %8598 = vmatmul.mubr.f32.gmra.mrb[0].mxu0 %v8409
  %v8599 = vpop.f32.mrb[0].mxu0
  %v8600 = vadd.f32 0.0, %v8599
  %v8601 = vpop.f32.mrb[0].mxu0
  %8602 = vdwg.mxu0
  %v8604 = vsel %vm646, %v8525, 0
  %v8607 = vsel %vm646, %v8530, 0
  %v8610 = vsel %vm646, %v8535, 0
  %v8613 = vsel %vm646, %v8540, 0
  %v8616 = vsel %vm646, %v8545, 0
  %v8619 = vsel %vm646, %v8550, 0
  %v8622 = vsel %vm646, %v8555, 0
  %v8625 = vsel %vm646, %v8560, 0
  %v8628 = vsel %vm646, %v8565, 0
  %v8631 = vsel %vm646, %v8570, 0
  %v8634 = vsel %vm646, %v8575, 0
  %v8637 = vsel %vm646, %v8580, 0
  %v8640 = vsel %vm646, %v8585, 0
  %v8643 = vsel %vm646, %v8590, 0
  %v8646 = vsel %vm646, %v8595, 0
  %v8649 = vsel %vm646, %v8600, 0
  %8651 = vmatprep.subr.mxu0 0.0
  %8652 = vmatpush1.msra.mxu0 %v5484
  %8653 = vmatprep.subr.mxu0 0.0
  %8654 = vmatpush1.msra.mxu0 0.0
  %8655 = vmatprep.subr.mxu0 0.0
  %8656 = vmatpush1.msra.mxu0 0.0
  %8657 = vmatprep.subr.mxu0 0.0
  %8658 = vmatpush1.msra.mxu0 0.0
  %8659 = vmatprep.subr.mxu0 0.0
  %8660 = vmatpush1.msra.mxu0 0.0
  %8661 = vmatprep.subr.mxu0 0.0
  %8662 = vmatpush1.msra.mxu0 0.0
  %8663 = vmatprep.subr.mxu0 0.0
  %8664 = vmatpush1.msra.mxu0 0.0
  %8665 = vmatprep.subr.mxu0 0.0
  %8666 = vmatpush1.msra.mxu0 0.0
  %8667 = vmatprep.subr.mxu0 0.0
  %8668 = vmatpush1.msra.mxu0 0.0
  %8669 = vmatprep.subr.mxu0 0.0
  %8670 = vmatpush1.msra.mxu0 0.0
  %8671 = vmatprep.subr.mxu0 0.0
  %8672 = vmatpush1.msra.mxu0 0.0
  %8673 = vmatprep.subr.mxu0 0.0
  %8674 = vmatpush1.msra.mxu0 0.0
  %8675 = vmatprep.subr.mxu0 0.0
  %8676 = vmatpush1.msra.mxu0 0.0
  %8677 = vmatprep.subr.mxu0 0.0
  %8678 = vmatpush1.msra.mxu0 0.0
  %8679 = vmatprep.subr.mxu0 0.0
  %8680 = vmatpush1.msra.mxu0 0.0
  %8681 = vmatprep.subr.mxu0 0.0
  %8682 = vmatpush1.msra.mxu0 0.0
  %8683 = vmatprep.subr.mxu0 0.0
  %8684 = vmatpush1.msra.mxu0 0.0
  %8685 = vmatprep.subr.mxu0 0.0
  %8686 = vmatpush1.msra.mxu0 0.0
  %8687 = vmatprep.subr.mxu0 0.0
  %8688 = vmatpush1.msra.mxu0 0.0
  %8689 = vmatprep.subr.mxu0 0.0
  %8690 = vmatpush1.msra.mxu0 0.0
  %8691 = vmatprep.subr.mxu0 0.0
  %8692 = vmatpush1.msra.mxu0 0.0
  %8693 = vmatprep.subr.mxu0 0.0
  %8694 = vmatpush1.msra.mxu0 0.0
  %8695 = vmatprep.subr.mxu0 0.0
  %8696 = vmatpush1.msra.mxu0 0.0
  %8697 = vmatprep.subr.mxu0 0.0
  %8698 = vmatpush1.msra.mxu0 0.0
  %8699 = vmatprep.subr.mxu0 0.0
  %8700 = vmatpush1.msra.mxu0 0.0
  %8701 = vmatprep.subr.mxu0 0.0
  %8702 = vmatpush1.msra.mxu0 0.0
  %8703 = vmatprep.subr.mxu0 0.0
  %8704 = vmatpush1.msra.mxu0 0.0
  %8705 = vmatprep.subr.mxu0 0.0
  %8706 = vmatpush1.msra.mxu0 0.0
  %8707 = vmatprep.subr.mxu0 0.0
  %8708 = vmatpush1.msra.mxu0 0.0
  %8709 = vmatprep.subr.mxu0 0.0
  %8710 = vmatpush1.msra.mxu0 0.0
  %8711 = vmatprep.subr.mxu0 0.0
  %8712 = vmatpush1.msra.mxu0 0.0
  %8713 = vmatprep.subr.mxu0 0.0
  %8714 = vmatpush1.msra.mxu0 0.0
  %8715 = vmatprep.mubr.f32.mxu0 0.0
  %8716 = vmatmul.mubr.f32.gmra.mrb[0].mxu0 %v8604
  %v8717 = vpop.f32.mrb[0].mxu0
  %v8718 = vadd.f32 0.0, %v8717
  %v8719 = vpop.f32.mrb[0].mxu0
  %8720 = vmatprep.mubr.f32.mxu0 0.0
  %8721 = vmatmul.mubr.f32.gmra.mrb[0].mxu0 %v8607
  %v8722 = vpop.f32.mrb[0].mxu0
  %v8723 = vadd.f32 0.0, %v8722
  %v8724 = vpop.f32.mrb[0].mxu0
  %8725 = vmatprep.mubr.f32.mxu0 0.0
  %8726 = vmatmul.mubr.f32.gmra.mrb[0].mxu0 %v8610
  %v8727 = vpop.f32.mrb[0].mxu0
  %v8728 = vadd.f32 0.0, %v8727
  %v8729 = vpop.f32.mrb[0].mxu0
  %8730 = vmatprep.mubr.f32.mxu0 0.0
  %8731 = vmatmul.mubr.f32.gmra.mrb[0].mxu0 %v8613
  %v8732 = vpop.f32.mrb[0].mxu0
  %v8733 = vadd.f32 0.0, %v8732
  %v8734 = vpop.f32.mrb[0].mxu0
  %8735 = vmatprep.mubr.f32.mxu0 0.0
  %8736 = vmatmul.mubr.f32.gmra.mrb[0].mxu0 %v8616
  %v8737 = vpop.f32.mrb[0].mxu0
  %v8738 = vadd.f32 0.0, %v8737
  %v8739 = vpop.f32.mrb[0].mxu0
  %8740 = vmatprep.mubr.f32.mxu0 0.0
  %8741 = vmatmul.mubr.f32.gmra.mrb[0].mxu0 %v8619
  %v8742 = vpop.f32.mrb[0].mxu0
  %v8743 = vadd.f32 0.0, %v8742
  %v8744 = vpop.f32.mrb[0].mxu0
  %8745 = vmatprep.mubr.f32.mxu0 0.0
  %8746 = vmatmul.mubr.f32.gmra.mrb[0].mxu0 %v8622
  %v8747 = vpop.f32.mrb[0].mxu0
  %v8748 = vadd.f32 0.0, %v8747
  %v8749 = vpop.f32.mrb[0].mxu0
  %8750 = vmatprep.mubr.f32.mxu0 0.0
  %8751 = vmatmul.mubr.f32.gmra.mrb[0].mxu0 %v8625
  %v8752 = vpop.f32.mrb[0].mxu0
  %v8753 = vadd.f32 0.0, %v8752
  %v8754 = vpop.f32.mrb[0].mxu0
  %8755 = vmatprep.mubr.f32.mxu0 0.0
  %8756 = vmatmul.mubr.f32.gmra.mrb[0].mxu0 %v8628
  %v8757 = vpop.f32.mrb[0].mxu0
  %v8758 = vadd.f32 0.0, %v8757
  %v8759 = vpop.f32.mrb[0].mxu0
  %8760 = vmatprep.mubr.f32.mxu0 0.0
  %8761 = vmatmul.mubr.f32.gmra.mrb[0].mxu0 %v8631
  %v8762 = vpop.f32.mrb[0].mxu0
  %v8763 = vadd.f32 0.0, %v8762
  %v8764 = vpop.f32.mrb[0].mxu0
  %8765 = vmatprep.mubr.f32.mxu0 0.0
  %8766 = vmatmul.mubr.f32.gmra.mrb[0].mxu0 %v8634
  %v8767 = vpop.f32.mrb[0].mxu0
  %v8768 = vadd.f32 0.0, %v8767
  %v8769 = vpop.f32.mrb[0].mxu0
  %8770 = vmatprep.mubr.f32.mxu0 0.0
  %8771 = vmatmul.mubr.f32.gmra.mrb[0].mxu0 %v8637
  %v8772 = vpop.f32.mrb[0].mxu0
  %v8773 = vadd.f32 0.0, %v8772
  %v8774 = vpop.f32.mrb[0].mxu0
  %8775 = vmatprep.mubr.f32.mxu0 0.0
  %8776 = vmatmul.mubr.f32.gmra.mrb[0].mxu0 %v8640
  %v8777 = vpop.f32.mrb[0].mxu0
  %v8778 = vadd.f32 0.0, %v8777
  %v8779 = vpop.f32.mrb[0].mxu0
  %8780 = vmatprep.mubr.f32.mxu0 0.0
  %8781 = vmatmul.mubr.f32.gmra.mrb[0].mxu0 %v8643
  %v8782 = vpop.f32.mrb[0].mxu0
  %v8783 = vadd.f32 0.0, %v8782
  %v8784 = vpop.f32.mrb[0].mxu0
  %8785 = vmatprep.mubr.f32.mxu0 0.0
  %8786 = vmatmul.mubr.f32.gmra.mrb[0].mxu0 %v8646
  %v8787 = vpop.f32.mrb[0].mxu0
  %v8788 = vadd.f32 0.0, %v8787
  %v8789 = vpop.f32.mrb[0].mxu0
  %8790 = vmatprep.mubr.f32.mxu0 0.0
  %8791 = vmatmul.mubr.f32.gmra.mrb[0].mxu0 %v8649
  %v8792 = vpop.f32.mrb[0].mxu0
  %v8793 = vadd.f32 0.0, %v8792
  %v8794 = vpop.f32.mrb[0].mxu0
  %8795 = vdwg.mxu0
  %v8796 = vadd.f32 %v7960, %v8718
  %v8797 = vadd.f32 %v7961, %v8723
  %v8798 = vadd.f32 %v7962, %v8728
  %v8799 = vadd.f32 %v7963, %v8733
  %v8800 = vadd.f32 %v7964, %v8738
  %v8801 = vadd.f32 %v7965, %v8743
  %v8802 = vadd.f32 %v7966, %v8748
  %v8803 = vadd.f32 %v7967, %v8753
  %v8804 = vadd.f32 %v7968, %v8758
  %v8805 = vadd.f32 %v7969, %v8763
  %v8806 = vadd.f32 %v7970, %v8768
  %v8807 = vadd.f32 %v7971, %v8773
  %v8808 = vadd.f32 %v7972, %v8778
  %v8809 = vadd.f32 %v7973, %v8783
  %v8810 = vadd.f32 %v7974, %v8788
  %v8811 = vadd.f32 %v7975, %v8793
  %v8812 = vadd.f32 %v5007, %v8796
  %v8813 = vadd.f32 %v5008, %v8797
  %v8814 = vadd.f32 %v5009, %v8798
  %v8815 = vadd.f32 %v5010, %v8799
  %v8816 = vadd.f32 %v5011, %v8800
  %v8817 = vadd.f32 %v5012, %v8801
  %v8818 = vadd.f32 %v5013, %v8802
  %v8819 = vadd.f32 %v5014, %v8803
  %v8820 = vadd.f32 %v5015, %v8804
  %v8821 = vadd.f32 %v5016, %v8805
  %v8822 = vadd.f32 %v5017, %v8806
  %v8823 = vadd.f32 %v5018, %v8807
  %v8824 = vadd.f32 %v5019, %v8808
  %v8825 = vadd.f32 %v5020, %v8809
  %v8826 = vadd.f32 %v5021, %v8810
  %v8827 = vadd.f32 %v5022, %v8811
  %v8828 = vld [vmem:[%s20] sm:$0x1]
  %v8830 = vlaneseq
  %v8831 = vshrl.u32 %v8830, 7
  %v8832 = vsub.s32 0, %v8831
  %v8833 = vrot.slane %v8828, %v8832
  %v8835 = vadd.f32 %v8812, %v8833
  %v8836 = vadd.f32 %v8813, %v8833
  %v8837 = vadd.f32 %v8814, %v8833
  %v8838 = vadd.f32 %v8815, %v8833
  %v8839 = vadd.f32 %v8816, %v8833
  %v8840 = vadd.f32 %v8817, %v8833
  %v8841 = vadd.f32 %v8818, %v8833
  %v8842 = vadd.f32 %v8819, %v8833
  %v8843 = vadd.f32 %v8820, %v8833
  %v8844 = vadd.f32 %v8821, %v8833
  %v8845 = vadd.f32 %v8822, %v8833
  %v8846 = vadd.f32 %v8823, %v8833
  %v8847 = vadd.f32 %v8824, %v8833
  %v8848 = vadd.f32 %v8825, %v8833
  %v8849 = vadd.f32 %v8826, %v8833
  %v8850 = vadd.f32 %v8827, %v8833
  %v8851 = vld [vmem:[%s21] sm:$0x1]
  %v8852 = vld [vmem:[%s22] sm:$0x1]
  %v8853 = vsel %vm104, %v8835, 0.0
  %8854 = vadd.xlane.f32.xlu0 %v8853
  %v8855 = vpop.xlane.xlu0 %8854
  %v8856 = vsel %vm104, %v8836, 0.0
  %8857 = vadd.xlane.f32.xlu0 %v8856
  %v8858 = vpop.xlane.xlu0 %8857
  %v8859 = vsel %vm104, %v8837, 0.0
  %8860 = vadd.xlane.f32.xlu0 %v8859
  %v8861 = vpop.xlane.xlu0 %8860
  %v8862 = vsel %vm104, %v8838, 0.0
  %8863 = vadd.xlane.f32.xlu0 %v8862
  %v8864 = vpop.xlane.xlu0 %8863
  %v8865 = vsel %vm104, %v8839, 0.0
  %8866 = vadd.xlane.f32.xlu0 %v8865
  %v8867 = vpop.xlane.xlu0 %8866
  %v8868 = vsel %vm104, %v8840, 0.0
  %8869 = vadd.xlane.f32.xlu0 %v8868
  %v8870 = vpop.xlane.xlu0 %8869
  %v8871 = vsel %vm104, %v8841, 0.0
  %8872 = vadd.xlane.f32.xlu0 %v8871
  %v8873 = vpop.xlane.xlu0 %8872
  %v8874 = vsel %vm104, %v8842, 0.0
  %8875 = vadd.xlane.f32.xlu0 %v8874
  %v8876 = vpop.xlane.xlu0 %8875
  %v8877 = vsel %vm104, %v8843, 0.0
  %8878 = vadd.xlane.f32.xlu0 %v8877
  %v8879 = vpop.xlane.xlu0 %8878
  %v8880 = vsel %vm104, %v8844, 0.0
  %8881 = vadd.xlane.f32.xlu0 %v8880
  %v8882 = vpop.xlane.xlu0 %8881
  %v8883 = vsel %vm104, %v8845, 0.0
  %8884 = vadd.xlane.f32.xlu0 %v8883
  %v8885 = vpop.xlane.xlu0 %8884
  %v8886 = vsel %vm104, %v8846, 0.0
  %8887 = vadd.xlane.f32.xlu0 %v8886
  %v8888 = vpop.xlane.xlu0 %8887
  %v8889 = vsel %vm104, %v8847, 0.0
  %8890 = vadd.xlane.f32.xlu0 %v8889
  %v8891 = vpop.xlane.xlu0 %8890
  %v8892 = vsel %vm104, %v8848, 0.0
  %8893 = vadd.xlane.f32.xlu0 %v8892
  %v8894 = vpop.xlane.xlu0 %8893
  %v8895 = vsel %vm104, %v8849, 0.0
  %8896 = vadd.xlane.f32.xlu0 %v8895
  %v8897 = vpop.xlane.xlu0 %8896
  %v8898 = vsel %vm104, %v8850, 0.0
  %8899 = vadd.xlane.f32.xlu0 %v8898
  %v8900 = vpop.xlane.xlu0 %8899
  %v8901 = vmul.f32 %v8855, %v153
  %v8902 = vmul.f32 %v8858, %v153
  %v8903 = vmul.f32 %v8861, %v153
  %v8904 = vmul.f32 %v8864, %v153
  %v8905 = vmul.f32 %v8867, %v153
  %v8906 = vmul.f32 %v8870, %v153
  %v8907 = vmul.f32 %v8873, %v153
  %v8908 = vmul.f32 %v8876, %v153
  %v8909 = vmul.f32 %v8879, %v153
  %v8910 = vmul.f32 %v8882, %v153
  %v8911 = vmul.f32 %v8885, %v153
  %v8912 = vmul.f32 %v8888, %v153
  %v8913 = vmul.f32 %v8891, %v153
  %v8914 = vmul.f32 %v8894, %v153
  %v8915 = vmul.f32 %v8897, %v153
  %v8916 = vmul.f32 %v8900, %v153
  %v8917 = vsub.f32 %v8835, %v8901
  %v8918 = vsub.f32 %v8836, %v8902
  %v8919 = vsub.f32 %v8837, %v8903
  %v8920 = vsub.f32 %v8838, %v8904
  %v8921 = vsub.f32 %v8839, %v8905
  %v8922 = vsub.f32 %v8840, %v8906
  %v8923 = vsub.f32 %v8841, %v8907
  %v8924 = vsub.f32 %v8842, %v8908
  %v8925 = vsub.f32 %v8843, %v8909
  %v8926 = vsub.f32 %v8844, %v8910
  %v8927 = vsub.f32 %v8845, %v8911
  %v8928 = vsub.f32 %v8846, %v8912
  %v8929 = vsub.f32 %v8847, %v8913
  %v8930 = vsub.f32 %v8848, %v8914
  %v8931 = vsub.f32 %v8849, %v8915
  %v8932 = vsub.f32 %v8850, %v8916
  %v8933 = vmul.f32 %v8917, %v8917
  %v8934 = vmul.f32 %v8918, %v8918
  %v8935 = vmul.f32 %v8919, %v8919
  %v8936 = vmul.f32 %v8920, %v8920
  %v8937 = vmul.f32 %v8921, %v8921
  %v8938 = vmul.f32 %v8922, %v8922
  %v8939 = vmul.f32 %v8923, %v8923
  %v8940 = vmul.f32 %v8924, %v8924
  %v8941 = vmul.f32 %v8925, %v8925
  %v8942 = vmul.f32 %v8926, %v8926
  %v8943 = vmul.f32 %v8927, %v8927
  %v8944 = vmul.f32 %v8928, %v8928
  %v8945 = vmul.f32 %v8929, %v8929
  %v8946 = vmul.f32 %v8930, %v8930
  %v8947 = vmul.f32 %v8931, %v8931
  %v8948 = vmul.f32 %v8932, %v8932
  %v8949 = vsel %vm104, %v8933, 0.0
  %8950 = vadd.xlane.f32.xlu0 %v8949
  %v8951 = vpop.xlane.xlu0 %8950
  %v8952 = vsel %vm104, %v8934, 0.0
  %8953 = vadd.xlane.f32.xlu0 %v8952
  %v8954 = vpop.xlane.xlu0 %8953
  %v8955 = vsel %vm104, %v8935, 0.0
  %8956 = vadd.xlane.f32.xlu0 %v8955
  %v8957 = vpop.xlane.xlu0 %8956
  %v8958 = vsel %vm104, %v8936, 0.0
  %8959 = vadd.xlane.f32.xlu0 %v8958
  %v8960 = vpop.xlane.xlu0 %8959
  %v8961 = vsel %vm104, %v8937, 0.0
  %8962 = vadd.xlane.f32.xlu0 %v8961
  %v8963 = vpop.xlane.xlu0 %8962
  %v8964 = vsel %vm104, %v8938, 0.0
  %8965 = vadd.xlane.f32.xlu0 %v8964
  %v8966 = vpop.xlane.xlu0 %8965
  %v8967 = vsel %vm104, %v8939, 0.0
  %8968 = vadd.xlane.f32.xlu0 %v8967
  %v8969 = vpop.xlane.xlu0 %8968
  %v8970 = vsel %vm104, %v8940, 0.0
  %8971 = vadd.xlane.f32.xlu0 %v8970
  %v8972 = vpop.xlane.xlu0 %8971
  %v8973 = vsel %vm104, %v8941, 0.0
  %8974 = vadd.xlane.f32.xlu0 %v8973
  %v8975 = vpop.xlane.xlu0 %8974
  %v8976 = vsel %vm104, %v8942, 0.0
  %8977 = vadd.xlane.f32.xlu0 %v8976
  %v8978 = vpop.xlane.xlu0 %8977
  %v8979 = vsel %vm104, %v8943, 0.0
  %8980 = vadd.xlane.f32.xlu0 %v8979
  %v8981 = vpop.xlane.xlu0 %8980
  %v8982 = vsel %vm104, %v8944, 0.0
  %8983 = vadd.xlane.f32.xlu0 %v8982
  %v8984 = vpop.xlane.xlu0 %8983
  %v8985 = vsel %vm104, %v8945, 0.0
  %8986 = vadd.xlane.f32.xlu0 %v8985
  %v8987 = vpop.xlane.xlu0 %8986
  %v8988 = vsel %vm104, %v8946, 0.0
  %8989 = vadd.xlane.f32.xlu0 %v8988
  %v8990 = vpop.xlane.xlu0 %8989
  %v8991 = vsel %vm104, %v8947, 0.0
  %8992 = vadd.xlane.f32.xlu0 %v8991
  %v8993 = vpop.xlane.xlu0 %8992
  %v8994 = vsel %vm104, %v8948, 0.0
  %8995 = vadd.xlane.f32.xlu0 %v8994
  %v8996 = vpop.xlane.xlu0 %8995
  %v8997 = vmul.f32 %v8951, %v153
  %v8998 = vmul.f32 %v8954, %v153
  %v8999 = vmul.f32 %v8957, %v153
  %v9000 = vmul.f32 %v8960, %v153
  %v9001 = vmul.f32 %v8963, %v153
  %v9002 = vmul.f32 %v8966, %v153
  %v9003 = vmul.f32 %v8969, %v153
  %v9004 = vmul.f32 %v8972, %v153
  %v9005 = vmul.f32 %v8975, %v153
  %v9006 = vmul.f32 %v8978, %v153
  %v9007 = vmul.f32 %v8981, %v153
  %v9008 = vmul.f32 %v8984, %v153
  %v9009 = vmul.f32 %v8987, %v153
  %v9010 = vmul.f32 %v8990, %v153
  %v9011 = vmul.f32 %v8993, %v153
  %v9012 = vmul.f32 %v8996, %v153
  %v9013 = vadd.f32 %v8997, 1e-05
  %v9014 = vadd.f32 %v8998, 1e-05
  %v9015 = vadd.f32 %v8999, 1e-05
  %v9016 = vadd.f32 %v9000, 1e-05
  %v9017 = vadd.f32 %v9001, 1e-05
  %v9018 = vadd.f32 %v9002, 1e-05
  %v9019 = vadd.f32 %v9003, 1e-05
  %v9020 = vadd.f32 %v9004, 1e-05
  %v9021 = vadd.f32 %v9005, 1e-05
  %v9022 = vadd.f32 %v9006, 1e-05
  %v9023 = vadd.f32 %v9007, 1e-05
  %v9024 = vadd.f32 %v9008, 1e-05
  %v9025 = vadd.f32 %v9009, 1e-05
  %v9026 = vadd.f32 %v9010, 1e-05
  %v9027 = vadd.f32 %v9011, 1e-05
  %v9028 = vadd.f32 %v9012, 1e-05
  %v9029 = vrsqrt.pop %v9013
  %v9030 = vrsqrt.pop %v9014
  %v9031 = vrsqrt.pop %v9015
  %v9032 = vrsqrt.pop %v9016
  %v9033 = vrsqrt.pop %v9017
  %v9034 = vrsqrt.pop %v9018
  %v9035 = vrsqrt.pop %v9019
  %v9036 = vrsqrt.pop %v9020
  %v9037 = vrsqrt.pop %v9021
  %v9038 = vrsqrt.pop %v9022
  %v9039 = vrsqrt.pop %v9023
  %v9040 = vrsqrt.pop %v9024
  %v9041 = vrsqrt.pop %v9025
  %v9042 = vrsqrt.pop %v9026
  %v9043 = vrsqrt.pop %v9027
  %v9044 = vrsqrt.pop %v9028
  %v9045 = vmul.f32 %v8917, %v9029
  %v9046 = vmul.f32 %v8918, %v9030
  %v9047 = vmul.f32 %v8919, %v9031
  %v9048 = vmul.f32 %v8920, %v9032
  %v9049 = vmul.f32 %v8921, %v9033
  %v9050 = vmul.f32 %v8922, %v9034
  %v9051 = vmul.f32 %v8923, %v9035
  %v9052 = vmul.f32 %v8924, %v9036
  %v9053 = vmul.f32 %v8925, %v9037
  %v9054 = vmul.f32 %v8926, %v9038
  %v9055 = vmul.f32 %v8927, %v9039
  %v9056 = vmul.f32 %v8928, %v9040
  %v9057 = vmul.f32 %v8929, %v9041
  %v9058 = vmul.f32 %v8930, %v9042
  %v9059 = vmul.f32 %v8931, %v9043
  %v9060 = vmul.f32 %v8932, %v9044
  %v9062 = vlaneseq
  %v9063 = vshrl.u32 %v9062, 7
  %v9064 = vsub.s32 0, %v9063
  %v9065 = vrot.slane %v8851, %v9064
  %v9067 = vmul.f32 %v9045, %v9065
  %v9068 = vmul.f32 %v9046, %v9065
  %v9069 = vmul.f32 %v9047, %v9065
  %v9070 = vmul.f32 %v9048, %v9065
  %v9071 = vmul.f32 %v9049, %v9065
  %v9072 = vmul.f32 %v9050, %v9065
  %v9073 = vmul.f32 %v9051, %v9065
  %v9074 = vmul.f32 %v9052, %v9065
  %v9075 = vmul.f32 %v9053, %v9065
  %v9076 = vmul.f32 %v9054, %v9065
  %v9077 = vmul.f32 %v9055, %v9065
  %v9078 = vmul.f32 %v9056, %v9065
  %v9079 = vmul.f32 %v9057, %v9065
  %v9080 = vmul.f32 %v9058, %v9065
  %v9081 = vmul.f32 %v9059, %v9065
  %v9082 = vmul.f32 %v9060, %v9065
  %v9084 = vlaneseq
  %v9085 = vshrl.u32 %v9084, 7
  %v9086 = vsub.s32 0, %v9085
  %v9087 = vrot.slane %v8852, %v9086
  %v9089 = vadd.f32 %v9067, %v9087
  %v9090 = vadd.f32 %v9068, %v9087
  %v9091 = vadd.f32 %v9069, %v9087
  %v9092 = vadd.f32 %v9070, %v9087
  %v9093 = vadd.f32 %v9071, %v9087
  %v9094 = vadd.f32 %v9072, %v9087
  %v9095 = vadd.f32 %v9073, %v9087
  %v9096 = vadd.f32 %v9074, %v9087
  %v9097 = vadd.f32 %v9075, %v9087
  %v9098 = vadd.f32 %v9076, %v9087
  %v9099 = vadd.f32 %v9077, %v9087
  %v9100 = vadd.f32 %v9078, %v9087
  %v9101 = vadd.f32 %v9079, %v9087
  %v9102 = vadd.f32 %v9080, %v9087
  %v9103 = vadd.f32 %v9081, %v9087
  %v9104 = vadd.f32 %v9082, %v9087
  %v9105 = vld [vmem:[%s23] sm:$0xff]
  %v9106 = vld [vmem:[%s23 + $0x8] sm:$0xff]
  %v9107 = vld [vmem:[%s23 + $0x10] sm:$0xff]
  %v9108 = vld [vmem:[%s23 + $0x18] sm:$0xff]
  %v9109 = vld [vmem:[%s24] sm:$0x1]
  %v9111 = vlaneseq
  %v9112 = vshrl.u32 %v9111, 7
  %v9113 = vsub.s32 0, %v9112
  %v9114 = vrot.slane %v9109, %v9113
  %v9117 = vsel %vm104, %v9089, 0
  %v9120 = vsel %vm104, %v9090, 0
  %v9123 = vsel %vm104, %v9091, 0
  %v9126 = vsel %vm104, %v9092, 0
  %v9129 = vsel %vm104, %v9093, 0
  %v9132 = vsel %vm104, %v9094, 0
  %v9135 = vsel %vm104, %v9095, 0
  %v9138 = vsel %vm104, %v9096, 0
  %v9141 = vsel %vm104, %v9097, 0
  %v9144 = vsel %vm104, %v9098, 0
  %v9147 = vsel %vm104, %v9099, 0
  %v9150 = vsel %vm104, %v9100, 0
  %v9153 = vsel %vm104, %v9101, 0
  %v9156 = vsel %vm104, %v9102, 0
  %v9159 = vsel %vm104, %v9103, 0
  %v9162 = vsel %vm104, %v9104, 0
  %9164 = vmatprep.subr.mxu0 0.0
  %9165 = vmatpush1.msra.mxu0 %v9105
  %9166 = vmatprep.subr.mxu0 0.0
  %9167 = vmatpush1.msra.mxu0 %v9106
  %9168 = vmatprep.subr.mxu0 0.0
  %9169 = vmatpush1.msra.mxu0 %v9107
  %9170 = vmatprep.subr.mxu0 0.0
  %9171 = vmatpush1.msra.mxu0 %v9108
  %9172 = vmatprep.subr.mxu0 0.0
  %9173 = vmatpush1.msra.mxu0 0.0
  %9174 = vmatprep.subr.mxu0 0.0
  %9175 = vmatpush1.msra.mxu0 0.0
  %9176 = vmatprep.subr.mxu0 0.0
  %9177 = vmatpush1.msra.mxu0 0.0
  %9178 = vmatprep.subr.mxu0 0.0
  %9179 = vmatpush1.msra.mxu0 0.0
  %9180 = vmatprep.subr.mxu0 0.0
  %9181 = vmatpush1.msra.mxu0 0.0
  %9182 = vmatprep.subr.mxu0 0.0
  %9183 = vmatpush1.msra.mxu0 0.0
  %9184 = vmatprep.subr.mxu0 0.0
  %9185 = vmatpush1.msra.mxu0 0.0
  %9186 = vmatprep.subr.mxu0 0.0
  %9187 = vmatpush1.msra.mxu0 0.0
  %9188 = vmatprep.subr.mxu0 0.0
  %9189 = vmatpush1.msra.mxu0 0.0
  %9190 = vmatprep.subr.mxu0 0.0
  %9191 = vmatpush1.msra.mxu0 0.0
  %9192 = vmatprep.subr.mxu0 0.0
  %9193 = vmatpush1.msra.mxu0 0.0
  %9194 = vmatprep.subr.mxu0 0.0
  %9195 = vmatpush1.msra.mxu0 0.0
  %9196 = vmatprep.subr.mxu0 0.0
  %9197 = vmatpush1.msra.mxu0 0.0
  %9198 = vmatprep.subr.mxu0 0.0
  %9199 = vmatpush1.msra.mxu0 0.0
  %9200 = vmatprep.subr.mxu0 0.0
  %9201 = vmatpush1.msra.mxu0 0.0
  %9202 = vmatprep.subr.mxu0 0.0
  %9203 = vmatpush1.msra.mxu0 0.0
  %9204 = vmatprep.subr.mxu0 0.0
  %9205 = vmatpush1.msra.mxu0 0.0
  %9206 = vmatprep.subr.mxu0 0.0
  %9207 = vmatpush1.msra.mxu0 0.0
  %9208 = vmatprep.subr.mxu0 0.0
  %9209 = vmatpush1.msra.mxu0 0.0
  %9210 = vmatprep.subr.mxu0 0.0
  %9211 = vmatpush1.msra.mxu0 0.0
  %9212 = vmatprep.subr.mxu0 0.0
  %9213 = vmatpush1.msra.mxu0 0.0
  %9214 = vmatprep.subr.mxu0 0.0
  %9215 = vmatpush1.msra.mxu0 0.0
  %9216 = vmatprep.subr.mxu0 0.0
  %9217 = vmatpush1.msra.mxu0 0.0
  %9218 = vmatprep.subr.mxu0 0.0
  %9219 = vmatpush1.msra.mxu0 0.0
  %9220 = vmatprep.subr.mxu0 0.0
  %9221 = vmatpush1.msra.mxu0 0.0
  %9222 = vmatprep.subr.mxu0 0.0
  %9223 = vmatpush1.msra.mxu0 0.0
  %9224 = vmatprep.subr.mxu0 0.0
  %9225 = vmatpush1.msra.mxu0 0.0
  %9226 = vmatprep.subr.mxu0 0.0
  %9227 = vmatpush1.msra.mxu0 0.0
  %9228 = vmatprep.mubr.f32.mxu0 0.0
  %9229 = vmatmul.mubr.f32.gmra.mrb[0].mxu0 %v9117
  %v9230 = vpop.f32.mrb[0].mxu0
  %v9231 = vadd.f32 %v9114, %v9230
  %v9232 = vpop.f32.mrb[0].mxu0
  %9233 = vmatprep.mubr.f32.mxu0 0.0
  %9234 = vmatmul.mubr.f32.gmra.mrb[0].mxu0 %v9120
  %v9235 = vpop.f32.mrb[0].mxu0
  %v9236 = vadd.f32 %v9114, %v9235
  %v9237 = vpop.f32.mrb[0].mxu0
  %9238 = vmatprep.mubr.f32.mxu0 0.0
  %9239 = vmatmul.mubr.f32.gmra.mrb[0].mxu0 %v9123
  %v9240 = vpop.f32.mrb[0].mxu0
  %v9241 = vadd.f32 %v9114, %v9240
  %v9242 = vpop.f32.mrb[0].mxu0
  %9243 = vmatprep.mubr.f32.mxu0 0.0
  %9244 = vmatmul.mubr.f32.gmra.mrb[0].mxu0 %v9126
  %v9245 = vpop.f32.mrb[0].mxu0
  %v9246 = vadd.f32 %v9114, %v9245
  %v9247 = vpop.f32.mrb[0].mxu0
  %9248 = vmatprep.mubr.f32.mxu0 0.0
  %9249 = vmatmul.mubr.f32.gmra.mrb[0].mxu0 %v9129
  %v9250 = vpop.f32.mrb[0].mxu0
  %v9251 = vadd.f32 %v9114, %v9250
  %v9252 = vpop.f32.mrb[0].mxu0
  %9253 = vmatprep.mubr.f32.mxu0 0.0
  %9254 = vmatmul.mubr.f32.gmra.mrb[0].mxu0 %v9132
  %v9255 = vpop.f32.mrb[0].mxu0
  %v9256 = vadd.f32 %v9114, %v9255
  %v9257 = vpop.f32.mrb[0].mxu0
  %9258 = vmatprep.mubr.f32.mxu0 0.0
  %9259 = vmatmul.mubr.f32.gmra.mrb[0].mxu0 %v9135
  %v9260 = vpop.f32.mrb[0].mxu0
  %v9261 = vadd.f32 %v9114, %v9260
  %v9262 = vpop.f32.mrb[0].mxu0
  %9263 = vmatprep.mubr.f32.mxu0 0.0
  %9264 = vmatmul.mubr.f32.gmra.mrb[0].mxu0 %v9138
  %v9265 = vpop.f32.mrb[0].mxu0
  %v9266 = vadd.f32 %v9114, %v9265
  %v9267 = vpop.f32.mrb[0].mxu0
  %9268 = vmatprep.mubr.f32.mxu0 0.0
  %9269 = vmatmul.mubr.f32.gmra.mrb[0].mxu0 %v9141
  %v9270 = vpop.f32.mrb[0].mxu0
  %v9271 = vadd.f32 %v9114, %v9270
  %v9272 = vpop.f32.mrb[0].mxu0
  %9273 = vmatprep.mubr.f32.mxu0 0.0
  %9274 = vmatmul.mubr.f32.gmra.mrb[0].mxu0 %v9144
  %v9275 = vpop.f32.mrb[0].mxu0
  %v9276 = vadd.f32 %v9114, %v9275
  %v9277 = vpop.f32.mrb[0].mxu0
  %9278 = vmatprep.mubr.f32.mxu0 0.0
  %9279 = vmatmul.mubr.f32.gmra.mrb[0].mxu0 %v9147
  %v9280 = vpop.f32.mrb[0].mxu0
  %v9281 = vadd.f32 %v9114, %v9280
  %v9282 = vpop.f32.mrb[0].mxu0
  %9283 = vmatprep.mubr.f32.mxu0 0.0
  %9284 = vmatmul.mubr.f32.gmra.mrb[0].mxu0 %v9150
  %v9285 = vpop.f32.mrb[0].mxu0
  %v9286 = vadd.f32 %v9114, %v9285
  %v9287 = vpop.f32.mrb[0].mxu0
  %9288 = vmatprep.mubr.f32.mxu0 0.0
  %9289 = vmatmul.mubr.f32.gmra.mrb[0].mxu0 %v9153
  %v9290 = vpop.f32.mrb[0].mxu0
  %v9291 = vadd.f32 %v9114, %v9290
  %v9292 = vpop.f32.mrb[0].mxu0
  %9293 = vmatprep.mubr.f32.mxu0 0.0
  %9294 = vmatmul.mubr.f32.gmra.mrb[0].mxu0 %v9156
  %v9295 = vpop.f32.mrb[0].mxu0
  %v9296 = vadd.f32 %v9114, %v9295
  %v9297 = vpop.f32.mrb[0].mxu0
  %9298 = vmatprep.mubr.f32.mxu0 0.0
  %9299 = vmatmul.mubr.f32.gmra.mrb[0].mxu0 %v9159
  %v9300 = vpop.f32.mrb[0].mxu0
  %v9301 = vadd.f32 %v9114, %v9300
  %v9302 = vpop.f32.mrb[0].mxu0
  %9303 = vmatprep.mubr.f32.mxu0 0.0
  %9304 = vmatmul.mubr.f32.gmra.mrb[0].mxu0 %v9162
  %v9305 = vpop.f32.mrb[0].mxu0
  %v9306 = vadd.f32 %v9114, %v9305
  %v9307 = vpop.f32.mrb[0].mxu0
  %9308 = vdwg.mxu0
  %v9309 = vmul.f32 %v9231, 0.5
  %v9310 = vmul.f32 %v9236, 0.5
  %v9311 = vmul.f32 %v9241, 0.5
  %v9312 = vmul.f32 %v9246, 0.5
  %v9313 = vmul.f32 %v9251, 0.5
  %v9314 = vmul.f32 %v9256, 0.5
  %v9315 = vmul.f32 %v9261, 0.5
  %v9316 = vmul.f32 %v9266, 0.5
  %v9317 = vmul.f32 %v9271, 0.5
  %v9318 = vmul.f32 %v9276, 0.5
  %v9319 = vmul.f32 %v9281, 0.5
  %v9320 = vmul.f32 %v9286, 0.5
  %v9321 = vmul.f32 %v9291, 0.5
  %v9322 = vmul.f32 %v9296, 0.5
  %v9323 = vmul.f32 %v9301, 0.5
  %v9324 = vmul.f32 %v9306, 0.5
  %v9325 = vmul.f32 %v9231, 0.70710677
  %v9326 = vmul.f32 %v9236, 0.70710677
  %v9327 = vmul.f32 %v9241, 0.70710677
  %v9328 = vmul.f32 %v9246, 0.70710677
  %v9329 = vmul.f32 %v9251, 0.70710677
  %v9330 = vmul.f32 %v9256, 0.70710677
  %v9331 = vmul.f32 %v9261, 0.70710677
  %v9332 = vmul.f32 %v9266, 0.70710677
  %v9333 = vmul.f32 %v9271, 0.70710677
  %v9334 = vmul.f32 %v9276, 0.70710677
  %v9335 = vmul.f32 %v9281, 0.70710677
  %v9336 = vmul.f32 %v9286, 0.70710677
  %v9337 = vmul.f32 %v9291, 0.70710677
  %v9338 = vmul.f32 %v9296, 0.70710677
  %v9339 = vmul.f32 %v9301, 0.70710677
  %v9340 = vmul.f32 %v9306, 0.70710677
  %vm9341 = vcmp.ge.f32.partialorder %v9325, 0.0
  %vm9342 = vcmp.ge.f32.partialorder %v9326, 0.0
  %vm9343 = vcmp.ge.f32.partialorder %v9327, 0.0
  %vm9344 = vcmp.ge.f32.partialorder %v9328, 0.0
  %vm9345 = vcmp.ge.f32.partialorder %v9329, 0.0
  %vm9346 = vcmp.ge.f32.partialorder %v9330, 0.0
  %vm9347 = vcmp.ge.f32.partialorder %v9331, 0.0
  %vm9348 = vcmp.ge.f32.partialorder %v9332, 0.0
  %vm9349 = vcmp.ge.f32.partialorder %v9333, 0.0
  %vm9350 = vcmp.ge.f32.partialorder %v9334, 0.0
  %vm9351 = vcmp.ge.f32.partialorder %v9335, 0.0
  %vm9352 = vcmp.ge.f32.partialorder %v9336, 0.0
  %vm9353 = vcmp.ge.f32.partialorder %v9337, 0.0
  %vm9354 = vcmp.ge.f32.partialorder %v9338, 0.0
  %vm9355 = vcmp.ge.f32.partialorder %v9339, 0.0
  %vm9356 = vcmp.ge.f32.partialorder %v9340, 0.0
  %v9357 = vsel %vm9341, 1.0, -1.0
  %v9358 = vsel %vm9342, 1.0, -1.0
  %v9359 = vsel %vm9343, 1.0, -1.0
  %v9360 = vsel %vm9344, 1.0, -1.0
  %v9361 = vsel %vm9345, 1.0, -1.0
  %v9362 = vsel %vm9346, 1.0, -1.0
  %v9363 = vsel %vm9347, 1.0, -1.0
  %v9364 = vsel %vm9348, 1.0, -1.0
  %v9365 = vsel %vm9349, 1.0, -1.0
  %v9366 = vsel %vm9350, 1.0, -1.0
  %v9367 = vsel %vm9351, 1.0, -1.0
  %v9368 = vsel %vm9352, 1.0, -1.0
  %v9369 = vsel %vm9353, 1.0, -1.0
  %v9370 = vsel %vm9354, 1.0, -1.0
  %v9371 = vsel %vm9355, 1.0, -1.0
  %v9372 = vsel %vm9356, 1.0, -1.0
  %v9373 = vand.u32 2147483647, %v9325
  %v9374 = vand.u32 2147483647, %v9326
  %v9375 = vand.u32 2147483647, %v9327
  %v9376 = vand.u32 2147483647, %v9328
  %v9377 = vand.u32 2147483647, %v9329
  %v9378 = vand.u32 2147483647, %v9330
  %v9379 = vand.u32 2147483647, %v9331
  %v9380 = vand.u32 2147483647, %v9332
  %v9381 = vand.u32 2147483647, %v9333
  %v9382 = vand.u32 2147483647, %v9334
  %v9383 = vand.u32 2147483647, %v9335
  %v9384 = vand.u32 2147483647, %v9336
  %v9385 = vand.u32 2147483647, %v9337
  %v9386 = vand.u32 2147483647, %v9338
  %v9387 = vand.u32 2147483647, %v9339
  %v9388 = vand.u32 2147483647, %v9340
  %v9389 = vmul.f32 %v9373, 0.3275911
  %v9390 = vmul.f32 %v9374, 0.3275911
  %v9391 = vmul.f32 %v9375, 0.3275911
  %v9392 = vmul.f32 %v9376, 0.3275911
  %v9393 = vmul.f32 %v9377, 0.3275911
  %v9394 = vmul.f32 %v9378, 0.3275911
  %v9395 = vmul.f32 %v9379, 0.3275911
  %v9396 = vmul.f32 %v9380, 0.3275911
  %v9397 = vmul.f32 %v9381, 0.3275911
  %v9398 = vmul.f32 %v9382, 0.3275911
  %v9399 = vmul.f32 %v9383, 0.3275911
  %v9400 = vmul.f32 %v9384, 0.3275911
  %v9401 = vmul.f32 %v9385, 0.3275911
  %v9402 = vmul.f32 %v9386, 0.3275911
  %v9403 = vmul.f32 %v9387, 0.3275911
  %v9404 = vmul.f32 %v9388, 0.3275911
  %v9405 = vadd.f32 %v9389, 1.0
  %v9406 = vadd.f32 %v9390, 1.0
  %v9407 = vadd.f32 %v9391, 1.0
  %v9408 = vadd.f32 %v9392, 1.0
  %v9409 = vadd.f32 %v9393, 1.0
  %v9410 = vadd.f32 %v9394, 1.0
  %v9411 = vadd.f32 %v9395, 1.0
  %v9412 = vadd.f32 %v9396, 1.0
  %v9413 = vadd.f32 %v9397, 1.0
  %v9414 = vadd.f32 %v9398, 1.0
  %v9415 = vadd.f32 %v9399, 1.0
  %v9416 = vadd.f32 %v9400, 1.0
  %v9417 = vadd.f32 %v9401, 1.0
  %v9418 = vadd.f32 %v9402, 1.0
  %v9419 = vadd.f32 %v9403, 1.0
  %v9420 = vadd.f32 %v9404, 1.0
  %v9421 = vrcp.pop %v9405
  %v9422 = vmul.f32 1.0, %v9421
  %v9423 = vrcp.pop %v9406
  %v9424 = vmul.f32 1.0, %v9423
  %v9425 = vrcp.pop %v9407
  %v9426 = vmul.f32 1.0, %v9425
  %v9427 = vrcp.pop %v9408
  %v9428 = vmul.f32 1.0, %v9427
  %v9429 = vrcp.pop %v9409
  %v9430 = vmul.f32 1.0, %v9429
  %v9431 = vrcp.pop %v9410
  %v9432 = vmul.f32 1.0, %v9431
  %v9433 = vrcp.pop %v9411
  %v9434 = vmul.f32 1.0, %v9433
  %v9435 = vrcp.pop %v9412
  %v9436 = vmul.f32 1.0, %v9435
  %v9437 = vrcp.pop %v9413
  %v9438 = vmul.f32 1.0, %v9437
  %v9439 = vrcp.pop %v9414
  %v9440 = vmul.f32 1.0, %v9439
  %v9441 = vrcp.pop %v9415
  %v9442 = vmul.f32 1.0, %v9441
  %v9443 = vrcp.pop %v9416
  %v9444 = vmul.f32 1.0, %v9443
  %v9445 = vrcp.pop %v9417
  %v9446 = vmul.f32 1.0, %v9445
  %v9447 = vrcp.pop %v9418
  %v9448 = vmul.f32 1.0, %v9447
  %v9449 = vrcp.pop %v9419
  %v9450 = vmul.f32 1.0, %v9449
  %v9451 = vrcp.pop %v9420
  %v9452 = vmul.f32 1.0, %v9451
  %v9453 = vmul.f32 %v9422, 1.0614054
  %v9454 = vmul.f32 %v9424, 1.0614054
  %v9455 = vmul.f32 %v9426, 1.0614054
  %v9456 = vmul.f32 %v9428, 1.0614054
  %v9457 = vmul.f32 %v9430, 1.0614054
  %v9458 = vmul.f32 %v9432, 1.0614054
  %v9459 = vmul.f32 %v9434, 1.0614054
  %v9460 = vmul.f32 %v9436, 1.0614054
  %v9461 = vmul.f32 %v9438, 1.0614054
  %v9462 = vmul.f32 %v9440, 1.0614054
  %v9463 = vmul.f32 %v9442, 1.0614054
  %v9464 = vmul.f32 %v9444, 1.0614054
  %v9465 = vmul.f32 %v9446, 1.0614054
  %v9466 = vmul.f32 %v9448, 1.0614054
  %v9467 = vmul.f32 %v9450, 1.0614054
  %v9468 = vmul.f32 %v9452, 1.0614054
  %v9469 = vadd.f32 %v9453, -1.4531521
  %v9470 = vadd.f32 %v9454, -1.4531521
  %v9471 = vadd.f32 %v9455, -1.4531521
  %v9472 = vadd.f32 %v9456, -1.4531521
  %v9473 = vadd.f32 %v9457, -1.4531521
  %v9474 = vadd.f32 %v9458, -1.4531521
  %v9475 = vadd.f32 %v9459, -1.4531521
  %v9476 = vadd.f32 %v9460, -1.4531521
  %v9477 = vadd.f32 %v9461, -1.4531521
  %v9478 = vadd.f32 %v9462, -1.4531521
  %v9479 = vadd.f32 %v9463, -1.4531521
  %v9480 = vadd.f32 %v9464, -1.4531521
  %v9481 = vadd.f32 %v9465, -1.4531521
  %v9482 = vadd.f32 %v9466, -1.4531521
  %v9483 = vadd.f32 %v9467, -1.4531521
  %v9484 = vadd.f32 %v9468, -1.4531521
  %v9485 = vmul.f32 %v9469, %v9422
  %v9486 = vmul.f32 %v9470, %v9424
  %v9487 = vmul.f32 %v9471, %v9426
  %v9488 = vmul.f32 %v9472, %v9428
  %v9489 = vmul.f32 %v9473, %v9430
  %v9490 = vmul.f32 %v9474, %v9432
  %v9491 = vmul.f32 %v9475, %v9434
  %v9492 = vmul.f32 %v9476, %v9436
  %v9493 = vmul.f32 %v9477, %v9438
  %v9494 = vmul.f32 %v9478, %v9440
  %v9495 = vmul.f32 %v9479, %v9442
  %v9496 = vmul.f32 %v9480, %v9444
  %v9497 = vmul.f32 %v9481, %v9446
  %v9498 = vmul.f32 %v9482, %v9448
  %v9499 = vmul.f32 %v9483, %v9450
  %v9500 = vmul.f32 %v9484, %v9452
  %v9501 = vadd.f32 %v9485, 1.4214138
  %v9502 = vadd.f32 %v9486, 1.4214138
  %v9503 = vadd.f32 %v9487, 1.4214138
  %v9504 = vadd.f32 %v9488, 1.4214138
  %v9505 = vadd.f32 %v9489, 1.4214138
  %v9506 = vadd.f32 %v9490, 1.4214138
  %v9507 = vadd.f32 %v9491, 1.4214138
  %v9508 = vadd.f32 %v9492, 1.4214138
  %v9509 = vadd.f32 %v9493, 1.4214138
  %v9510 = vadd.f32 %v9494, 1.4214138
  %v9511 = vadd.f32 %v9495, 1.4214138
  %v9512 = vadd.f32 %v9496, 1.4214138
  %v9513 = vadd.f32 %v9497, 1.4214138
  %v9514 = vadd.f32 %v9498, 1.4214138
  %v9515 = vadd.f32 %v9499, 1.4214138
  %v9516 = vadd.f32 %v9500, 1.4214138
  %v9517 = vmul.f32 %v9501, %v9422
  %v9518 = vmul.f32 %v9502, %v9424
  %v9519 = vmul.f32 %v9503, %v9426
  %v9520 = vmul.f32 %v9504, %v9428
  %v9521 = vmul.f32 %v9505, %v9430
  %v9522 = vmul.f32 %v9506, %v9432
  %v9523 = vmul.f32 %v9507, %v9434
  %v9524 = vmul.f32 %v9508, %v9436
  %v9525 = vmul.f32 %v9509, %v9438
  %v9526 = vmul.f32 %v9510, %v9440
  %v9527 = vmul.f32 %v9511, %v9442
  %v9528 = vmul.f32 %v9512, %v9444
  %v9529 = vmul.f32 %v9513, %v9446
  %v9530 = vmul.f32 %v9514, %v9448
  %v9531 = vmul.f32 %v9515, %v9450
  %v9532 = vmul.f32 %v9516, %v9452
  %v9533 = vadd.f32 %v9517, -0.28449672
  %v9534 = vadd.f32 %v9518, -0.28449672
  %v9535 = vadd.f32 %v9519, -0.28449672
  %v9536 = vadd.f32 %v9520, -0.28449672
  %v9537 = vadd.f32 %v9521, -0.28449672
  %v9538 = vadd.f32 %v9522, -0.28449672
  %v9539 = vadd.f32 %v9523, -0.28449672
  %v9540 = vadd.f32 %v9524, -0.28449672
  %v9541 = vadd.f32 %v9525, -0.28449672
  %v9542 = vadd.f32 %v9526, -0.28449672
  %v9543 = vadd.f32 %v9527, -0.28449672
  %v9544 = vadd.f32 %v9528, -0.28449672
  %v9545 = vadd.f32 %v9529, -0.28449672
  %v9546 = vadd.f32 %v9530, -0.28449672
  %v9547 = vadd.f32 %v9531, -0.28449672
  %v9548 = vadd.f32 %v9532, -0.28449672
  %v9549 = vmul.f32 %v9533, %v9422
  %v9550 = vmul.f32 %v9534, %v9424
  %v9551 = vmul.f32 %v9535, %v9426
  %v9552 = vmul.f32 %v9536, %v9428
  %v9553 = vmul.f32 %v9537, %v9430
  %v9554 = vmul.f32 %v9538, %v9432
  %v9555 = vmul.f32 %v9539, %v9434
  %v9556 = vmul.f32 %v9540, %v9436
  %v9557 = vmul.f32 %v9541, %v9438
  %v9558 = vmul.f32 %v9542, %v9440
  %v9559 = vmul.f32 %v9543, %v9442
  %v9560 = vmul.f32 %v9544, %v9444
  %v9561 = vmul.f32 %v9545, %v9446
  %v9562 = vmul.f32 %v9546, %v9448
  %v9563 = vmul.f32 %v9547, %v9450
  %v9564 = vmul.f32 %v9548, %v9452
  %v9565 = vadd.f32 %v9549, 0.2548296
  %v9566 = vadd.f32 %v9550, 0.2548296
  %v9567 = vadd.f32 %v9551, 0.2548296
  %v9568 = vadd.f32 %v9552, 0.2548296
  %v9569 = vadd.f32 %v9553, 0.2548296
  %v9570 = vadd.f32 %v9554, 0.2548296
  %v9571 = vadd.f32 %v9555, 0.2548296
  %v9572 = vadd.f32 %v9556, 0.2548296
  %v9573 = vadd.f32 %v9557, 0.2548296
  %v9574 = vadd.f32 %v9558, 0.2548296
  %v9575 = vadd.f32 %v9559, 0.2548296
  %v9576 = vadd.f32 %v9560, 0.2548296
  %v9577 = vadd.f32 %v9561, 0.2548296
  %v9578 = vadd.f32 %v9562, 0.2548296
  %v9579 = vadd.f32 %v9563, 0.2548296
  %v9580 = vadd.f32 %v9564, 0.2548296
  %v9581 = vmul.f32 %v9565, %v9422
  %v9582 = vmul.f32 %v9566, %v9424
  %v9583 = vmul.f32 %v9567, %v9426
  %v9584 = vmul.f32 %v9568, %v9428
  %v9585 = vmul.f32 %v9569, %v9430
  %v9586 = vmul.f32 %v9570, %v9432
  %v9587 = vmul.f32 %v9571, %v9434
  %v9588 = vmul.f32 %v9572, %v9436
  %v9589 = vmul.f32 %v9573, %v9438
  %v9590 = vmul.f32 %v9574, %v9440
  %v9591 = vmul.f32 %v9575, %v9442
  %v9592 = vmul.f32 %v9576, %v9444
  %v9593 = vmul.f32 %v9577, %v9446
  %v9594 = vmul.f32 %v9578, %v9448
  %v9595 = vmul.f32 %v9579, %v9450
  %v9596 = vmul.f32 %v9580, %v9452
  %v9597 = vsub.f32 0.0, %v9373
  %v9598 = vsub.f32 0.0, %v9374
  %v9599 = vsub.f32 0.0, %v9375
  %v9600 = vsub.f32 0.0, %v9376
  %v9601 = vsub.f32 0.0, %v9377
  %v9602 = vsub.f32 0.0, %v9378
  %v9603 = vsub.f32 0.0, %v9379
  %v9604 = vsub.f32 0.0, %v9380
  %v9605 = vsub.f32 0.0, %v9381
  %v9606 = vsub.f32 0.0, %v9382
  %v9607 = vsub.f32 0.0, %v9383
  %v9608 = vsub.f32 0.0, %v9384
  %v9609 = vsub.f32 0.0, %v9385
  %v9610 = vsub.f32 0.0, %v9386
  %v9611 = vsub.f32 0.0, %v9387
  %v9612 = vsub.f32 0.0, %v9388
  %v9613 = vmul.f32 %v9597, %v9373
  %v9614 = vmul.f32 %v9598, %v9374
  %v9615 = vmul.f32 %v9599, %v9375
  %v9616 = vmul.f32 %v9600, %v9376
  %v9617 = vmul.f32 %v9601, %v9377
  %v9618 = vmul.f32 %v9602, %v9378
  %v9619 = vmul.f32 %v9603, %v9379
  %v9620 = vmul.f32 %v9604, %v9380
  %v9621 = vmul.f32 %v9605, %v9381
  %v9622 = vmul.f32 %v9606, %v9382
  %v9623 = vmul.f32 %v9607, %v9383
  %v9624 = vmul.f32 %v9608, %v9384
  %v9625 = vmul.f32 %v9609, %v9385
  %v9626 = vmul.f32 %v9610, %v9386
  %v9627 = vmul.f32 %v9611, %v9387
  %v9628 = vmul.f32 %v9612, %v9388
  %v9629 = vmul.f32 %v9613, 1.442695
  %v9630 = vpow.pop %v9629
  %v9631 = vmul.f32 %v9614, 1.442695
  %v9632 = vpow.pop %v9631
  %v9633 = vmul.f32 %v9615, 1.442695
  %v9634 = vpow.pop %v9633
  %v9635 = vmul.f32 %v9616, 1.442695
  %v9636 = vpow.pop %v9635
  %v9637 = vmul.f32 %v9617, 1.442695
  %v9638 = vpow.pop %v9637
  %v9639 = vmul.f32 %v9618, 1.442695
  %v9640 = vpow.pop %v9639
  %v9641 = vmul.f32 %v9619, 1.442695
  %v9642 = vpow.pop %v9641
  %v9643 = vmul.f32 %v9620, 1.442695
  %v9644 = vpow.pop %v9643
  %v9645 = vmul.f32 %v9621, 1.442695
  %v9646 = vpow.pop %v9645
  %v9647 = vmul.f32 %v9622, 1.442695
  %v9648 = vpow.pop %v9647
  %v9649 = vmul.f32 %v9623, 1.442695
  %v9650 = vpow.pop %v9649
  %v9651 = vmul.f32 %v9624, 1.442695
  %v9652 = vpow.pop %v9651
  %v9653 = vmul.f32 %v9625, 1.442695
  %v9654 = vpow.pop %v9653
  %v9655 = vmul.f32 %v9626, 1.442695
  %v9656 = vpow.pop %v9655
  %v9657 = vmul.f32 %v9627, 1.442695
  %v9658 = vpow.pop %v9657
  %v9659 = vmul.f32 %v9628, 1.442695
  %v9660 = vpow.pop %v9659
  %v9661 = vmul.f32 %v9581, %v9630
  %v9662 = vmul.f32 %v9582, %v9632
  %v9663 = vmul.f32 %v9583, %v9634
  %v9664 = vmul.f32 %v9584, %v9636
  %v9665 = vmul.f32 %v9585, %v9638
  %v9666 = vmul.f32 %v9586, %v9640
  %v9667 = vmul.f32 %v9587, %v9642
  %v9668 = vmul.f32 %v9588, %v9644
  %v9669 = vmul.f32 %v9589, %v9646
  %v9670 = vmul.f32 %v9590, %v9648
  %v9671 = vmul.f32 %v9591, %v9650
  %v9672 = vmul.f32 %v9592, %v9652
  %v9673 = vmul.f32 %v9593, %v9654
  %v9674 = vmul.f32 %v9594, %v9656
  %v9675 = vmul.f32 %v9595, %v9658
  %v9676 = vmul.f32 %v9596, %v9660
  %v9677 = vsub.f32 1.0, %v9661
  %v9678 = vsub.f32 1.0, %v9662
  %v9679 = vsub.f32 1.0, %v9663
  %v9680 = vsub.f32 1.0, %v9664
  %v9681 = vsub.f32 1.0, %v9665
  %v9682 = vsub.f32 1.0, %v9666
  %v9683 = vsub.f32 1.0, %v9667
  %v9684 = vsub.f32 1.0, %v9668
  %v9685 = vsub.f32 1.0, %v9669
  %v9686 = vsub.f32 1.0, %v9670
  %v9687 = vsub.f32 1.0, %v9671
  %v9688 = vsub.f32 1.0, %v9672
  %v9689 = vsub.f32 1.0, %v9673
  %v9690 = vsub.f32 1.0, %v9674
  %v9691 = vsub.f32 1.0, %v9675
  %v9692 = vsub.f32 1.0, %v9676
  %v9693 = vmul.f32 %v9357, %v9677
  %v9694 = vmul.f32 %v9358, %v9678
  %v9695 = vmul.f32 %v9359, %v9679
  %v9696 = vmul.f32 %v9360, %v9680
  %v9697 = vmul.f32 %v9361, %v9681
  %v9698 = vmul.f32 %v9362, %v9682
  %v9699 = vmul.f32 %v9363, %v9683
  %v9700 = vmul.f32 %v9364, %v9684
  %v9701 = vmul.f32 %v9365, %v9685
  %v9702 = vmul.f32 %v9366, %v9686
  %v9703 = vmul.f32 %v9367, %v9687
  %v9704 = vmul.f32 %v9368, %v9688
  %v9705 = vmul.f32 %v9369, %v9689
  %v9706 = vmul.f32 %v9370, %v9690
  %v9707 = vmul.f32 %v9371, %v9691
  %v9708 = vmul.f32 %v9372, %v9692
  %v9709 = vadd.f32 %v9693, 1.0
  %v9710 = vadd.f32 %v9694, 1.0
  %v9711 = vadd.f32 %v9695, 1.0
  %v9712 = vadd.f32 %v9696, 1.0
  %v9713 = vadd.f32 %v9697, 1.0
  %v9714 = vadd.f32 %v9698, 1.0
  %v9715 = vadd.f32 %v9699, 1.0
  %v9716 = vadd.f32 %v9700, 1.0
  %v9717 = vadd.f32 %v9701, 1.0
  %v9718 = vadd.f32 %v9702, 1.0
  %v9719 = vadd.f32 %v9703, 1.0
  %v9720 = vadd.f32 %v9704, 1.0
  %v9721 = vadd.f32 %v9705, 1.0
  %v9722 = vadd.f32 %v9706, 1.0
  %v9723 = vadd.f32 %v9707, 1.0
  %v9724 = vadd.f32 %v9708, 1.0
  %v9725 = vmul.f32 %v9309, %v9709
  %v9726 = vmul.f32 %v9310, %v9710
  %v9727 = vmul.f32 %v9311, %v9711
  %v9728 = vmul.f32 %v9312, %v9712
  %v9729 = vmul.f32 %v9313, %v9713
  %v9730 = vmul.f32 %v9314, %v9714
  %v9731 = vmul.f32 %v9315, %v9715
  %v9732 = vmul.f32 %v9316, %v9716
  %v9733 = vmul.f32 %v9317, %v9717
  %v9734 = vmul.f32 %v9318, %v9718
  %v9735 = vmul.f32 %v9319, %v9719
  %v9736 = vmul.f32 %v9320, %v9720
  %v9737 = vmul.f32 %v9321, %v9721
  %v9738 = vmul.f32 %v9322, %v9722
  %v9739 = vmul.f32 %v9323, %v9723
  %v9740 = vmul.f32 %v9324, %v9724
  %v9741 = vld [vmem:[%s25] sm:$0xff]
  %v9742 = vld [vmem:[%s25 + $0x8] sm:$0xff]
  %v9743 = vld [vmem:[%s25 + $0x10] sm:$0xff]
  %v9744 = vld [vmem:[%s25 + $0x18] sm:$0xff]
  %v9745 = vld [vmem:[%s25 + $0x20] sm:$0xff]
  %v9746 = vld [vmem:[%s25 + $0x28] sm:$0xff]
  %v9747 = vld [vmem:[%s25 + $0x30] sm:$0xff]
  %v9748 = vld [vmem:[%s25 + $0x38] sm:$0xff]
  %v9749 = vld [vmem:[%s25 + $0x40] sm:$0xff]
  %v9750 = vld [vmem:[%s25 + $0x48] sm:$0xff]
  %v9751 = vld [vmem:[%s25 + $0x50] sm:$0xff]
  %v9752 = vld [vmem:[%s25 + $0x58] sm:$0xff]
  %v9753 = vld [vmem:[%s25 + $0x60] sm:$0xff]
  %v9754 = vld [vmem:[%s25 + $0x68] sm:$0xff]
  %v9755 = vld [vmem:[%s25 + $0x70] sm:$0xff]
  %v9756 = vld [vmem:[%s25 + $0x78] sm:$0xff]
  %9757 = vmatprep.subr.mxu0 0.0
  %9758 = vmatpush1.msra.mxu0 %v9741
  %9759 = vmatprep.subr.mxu0 0.0
  %9760 = vmatpush1.msra.mxu0 %v9742
  %9761 = vmatprep.subr.mxu0 0.0
  %9762 = vmatpush1.msra.mxu0 %v9743
  %9763 = vmatprep.subr.mxu0 0.0
  %9764 = vmatpush1.msra.mxu0 %v9744
  %9765 = vmatprep.subr.mxu0 0.0
  %9766 = vmatpush1.msra.mxu0 %v9745
  %9767 = vmatprep.subr.mxu0 0.0
  %9768 = vmatpush1.msra.mxu0 %v9746
  %9769 = vmatprep.subr.mxu0 0.0
  %9770 = vmatpush1.msra.mxu0 %v9747
  %9771 = vmatprep.subr.mxu0 0.0
  %9772 = vmatpush1.msra.mxu0 %v9748
  %9773 = vmatprep.subr.mxu0 0.0
  %9774 = vmatpush1.msra.mxu0 %v9749
  %9775 = vmatprep.subr.mxu0 0.0
  %9776 = vmatpush1.msra.mxu0 %v9750
  %9777 = vmatprep.subr.mxu0 0.0
  %9778 = vmatpush1.msra.mxu0 %v9751
  %9779 = vmatprep.subr.mxu0 0.0
  %9780 = vmatpush1.msra.mxu0 %v9752
  %9781 = vmatprep.subr.mxu0 0.0
  %9782 = vmatpush1.msra.mxu0 %v9753
  %9783 = vmatprep.subr.mxu0 0.0
  %9784 = vmatpush1.msra.mxu0 %v9754
  %9785 = vmatprep.subr.mxu0 0.0
  %9786 = vmatpush1.msra.mxu0 %v9755
  %9787 = vmatprep.subr.mxu0 0.0
  %9788 = vmatpush1.msra.mxu0 %v9756
  %9789 = vmatprep.subr.mxu0 0.0
  %9790 = vmatpush1.msra.mxu0 0.0
  %9791 = vmatprep.subr.mxu0 0.0
  %9792 = vmatpush1.msra.mxu0 0.0
  %9793 = vmatprep.subr.mxu0 0.0
  %9794 = vmatpush1.msra.mxu0 0.0
  %9795 = vmatprep.subr.mxu0 0.0
  %9796 = vmatpush1.msra.mxu0 0.0
  %9797 = vmatprep.subr.mxu0 0.0
  %9798 = vmatpush1.msra.mxu0 0.0
  %9799 = vmatprep.subr.mxu0 0.0
  %9800 = vmatpush1.msra.mxu0 0.0
  %9801 = vmatprep.subr.mxu0 0.0
  %9802 = vmatpush1.msra.mxu0 0.0
  %9803 = vmatprep.subr.mxu0 0.0
  %9804 = vmatpush1.msra.mxu0 0.0
  %9805 = vmatprep.subr.mxu0 0.0
  %9806 = vmatpush1.msra.mxu0 0.0
  %9807 = vmatprep.subr.mxu0 0.0
  %9808 = vmatpush1.msra.mxu0 0.0
  %9809 = vmatprep.subr.mxu0 0.0
  %9810 = vmatpush1.msra.mxu0 0.0
  %9811 = vmatprep.subr.mxu0 0.0
  %9812 = vmatpush1.msra.mxu0 0.0
  %9813 = vmatprep.subr.mxu0 0.0
  %9814 = vmatpush1.msra.mxu0 0.0
  %9815 = vmatprep.subr.mxu0 0.0
  %9816 = vmatpush1.msra.mxu0 0.0
  %9817 = vmatprep.subr.mxu0 0.0
  %9818 = vmatpush1.msra.mxu0 0.0
  %9819 = vmatprep.subr.mxu0 0.0
  %9820 = vmatpush1.msra.mxu0 0.0
  %9821 = vmatprep.mubr.f32.mxu0 0.0
  %9822 = vmatmul.mubr.f32.gmra.mrb[0].mxu0 %v9725
  %v9823 = vpop.f32.mrb[0].mxu0
  %v9824 = vadd.f32 0.0, %v9823
  %v9825 = vpop.f32.mrb[0].mxu0
  %9826 = vmatprep.mubr.f32.mxu0 0.0
  %9827 = vmatmul.mubr.f32.gmra.mrb[0].mxu0 %v9726
  %v9828 = vpop.f32.mrb[0].mxu0
  %v9829 = vadd.f32 0.0, %v9828
  %v9830 = vpop.f32.mrb[0].mxu0
  %9831 = vmatprep.mubr.f32.mxu0 0.0
  %9832 = vmatmul.mubr.f32.gmra.mrb[0].mxu0 %v9727
  %v9833 = vpop.f32.mrb[0].mxu0
  %v9834 = vadd.f32 0.0, %v9833
  %v9835 = vpop.f32.mrb[0].mxu0
  %9836 = vmatprep.mubr.f32.mxu0 0.0
  %9837 = vmatmul.mubr.f32.gmra.mrb[0].mxu0 %v9728
  %v9838 = vpop.f32.mrb[0].mxu0
  %v9839 = vadd.f32 0.0, %v9838
  %v9840 = vpop.f32.mrb[0].mxu0
  %9841 = vmatprep.mubr.f32.mxu0 0.0
  %9842 = vmatmul.mubr.f32.gmra.mrb[0].mxu0 %v9729
  %v9843 = vpop.f32.mrb[0].mxu0
  %v9844 = vadd.f32 0.0, %v9843
  %v9845 = vpop.f32.mrb[0].mxu0
  %9846 = vmatprep.mubr.f32.mxu0 0.0
  %9847 = vmatmul.mubr.f32.gmra.mrb[0].mxu0 %v9730
  %v9848 = vpop.f32.mrb[0].mxu0
  %v9849 = vadd.f32 0.0, %v9848
  %v9850 = vpop.f32.mrb[0].mxu0
  %9851 = vmatprep.mubr.f32.mxu0 0.0
  %9852 = vmatmul.mubr.f32.gmra.mrb[0].mxu0 %v9731
  %v9853 = vpop.f32.mrb[0].mxu0
  %v9854 = vadd.f32 0.0, %v9853
  %v9855 = vpop.f32.mrb[0].mxu0
  %9856 = vmatprep.mubr.f32.mxu0 0.0
  %9857 = vmatmul.mubr.f32.gmra.mrb[0].mxu0 %v9732
  %v9858 = vpop.f32.mrb[0].mxu0
  %v9859 = vadd.f32 0.0, %v9858
  %v9860 = vpop.f32.mrb[0].mxu0
  %9861 = vmatprep.mubr.f32.mxu0 0.0
  %9862 = vmatmul.mubr.f32.gmra.mrb[0].mxu0 %v9733
  %v9863 = vpop.f32.mrb[0].mxu0
  %v9864 = vadd.f32 0.0, %v9863
  %v9865 = vpop.f32.mrb[0].mxu0
  %9866 = vmatprep.mubr.f32.mxu0 0.0
  %9867 = vmatmul.mubr.f32.gmra.mrb[0].mxu0 %v9734
  %v9868 = vpop.f32.mrb[0].mxu0
  %v9869 = vadd.f32 0.0, %v9868
  %v9870 = vpop.f32.mrb[0].mxu0
  %9871 = vmatprep.mubr.f32.mxu0 0.0
  %9872 = vmatmul.mubr.f32.gmra.mrb[0].mxu0 %v9735
  %v9873 = vpop.f32.mrb[0].mxu0
  %v9874 = vadd.f32 0.0, %v9873
  %v9875 = vpop.f32.mrb[0].mxu0
  %9876 = vmatprep.mubr.f32.mxu0 0.0
  %9877 = vmatmul.mubr.f32.gmra.mrb[0].mxu0 %v9736
  %v9878 = vpop.f32.mrb[0].mxu0
  %v9879 = vadd.f32 0.0, %v9878
  %v9880 = vpop.f32.mrb[0].mxu0
  %9881 = vmatprep.mubr.f32.mxu0 0.0
  %9882 = vmatmul.mubr.f32.gmra.mrb[0].mxu0 %v9737
  %v9883 = vpop.f32.mrb[0].mxu0
  %v9884 = vadd.f32 0.0, %v9883
  %v9885 = vpop.f32.mrb[0].mxu0
  %9886 = vmatprep.mubr.f32.mxu0 0.0
  %9887 = vmatmul.mubr.f32.gmra.mrb[0].mxu0 %v9738
  %v9888 = vpop.f32.mrb[0].mxu0
  %v9889 = vadd.f32 0.0, %v9888
  %v9890 = vpop.f32.mrb[0].mxu0
  %9891 = vmatprep.mubr.f32.mxu0 0.0
  %9892 = vmatmul.mubr.f32.gmra.mrb[0].mxu0 %v9739
  %v9893 = vpop.f32.mrb[0].mxu0
  %v9894 = vadd.f32 0.0, %v9893
  %v9895 = vpop.f32.mrb[0].mxu0
  %9896 = vmatprep.mubr.f32.mxu0 0.0
  %9897 = vmatmul.mubr.f32.gmra.mrb[0].mxu0 %v9740
  %v9898 = vpop.f32.mrb[0].mxu0
  %v9899 = vadd.f32 0.0, %v9898
  %v9900 = vpop.f32.mrb[0].mxu0
  %9901 = vdwg.mxu0
  %v9902 = vadd.f32 %v8835, %v9824
  %v9903 = vadd.f32 %v8836, %v9829
  %v9904 = vadd.f32 %v8837, %v9834
  %v9905 = vadd.f32 %v8838, %v9839
  %v9906 = vadd.f32 %v8839, %v9844
  %v9907 = vadd.f32 %v8840, %v9849
  %v9908 = vadd.f32 %v8841, %v9854
  %v9909 = vadd.f32 %v8842, %v9859
  %v9910 = vadd.f32 %v8843, %v9864
  %v9911 = vadd.f32 %v8844, %v9869
  %v9912 = vadd.f32 %v8845, %v9874
  %v9913 = vadd.f32 %v8846, %v9879
  %v9914 = vadd.f32 %v8847, %v9884
  %v9915 = vadd.f32 %v8848, %v9889
  %v9916 = vadd.f32 %v8849, %v9894
  %v9917 = vadd.f32 %v8850, %v9899
  %v9918 = vld [vmem:[%s26] sm:$0x1]
  %v9920 = vlaneseq
  %v9921 = vshrl.u32 %v9920, 7
  %v9922 = vsub.s32 0, %v9921
  %v9923 = vrot.slane %v9918, %v9922
  %v9925 = vadd.f32 %v9902, %v9923
  %v9926 = vadd.f32 %v9903, %v9923
  %v9927 = vadd.f32 %v9904, %v9923
  %v9928 = vadd.f32 %v9905, %v9923
  %v9929 = vadd.f32 %v9906, %v9923
  %v9930 = vadd.f32 %v9907, %v9923
  %v9931 = vadd.f32 %v9908, %v9923
  %v9932 = vadd.f32 %v9909, %v9923
  %v9933 = vadd.f32 %v9910, %v9923
  %v9934 = vadd.f32 %v9911, %v9923
  %v9935 = vadd.f32 %v9912, %v9923
  %v9936 = vadd.f32 %v9913, %v9923
  %v9937 = vadd.f32 %v9914, %v9923
  %v9938 = vadd.f32 %v9915, %v9923
  %v9939 = vadd.f32 %v9916, %v9923
  %v9940 = vadd.f32 %v9917, %v9923
  %9941 = vst.msk [vmem:[%s27] sm:$0xff] %vm104, %v9925
  %9942 = vst.msk [vmem:[%s27 + $0x8] sm:$0xff] %vm104, %v9926
  %9943 = vst.msk [vmem:[%s27 + $0x10] sm:$0xff] %vm104, %v9927
  %9944 = vst.msk [vmem:[%s27 + $0x18] sm:$0xff] %vm104, %v9928
  %9945 = vst.msk [vmem:[%s27 + $0x20] sm:$0xff] %vm104, %v9929
  %9946 = vst.msk [vmem:[%s27 + $0x28] sm:$0xff] %vm104, %v9930
  %9947 = vst.msk [vmem:[%s27 + $0x30] sm:$0xff] %vm104, %v9931
  %9948 = vst.msk [vmem:[%s27 + $0x38] sm:$0xff] %vm104, %v9932
  %9949 = vst.msk [vmem:[%s27 + $0x40] sm:$0xff] %vm104, %v9933
  %9950 = vst.msk [vmem:[%s27 + $0x48] sm:$0xff] %vm104, %v9934
  %9951 = vst.msk [vmem:[%s27 + $0x50] sm:$0xff] %vm104, %v9935
  %9952 = vst.msk [vmem:[%s27 + $0x58] sm:$0xff] %vm104, %v9936
  %9953 = vst.msk [vmem:[%s27 + $0x60] sm:$0xff] %vm104, %v9937
  %9954 = vst.msk [vmem:[%s27 + $0x68] sm:$0xff] %vm104, %v9938
  %9955 = vst.msk [vmem:[%s27 + $0x70] sm:$0xff] %vm104, %v9939
  %9956 = vst.msk [vmem:[%s27 + $0x78] sm:$0xff] %vm104, %v9940
  // Predicated region
  $region110: #{basic_layer_forward.1} parent=0 // pred_check
    _
  $region111: #{basic_layer_forward.1} parent=0 // pred_check_branch
    %9958 = sbr.rel (0) target = $region113
  $region112: #{basic_layer_forward.1} parent=0 // pred_region
    _
  $region113: #{basic_layer_forward.1} parent=0 // pred_fallthru
    _
  // Predicated region
  $region114: #{basic_layer_forward.1} parent=0 // pred_check
    _
  $region115: #{basic_layer_forward.1} parent=0 // pred_check_branch
    %9960 = sbr.rel (0) target = $region117
  $region116: #{basic_layer_forward.1} parent=0 // pred_region
    _
  $region117: #{basic_layer_forward.1} parent=0 // pred_fallthru
    _

</llo_original>
